<compile_context>
chip_gen: v7x
topology: tpu7x:2x2x1
jax: 0.10.0
libtpu: 0.0.40
codegen_flags: <defaults>
</compile_context>

<pallas_src>
import jax
import jax.numpy as jnp
from jax import lax
from jax.experimental import pallas as pl
from jax.experimental.pallas import tpu as pltpu

GROUPS_IN_NORMALIZATION = 32
EPS = 1e-5  # nn.GroupNorm default eps
LANE = 128


def _round_up(x, m):
    return (x + m - 1) // m * m


def _basic_block_gn_kernel(x_ref, w1_ref, b1_ref, g1_ref, bt1_ref,
                           w2_ref, b2_ref, g2_ref, bt2_ref, p_ref,
                           o_ref, pad_ref, slab_ref):
    # x_ref   : (1, H, W, Cp)   bf16, one batch element (unpadded spatially)
    # w*_ref  : (9*Cp, Cp)      bf16 im2col conv weights, row = tap*Cp + cin
    # b*/g*/bt*_ref : (1, Cp)   f32 conv bias / GN gamma / GN beta
    # p_ref   : (Cp, Cp)        f32 group-averaging matrix (mean = rowsum @ P)
    # o_ref   : (1, H, W, Cp)   f32 output
    # pad_ref : (H+2, W+2, Cp)  bf16 scratch: spatially padded activations
    # slab_ref: (H*W, 9*Cp)     bf16 scratch: im2col patch slab
    _, H, W, Cp = x_ref.shape
    HW = H * W

    # Zero only the 1-pixel halo; the interior is fully overwritten below.
    # Done every step so grid iterations stay independent ("parallel"-safe).
    zrow = jnp.zeros((1, W + 2, Cp), pad_ref.dtype)
    zcol = jnp.zeros((H, 1, Cp), pad_ref.dtype)
    pad_ref[0:1, :, :] = zrow
    pad_ref[H + 1:H + 2, :, :] = zrow
    pad_ref[1:1 + H, 0:1, :] = zcol
    pad_ref[1:1 + H, W + 1:W + 2, :] = zcol

    def conv3x3(w_ref, b_ref):
        # Pack the 9 shifted taps of pad_ref into one (HW, 9*Cp) slab, then do
        # a single deep-K bf16 MXU matmul with f32 accumulation.
        for kh in range(3):
            for kw in range(3):
                t = kh * 3 + kw
                slab_ref[:, t * Cp:(t + 1) * Cp] = (
                    pad_ref[kh:kh + H, kw:kw + W, :].reshape(HW, Cp))
        return jnp.dot(slab_ref[...], w_ref[...],
                       preferred_element_type=jnp.float32) + b_ref[...]

    def group_norm(y, gamma, beta):
        # y: (HW, Cp) f32.  Group stats via two (1,Cp)@(Cp,Cp) matmuls; the
        # normalization is folded into a per-channel scale/shift.
        s = jnp.sum(y, axis=0, keepdims=True)
        ss = jnp.sum(y * y, axis=0, keepdims=True)
        mean = jnp.dot(s, p_ref[...], preferred_element_type=jnp.float32)
        ex2 = jnp.dot(ss, p_ref[...], preferred_element_type=jnp.float32)
        var = jnp.maximum(ex2 - mean * mean, 0.0)      # clamp vs. cancellation
        scale = lax.rsqrt(var + EPS) * gamma
        shift = beta - mean * scale
        return y * scale + shift

    # --- conv1 -> GroupNorm -> ReLU -----------------------------------------
    pad_ref[1:1 + H, 1:1 + W, :] = x_ref[0]
    h1 = conv3x3(w1_ref, b1_ref)
    h1 = jnp.maximum(group_norm(h1, g1_ref[...], bt1_ref[...]), 0.0)

    # --- conv2 -> GroupNorm ---------------------------------------------------
    pad_ref[1:1 + H, 1:1 + W, :] = h1.reshape(H, W, Cp).astype(pad_ref.dtype)
    h2 = group_norm(conv3x3(w2_ref, b2_ref), g2_ref[...], bt2_ref[...])

    # --- identity residual add + ReLU (downsample is None) -------------------
    residual = x_ref[0].astype(jnp.float32).reshape(HW, Cp)
    out = jnp.maximum(h2 + residual, 0.0)
    o_ref[...] = out.reshape(1, H, W, Cp)


def basic_block_gn_nhwc(x_nhwc, params):
    """Forward pass of BasicBlockGN on an NHWC tensor; returns NHWC float32.

    Channels are zero-padded to a multiple of 128 internally (lane-dense).
    When chaining several blocks, call this directly to keep NHWC end-to-end
    and avoid per-block NCHW<->NHWC HBM round trips.
    """
    w1, b1, g1, bt1, w2, b2, g2, bt2 = params   # PyTorch parameter layouts
    N, H, W, C = x_nhwc.shape
    G = GROUPS_IN_NORMALIZATION
    assert C % G == 0, "GroupNorm(32, C) requires C % 32 == 0"
    cpg = C // G
    Cp = _round_up(max(C, LANE), LANE)

    def prep_w(w):
        # (Cout, Cin, 3, 3) -> (9*Cp, Cp) bf16 with row index = tap*Cp + cin.
        wt = jnp.transpose(w.astype(jnp.float32), (2, 3, 1, 0))   # (3,3,Cin,Cout)
        wt = jnp.pad(wt, ((0, 0), (0, 0), (0, Cp - C), (0, Cp - C)))
        return wt.reshape(9 * Cp, Cp).astype(jnp.bfloat16)

    def prep_c(v):
        return jnp.pad(v.astype(jnp.float32).reshape(1, C), ((0, 0), (0, Cp - C)))

    # Group-averaging matrix: (rowsum @ P)[c] = mean over channel c's group.
    # Padded channels belong to no group (zero rows/cols).
    ch = jnp.arange(Cp)
    grp = jnp.where(ch < C, ch // cpg, G)
    onehot = (grp[:, None] == jnp.arange(G)[None, :]).astype(jnp.float32)
    p_mat = (onehot @ onehot.T) / float(H * W * cpg)

    x = jnp.pad(x_nhwc.astype(jnp.bfloat16),
                ((0, 0), (0, 0), (0, 0), (0, Cp - C)))

    rep = lambda n: (0, 0)   # replicated (constant block-index) operands
    grid_spec = pltpu.PrefetchScalarGridSpec(
        num_scalar_prefetch=0,
        grid=(N,),
        in_specs=[
            pl.BlockSpec((1, H, W, Cp), lambda n: (n, 0, 0, 0)),
            pl.BlockSpec((9 * Cp, Cp), rep),
            pl.BlockSpec((1, Cp), rep),
            pl.BlockSpec((1, Cp), rep),
            pl.BlockSpec((1, Cp), rep),
            pl.BlockSpec((9 * Cp, Cp), rep),
            pl.BlockSpec((1, Cp), rep),
            pl.BlockSpec((1, Cp), rep),
            pl.BlockSpec((1, Cp), rep),
            pl.BlockSpec((Cp, Cp), rep),
        ],
        out_specs=pl.BlockSpec((1, H, W, Cp), lambda n: (n, 0, 0, 0)),
        scratch_shapes=[
            pltpu.VMEM((H + 2, W + 2, Cp), jnp.bfloat16),   # padded activations
            pltpu.VMEM((H * W, 9 * Cp), jnp.bfloat16),      # im2col slab
        ],
    )

    out = pl.pallas_call(
        _basic_block_gn_kernel,
        out_shape=jax.ShapeDtypeStruct((N, H, W, Cp), jnp.float32),
        grid_spec=grid_spec,
        compiler_params=pltpu.CompilerParams(
            # Batch elements are independent -> shard across TCs on v7x.
            dimension_semantics=("parallel",),
            # Explicit VMEM budget (headroom for weights + slab at larger C;
            # stays below v7x's 64 MiB physical VMEM).
            vmem_limit_bytes=48 * 1024 * 1024,
        ),
    )(x, prep_w(w1), prep_c(b1), prep_c(g1), prep_c(bt1),
      prep_w(w2), prep_c(b2), prep_c(g2), prep_c(bt2), p_mat)

    return out[..., :C]


def basic_block_gn(x_nchw, params):
    """NCHW wrapper matching the PyTorch module layout. x_nchw: (N, C, H, W)."""
    x = jnp.transpose(x_nchw, (0, 2, 3, 1))
    out = basic_block_gn_nhwc(x, params)
    return jnp.transpose(out, (0, 3, 1, 2))


def _ref_forward(x_nchw, params):
    """Pure-JAX reference (PyTorch BasicBlockGN with downsample=None), applying
    the same bf16 quantization to conv inputs/weights that the kernel uses."""
    w1, b1, g1, bt1, w2, b2, g2, bt2 = params
    N, C, H, W = x_nchw.shape
    G = GROUPS_IN_NORMALIZATION
    q = lambda a: a.astype(jnp.bfloat16).astype(jnp.float32)

    x = q(jnp.transpose(x_nchw, (0, 2, 3, 1)))

    def conv(h, w, b):
        wq = q(jnp.transpose(w, (2, 3, 1, 0)))   # HWIO
        y = lax.conv_general_dilated(h, wq, (1, 1), 'SAME',
                                     dimension_numbers=('NHWC', 'HWIO', 'NHWC'))
        return y + b.reshape(1, 1, 1, C)

    def gn(h, gamma, beta):
        hr = h.reshape(N, H * W, G, C // G)
        mean = hr.mean(axis=(1, 3), keepdims=True)
        var = ((hr - mean) ** 2).mean(axis=(1, 3), keepdims=True)
        hn = ((hr - mean) / jnp.sqrt(var + EPS)).reshape(N, H, W, C)
        return hn * gamma.reshape(1, 1, 1, C) + beta.reshape(1, 1, 1, C)

    h1 = jax.nn.relu(gn(conv(x, w1, b1), g1, bt1))
    out = gn(conv(q(h1), w2, b2), g2, bt2)
    out = jax.nn.relu(out + x)
    return jnp.transpose(out, (0, 3, 1, 2))


if __name__ == "__main__":
    # Smallest shapes consistent with GroupNorm(32, planes): channels = 32.
    N, C, H, W = 2, 32, 16, 16
    key = jax.random.PRNGKey(0)
    ks = jax.random.split(key, 9)

    x = jax.random.normal(ks[0], (N, C, H, W), jnp.float32)
    # Parameters in PyTorch layouts: conv weight (Cout, Cin, 3, 3), rest (C,).
    w1 = 0.05 * jax.random.normal(ks[1], (C, C, 3, 3), jnp.float32)
    b1 = 0.05 * jax.random.normal(ks[2], (C,), jnp.float32)
    g1 = 1.0 + 0.1 * jax.random.normal(ks[3], (C,), jnp.float32)
    bt1 = 0.1 * jax.random.normal(ks[4], (C,), jnp.float32)
    w2 = 0.05 * jax.random.normal(ks[5], (C, C, 3, 3), jnp.float32)
    b2 = 0.05 * jax.random.normal(ks[6], (C,), jnp.float32)
    g2 = 1.0 + 0.1 * jax.random.normal(ks[7], (C,), jnp.float32)
    bt2 = 0.1 * jax.random.normal(ks[8], (C,), jnp.float32)
    params = (w1, b1, g1, bt1, w2, b2, g2, bt2)

    out = jax.jit(basic_block_gn)(x, params)
    out = jax.block_until_ready(out)

    ref = _ref_forward(x, params)
    assert out.shape == (N, C, H, W) and out.dtype == jnp.float32
    max_err = float(jnp.max(jnp.abs(out - ref)))
    assert max_err < 5e-3, f"max_err={max_err}"

    print("KERNEL_OK")
</pallas_src>

<mosaic_0001>
module attributes {stable_mosaic.version = 11 : i64} {
  func.func @_basic_block_gn_kernel(%arg0: i32, %arg1: memref<1x16x16x128xbf16, #tpu.memory_space<vmem>>, %arg2: memref<1152x128xbf16, #tpu.memory_space<vmem>>, %arg3: memref<1x128xf32, #tpu.memory_space<vmem>>, %arg4: memref<1x128xf32, #tpu.memory_space<vmem>>, %arg5: memref<1x128xf32, #tpu.memory_space<vmem>>, %arg6: memref<1152x128xbf16, #tpu.memory_space<vmem>>, %arg7: memref<1x128xf32, #tpu.memory_space<vmem>>, %arg8: memref<1x128xf32, #tpu.memory_space<vmem>>, %arg9: memref<1x128xf32, #tpu.memory_space<vmem>>, %arg10: memref<128x128xf32, #tpu.memory_space<vmem>>, %arg11: memref<1x16x16x128xf32, #tpu.memory_space<vmem>>, %arg12: memref<18x18x128xbf16, #tpu.memory_space<vmem>>, %arg13: memref<256x1152xbf16, #tpu.memory_space<vmem>>) attributes {dimension_semantics = [#tpu.dimension_semantics<parallel>], iteration_bounds = array<i64: 2>, scalar_prefetch = 0 : i64, scratch_operands = 2 : i64, tpu.core_type = #tpu.core_type<tc>, window_params = [{transform_indices = @transform_0, window_bounds = array<i64: 1, 16, 16, 128>}, {pipeline_mode = #tpu.pipeline_mode<synchronous>, transform_indices = @transform_1, window_bounds = array<i64: 1152, 128>}, {pipeline_mode = #tpu.pipeline_mode<synchronous>, transform_indices = @transform_2, window_bounds = array<i64: 1, 128>}, {pipeline_mode = #tpu.pipeline_mode<synchronous>, transform_indices = @transform_3, window_bounds = array<i64: 1, 128>}, {pipeline_mode = #tpu.pipeline_mode<synchronous>, transform_indices = @transform_4, window_bounds = array<i64: 1, 128>}, {pipeline_mode = #tpu.pipeline_mode<synchronous>, transform_indices = @transform_5, window_bounds = array<i64: 1152, 128>}, {pipeline_mode = #tpu.pipeline_mode<synchronous>, transform_indices = @transform_6, window_bounds = array<i64: 1, 128>}, {pipeline_mode = #tpu.pipeline_mode<synchronous>, transform_indices = @transform_7, window_bounds = array<i64: 1, 128>}, {pipeline_mode = #tpu.pipeline_mode<synchronous>, transform_indices = @transform_8, window_bounds = array<i64: 1, 128>}, {pipeline_mode = #tpu.pipeline_mode<synchronous>, transform_indices = @transform_9, window_bounds = array<i64: 128, 128>}, {transform_indices = @transform_10, window_bounds = array<i64: 1, 16, 16, 128>}]} {
    %cst = arith.constant 0.000000e+00 : bf16
    %0 = vector.broadcast %cst : bf16 to vector<1x18x128xbf16>
    %cst_0 = arith.constant 0.000000e+00 : bf16
    %1 = vector.broadcast %cst_0 : bf16 to vector<16x1x128xbf16>
    %c0 = arith.constant 0 : index
    %c0_1 = arith.constant 0 : index
    %c0_2 = arith.constant 0 : index
    %2 = vector.load %arg12[%c0, %c0_1, %c0_2] : memref<18x18x128xbf16, #tpu.memory_space<vmem>>, vector<1x18x128xbf16>
    tpu.vector_store %arg12[%c0, %c0_1, %c0_2], %0 {strides = array<i32>} : memref<18x18x128xbf16, #tpu.memory_space<vmem>>, vector<1x18x128xbf16>,
    %c17 = arith.constant 17 : index
    %c0_3 = arith.constant 0 : index
    %c0_4 = arith.constant 0 : index
    %3 = vector.load %arg12[%c17, %c0_3, %c0_4] : memref<18x18x128xbf16, #tpu.memory_space<vmem>>, vector<1x18x128xbf16>
    tpu.vector_store %arg12[%c17, %c0_3, %c0_4], %0 {strides = array<i32>} : memref<18x18x128xbf16, #tpu.memory_space<vmem>>, vector<1x18x128xbf16>,
    %c1 = arith.constant 1 : index
    %c0_5 = arith.constant 0 : index
    %c0_6 = arith.constant 0 : index
    %4 = vector.load %arg12[%c1, %c0_5, %c0_6] : memref<18x18x128xbf16, #tpu.memory_space<vmem>>, vector<16x1x128xbf16>
    tpu.vector_store %arg12[%c1, %c0_5, %c0_6], %1 {strides = array<i32>} : memref<18x18x128xbf16, #tpu.memory_space<vmem>>, vector<16x1x128xbf16>,
    %c1_7 = arith.constant 1 : index
    %c17_8 = arith.constant 17 : index
    %c0_9 = arith.constant 0 : index
    %5 = vector.load %arg12[%c1_7, %c17_8, %c0_9] : memref<18x18x128xbf16, #tpu.memory_space<vmem>>, vector<16x1x128xbf16>
    tpu.vector_store %arg12[%c1_7, %c17_8, %c0_9], %1 {strides = array<i32>} : memref<18x18x128xbf16, #tpu.memory_space<vmem>>, vector<16x1x128xbf16>,
    %c0_10 = arith.constant 0 : index
    %c0_11 = arith.constant 0 : index
    %c0_12 = arith.constant 0 : index
    %c0_13 = arith.constant 0 : index
    %6 = vector.load %arg1[%c0_10, %c0_11, %c0_12, %c0_13] : memref<1x16x16x128xbf16, #tpu.memory_space<vmem>>, vector<1x16x16x128xbf16>
    %7 = vector.shape_cast %6 : vector<1x16x16x128xbf16> to vector<16x16x128xbf16>
    %c1_14 = arith.constant 1 : index
    %c1_15 = arith.constant 1 : index
    %c0_16 = arith.constant 0 : index
    %8 = vector.load %arg12[%c1_14, %c1_15, %c0_16] : memref<18x18x128xbf16, #tpu.memory_space<vmem>>, vector<16x16x128xbf16>
    tpu.vector_store %arg12[%c1_14, %c1_15, %c0_16], %7 {strides = array<i32>} : memref<18x18x128xbf16, #tpu.memory_space<vmem>>, vector<16x16x128xbf16>,
    %c0_17 = arith.constant 0 : index
    %c0_18 = arith.constant 0 : index
    %c0_19 = arith.constant 0 : index
    %9 = vector.load %arg12[%c0_17, %c0_18, %c0_19] : memref<18x18x128xbf16, #tpu.memory_space<vmem>>, vector<16x16x128xbf16>
    %10 = vector.shape_cast %9 : vector<16x16x128xbf16> to vector<256x128xbf16>
    %c0_20 = arith.constant 0 : index
    %c0_21 = arith.constant 0 : index
    %11 = vector.load %arg13[%c0_20, %c0_21] : memref<256x1152xbf16, #tpu.memory_space<vmem>>, vector<256x128xbf16>
    tpu.vector_store %arg13[%c0_20, %c0_21], %10 {strides = array<i32>} : memref<256x1152xbf16, #tpu.memory_space<vmem>>, vector<256x128xbf16>,
    %c0_22 = arith.constant 0 : index
    %c1_23 = arith.constant 1 : index
    %c0_24 = arith.constant 0 : index
    %12 = vector.load %arg12[%c0_22, %c1_23, %c0_24] : memref<18x18x128xbf16, #tpu.memory_space<vmem>>, vector<16x16x128xbf16>
    %13 = vector.shape_cast %12 : vector<16x16x128xbf16> to vector<256x128xbf16>
    %c0_25 = arith.constant 0 : index
    %c128 = arith.constant 128 : index
    %14 = vector.load %arg13[%c0_25, %c128] : memref<256x1152xbf16, #tpu.memory_space<vmem>>, vector<256x128xbf16>
    tpu.vector_store %arg13[%c0_25, %c128], %13 {strides = array<i32>} : memref<256x1152xbf16, #tpu.memory_space<vmem>>, vector<256x128xbf16>,
    %c0_26 = arith.constant 0 : index
    %c2 = arith.constant 2 : index
    %c0_27 = arith.constant 0 : index
    %15 = vector.load %arg12[%c0_26, %c2, %c0_27] : memref<18x18x128xbf16, #tpu.memory_space<vmem>>, vector<16x16x128xbf16>
    %16 = vector.shape_cast %15 : vector<16x16x128xbf16> to vector<256x128xbf16>
    %c0_28 = arith.constant 0 : index
    %c256 = arith.constant 256 : index
    %17 = vector.load %arg13[%c0_28, %c256] : memref<256x1152xbf16, #tpu.memory_space<vmem>>, vector<256x128xbf16>
    tpu.vector_store %arg13[%c0_28, %c256], %16 {strides = array<i32>} : memref<256x1152xbf16, #tpu.memory_space<vmem>>, vector<256x128xbf16>,
    %c1_29 = arith.constant 1 : index
    %c0_30 = arith.constant 0 : index
    %c0_31 = arith.constant 0 : index
    %18 = vector.load %arg12[%c1_29, %c0_30, %c0_31] : memref<18x18x128xbf16, #tpu.memory_space<vmem>>, vector<16x16x128xbf16>
    %19 = vector.shape_cast %18 : vector<16x16x128xbf16> to vector<256x128xbf16>
    %c0_32 = arith.constant 0 : index
    %c384 = arith.constant 384 : index
    %20 = vector.load %arg13[%c0_32, %c384] : memref<256x1152xbf16, #tpu.memory_space<vmem>>, vector<256x128xbf16>
    tpu.vector_store %arg13[%c0_32, %c384], %19 {strides = array<i32>} : memref<256x1152xbf16, #tpu.memory_space<vmem>>, vector<256x128xbf16>,
    %c1_33 = arith.constant 1 : index
    %c1_34 = arith.constant 1 : index
    %c0_35 = arith.constant 0 : index
    %21 = vector.load %arg12[%c1_33, %c1_34, %c0_35] : memref<18x18x128xbf16, #tpu.memory_space<vmem>>, vector<16x16x128xbf16>
    %22 = vector.shape_cast %21 : vector<16x16x128xbf16> to vector<256x128xbf16>
    %c0_36 = arith.constant 0 : index
    %c512 = arith.constant 512 : index
    %23 = vector.load %arg13[%c0_36, %c512] : memref<256x1152xbf16, #tpu.memory_space<vmem>>, vector<256x128xbf16>
    tpu.vector_store %arg13[%c0_36, %c512], %22 {strides = array<i32>} : memref<256x1152xbf16, #tpu.memory_space<vmem>>, vector<256x128xbf16>,
    %c1_37 = arith.constant 1 : index
    %c2_38 = arith.constant 2 : index
    %c0_39 = arith.constant 0 : index
    %24 = vector.load %arg12[%c1_37, %c2_38, %c0_39] : memref<18x18x128xbf16, #tpu.memory_space<vmem>>, vector<16x16x128xbf16>
    %25 = vector.shape_cast %24 : vector<16x16x128xbf16> to vector<256x128xbf16>
    %c0_40 = arith.constant 0 : index
    %c640 = arith.constant 640 : index
    %26 = vector.load %arg13[%c0_40, %c640] : memref<256x1152xbf16, #tpu.memory_space<vmem>>, vector<256x128xbf16>
    tpu.vector_store %arg13[%c0_40, %c640], %25 {strides = array<i32>} : memref<256x1152xbf16, #tpu.memory_space<vmem>>, vector<256x128xbf16>,
    %c2_41 = arith.constant 2 : index
    %c0_42 = arith.constant 0 : index
    %c0_43 = arith.constant 0 : index
    %27 = vector.load %arg12[%c2_41, %c0_42, %c0_43] : memref<18x18x128xbf16, #tpu.memory_space<vmem>>, vector<16x16x128xbf16>
    %28 = vector.shape_cast %27 : vector<16x16x128xbf16> to vector<256x128xbf16>
    %c0_44 = arith.constant 0 : index
    %c768 = arith.constant 768 : index
    %29 = vector.load %arg13[%c0_44, %c768] : memref<256x1152xbf16, #tpu.memory_space<vmem>>, vector<256x128xbf16>
    tpu.vector_store %arg13[%c0_44, %c768], %28 {strides = array<i32>} : memref<256x1152xbf16, #tpu.memory_space<vmem>>, vector<256x128xbf16>,
    %c2_45 = arith.constant 2 : index
    %c1_46 = arith.constant 1 : index
    %c0_47 = arith.constant 0 : index
    %30 = vector.load %arg12[%c2_45, %c1_46, %c0_47] : memref<18x18x128xbf16, #tpu.memory_space<vmem>>, vector<16x16x128xbf16>
    %31 = vector.shape_cast %30 : vector<16x16x128xbf16> to vector<256x128xbf16>
    %c0_48 = arith.constant 0 : index
    %c896 = arith.constant 896 : index
    %32 = vector.load %arg13[%c0_48, %c896] : memref<256x1152xbf16, #tpu.memory_space<vmem>>, vector<256x128xbf16>
    tpu.vector_store %arg13[%c0_48, %c896], %31 {strides = array<i32>} : memref<256x1152xbf16, #tpu.memory_space<vmem>>, vector<256x128xbf16>,
    %c2_49 = arith.constant 2 : index
    %c2_50 = arith.constant 2 : index
    %c0_51 = arith.constant 0 : index
    %33 = vector.load %arg12[%c2_49, %c2_50, %c0_51] : memref<18x18x128xbf16, #tpu.memory_space<vmem>>, vector<16x16x128xbf16>
    %34 = vector.shape_cast %33 : vector<16x16x128xbf16> to vector<256x128xbf16>
    %c0_52 = arith.constant 0 : index
    %c1024 = arith.constant 1024 : index
    %35 = vector.load %arg13[%c0_52, %c1024] : memref<256x1152xbf16, #tpu.memory_space<vmem>>, vector<256x128xbf16>
    tpu.vector_store %arg13[%c0_52, %c1024], %34 {strides = array<i32>} : memref<256x1152xbf16, #tpu.memory_space<vmem>>, vector<256x128xbf16>,
    %c0_53 = arith.constant 0 : index
    %c0_54 = arith.constant 0 : index
    %36 = vector.load %arg13[%c0_53, %c0_54] : memref<256x1152xbf16, #tpu.memory_space<vmem>>, vector<256x1152xbf16>
    %c0_55 = arith.constant 0 : index
    %c0_56 = arith.constant 0 : index
    %37 = vector.load %arg2[%c0_55, %c0_56] : memref<1152x128xbf16, #tpu.memory_space<vmem>>, vector<1152x128xbf16>
    %cst_57 = arith.constant dense<0.000000e+00> : vector<256x128xf32>
    %38 = tpu.matmul %36, %37, %cst_57 {dimension_numbers = #tpu.dot_dimension_numbers<[1], [0], [0], [1], [0, 0, 1, 1], [], []>} : vector<256x1152xbf16>, vector<1152x128xbf16>, vector<256x128xf32> -> vector<256x128xf32>
    %c0_58 = arith.constant 0 : index
    %c0_59 = arith.constant 0 : index
    %39 = vector.load %arg3[%c0_58, %c0_59] : memref<1x128xf32, #tpu.memory_space<vmem>>, vector<1x128xf32>
    %40 = vector.broadcast %39 : vector<1x128xf32> to vector<256x128xf32>
    %41 = arith.addf %38, %40 : vector<256x128xf32>
    %c0_60 = arith.constant 0 : index
    %c0_61 = arith.constant 0 : index
    %42 = vector.load %arg4[%c0_60, %c0_61] : memref<1x128xf32, #tpu.memory_space<vmem>>, vector<1x128xf32>
    %c0_62 = arith.constant 0 : index
    %c0_63 = arith.constant 0 : index
    %43 = vector.load %arg5[%c0_62, %c0_63] : memref<1x128xf32, #tpu.memory_space<vmem>>, vector<1x128xf32>
    %cst_64 = arith.constant dense<0.000000e+00> : vector<128xf32>
    %44 = vector.multi_reduction <add>, %41, %cst_64 [0] : vector<256x128xf32> to vector<128xf32>
    %45 = vector.shape_cast %44 : vector<128xf32> to vector<1x128xf32>
    %46 = arith.mulf %41, %41 : vector<256x128xf32>
    %cst_65 = arith.constant dense<0.000000e+00> : vector<128xf32>
    %47 = vector.multi_reduction <add>, %46, %cst_65 [0] : vector<256x128xf32> to vector<128xf32>
    %48 = vector.shape_cast %47 : vector<128xf32> to vector<1x128xf32>
    %c0_66 = arith.constant 0 : index
    %c0_67 = arith.constant 0 : index
    %49 = vector.load %arg10[%c0_66, %c0_67] : memref<128x128xf32, #tpu.memory_space<vmem>>, vector<128x128xf32>
    %cst_68 = arith.constant dense<0.000000e+00> : vector<1x128xf32>
    %50 = tpu.matmul %45, %49, %cst_68 {dimension_numbers = #tpu.dot_dimension_numbers<[1], [0], [0], [1], [0, 0, 1, 1], [], []>} : vector<1x128xf32>, vector<128x128xf32>, vector<1x128xf32> -> vector<1x128xf32>
    %c0_69 = arith.constant 0 : index
    %c0_70 = arith.constant 0 : index
    %51 = vector.load %arg10[%c0_69, %c0_70] : memref<128x128xf32, #tpu.memory_space<vmem>>, vector<128x128xf32>
    %cst_71 = arith.constant dense<0.000000e+00> : vector<1x128xf32>
    %52 = tpu.matmul %48, %51, %cst_71 {dimension_numbers = #tpu.dot_dimension_numbers<[1], [0], [0], [1], [0, 0, 1, 1], [], []>} : vector<1x128xf32>, vector<128x128xf32>, vector<1x128xf32> -> vector<1x128xf32>
    %53 = arith.mulf %50, %50 : vector<1x128xf32>
    %54 = arith.subf %52, %53 : vector<1x128xf32>
    %cst_72 = arith.constant 0.000000e+00 : f32
    %55 = vector.broadcast %cst_72 : f32 to vector<1x128xf32>
    %56 = arith.maximumf %54, %55 : vector<1x128xf32>
    %cst_73 = arith.constant 9.99999974E-6 : f32
    %57 = vector.broadcast %cst_73 : f32 to vector<1x128xf32>
    %58 = arith.addf %56, %57 : vector<1x128xf32>
    %59 = math.rsqrt %58 : vector<1x128xf32>
    %60 = arith.mulf %59, %42 : vector<1x128xf32>
    %61 = arith.mulf %50, %60 : vector<1x128xf32>
    %62 = arith.subf %43, %61 : vector<1x128xf32>
    %63 = vector.broadcast %60 : vector<1x128xf32> to vector<256x128xf32>
    %64 = arith.mulf %41, %63 : vector<256x128xf32>
    %65 = vector.broadcast %62 : vector<1x128xf32> to vector<256x128xf32>
    %66 = arith.addf %64, %65 : vector<256x128xf32>
    %cst_74 = arith.constant 0.000000e+00 : f32
    %67 = vector.broadcast %cst_74 : f32 to vector<256x128xf32>
    %68 = arith.maximumf %66, %67 : vector<256x128xf32>
    %69 = vector.shape_cast %68 : vector<256x128xf32> to vector<16x16x128xf32>
    %70 = arith.truncf %69 : vector<16x16x128xf32> to vector<16x16x128xbf16>
    %c1_75 = arith.constant 1 : index
    %c1_76 = arith.constant 1 : index
    %c0_77 = arith.constant 0 : index
    %71 = vector.load %arg12[%c1_75, %c1_76, %c0_77] : memref<18x18x128xbf16, #tpu.memory_space<vmem>>, vector<16x16x128xbf16>
    tpu.vector_store %arg12[%c1_75, %c1_76, %c0_77], %70 {strides = array<i32>} : memref<18x18x128xbf16, #tpu.memory_space<vmem>>, vector<16x16x128xbf16>,
    %c0_78 = arith.constant 0 : index
    %c0_79 = arith.constant 0 : index
    %c0_80 = arith.constant 0 : index
    %72 = vector.load %arg12[%c0_78, %c0_79, %c0_80] : memref<18x18x128xbf16, #tpu.memory_space<vmem>>, vector<16x16x128xbf16>
    %73 = vector.shape_cast %72 : vector<16x16x128xbf16> to vector<256x128xbf16>
    %c0_81 = arith.constant 0 : index
    %c0_82 = arith.constant 0 : index
    %74 = vector.load %arg13[%c0_81, %c0_82] : memref<256x1152xbf16, #tpu.memory_space<vmem>>, vector<256x128xbf16>
    tpu.vector_store %arg13[%c0_81, %c0_82], %73 {strides = array<i32>} : memref<256x1152xbf16, #tpu.memory_space<vmem>>, vector<256x128xbf16>,
    %c0_83 = arith.constant 0 : index
    %c1_84 = arith.constant 1 : index
    %c0_85 = arith.constant 0 : index
    %75 = vector.load %arg12[%c0_83, %c1_84, %c0_85] : memref<18x18x128xbf16, #tpu.memory_space<vmem>>, vector<16x16x128xbf16>
    %76 = vector.shape_cast %75 : vector<16x16x128xbf16> to vector<256x128xbf16>
    %c0_86 = arith.constant 0 : index
    %c128_87 = arith.constant 128 : index
    %77 = vector.load %arg13[%c0_86, %c128_87] : memref<256x1152xbf16, #tpu.memory_space<vmem>>, vector<256x128xbf16>
    tpu.vector_store %arg13[%c0_86, %c128_87], %76 {strides = array<i32>} : memref<256x1152xbf16, #tpu.memory_space<vmem>>, vector<256x128xbf16>,
    %c0_88 = arith.constant 0 : index
    %c2_89 = arith.constant 2 : index
    %c0_90 = arith.constant 0 : index
    %78 = vector.load %arg12[%c0_88, %c2_89, %c0_90] : memref<18x18x128xbf16, #tpu.memory_space<vmem>>, vector<16x16x128xbf16>
    %79 = vector.shape_cast %78 : vector<16x16x128xbf16> to vector<256x128xbf16>
    %c0_91 = arith.constant 0 : index
    %c256_92 = arith.constant 256 : index
    %80 = vector.load %arg13[%c0_91, %c256_92] : memref<256x1152xbf16, #tpu.memory_space<vmem>>, vector<256x128xbf16>
    tpu.vector_store %arg13[%c0_91, %c256_92], %79 {strides = array<i32>} : memref<256x1152xbf16, #tpu.memory_space<vmem>>, vector<256x128xbf16>,
    %c1_93 = arith.constant 1 : index
    %c0_94 = arith.constant 0 : index
    %c0_95 = arith.constant 0 : index
    %81 = vector.load %arg12[%c1_93, %c0_94, %c0_95] : memref<18x18x128xbf16, #tpu.memory_space<vmem>>, vector<16x16x128xbf16>
    %82 = vector.shape_cast %81 : vector<16x16x128xbf16> to vector<256x128xbf16>
    %c0_96 = arith.constant 0 : index
    %c384_97 = arith.constant 384 : index
    %83 = vector.load %arg13[%c0_96, %c384_97] : memref<256x1152xbf16, #tpu.memory_space<vmem>>, vector<256x128xbf16>
    tpu.vector_store %arg13[%c0_96, %c384_97], %82 {strides = array<i32>} : memref<256x1152xbf16, #tpu.memory_space<vmem>>, vector<256x128xbf16>,
    %c1_98 = arith.constant 1 : index
    %c1_99 = arith.constant 1 : index
    %c0_100 = arith.constant 0 : index
    %84 = vector.load %arg12[%c1_98, %c1_99, %c0_100] : memref<18x18x128xbf16, #tpu.memory_space<vmem>>, vector<16x16x128xbf16>
    %85 = vector.shape_cast %84 : vector<16x16x128xbf16> to vector<256x128xbf16>
    %c0_101 = arith.constant 0 : index
    %c512_102 = arith.constant 512 : index
    %86 = vector.load %arg13[%c0_101, %c512_102] : memref<256x1152xbf16, #tpu.memory_space<vmem>>, vector<256x128xbf16>
    tpu.vector_store %arg13[%c0_101, %c512_102], %85 {strides = array<i32>} : memref<256x1152xbf16, #tpu.memory_space<vmem>>, vector<256x128xbf16>,
    %c1_103 = arith.constant 1 : index
    %c2_104 = arith.constant 2 : index
    %c0_105 = arith.constant 0 : index
    %87 = vector.load %arg12[%c1_103, %c2_104, %c0_105] : memref<18x18x128xbf16, #tpu.memory_space<vmem>>, vector<16x16x128xbf16>
    %88 = vector.shape_cast %87 : vector<16x16x128xbf16> to vector<256x128xbf16>
    %c0_106 = arith.constant 0 : index
    %c640_107 = arith.constant 640 : index
    %89 = vector.load %arg13[%c0_106, %c640_107] : memref<256x1152xbf16, #tpu.memory_space<vmem>>, vector<256x128xbf16>
    tpu.vector_store %arg13[%c0_106, %c640_107], %88 {strides = array<i32>} : memref<256x1152xbf16, #tpu.memory_space<vmem>>, vector<256x128xbf16>,
    %c2_108 = arith.constant 2 : index
    %c0_109 = arith.constant 0 : index
    %c0_110 = arith.constant 0 : index
    %90 = vector.load %arg12[%c2_108, %c0_109, %c0_110] : memref<18x18x128xbf16, #tpu.memory_space<vmem>>, vector<16x16x128xbf16>
    %91 = vector.shape_cast %90 : vector<16x16x128xbf16> to vector<256x128xbf16>
    %c0_111 = arith.constant 0 : index
    %c768_112 = arith.constant 768 : index
    %92 = vector.load %arg13[%c0_111, %c768_112] : memref<256x1152xbf16, #tpu.memory_space<vmem>>, vector<256x128xbf16>
    tpu.vector_store %arg13[%c0_111, %c768_112], %91 {strides = array<i32>} : memref<256x1152xbf16, #tpu.memory_space<vmem>>, vector<256x128xbf16>,
    %c2_113 = arith.constant 2 : index
    %c1_114 = arith.constant 1 : index
    %c0_115 = arith.constant 0 : index
    %93 = vector.load %arg12[%c2_113, %c1_114, %c0_115] : memref<18x18x128xbf16, #tpu.memory_space<vmem>>, vector<16x16x128xbf16>
    %94 = vector.shape_cast %93 : vector<16x16x128xbf16> to vector<256x128xbf16>
    %c0_116 = arith.constant 0 : index
    %c896_117 = arith.constant 896 : index
    %95 = vector.load %arg13[%c0_116, %c896_117] : memref<256x1152xbf16, #tpu.memory_space<vmem>>, vector<256x128xbf16>
    tpu.vector_store %arg13[%c0_116, %c896_117], %94 {strides = array<i32>} : memref<256x1152xbf16, #tpu.memory_space<vmem>>, vector<256x128xbf16>,
    %c2_118 = arith.constant 2 : index
    %c2_119 = arith.constant 2 : index
    %c0_120 = arith.constant 0 : index
    %96 = vector.load %arg12[%c2_118, %c2_119, %c0_120] : memref<18x18x128xbf16, #tpu.memory_space<vmem>>, vector<16x16x128xbf16>
    %97 = vector.shape_cast %96 : vector<16x16x128xbf16> to vector<256x128xbf16>
    %c0_121 = arith.constant 0 : index
    %c1024_122 = arith.constant 1024 : index
    %98 = vector.load %arg13[%c0_121, %c1024_122] : memref<256x1152xbf16, #tpu.memory_space<vmem>>, vector<256x128xbf16>
    tpu.vector_store %arg13[%c0_121, %c1024_122], %97 {strides = array<i32>} : memref<256x1152xbf16, #tpu.memory_space<vmem>>, vector<256x128xbf16>,
    %c0_123 = arith.constant 0 : index
    %c0_124 = arith.constant 0 : index
    %99 = vector.load %arg13[%c0_123, %c0_124] : memref<256x1152xbf16, #tpu.memory_space<vmem>>, vector<256x1152xbf16>
    %c0_125 = arith.constant 0 : index
    %c0_126 = arith.constant 0 : index
    %100 = vector.load %arg6[%c0_125, %c0_126] : memref<1152x128xbf16, #tpu.memory_space<vmem>>, vector<1152x128xbf16>
    %cst_127 = arith.constant dense<0.000000e+00> : vector<256x128xf32>
    %101 = tpu.matmul %99, %100, %cst_127 {dimension_numbers = #tpu.dot_dimension_numbers<[1], [0], [0], [1], [0, 0, 1, 1], [], []>} : vector<256x1152xbf16>, vector<1152x128xbf16>, vector<256x128xf32> -> vector<256x128xf32>
    %c0_128 = arith.constant 0 : index
    %c0_129 = arith.constant 0 : index
    %102 = vector.load %arg7[%c0_128, %c0_129] : memref<1x128xf32, #tpu.memory_space<vmem>>, vector<1x128xf32>
    %103 = vector.broadcast %102 : vector<1x128xf32> to vector<256x128xf32>
    %104 = arith.addf %101, %103 : vector<256x128xf32>
    %c0_130 = arith.constant 0 : index
    %c0_131 = arith.constant 0 : index
    %105 = vector.load %arg8[%c0_130, %c0_131] : memref<1x128xf32, #tpu.memory_space<vmem>>, vector<1x128xf32>
    %c0_132 = arith.constant 0 : index
    %c0_133 = arith.constant 0 : index
    %106 = vector.load %arg9[%c0_132, %c0_133] : memref<1x128xf32, #tpu.memory_space<vmem>>, vector<1x128xf32>
    %cst_134 = arith.constant dense<0.000000e+00> : vector<128xf32>
    %107 = vector.multi_reduction <add>, %104, %cst_134 [0] : vector<256x128xf32> to vector<128xf32>
    %108 = vector.shape_cast %107 : vector<128xf32> to vector<1x128xf32>
    %109 = arith.mulf %104, %104 : vector<256x128xf32>
    %cst_135 = arith.constant dense<0.000000e+00> : vector<128xf32>
    %110 = vector.multi_reduction <add>, %109, %cst_135 [0] : vector<256x128xf32> to vector<128xf32>
    %111 = vector.shape_cast %110 : vector<128xf32> to vector<1x128xf32>
    %c0_136 = arith.constant 0 : index
    %c0_137 = arith.constant 0 : index
    %112 = vector.load %arg10[%c0_136, %c0_137] : memref<128x128xf32, #tpu.memory_space<vmem>>, vector<128x128xf32>
    %cst_138 = arith.constant dense<0.000000e+00> : vector<1x128xf32>
    %113 = tpu.matmul %108, %112, %cst_138 {dimension_numbers = #tpu.dot_dimension_numbers<[1], [0], [0], [1], [0, 0, 1, 1], [], []>} : vector<1x128xf32>, vector<128x128xf32>, vector<1x128xf32> -> vector<1x128xf32>
    %c0_139 = arith.constant 0 : index
    %c0_140 = arith.constant 0 : index
    %114 = vector.load %arg10[%c0_139, %c0_140] : memref<128x128xf32, #tpu.memory_space<vmem>>, vector<128x128xf32>
    %cst_141 = arith.constant dense<0.000000e+00> : vector<1x128xf32>
    %115 = tpu.matmul %111, %114, %cst_141 {dimension_numbers = #tpu.dot_dimension_numbers<[1], [0], [0], [1], [0, 0, 1, 1], [], []>} : vector<1x128xf32>, vector<128x128xf32>, vector<1x128xf32> -> vector<1x128xf32>
    %116 = arith.mulf %113, %113 : vector<1x128xf32>
    %117 = arith.subf %115, %116 : vector<1x128xf32>
    %cst_142 = arith.constant 0.000000e+00 : f32
    %118 = vector.broadcast %cst_142 : f32 to vector<1x128xf32>
    %119 = arith.maximumf %117, %118 : vector<1x128xf32>
    %cst_143 = arith.constant 9.99999974E-6 : f32
    %120 = vector.broadcast %cst_143 : f32 to vector<1x128xf32>
    %121 = arith.addf %119, %120 : vector<1x128xf32>
    %122 = math.rsqrt %121 : vector<1x128xf32>
    %123 = arith.mulf %122, %105 : vector<1x128xf32>
    %124 = arith.mulf %113, %123 : vector<1x128xf32>
    %125 = arith.subf %106, %124 : vector<1x128xf32>
    %126 = vector.broadcast %123 : vector<1x128xf32> to vector<256x128xf32>
    %127 = arith.mulf %104, %126 : vector<256x128xf32>
    %128 = vector.broadcast %125 : vector<1x128xf32> to vector<256x128xf32>
    %129 = arith.addf %127, %128 : vector<256x128xf32>
    %c0_144 = arith.constant 0 : index
    %c0_145 = arith.constant 0 : index
    %c0_146 = arith.constant 0 : index
    %c0_147 = arith.constant 0 : index
    %130 = vector.load %arg1[%c0_144, %c0_145, %c0_146, %c0_147] : memref<1x16x16x128xbf16, #tpu.memory_space<vmem>>, vector<1x16x16x128xbf16>
    %131 = vector.shape_cast %130 : vector<1x16x16x128xbf16> to vector<16x16x128xbf16>
    %132 = arith.extf %131 : vector<16x16x128xbf16> to vector<16x16x128xf32>
    %133 = vector.shape_cast %132 : vector<16x16x128xf32> to vector<256x128xf32>
    %134 = arith.addf %129, %133 : vector<256x128xf32>
    %cst_148 = arith.constant 0.000000e+00 : f32
    %135 = vector.broadcast %cst_148 : f32 to vector<256x128xf32>
    %136 = arith.maximumf %134, %135 : vector<256x128xf32>
    %137 = vector.shape_cast %136 : vector<256x128xf32> to vector<1x16x16x128xf32>
    %c0_149 = arith.constant 0 : index
    %c0_150 = arith.constant 0 : index
    %c0_151 = arith.constant 0 : index
    %c0_152 = arith.constant 0 : index
    %138 = vector.load %arg11[%c0_149, %c0_150, %c0_151, %c0_152] : memref<1x16x16x128xf32, #tpu.memory_space<vmem>>, vector<1x16x16x128xf32>
    tpu.vector_store %arg11[%c0_149, %c0_150, %c0_151, %c0_152], %137 {strides = array<i32>} : memref<1x16x16x128xf32, #tpu.memory_space<vmem>>, vector<1x16x16x128xf32>,
    return
  }
  func.func @transform_0(%arg0: i32) -> (i32, i32, i32, i32) {
    %c0_i32 = arith.constant 0 : i32
    %c0_i32_0 = arith.constant 0 : i32
    %c0_i32_1 = arith.constant 0 : i32
    %c0_i32_2 = arith.constant 0 : i32
    return %arg0, %c0_i32, %c0_i32_0, %c0_i32_1 : i32, i32, i32, i32
  }
  func.func @transform_1(%arg0: i32) -> (i32, i32) {
    %c0_i32 = arith.constant 0 : i32
    %c0_i32_0 = arith.constant 0 : i32
    %c0_i32_1 = arith.constant 0 : i32
    return %c0_i32, %c0_i32_0 : i32, i32
  }
  func.func @transform_2(%arg0: i32) -> (i32, i32) {
    %c0_i32 = arith.constant 0 : i32
    %c0_i32_0 = arith.constant 0 : i32
    %c0_i32_1 = arith.constant 0 : i32
    return %c0_i32, %c0_i32_0 : i32, i32
  }
  func.func @transform_3(%arg0: i32) -> (i32, i32) {
    %c0_i32 = arith.constant 0 : i32
    %c0_i32_0 = arith.constant 0 : i32
    %c0_i32_1 = arith.constant 0 : i32
    return %c0_i32, %c0_i32_0 : i32, i32
  }
  func.func @transform_4(%arg0: i32) -> (i32, i32) {
    %c0_i32 = arith.constant 0 : i32
    %c0_i32_0 = arith.constant 0 : i32
    %c0_i32_1 = arith.constant 0 : i32
    return %c0_i32, %c0_i32_0 : i32, i32
  }
  func.func @transform_5(%arg0: i32) -> (i32, i32) {
    %c0_i32 = arith.constant 0 : i32
    %c0_i32_0 = arith.constant 0 : i32
    %c0_i32_1 = arith.constant 0 : i32
    return %c0_i32, %c0_i32_0 : i32, i32
  }
  func.func @transform_6(%arg0: i32) -> (i32, i32) {
    %c0_i32 = arith.constant 0 : i32
    %c0_i32_0 = arith.constant 0 : i32
    %c0_i32_1 = arith.constant 0 : i32
    return %c0_i32, %c0_i32_0 : i32, i32
  }
  func.func @transform_7(%arg0: i32) -> (i32, i32) {
    %c0_i32 = arith.constant 0 : i32
    %c0_i32_0 = arith.constant 0 : i32
    %c0_i32_1 = arith.constant 0 : i32
    return %c0_i32, %c0_i32_0 : i32, i32
  }
  func.func @transform_8(%arg0: i32) -> (i32, i32) {
    %c0_i32 = arith.constant 0 : i32
    %c0_i32_0 = arith.constant 0 : i32
    %c0_i32_1 = arith.constant 0 : i32
    return %c0_i32, %c0_i32_0 : i32, i32
  }
  func.func @transform_9(%arg0: i32) -> (i32, i32) {
    %c0_i32 = arith.constant 0 : i32
    %c0_i32_0 = arith.constant 0 : i32
    %c0_i32_1 = arith.constant 0 : i32
    return %c0_i32, %c0_i32_0 : i32, i32
  }
  func.func @transform_10(%arg0: i32) -> (i32, i32, i32, i32) {
    %c0_i32 = arith.constant 0 : i32
    %c0_i32_0 = arith.constant 0 : i32
    %c0_i32_1 = arith.constant 0 : i32
    %c0_i32_2 = arith.constant 0 : i32
    return %arg0, %c0_i32, %c0_i32_0, %c0_i32_1 : i32, i32, i32, i32
  }
}

</mosaic_0001>

<llo_original>
// kernel: basic_block_gn.1
$region0: #{basic_block_gn.1}
  #allocation0 [shape = 'u32[]', space=smem, size = 0x4, offset = 0x4, fixed_abs, tag = 'smem constant byte address 0x4 - core index']
  #allocation1 [shape = 'u32[144,128]{1,0:T(1,128)}', space=vmem, size = 0x12000, scoped, tag = 'internal scratch']
  #allocation2 [shape = 'bf16[18,18,128]{2,1,0:T(8,128)(2,1)}', space=vmem, size = 0x1b000, scoped, tag = 'scratch operand']
  #allocation3 [shape = 'bf16[256,1152]{1,0:T(16,128)(2,1)}', space=vmem, size = 0x90000, scoped, tag = 'scratch operand']
  %s0 = inlined_call_operand.vmem [shape: bf16[2,16,16,128], index: 0, kind: input, shape index: {}]
  %s1 = inlined_call_operand.vmem [shape: bf16[1152,128], index: 1, kind: input, shape index: {}]
  %s2 = inlined_call_operand.vmem [shape: f32[1,128], index: 2, kind: input, shape index: {}]
  %s3 = inlined_call_operand.vmem [shape: f32[1,128], index: 3, kind: input, shape index: {}]
  %s4 = inlined_call_operand.vmem [shape: f32[1,128], index: 4, kind: input, shape index: {}]
  %s5 = inlined_call_operand.vmem [shape: bf16[1152,128], index: 5, kind: input, shape index: {}]
  %s6 = inlined_call_operand.vmem [shape: f32[1,128], index: 6, kind: input, shape index: {}]
  %s7 = inlined_call_operand.vmem [shape: f32[1,128], index: 7, kind: input, shape index: {}]
  %s8 = inlined_call_operand.vmem [shape: f32[1,128], index: 8, kind: input, shape index: {}]
  %s9 = inlined_call_operand.vmem [shape: f32[128,128], index: 9, kind: input, shape index: {}]
  %s10 = inlined_call_operand.vmem [shape: f32[2,16,16,128], index: 10, kind: output, shape index: {}]
  %s11 = sld [smem:[#allocation0]]
  $region73: #{basic_block_gn.1} parent=0
    _
  %s13 = ssub.s32 1, %s11
  %s14 = scalar_select 0, %s13, %s11
  loop: start=0, step=1, limit=4
  $region2: #{basic_block_gn.1} parent=0 // loop_pre_header
    _
  $region3: #{basic_block_gn.1} parent=0 // loop_header
    %s16 = sphi 0, %s20
    %p17 = scmp.ge.s32.totalorder %s16, 4
    %s26 = sphi 0, %s28
    %s29 = sphi 0, %s26
    %s30 = sphi 0, %s29
    %s46 = sphi 0, %s30
    %s50 = sphi 0, %s50
    %s52 = sphi 0, %s50
    %s53 = sphi 0, %s52
    %s67 = sphi 0, %s53
    %s71 = sphi 0, %s71
    %s73 = sphi 0, %s71
    %s74 = sphi 0, %s73
    %s88 = sphi 0, %s74
    %s92 = sphi 0, %s92
    %s94 = sphi 0, %s92
    %s95 = sphi 0, %s94
    %s109 = sphi 0, %s95
    %s113 = sphi 0, %s113
    %s115 = sphi 0, %s113
    %s116 = sphi 0, %s115
    %s130 = sphi 0, %s116
    %s134 = sphi 0, %s134
    %s136 = sphi 0, %s134
    %s137 = sphi 0, %s136
    %s151 = sphi 0, %s137
    %s155 = sphi 0, %s155
    %s157 = sphi 0, %s155
    %s158 = sphi 0, %s157
    %s172 = sphi 0, %s158
    %s176 = sphi 0, %s176
    %s178 = sphi 0, %s176
    %s179 = sphi 0, %s178
    %s193 = sphi 0, %s179
    %s197 = sphi 0, %s197
    %s199 = sphi 0, %s197
    %s200 = sphi 0, %s199
    %s214 = sphi 0, %s200
    %s218 = sphi 0, %s218
    %s220 = sphi 0, %s218
    %s221 = sphi 0, %s220
    %s235 = sphi 0, %s221
    %s241 = sphi 0, %s243
    %s244 = sphi 0, %s241
    %s245 = sphi 0, %s244
    %s261 = sphi 0, %s245
  $region4: #{basic_block_gn.1} parent=0 // loop_header_branch
    %19 = sbr.rel (%p17) target = $region8
  $region5: #{basic_block_gn.1} parent=0 // loop_body
    %s21 = ssub.s32 %s16, 1
    %s22 = ssub.s32 %s16, 2
    %s23 = sadd.s32 %s16, 1
    %s24 = ssub.s32 %s16, %s23
    %p25 = scmp.eq.s32.totalorder %s24, 0
    %s27 = sadd.s32 %s26, 1
    %s28 = scalar_select %p25, %s26, %s27
    %p31 = pneg %p25
    %p32 = scmp.eq.s32.totalorder %s16, 1
    %p33 = por %p31, %p32
    %p34 = scmp.ne.s32.totalorder %s26, %s29
    %p35 = scmp.eq.s32.totalorder %s16, 0
    %p36 = por %p34, %p35
    %p37 = scmp.ne.s32.totalorder %s26, %s29
    %p38 = scmp.eq.s32.totalorder %s21, 1
    %p39 = por %p37, %p38
    %p40 = scmp.ne.s32.totalorder %s29, %s30
    %p41 = scmp.eq.s32.totalorder %s21, 0
    %p42 = por %p40, %p41
    %p43 = scmp.ne.s32.totalorder %s29, %s30
    %p44 = scmp.eq.s32.totalorder %s22, 1
    %p45 = por %p43, %p44
    %p47 = scmp.ne.s32.totalorder %s30, %s46
    %p48 = scmp.eq.s32.totalorder %s22, 0
    %p49 = por %p47, %p48
    %s51 = sadd.s32 %s50, 1
    %p54 = scmp.eq.s32.totalorder %s16, 1
    %p55 = scmp.ne.s32.totalorder %s50, %s52
    %p56 = scmp.eq.s32.totalorder %s16, 0
    %p57 = por %p55, %p56
    %p58 = scmp.ne.s32.totalorder %s50, %s52
    %p59 = scmp.eq.s32.totalorder %s21, 1
    %p60 = por %p58, %p59
    %p61 = scmp.ne.s32.totalorder %s52, %s53
    %p62 = scmp.eq.s32.totalorder %s21, 0
    %p63 = por %p61, %p62
    %p64 = scmp.ne.s32.totalorder %s52, %s53
    %p65 = scmp.eq.s32.totalorder %s22, 1
    %p66 = por %p64, %p65
    %p68 = scmp.ne.s32.totalorder %s53, %s67
    %p69 = scmp.eq.s32.totalorder %s22, 0
    %p70 = por %p68, %p69
    %s72 = sadd.s32 %s71, 1
    %p75 = scmp.eq.s32.totalorder %s16, 1
    %p76 = scmp.ne.s32.totalorder %s71, %s73
    %p77 = scmp.eq.s32.totalorder %s16, 0
    %p78 = por %p76, %p77
    %p79 = scmp.ne.s32.totalorder %s71, %s73
    %p80 = scmp.eq.s32.totalorder %s21, 1
    %p81 = por %p79, %p80
    %p82 = scmp.ne.s32.totalorder %s73, %s74
    %p83 = scmp.eq.s32.totalorder %s21, 0
    %p84 = por %p82, %p83
    %p85 = scmp.ne.s32.totalorder %s73, %s74
    %p86 = scmp.eq.s32.totalorder %s22, 1
    %p87 = por %p85, %p86
    %p89 = scmp.ne.s32.totalorder %s74, %s88
    %p90 = scmp.eq.s32.totalorder %s22, 0
    %p91 = por %p89, %p90
    %s93 = sadd.s32 %s92, 1
    %p96 = scmp.eq.s32.totalorder %s16, 1
    %p97 = scmp.ne.s32.totalorder %s92, %s94
    %p98 = scmp.eq.s32.totalorder %s16, 0
    %p99 = por %p97, %p98
    %p100 = scmp.ne.s32.totalorder %s92, %s94
    %p101 = scmp.eq.s32.totalorder %s21, 1
    %p102 = por %p100, %p101
    %p103 = scmp.ne.s32.totalorder %s94, %s95
    %p104 = scmp.eq.s32.totalorder %s21, 0
    %p105 = por %p103, %p104
    %p106 = scmp.ne.s32.totalorder %s94, %s95
    %p107 = scmp.eq.s32.totalorder %s22, 1
    %p108 = por %p106, %p107
    %p110 = scmp.ne.s32.totalorder %s95, %s109
    %p111 = scmp.eq.s32.totalorder %s22, 0
    %p112 = por %p110, %p111
    %s114 = sadd.s32 %s113, 1
    %p117 = scmp.eq.s32.totalorder %s16, 1
    %p118 = scmp.ne.s32.totalorder %s113, %s115
    %p119 = scmp.eq.s32.totalorder %s16, 0
    %p120 = por %p118, %p119
    %p121 = scmp.ne.s32.totalorder %s113, %s115
    %p122 = scmp.eq.s32.totalorder %s21, 1
    %p123 = por %p121, %p122
    %p124 = scmp.ne.s32.totalorder %s115, %s116
    %p125 = scmp.eq.s32.totalorder %s21, 0
    %p126 = por %p124, %p125
    %p127 = scmp.ne.s32.totalorder %s115, %s116
    %p128 = scmp.eq.s32.totalorder %s22, 1
    %p129 = por %p127, %p128
    %p131 = scmp.ne.s32.totalorder %s116, %s130
    %p132 = scmp.eq.s32.totalorder %s22, 0
    %p133 = por %p131, %p132
    %s135 = sadd.s32 %s134, 1
    %p138 = scmp.eq.s32.totalorder %s16, 1
    %p139 = scmp.ne.s32.totalorder %s134, %s136
    %p140 = scmp.eq.s32.totalorder %s16, 0
    %p141 = por %p139, %p140
    %p142 = scmp.ne.s32.totalorder %s134, %s136
    %p143 = scmp.eq.s32.totalorder %s21, 1
    %p144 = por %p142, %p143
    %p145 = scmp.ne.s32.totalorder %s136, %s137
    %p146 = scmp.eq.s32.totalorder %s21, 0
    %p147 = por %p145, %p146
    %p148 = scmp.ne.s32.totalorder %s136, %s137
    %p149 = scmp.eq.s32.totalorder %s22, 1
    %p150 = por %p148, %p149
    %p152 = scmp.ne.s32.totalorder %s137, %s151
    %p153 = scmp.eq.s32.totalorder %s22, 0
    %p154 = por %p152, %p153
    %s156 = sadd.s32 %s155, 1
    %p159 = scmp.eq.s32.totalorder %s16, 1
    %p160 = scmp.ne.s32.totalorder %s155, %s157
    %p161 = scmp.eq.s32.totalorder %s16, 0
    %p162 = por %p160, %p161
    %p163 = scmp.ne.s32.totalorder %s155, %s157
    %p164 = scmp.eq.s32.totalorder %s21, 1
    %p165 = por %p163, %p164
    %p166 = scmp.ne.s32.totalorder %s157, %s158
    %p167 = scmp.eq.s32.totalorder %s21, 0
    %p168 = por %p166, %p167
    %p169 = scmp.ne.s32.totalorder %s157, %s158
    %p170 = scmp.eq.s32.totalorder %s22, 1
    %p171 = por %p169, %p170
    %p173 = scmp.ne.s32.totalorder %s158, %s172
    %p174 = scmp.eq.s32.totalorder %s22, 0
    %p175 = por %p173, %p174
    %s177 = sadd.s32 %s176, 1
    %p180 = scmp.eq.s32.totalorder %s16, 1
    %p181 = scmp.ne.s32.totalorder %s176, %s178
    %p182 = scmp.eq.s32.totalorder %s16, 0
    %p183 = por %p181, %p182
    %p184 = scmp.ne.s32.totalorder %s176, %s178
    %p185 = scmp.eq.s32.totalorder %s21, 1
    %p186 = por %p184, %p185
    %p187 = scmp.ne.s32.totalorder %s178, %s179
    %p188 = scmp.eq.s32.totalorder %s21, 0
    %p189 = por %p187, %p188
    %p190 = scmp.ne.s32.totalorder %s178, %s179
    %p191 = scmp.eq.s32.totalorder %s22, 1
    %p192 = por %p190, %p191
    %p194 = scmp.ne.s32.totalorder %s179, %s193
    %p195 = scmp.eq.s32.totalorder %s22, 0
    %p196 = por %p194, %p195
    %s198 = sadd.s32 %s197, 1
    %p201 = scmp.eq.s32.totalorder %s16, 1
    %p202 = scmp.ne.s32.totalorder %s197, %s199
    %p203 = scmp.eq.s32.totalorder %s16, 0
    %p204 = por %p202, %p203
    %p205 = scmp.ne.s32.totalorder %s197, %s199
    %p206 = scmp.eq.s32.totalorder %s21, 1
    %p207 = por %p205, %p206
    %p208 = scmp.ne.s32.totalorder %s199, %s200
    %p209 = scmp.eq.s32.totalorder %s21, 0
    %p210 = por %p208, %p209
    %p211 = scmp.ne.s32.totalorder %s199, %s200
    %p212 = scmp.eq.s32.totalorder %s22, 1
    %p213 = por %p211, %p212
    %p215 = scmp.ne.s32.totalorder %s200, %s214
    %p216 = scmp.eq.s32.totalorder %s22, 0
    %p217 = por %p215, %p216
    %s219 = sadd.s32 %s218, 1
    %p222 = scmp.eq.s32.totalorder %s16, 1
    %p223 = scmp.ne.s32.totalorder %s218, %s220
    %p224 = scmp.eq.s32.totalorder %s16, 0
    %p225 = por %p223, %p224
    %p226 = scmp.ne.s32.totalorder %s218, %s220
    %p227 = scmp.eq.s32.totalorder %s21, 1
    %p228 = por %p226, %p227
    %p229 = scmp.ne.s32.totalorder %s220, %s221
    %p230 = scmp.eq.s32.totalorder %s21, 0
    %p231 = por %p229, %p230
    %p232 = scmp.ne.s32.totalorder %s220, %s221
    %p233 = scmp.eq.s32.totalorder %s22, 1
    %p234 = por %p232, %p233
    %p236 = scmp.ne.s32.totalorder %s221, %s235
    %p237 = scmp.eq.s32.totalorder %s22, 0
    %p238 = por %p236, %p237
    %s239 = ssub.s32 %s16, %s23
    %p240 = scmp.eq.s32.totalorder %s239, 0
    %s242 = sadd.s32 %s241, 1
    %s243 = scalar_select %p240, %s241, %s242
    %p246 = pneg %p240
    %p247 = scmp.eq.s32.totalorder %s16, 1
    %p248 = por %p246, %p247
    %p249 = scmp.ne.s32.totalorder %s241, %s244
    %p250 = scmp.eq.s32.totalorder %s16, 0
    %p251 = por %p249, %p250
    %p252 = scmp.ne.s32.totalorder %s241, %s244
    %p253 = scmp.eq.s32.totalorder %s21, 1
    %p254 = por %p252, %p253
    %p255 = scmp.ne.s32.totalorder %s244, %s245
    %p256 = scmp.eq.s32.totalorder %s21, 0
    %p257 = por %p255, %p256
    %p258 = scmp.ne.s32.totalorder %s244, %s245
    %p259 = scmp.eq.s32.totalorder %s22, 1
    %p260 = por %p258, %p259
    %p262 = scmp.ne.s32.totalorder %s245, %s261
    %p263 = scmp.eq.s32.totalorder %s22, 0
    %p264 = por %p262, %p263
    %p265 = scmp.le.s32.totalorder 1, %s16
    %p266 = scmp.lt.s32.totalorder %s16, 3
    %p267 = pnand %p265, %p266
    %p268 = pneg %p267
    // Predicated region
    $region9: #{basic_block_gn.1} parent=5 // pred_check
      _
    $region10: #{basic_block_gn.1} parent=5 // pred_check_branch
      %270 = sbr.rel (%p267) target = $region12
    $region11: #{basic_block_gn.1} parent=5 // pred_region
      %s271 = ssub.s32 %s16, 1
      // Predicated region
      $region13: #{basic_block_gn.1} parent=11 // pred_check
        %p272 = pneg %p63
      $region14: #{basic_block_gn.1} parent=11 // pred_check_branch
        %274 = sbr.rel (%p272) target = $region16
      $region15: #{basic_block_gn.1} parent=11 // pred_region
        _
      $region16: #{basic_block_gn.1} parent=11 // pred_fallthru
        _
      // Predicated region
      $region17: #{basic_block_gn.1} parent=11 // pred_check
        %p275 = pneg %p84
      $region18: #{basic_block_gn.1} parent=11 // pred_check_branch
        %277 = sbr.rel (%p275) target = $region20
      $region19: #{basic_block_gn.1} parent=11 // pred_region
        _
      $region20: #{basic_block_gn.1} parent=11 // pred_fallthru
        _
      // Predicated region
      $region21: #{basic_block_gn.1} parent=11 // pred_check
        %p278 = pneg %p105
      $region22: #{basic_block_gn.1} parent=11 // pred_check_branch
        %280 = sbr.rel (%p278) target = $region24
      $region23: #{basic_block_gn.1} parent=11 // pred_region
        _
      $region24: #{basic_block_gn.1} parent=11 // pred_fallthru
        _
      // Predicated region
      $region25: #{basic_block_gn.1} parent=11 // pred_check
        %p281 = pneg %p126
      $region26: #{basic_block_gn.1} parent=11 // pred_check_branch
        %283 = sbr.rel (%p281) target = $region28
      $region27: #{basic_block_gn.1} parent=11 // pred_region
        _
      $region28: #{basic_block_gn.1} parent=11 // pred_fallthru
        _
      // Predicated region
      $region29: #{basic_block_gn.1} parent=11 // pred_check
        %p284 = pneg %p147
      $region30: #{basic_block_gn.1} parent=11 // pred_check_branch
        %286 = sbr.rel (%p284) target = $region32
      $region31: #{basic_block_gn.1} parent=11 // pred_region
        _
      $region32: #{basic_block_gn.1} parent=11 // pred_fallthru
        _
      // Predicated region
      $region33: #{basic_block_gn.1} parent=11 // pred_check
        %p287 = pneg %p168
      $region34: #{basic_block_gn.1} parent=11 // pred_check_branch
        %289 = sbr.rel (%p287) target = $region36
      $region35: #{basic_block_gn.1} parent=11 // pred_region
        _
      $region36: #{basic_block_gn.1} parent=11 // pred_fallthru
        _
      // Predicated region
      $region37: #{basic_block_gn.1} parent=11 // pred_check
        %p290 = pneg %p189
      $region38: #{basic_block_gn.1} parent=11 // pred_check_branch
        %292 = sbr.rel (%p290) target = $region40
      $region39: #{basic_block_gn.1} parent=11 // pred_region
        _
      $region40: #{basic_block_gn.1} parent=11 // pred_fallthru
        _
      // Predicated region
      $region41: #{basic_block_gn.1} parent=11 // pred_check
        %p293 = pneg %p210
      $region42: #{basic_block_gn.1} parent=11 // pred_check_branch
        %295 = sbr.rel (%p293) target = $region44
      $region43: #{basic_block_gn.1} parent=11 // pred_region
        _
      $region44: #{basic_block_gn.1} parent=11 // pred_fallthru
        _
      // Predicated region
      $region45: #{basic_block_gn.1} parent=11 // pred_check
        %p296 = pneg %p231
      $region46: #{basic_block_gn.1} parent=11 // pred_check_branch
        %298 = sbr.rel (%p296) target = $region48
      $region47: #{basic_block_gn.1} parent=11 // pred_region
        _
      $region48: #{basic_block_gn.1} parent=11 // pred_fallthru
        _
    $region12: #{basic_block_gn.1} parent=5 // pred_fallthru
      _
    %p299 = scmp.lt.s32.totalorder %s16, 2
    // Predicated region
    $region49: #{basic_block_gn.1} parent=5 // pred_check
      %p300 = pneg %p299
    $region50: #{basic_block_gn.1} parent=5 // pred_check_branch
      %302 = sbr.rel (%p300) target = $region52
    $region51: #{basic_block_gn.1} parent=5 // pred_region
      // Predicated region
      $region53: #{basic_block_gn.1} parent=51 // pred_check
        %p303 = pneg %p36
      $region54: #{basic_block_gn.1} parent=51 // pred_check_branch
        %305 = sbr.rel (%p303) target = $region56
      $region55: #{basic_block_gn.1} parent=51 // pred_region
        %p306 = scmp.lt.s32.totalorder %s16, 1
        %s307 = scalar_select %p306, %s16, 1
        %s308 = smul.addr %s307, 32
        %s309 = smul.addr %s308, 4
        %s310 = scalar_lea.vmem %s0, %s309
      $region56: #{basic_block_gn.1} parent=51 // pred_fallthru
        _
    $region52: #{basic_block_gn.1} parent=5 // pred_fallthru
      _
    %p311 = scmp.le.s32.totalorder 1, %s16
    %p312 = scmp.lt.s32.totalorder %s16, 3
    %p313 = pnand %p311, %p312
    %p314 = pneg %p313
    // Predicated region
    $region57: #{basic_block_gn.1} parent=5 // pred_check
      _
    $region58: #{basic_block_gn.1} parent=5 // pred_check_branch
      %316 = sbr.rel (%p313) target = $region60
    $region59: #{basic_block_gn.1} parent=5 // pred_region
      %s317 = ssub.s32 %s16, 1
      %p318 = scmp.lt.s32.totalorder %s21, 1
      %s319 = scalar_select %p318, %s21, 1
      %s320 = smul.addr %s319, 32
      %s321 = smul.addr %s320, 4
      %s322 = scalar_lea.vmem %s0, %s321
      %p323 = pneg %p42
      %p324 = pneg %p39
      %p325 = pneg %p63
      %p326 = pneg %p60
      %p327 = pneg %p84
      %p328 = pneg %p81
      %p329 = pneg %p105
      %p330 = pneg %p102
      %p331 = pneg %p126
      %p332 = pneg %p123
      %p333 = pneg %p147
      %p334 = pneg %p144
      %p335 = pneg %p168
      %p336 = pneg %p165
      %p337 = pneg %p189
      %p338 = pneg %p186
      %p339 = pneg %p210
      %p340 = pneg %p207
      %p341 = pneg %p231
      %p342 = pneg %p228
      %p343 = pneg %p257
      %p344 = pneg %p254
      %p345 = scmp.lt.s32.totalorder %s21, 1
      %s346 = scalar_select %p345, %s21, 1
      %s347 = smul.addr %s346, 32
      %s348 = smul.addr %s347, 8
      %s349 = scalar_lea.vmem %s10, %s348
      %p350 = scmp.lt.s32.totalorder %s21, 1
      %s351 = scalar_select %p350, %s21, 1
      %s352 = smul.addr %s351, 32
      %s353 = smul.addr %s352, 4
      %s354 = scalar_lea.vmem %s0, %s353
      %p355 = scmp.lt.s32.totalorder %s21, 1
      %s356 = scalar_select %p355, %s21, 1
      %s357 = smul.addr %s356, 32
      %s358 = smul.addr %s357, 8
      %s359 = scalar_lea.vmem %s10, %s358
      %361 = vst [vmem:[#allocation2] sm:$0xf] 0
      %362 = vst [vmem:[#allocation2 + $0x4] sm:$0xf] 0
      %363 = vst [vmem:[#allocation2 + $0x8] sm:$0x1] 0
      %s364 = scalar_lea.vmem [#allocation2], 204
      %365 = vst [vmem:[%s364] sm:$0xf] 0
      %366 = vst [vmem:[%s364 + $0x4] sm:$0xf] 0
      %367 = vst [vmem:[%s364 + $0x8] sm:$0x1] 0
      %s368 = scalar_lea.vmem [#allocation2], 12
      %vm369 = vcmask 1040384
      %vm370 = vsmask.f32 256
      %vm371 = vmand %vm369, %vm370
      %v372 = vld [vmem:[%s368] sm:$0x1]
      %v373 = vsel %vm371, 0, %v372
      %374 = vst [vmem:[%s368] sm:$0x1] %v373
      %v375 = vld [vmem:[%s368 + $0xc] sm:$0x1]
      %v376 = vsel %vm371, 0, %v375
      %377 = vst [vmem:[%s368 + $0xc] sm:$0x1] %v376
      %v378 = vld [vmem:[%s368 + $0x18] sm:$0x1]
      %v379 = vsel %vm371, 0, %v378
      %380 = vst [vmem:[%s368 + $0x18] sm:$0x1] %v379
      %v381 = vld [vmem:[%s368 + $0x24] sm:$0x1]
      %v382 = vsel %vm371, 0, %v381
      %383 = vst [vmem:[%s368 + $0x24] sm:$0x1] %v382
      %v384 = vld [vmem:[%s368 + $0x30] sm:$0x1]
      %v385 = vsel %vm371, 0, %v384
      %386 = vst [vmem:[%s368 + $0x30] sm:$0x1] %v385
      %v387 = vld [vmem:[%s368 + $0x3c] sm:$0x1]
      %v388 = vsel %vm371, 0, %v387
      %389 = vst [vmem:[%s368 + $0x3c] sm:$0x1] %v388
      %v390 = vld [vmem:[%s368 + $0x48] sm:$0x1]
      %v391 = vsel %vm371, 0, %v390
      %392 = vst [vmem:[%s368 + $0x48] sm:$0x1] %v391
      %v393 = vld [vmem:[%s368 + $0x54] sm:$0x1]
      %v394 = vsel %vm371, 0, %v393
      %395 = vst [vmem:[%s368 + $0x54] sm:$0x1] %v394
      %v396 = vld [vmem:[%s368 + $0x60] sm:$0x1]
      %v397 = vsel %vm371, 0, %v396
      %398 = vst [vmem:[%s368 + $0x60] sm:$0x1] %v397
      %v399 = vld [vmem:[%s368 + $0x6c] sm:$0x1]
      %v400 = vsel %vm371, 0, %v399
      %401 = vst [vmem:[%s368 + $0x6c] sm:$0x1] %v400
      %v402 = vld [vmem:[%s368 + $0x78] sm:$0x1]
      %v403 = vsel %vm371, 0, %v402
      %404 = vst [vmem:[%s368 + $0x78] sm:$0x1] %v403
      %v405 = vld [vmem:[%s368 + $0x84] sm:$0x1]
      %v406 = vsel %vm371, 0, %v405
      %407 = vst [vmem:[%s368 + $0x84] sm:$0x1] %v406
      %v408 = vld [vmem:[%s368 + $0x90] sm:$0x1]
      %v409 = vsel %vm371, 0, %v408
      %410 = vst [vmem:[%s368 + $0x90] sm:$0x1] %v409
      %v411 = vld [vmem:[%s368 + $0x9c] sm:$0x1]
      %v412 = vsel %vm371, 0, %v411
      %413 = vst [vmem:[%s368 + $0x9c] sm:$0x1] %v412
      %v414 = vld [vmem:[%s368 + $0xa8] sm:$0x1]
      %v415 = vsel %vm371, 0, %v414
      %416 = vst [vmem:[%s368 + $0xa8] sm:$0x1] %v415
      %v417 = vld [vmem:[%s368 + $0xb4] sm:$0x1]
      %v418 = vsel %vm371, 0, %v417
      %419 = vst [vmem:[%s368 + $0xb4] sm:$0x1] %v418
      %vm420 = vsmask.f32 7938
      %vm421 = vmand %vm369, %vm420
      %v422 = vld [vmem:[%s368 + $0x8] sm:$0x1]
      %v423 = vsel %vm421, 0, %v422
      %424 = vst [vmem:[%s368 + $0x8] sm:$0x1] %v423
      %v425 = vld [vmem:[%s368 + $0x14] sm:$0x1]
      %v426 = vsel %vm421, 0, %v425
      %427 = vst [vmem:[%s368 + $0x14] sm:$0x1] %v426
      %v428 = vld [vmem:[%s368 + $0x20] sm:$0x1]
      %v429 = vsel %vm421, 0, %v428
      %430 = vst [vmem:[%s368 + $0x20] sm:$0x1] %v429
      %v431 = vld [vmem:[%s368 + $0x2c] sm:$0x1]
      %v432 = vsel %vm421, 0, %v431
      %433 = vst [vmem:[%s368 + $0x2c] sm:$0x1] %v432
      %v434 = vld [vmem:[%s368 + $0x38] sm:$0x1]
      %v435 = vsel %vm421, 0, %v434
      %436 = vst [vmem:[%s368 + $0x38] sm:$0x1] %v435
      %v437 = vld [vmem:[%s368 + $0x44] sm:$0x1]
      %v438 = vsel %vm421, 0, %v437
      %439 = vst [vmem:[%s368 + $0x44] sm:$0x1] %v438
      %v440 = vld [vmem:[%s368 + $0x50] sm:$0x1]
      %v441 = vsel %vm421, 0, %v440
      %442 = vst [vmem:[%s368 + $0x50] sm:$0x1] %v441
      %v443 = vld [vmem:[%s368 + $0x5c] sm:$0x1]
      %v444 = vsel %vm421, 0, %v443
      %445 = vst [vmem:[%s368 + $0x5c] sm:$0x1] %v444
      %v446 = vld [vmem:[%s368 + $0x68] sm:$0x1]
      %v447 = vsel %vm421, 0, %v446
      %448 = vst [vmem:[%s368 + $0x68] sm:$0x1] %v447
      %v449 = vld [vmem:[%s368 + $0x74] sm:$0x1]
      %v450 = vsel %vm421, 0, %v449
      %451 = vst [vmem:[%s368 + $0x74] sm:$0x1] %v450
      %v452 = vld [vmem:[%s368 + $0x80] sm:$0x1]
      %v453 = vsel %vm421, 0, %v452
      %454 = vst [vmem:[%s368 + $0x80] sm:$0x1] %v453
      %v455 = vld [vmem:[%s368 + $0x8c] sm:$0x1]
      %v456 = vsel %vm421, 0, %v455
      %457 = vst [vmem:[%s368 + $0x8c] sm:$0x1] %v456
      %v458 = vld [vmem:[%s368 + $0x98] sm:$0x1]
      %v459 = vsel %vm421, 0, %v458
      %460 = vst [vmem:[%s368 + $0x98] sm:$0x1] %v459
      %v461 = vld [vmem:[%s368 + $0xa4] sm:$0x1]
      %v462 = vsel %vm421, 0, %v461
      %463 = vst [vmem:[%s368 + $0xa4] sm:$0x1] %v462
      %v464 = vld [vmem:[%s368 + $0xb0] sm:$0x1]
      %v465 = vsel %vm421, 0, %v464
      %466 = vst [vmem:[%s368 + $0xb0] sm:$0x1] %v465
      %v467 = vld [vmem:[%s368 + $0xbc] sm:$0x1]
      %v468 = vsel %vm421, 0, %v467
      %469 = vst [vmem:[%s368 + $0xbc] sm:$0x1] %v468
      %v470 = vld [vmem:[%s354] sm:$0xf]
      %v471 = vld [vmem:[%s354 + $0x4] sm:$0xf]
      %v472 = vld [vmem:[%s354 + $0x8] sm:$0xf]
      %v473 = vld [vmem:[%s354 + $0xc] sm:$0xf]
      %v474 = vld [vmem:[%s354 + $0x10] sm:$0xf]
      %v475 = vld [vmem:[%s354 + $0x14] sm:$0xf]
      %v476 = vld [vmem:[%s354 + $0x18] sm:$0xf]
      %v477 = vld [vmem:[%s354 + $0x1c] sm:$0xf]
      %v478 = vld [vmem:[%s354 + $0x20] sm:$0xf]
      %v479 = vld [vmem:[%s354 + $0x24] sm:$0xf]
      %v480 = vld [vmem:[%s354 + $0x28] sm:$0xf]
      %v481 = vld [vmem:[%s354 + $0x2c] sm:$0xf]
      %v482 = vld [vmem:[%s354 + $0x30] sm:$0xf]
      %v483 = vld [vmem:[%s354 + $0x34] sm:$0xf]
      %v484 = vld [vmem:[%s354 + $0x38] sm:$0xf]
      %v485 = vld [vmem:[%s354 + $0x3c] sm:$0xf]
      %v486 = vld [vmem:[%s354 + $0x40] sm:$0xf]
      %v487 = vld [vmem:[%s354 + $0x44] sm:$0xf]
      %v488 = vld [vmem:[%s354 + $0x48] sm:$0xf]
      %v489 = vld [vmem:[%s354 + $0x4c] sm:$0xf]
      %v490 = vld [vmem:[%s354 + $0x50] sm:$0xf]
      %v491 = vld [vmem:[%s354 + $0x54] sm:$0xf]
      %v492 = vld [vmem:[%s354 + $0x58] sm:$0xf]
      %v493 = vld [vmem:[%s354 + $0x5c] sm:$0xf]
      %v494 = vld [vmem:[%s354 + $0x60] sm:$0xf]
      %v495 = vld [vmem:[%s354 + $0x64] sm:$0xf]
      %v496 = vld [vmem:[%s354 + $0x68] sm:$0xf]
      %v497 = vld [vmem:[%s354 + $0x6c] sm:$0xf]
      %v498 = vld [vmem:[%s354 + $0x70] sm:$0xf]
      %v499 = vld [vmem:[%s354 + $0x74] sm:$0xf]
      %v500 = vld [vmem:[%s354 + $0x78] sm:$0xf]
      %v501 = vld [vmem:[%s354 + $0x7c] sm:$0xf]
      %vm502 = vsmask.f32 4368
      %vm503 = vmor %vm370, %vm502
      %v505 = vshrl.u32 %v470, 16
      %v507 = vrot.slane %v505, 7
      %v508 = vshll.u32 %v470, 16
      %v510 = vor.u32 %v507, %v508
      %v511 = vrot.slane %v507, 4
      %v513 = vshrl.u32 %v471, 16
      %v515 = vrot.slane %v513, 7
      %v516 = vshll.u32 %v471, 16
      %v518 = vor.u32 %v515, %v516
      %v519 = vsel %vm503, %v511, %v518
      %v520 = vrot.slane %v515, 4
      %v522 = vshrl.u32 %v472, 16
      %v524 = vrot.slane %v522, 7
      %v525 = vshll.u32 %v472, 16
      %v527 = vor.u32 %v524, %v525
      %v528 = vrot.slane %v524, 4
      %v530 = vshrl.u32 %v473, 16
      %v532 = vrot.slane %v530, 7
      %v533 = vshll.u32 %v473, 16
      %v535 = vor.u32 %v532, %v533
      %v536 = vsel %vm503, %v528, %v535
      %v537 = vrot.slane %v532, 4
      %v539 = vshrl.u32 %v474, 16
      %v541 = vrot.slane %v539, 7
      %v542 = vshll.u32 %v474, 16
      %v544 = vor.u32 %v541, %v542
      %v545 = vrot.slane %v541, 4
      %v547 = vshrl.u32 %v475, 16
      %v549 = vrot.slane %v547, 7
      %v550 = vshll.u32 %v475, 16
      %v552 = vor.u32 %v549, %v550
      %v553 = vsel %vm503, %v545, %v552
      %v554 = vrot.slane %v549, 4
      %v556 = vshrl.u32 %v476, 16
      %v558 = vrot.slane %v556, 7
      %v559 = vshll.u32 %v476, 16
      %v561 = vor.u32 %v558, %v559
      %v562 = vrot.slane %v558, 4
      %v564 = vshrl.u32 %v477, 16
      %v566 = vrot.slane %v564, 7
      %v567 = vshll.u32 %v477, 16
      %v569 = vor.u32 %v566, %v567
      %v570 = vsel %vm503, %v562, %v569
      %v571 = vrot.slane %v566, 4
      %v573 = vshrl.u32 %v478, 16
      %v575 = vrot.slane %v573, 7
      %v576 = vshll.u32 %v478, 16
      %v578 = vor.u32 %v575, %v576
      %v579 = vrot.slane %v575, 4
      %v581 = vshrl.u32 %v479, 16
      %v583 = vrot.slane %v581, 7
      %v584 = vshll.u32 %v479, 16
      %v586 = vor.u32 %v583, %v584
      %v587 = vsel %vm503, %v579, %v586
      %v588 = vrot.slane %v583, 4
      %v590 = vshrl.u32 %v480, 16
      %v592 = vrot.slane %v590, 7
      %v593 = vshll.u32 %v480, 16
      %v595 = vor.u32 %v592, %v593
      %v596 = vrot.slane %v592, 4
      %v598 = vshrl.u32 %v481, 16
      %v600 = vrot.slane %v598, 7
      %v601 = vshll.u32 %v481, 16
      %v603 = vor.u32 %v600, %v601
      %v604 = vsel %vm503, %v596, %v603
      %v605 = vrot.slane %v600, 4
      %v607 = vshrl.u32 %v482, 16
      %v609 = vrot.slane %v607, 7
      %v610 = vshll.u32 %v482, 16
      %v612 = vor.u32 %v609, %v610
      %v613 = vrot.slane %v609, 4
      %v615 = vshrl.u32 %v483, 16
      %v617 = vrot.slane %v615, 7
      %v618 = vshll.u32 %v483, 16
      %v620 = vor.u32 %v617, %v618
      %v621 = vsel %vm503, %v613, %v620
      %v622 = vrot.slane %v617, 4
      %v624 = vshrl.u32 %v484, 16
      %v626 = vrot.slane %v624, 7
      %v627 = vshll.u32 %v484, 16
      %v629 = vor.u32 %v626, %v627
      %v630 = vrot.slane %v626, 4
      %v632 = vshrl.u32 %v485, 16
      %v634 = vrot.slane %v632, 7
      %v635 = vshll.u32 %v485, 16
      %v637 = vor.u32 %v634, %v635
      %v638 = vsel %vm503, %v630, %v637
      %v639 = vrot.slane %v634, 4
      %v641 = vshrl.u32 %v486, 16
      %v643 = vrot.slane %v641, 7
      %v644 = vshll.u32 %v486, 16
      %v646 = vor.u32 %v643, %v644
      %v647 = vrot.slane %v643, 4
      %v649 = vshrl.u32 %v487, 16
      %v651 = vrot.slane %v649, 7
      %v652 = vshll.u32 %v487, 16
      %v654 = vor.u32 %v651, %v652
      %v655 = vsel %vm503, %v647, %v654
      %v656 = vrot.slane %v651, 4
      %v658 = vshrl.u32 %v488, 16
      %v660 = vrot.slane %v658, 7
      %v661 = vshll.u32 %v488, 16
      %v663 = vor.u32 %v660, %v661
      %v664 = vrot.slane %v660, 4
      %v666 = vshrl.u32 %v489, 16
      %v668 = vrot.slane %v666, 7
      %v669 = vshll.u32 %v489, 16
      %v671 = vor.u32 %v668, %v669
      %v672 = vsel %vm503, %v664, %v671
      %v673 = vrot.slane %v668, 4
      %v675 = vshrl.u32 %v490, 16
      %v677 = vrot.slane %v675, 7
      %v678 = vshll.u32 %v490, 16
      %v680 = vor.u32 %v677, %v678
      %v681 = vrot.slane %v677, 4
      %v683 = vshrl.u32 %v491, 16
      %v685 = vrot.slane %v683, 7
      %v686 = vshll.u32 %v491, 16
      %v688 = vor.u32 %v685, %v686
      %v689 = vsel %vm503, %v681, %v688
      %v690 = vrot.slane %v685, 4
      %v692 = vshrl.u32 %v492, 16
      %v694 = vrot.slane %v692, 7
      %v695 = vshll.u32 %v492, 16
      %v697 = vor.u32 %v694, %v695
      %v698 = vrot.slane %v694, 4
      %v700 = vshrl.u32 %v493, 16
      %v702 = vrot.slane %v700, 7
      %v703 = vshll.u32 %v493, 16
      %v705 = vor.u32 %v702, %v703
      %v706 = vsel %vm503, %v698, %v705
      %v707 = vrot.slane %v702, 4
      %v709 = vshrl.u32 %v494, 16
      %v711 = vrot.slane %v709, 7
      %v712 = vshll.u32 %v494, 16
      %v714 = vor.u32 %v711, %v712
      %v715 = vrot.slane %v711, 4
      %v717 = vshrl.u32 %v495, 16
      %v719 = vrot.slane %v717, 7
      %v720 = vshll.u32 %v495, 16
      %v722 = vor.u32 %v719, %v720
      %v723 = vsel %vm503, %v715, %v722
      %v724 = vrot.slane %v719, 4
      %v726 = vshrl.u32 %v496, 16
      %v728 = vrot.slane %v726, 7
      %v729 = vshll.u32 %v496, 16
      %v731 = vor.u32 %v728, %v729
      %v732 = vrot.slane %v728, 4
      %v734 = vshrl.u32 %v497, 16
      %v736 = vrot.slane %v734, 7
      %v737 = vshll.u32 %v497, 16
      %v739 = vor.u32 %v736, %v737
      %v740 = vsel %vm503, %v732, %v739
      %v741 = vrot.slane %v736, 4
      %v743 = vshrl.u32 %v498, 16
      %v745 = vrot.slane %v743, 7
      %v746 = vshll.u32 %v498, 16
      %v748 = vor.u32 %v745, %v746
      %v749 = vrot.slane %v745, 4
      %v751 = vshrl.u32 %v499, 16
      %v753 = vrot.slane %v751, 7
      %v754 = vshll.u32 %v499, 16
      %v756 = vor.u32 %v753, %v754
      %v757 = vsel %vm503, %v749, %v756
      %v758 = vrot.slane %v753, 4
      %v760 = vshrl.u32 %v500, 16
      %v762 = vrot.slane %v760, 7
      %v763 = vshll.u32 %v500, 16
      %v765 = vor.u32 %v762, %v763
      %v766 = vrot.slane %v762, 4
      %v768 = vshrl.u32 %v501, 16
      %v770 = vrot.slane %v768, 7
      %v771 = vshll.u32 %v501, 16
      %v773 = vor.u32 %v770, %v771
      %v774 = vsel %vm503, %v766, %v773
      %v775 = vrot.slane %v770, 4
      %vm824 = vcmask 1043456
      %vm825 = vmand %vm824, %vm420
      %v826 = vld [vmem:[%s368] sm:$0xf]
      %v827 = vsel %vm825, %v510, %v826
      %828 = vst [vmem:[%s368] sm:$0xf] %v827
      %829 = vst [vmem:[%s368 + $0x4] sm:$0xf] %v519
      %v830 = vld [vmem:[%s368 + $0x8] sm:$0x1]
      %v831 = vsel %vm371, %v520, %v830
      %832 = vst [vmem:[%s368 + $0x8] sm:$0x1] %v831
      %v833 = vld [vmem:[%s368 + $0xc] sm:$0xf]
      %v834 = vsel %vm825, %v527, %v833
      %835 = vst [vmem:[%s368 + $0xc] sm:$0xf] %v834
      %836 = vst [vmem:[%s368 + $0x10] sm:$0xf] %v536
      %v837 = vld [vmem:[%s368 + $0x14] sm:$0x1]
      %v838 = vsel %vm371, %v537, %v837
      %839 = vst [vmem:[%s368 + $0x14] sm:$0x1] %v838
      %v840 = vld [vmem:[%s368 + $0x18] sm:$0xf]
      %v841 = vsel %vm825, %v544, %v840
      %842 = vst [vmem:[%s368 + $0x18] sm:$0xf] %v841
      %843 = vst [vmem:[%s368 + $0x1c] sm:$0xf] %v553
      %v844 = vld [vmem:[%s368 + $0x20] sm:$0x1]
      %v845 = vsel %vm371, %v554, %v844
      %846 = vst [vmem:[%s368 + $0x20] sm:$0x1] %v845
      %v847 = vld [vmem:[%s368 + $0x24] sm:$0xf]
      %v848 = vsel %vm825, %v561, %v847
      %849 = vst [vmem:[%s368 + $0x24] sm:$0xf] %v848
      %850 = vst [vmem:[%s368 + $0x28] sm:$0xf] %v570
      %v851 = vld [vmem:[%s368 + $0x2c] sm:$0x1]
      %v852 = vsel %vm371, %v571, %v851
      %853 = vst [vmem:[%s368 + $0x2c] sm:$0x1] %v852
      %v854 = vld [vmem:[%s368 + $0x30] sm:$0xf]
      %v855 = vsel %vm825, %v578, %v854
      %856 = vst [vmem:[%s368 + $0x30] sm:$0xf] %v855
      %857 = vst [vmem:[%s368 + $0x34] sm:$0xf] %v587
      %v858 = vld [vmem:[%s368 + $0x38] sm:$0x1]
      %v859 = vsel %vm371, %v588, %v858
      %860 = vst [vmem:[%s368 + $0x38] sm:$0x1] %v859
      %v861 = vld [vmem:[%s368 + $0x3c] sm:$0xf]
      %v862 = vsel %vm825, %v595, %v861
      %863 = vst [vmem:[%s368 + $0x3c] sm:$0xf] %v862
      %864 = vst [vmem:[%s368 + $0x40] sm:$0xf] %v604
      %v865 = vld [vmem:[%s368 + $0x44] sm:$0x1]
      %v866 = vsel %vm371, %v605, %v865
      %867 = vst [vmem:[%s368 + $0x44] sm:$0x1] %v866
      %v868 = vld [vmem:[%s368 + $0x48] sm:$0xf]
      %v869 = vsel %vm825, %v612, %v868
      %870 = vst [vmem:[%s368 + $0x48] sm:$0xf] %v869
      %871 = vst [vmem:[%s368 + $0x4c] sm:$0xf] %v621
      %v872 = vld [vmem:[%s368 + $0x50] sm:$0x1]
      %v873 = vsel %vm371, %v622, %v872
      %874 = vst [vmem:[%s368 + $0x50] sm:$0x1] %v873
      %v875 = vld [vmem:[%s368 + $0x54] sm:$0xf]
      %v876 = vsel %vm825, %v629, %v875
      %877 = vst [vmem:[%s368 + $0x54] sm:$0xf] %v876
      %878 = vst [vmem:[%s368 + $0x58] sm:$0xf] %v638
      %v879 = vld [vmem:[%s368 + $0x5c] sm:$0x1]
      %v880 = vsel %vm371, %v639, %v879
      %881 = vst [vmem:[%s368 + $0x5c] sm:$0x1] %v880
      %v882 = vld [vmem:[%s368 + $0x60] sm:$0xf]
      %v883 = vsel %vm825, %v646, %v882
      %884 = vst [vmem:[%s368 + $0x60] sm:$0xf] %v883
      %885 = vst [vmem:[%s368 + $0x64] sm:$0xf] %v655
      %v886 = vld [vmem:[%s368 + $0x68] sm:$0x1]
      %v887 = vsel %vm371, %v656, %v886
      %888 = vst [vmem:[%s368 + $0x68] sm:$0x1] %v887
      %v889 = vld [vmem:[%s368 + $0x6c] sm:$0xf]
      %v890 = vsel %vm825, %v663, %v889
      %891 = vst [vmem:[%s368 + $0x6c] sm:$0xf] %v890
      %892 = vst [vmem:[%s368 + $0x70] sm:$0xf] %v672
      %v893 = vld [vmem:[%s368 + $0x74] sm:$0x1]
      %v894 = vsel %vm371, %v673, %v893
      %895 = vst [vmem:[%s368 + $0x74] sm:$0x1] %v894
      %v896 = vld [vmem:[%s368 + $0x78] sm:$0xf]
      %v897 = vsel %vm825, %v680, %v896
      %898 = vst [vmem:[%s368 + $0x78] sm:$0xf] %v897
      %899 = vst [vmem:[%s368 + $0x7c] sm:$0xf] %v689
      %v900 = vld [vmem:[%s368 + $0x80] sm:$0x1]
      %v901 = vsel %vm371, %v690, %v900
      %902 = vst [vmem:[%s368 + $0x80] sm:$0x1] %v901
      %v903 = vld [vmem:[%s368 + $0x84] sm:$0xf]
      %v904 = vsel %vm825, %v697, %v903
      %905 = vst [vmem:[%s368 + $0x84] sm:$0xf] %v904
      %906 = vst [vmem:[%s368 + $0x88] sm:$0xf] %v706
      %v907 = vld [vmem:[%s368 + $0x8c] sm:$0x1]
      %v908 = vsel %vm371, %v707, %v907
      %909 = vst [vmem:[%s368 + $0x8c] sm:$0x1] %v908
      %v910 = vld [vmem:[%s368 + $0x90] sm:$0xf]
      %v911 = vsel %vm825, %v714, %v910
      %912 = vst [vmem:[%s368 + $0x90] sm:$0xf] %v911
      %913 = vst [vmem:[%s368 + $0x94] sm:$0xf] %v723
      %v914 = vld [vmem:[%s368 + $0x98] sm:$0x1]
      %v915 = vsel %vm371, %v724, %v914
      %916 = vst [vmem:[%s368 + $0x98] sm:$0x1] %v915
      %v917 = vld [vmem:[%s368 + $0x9c] sm:$0xf]
      %v918 = vsel %vm825, %v731, %v917
      %919 = vst [vmem:[%s368 + $0x9c] sm:$0xf] %v918
      %920 = vst [vmem:[%s368 + $0xa0] sm:$0xf] %v740
      %v921 = vld [vmem:[%s368 + $0xa4] sm:$0x1]
      %v922 = vsel %vm371, %v741, %v921
      %923 = vst [vmem:[%s368 + $0xa4] sm:$0x1] %v922
      %v924 = vld [vmem:[%s368 + $0xa8] sm:$0xf]
      %v925 = vsel %vm825, %v748, %v924
      %926 = vst [vmem:[%s368 + $0xa8] sm:$0xf] %v925
      %927 = vst [vmem:[%s368 + $0xac] sm:$0xf] %v757
      %v928 = vld [vmem:[%s368 + $0xb0] sm:$0x1]
      %v929 = vsel %vm371, %v758, %v928
      %930 = vst [vmem:[%s368 + $0xb0] sm:$0x1] %v929
      %v931 = vld [vmem:[%s368 + $0xb4] sm:$0xf]
      %v932 = vsel %vm825, %v765, %v931
      %933 = vst [vmem:[%s368 + $0xb4] sm:$0xf] %v932
      %934 = vst [vmem:[%s368 + $0xb8] sm:$0xf] %v774
      %v935 = vld [vmem:[%s368 + $0xbc] sm:$0x1]
      %v936 = vsel %vm371, %v775, %v935
      %937 = vst [vmem:[%s368 + $0xbc] sm:$0x1] %v936
      %v938 = vld [vmem:[#allocation2] sm:$0xf]
      %v939 = vld [vmem:[#allocation2 + $0x4] sm:$0xf]
      %v940 = vld [vmem:[#allocation2 + $0xc] sm:$0xf]
      %v941 = vld [vmem:[#allocation2 + $0x10] sm:$0xf]
      %v942 = vld [vmem:[#allocation2 + $0x18] sm:$0xf]
      %v943 = vld [vmem:[#allocation2 + $0x1c] sm:$0xf]
      %v944 = vld [vmem:[#allocation2 + $0x24] sm:$0xf]
      %v945 = vld [vmem:[#allocation2 + $0x28] sm:$0xf]
      %v946 = vld [vmem:[#allocation2 + $0x30] sm:$0xf]
      %v947 = vld [vmem:[#allocation2 + $0x34] sm:$0xf]
      %v948 = vld [vmem:[#allocation2 + $0x3c] sm:$0xf]
      %v949 = vld [vmem:[#allocation2 + $0x40] sm:$0xf]
      %v950 = vld [vmem:[#allocation2 + $0x48] sm:$0xf]
      %v951 = vld [vmem:[#allocation2 + $0x4c] sm:$0xf]
      %v952 = vld [vmem:[#allocation2 + $0x54] sm:$0xf]
      %v953 = vld [vmem:[#allocation2 + $0x58] sm:$0xf]
      %v954 = vld [vmem:[#allocation2 + $0x60] sm:$0xf]
      %v955 = vld [vmem:[#allocation2 + $0x64] sm:$0xf]
      %v956 = vld [vmem:[#allocation2 + $0x6c] sm:$0xf]
      %v957 = vld [vmem:[#allocation2 + $0x70] sm:$0xf]
      %v958 = vld [vmem:[#allocation2 + $0x78] sm:$0xf]
      %v959 = vld [vmem:[#allocation2 + $0x7c] sm:$0xf]
      %v960 = vld [vmem:[#allocation2 + $0x84] sm:$0xf]
      %v961 = vld [vmem:[#allocation2 + $0x88] sm:$0xf]
      %v962 = vld [vmem:[#allocation2 + $0x90] sm:$0xf]
      %v963 = vld [vmem:[#allocation2 + $0x94] sm:$0xf]
      %v964 = vld [vmem:[#allocation2 + $0x9c] sm:$0xf]
      %v965 = vld [vmem:[#allocation2 + $0xa0] sm:$0xf]
      %v966 = vld [vmem:[#allocation2 + $0xa8] sm:$0xf]
      %v967 = vld [vmem:[#allocation2 + $0xac] sm:$0xf]
      %v968 = vld [vmem:[#allocation2 + $0xb4] sm:$0xf]
      %v969 = vld [vmem:[#allocation2 + $0xb8] sm:$0xf]
      %v1002 = vunpack.c.l.b16 %v938
      %v1003 = vunpack.c.l.b16 %v939
      %v1004 = vunpack.c.l.b16 %v940
      %v1005 = vunpack.c.l.b16 %v941
      %v1006 = vunpack.c.l.b16 %v942
      %v1007 = vunpack.c.l.b16 %v943
      %v1008 = vunpack.c.l.b16 %v944
      %v1009 = vunpack.c.l.b16 %v945
      %v1010 = vunpack.c.l.b16 %v946
      %v1011 = vunpack.c.l.b16 %v947
      %v1012 = vunpack.c.l.b16 %v948
      %v1013 = vunpack.c.l.b16 %v949
      %v1014 = vunpack.c.l.b16 %v950
      %v1015 = vunpack.c.l.b16 %v951
      %v1016 = vunpack.c.l.b16 %v952
      %v1017 = vunpack.c.l.b16 %v953
      %v1018 = vunpack.c.l.b16 %v954
      %v1019 = vunpack.c.l.b16 %v955
      %v1020 = vunpack.c.l.b16 %v956
      %v1021 = vunpack.c.l.b16 %v957
      %v1022 = vunpack.c.l.b16 %v958
      %v1023 = vunpack.c.l.b16 %v959
      %v1024 = vunpack.c.l.b16 %v960
      %v1025 = vunpack.c.l.b16 %v961
      %v1026 = vunpack.c.l.b16 %v962
      %v1027 = vunpack.c.l.b16 %v963
      %v1028 = vunpack.c.l.b16 %v964
      %v1029 = vunpack.c.l.b16 %v965
      %v1030 = vunpack.c.l.b16 %v966
      %v1031 = vunpack.c.l.b16 %v967
      %v1032 = vunpack.c.l.b16 %v968
      %v1033 = vunpack.c.l.b16 %v969
      %v1034 = vpack.c.b16 %v1003, %v1002
      %v1035 = vpack.c.b16 %v1005, %v1004
      %v1036 = vpack.c.b16 %v1007, %v1006
      %v1037 = vpack.c.b16 %v1009, %v1008
      %v1038 = vpack.c.b16 %v1011, %v1010
      %v1039 = vpack.c.b16 %v1013, %v1012
      %v1040 = vpack.c.b16 %v1015, %v1014
      %v1041 = vpack.c.b16 %v1017, %v1016
      %v1042 = vpack.c.b16 %v1019, %v1018
      %v1043 = vpack.c.b16 %v1021, %v1020
      %v1044 = vpack.c.b16 %v1023, %v1022
      %v1045 = vpack.c.b16 %v1025, %v1024
      %v1046 = vpack.c.b16 %v1027, %v1026
      %v1047 = vpack.c.b16 %v1029, %v1028
      %v1048 = vpack.c.b16 %v1031, %v1030
      %v1049 = vpack.c.b16 %v1033, %v1032
      %1066 = vst [vmem:[#allocation3] sm:$0xff] %v1034
      %1067 = vst [vmem:[#allocation3 + $0x48] sm:$0xff] %v1035
      %1068 = vst [vmem:[#allocation3 + $0x90] sm:$0xff] %v1036
      %1069 = vst [vmem:[#allocation3 + $0xd8] sm:$0xff] %v1037
      %1070 = vst [vmem:[#allocation3 + $0x120] sm:$0xff] %v1038
      %1071 = vst [vmem:[#allocation3 + $0x168] sm:$0xff] %v1039
      %1072 = vst [vmem:[#allocation3 + $0x1b0] sm:$0xff] %v1040
      %1073 = vst [vmem:[#allocation3 + $0x1f8] sm:$0xff] %v1041
      %1074 = vst [vmem:[#allocation3 + $0x240] sm:$0xff] %v1042
      %1075 = vst [vmem:[#allocation3 + $0x288] sm:$0xff] %v1043
      %1076 = vst [vmem:[#allocation3 + $0x2d0] sm:$0xff] %v1044
      %1077 = vst [vmem:[#allocation3 + $0x318] sm:$0xff] %v1045
      %1078 = vst [vmem:[#allocation3 + $0x360] sm:$0xff] %v1046
      %1079 = vst [vmem:[#allocation3 + $0x3a8] sm:$0xff] %v1047
      %1080 = vst [vmem:[#allocation3 + $0x3f0] sm:$0xff] %v1048
      %1081 = vst [vmem:[#allocation3 + $0x438] sm:$0xff] %v1049
      %v1082 = vld [vmem:[#allocation2] sm:$0xf]
      %v1083 = vld [vmem:[#allocation2 + $0x4] sm:$0xf]
      %v1084 = vld [vmem:[#allocation2 + $0x8] sm:$0x1]
      %v1085 = vld [vmem:[#allocation2 + $0xc] sm:$0xf]
      %v1086 = vld [vmem:[#allocation2 + $0x10] sm:$0xf]
      %v1087 = vld [vmem:[#allocation2 + $0x14] sm:$0x1]
      %v1088 = vld [vmem:[#allocation2 + $0x18] sm:$0xf]
      %v1089 = vld [vmem:[#allocation2 + $0x1c] sm:$0xf]
      %v1090 = vld [vmem:[#allocation2 + $0x20] sm:$0x1]
      %v1091 = vld [vmem:[#allocation2 + $0x24] sm:$0xf]
      %v1092 = vld [vmem:[#allocation2 + $0x28] sm:$0xf]
      %v1093 = vld [vmem:[#allocation2 + $0x2c] sm:$0x1]
      %v1094 = vld [vmem:[#allocation2 + $0x30] sm:$0xf]
      %v1095 = vld [vmem:[#allocation2 + $0x34] sm:$0xf]
      %v1096 = vld [vmem:[#allocation2 + $0x38] sm:$0x1]
      %v1097 = vld [vmem:[#allocation2 + $0x3c] sm:$0xf]
      %v1098 = vld [vmem:[#allocation2 + $0x40] sm:$0xf]
      %v1099 = vld [vmem:[#allocation2 + $0x44] sm:$0x1]
      %v1100 = vld [vmem:[#allocation2 + $0x48] sm:$0xf]
      %v1101 = vld [vmem:[#allocation2 + $0x4c] sm:$0xf]
      %v1102 = vld [vmem:[#allocation2 + $0x50] sm:$0x1]
      %v1103 = vld [vmem:[#allocation2 + $0x54] sm:$0xf]
      %v1104 = vld [vmem:[#allocation2 + $0x58] sm:$0xf]
      %v1105 = vld [vmem:[#allocation2 + $0x5c] sm:$0x1]
      %v1106 = vld [vmem:[#allocation2 + $0x60] sm:$0xf]
      %v1107 = vld [vmem:[#allocation2 + $0x64] sm:$0xf]
      %v1108 = vld [vmem:[#allocation2 + $0x68] sm:$0x1]
      %v1109 = vld [vmem:[#allocation2 + $0x6c] sm:$0xf]
      %v1110 = vld [vmem:[#allocation2 + $0x70] sm:$0xf]
      %v1111 = vld [vmem:[#allocation2 + $0x74] sm:$0x1]
      %v1112 = vld [vmem:[#allocation2 + $0x78] sm:$0xf]
      %v1113 = vld [vmem:[#allocation2 + $0x7c] sm:$0xf]
      %v1114 = vld [vmem:[#allocation2 + $0x80] sm:$0x1]
      %v1115 = vld [vmem:[#allocation2 + $0x84] sm:$0xf]
      %v1116 = vld [vmem:[#allocation2 + $0x88] sm:$0xf]
      %v1117 = vld [vmem:[#allocation2 + $0x8c] sm:$0x1]
      %v1118 = vld [vmem:[#allocation2 + $0x90] sm:$0xf]
      %v1119 = vld [vmem:[#allocation2 + $0x94] sm:$0xf]
      %v1120 = vld [vmem:[#allocation2 + $0x98] sm:$0x1]
      %v1121 = vld [vmem:[#allocation2 + $0x9c] sm:$0xf]
      %v1122 = vld [vmem:[#allocation2 + $0xa0] sm:$0xf]
      %v1123 = vld [vmem:[#allocation2 + $0xa4] sm:$0x1]
      %v1124 = vld [vmem:[#allocation2 + $0xa8] sm:$0xf]
      %v1125 = vld [vmem:[#allocation2 + $0xac] sm:$0xf]
      %v1126 = vld [vmem:[#allocation2 + $0xb0] sm:$0x1]
      %v1127 = vld [vmem:[#allocation2 + $0xb4] sm:$0xf]
      %v1128 = vld [vmem:[#allocation2 + $0xb8] sm:$0xf]
      %v1129 = vld [vmem:[#allocation2 + $0xbc] sm:$0x1]
      %vm1130 = vsmask.f32 3328
      %vm1131 = vsmask.f32 7440
      %vm1132 = vmor %vm1130, %vm1131
      %v1134 = vshrl.u32 %v1082, 16
      %v1136 = vrot.slane %v1134, 4
      %v1137 = vshll.u32 %v1082, 16
      %v1139 = vrot.slane %v1137, 5
      %v1140 = vor.u32 %v1136, %v1139
      %v1141 = vrot.slane %v1140, 4
      %v1143 = vshll.u32 %v1083, 16
      %v1145 = vrot.slane %v1143, 5
      %v1146 = vsel %vm1132, %v1141, %v1145
      %v1147 = vshrl.u32 %v1083, 16
      %v1149 = vrot.slane %v1147, 4
      %v1150 = vor.u32 %v1149, %v1145
      %v1151 = vrot.slane %v1150, 4
      %v1153 = vshll.u32 %v1084, 16
      %v1155 = vrot.slane %v1153, 5
      %v1156 = vsel %vm1132, %v1151, %v1155
      %v1158 = vshrl.u32 %v1085, 16
      %v1160 = vrot.slane %v1158, 4
      %v1161 = vshll.u32 %v1085, 16
      %v1163 = vrot.slane %v1161, 5
      %v1164 = vor.u32 %v1160, %v1163
      %v1165 = vrot.slane %v1164, 4
      %v1167 = vshll.u32 %v1086, 16
      %v1169 = vrot.slane %v1167, 5
      %v1170 = vsel %vm1132, %v1165, %v1169
      %v1171 = vshrl.u32 %v1086, 16
      %v1173 = vrot.slane %v1171, 4
      %v1174 = vor.u32 %v1173, %v1169
      %v1175 = vrot.slane %v1174, 4
      %v1177 = vshll.u32 %v1087, 16
      %v1179 = vrot.slane %v1177, 5
      %v1180 = vsel %vm1132, %v1175, %v1179
      %v1182 = vshrl.u32 %v1088, 16
      %v1184 = vrot.slane %v1182, 4
      %v1185 = vshll.u32 %v1088, 16
      %v1187 = vrot.slane %v1185, 5
      %v1188 = vor.u32 %v1184, %v1187
      %v1189 = vrot.slane %v1188, 4
      %v1191 = vshll.u32 %v1089, 16
      %v1193 = vrot.slane %v1191, 5
      %v1194 = vsel %vm1132, %v1189, %v1193
      %v1195 = vshrl.u32 %v1089, 16
      %v1197 = vrot.slane %v1195, 4
      %v1198 = vor.u32 %v1197, %v1193
      %v1199 = vrot.slane %v1198, 4
      %v1201 = vshll.u32 %v1090, 16
      %v1203 = vrot.slane %v1201, 5
      %v1204 = vsel %vm1132, %v1199, %v1203
      %v1206 = vshrl.u32 %v1091, 16
      %v1208 = vrot.slane %v1206, 4
      %v1209 = vshll.u32 %v1091, 16
      %v1211 = vrot.slane %v1209, 5
      %v1212 = vor.u32 %v1208, %v1211
      %v1213 = vrot.slane %v1212, 4
      %v1215 = vshll.u32 %v1092, 16
      %v1217 = vrot.slane %v1215, 5
      %v1218 = vsel %vm1132, %v1213, %v1217
      %v1219 = vshrl.u32 %v1092, 16
      %v1221 = vrot.slane %v1219, 4
      %v1222 = vor.u32 %v1221, %v1217
      %v1223 = vrot.slane %v1222, 4
      %v1225 = vshll.u32 %v1093, 16
      %v1227 = vrot.slane %v1225, 5
      %v1228 = vsel %vm1132, %v1223, %v1227
      %v1230 = vshrl.u32 %v1094, 16
      %v1232 = vrot.slane %v1230, 4
      %v1233 = vshll.u32 %v1094, 16
      %v1235 = vrot.slane %v1233, 5
      %v1236 = vor.u32 %v1232, %v1235
      %v1237 = vrot.slane %v1236, 4
      %v1239 = vshll.u32 %v1095, 16
      %v1241 = vrot.slane %v1239, 5
      %v1242 = vsel %vm1132, %v1237, %v1241
      %v1243 = vshrl.u32 %v1095, 16
      %v1245 = vrot.slane %v1243, 4
      %v1246 = vor.u32 %v1245, %v1241
      %v1247 = vrot.slane %v1246, 4
      %v1249 = vshll.u32 %v1096, 16
      %v1251 = vrot.slane %v1249, 5
      %v1252 = vsel %vm1132, %v1247, %v1251
      %v1254 = vshrl.u32 %v1097, 16
      %v1256 = vrot.slane %v1254, 4
      %v1257 = vshll.u32 %v1097, 16
      %v1259 = vrot.slane %v1257, 5
      %v1260 = vor.u32 %v1256, %v1259
      %v1261 = vrot.slane %v1260, 4
      %v1263 = vshll.u32 %v1098, 16
      %v1265 = vrot.slane %v1263, 5
      %v1266 = vsel %vm1132, %v1261, %v1265
      %v1267 = vshrl.u32 %v1098, 16
      %v1269 = vrot.slane %v1267, 4
      %v1270 = vor.u32 %v1269, %v1265
      %v1271 = vrot.slane %v1270, 4
      %v1273 = vshll.u32 %v1099, 16
      %v1275 = vrot.slane %v1273, 5
      %v1276 = vsel %vm1132, %v1271, %v1275
      %v1278 = vshrl.u32 %v1100, 16
      %v1280 = vrot.slane %v1278, 4
      %v1281 = vshll.u32 %v1100, 16
      %v1283 = vrot.slane %v1281, 5
      %v1284 = vor.u32 %v1280, %v1283
      %v1285 = vrot.slane %v1284, 4
      %v1287 = vshll.u32 %v1101, 16
      %v1289 = vrot.slane %v1287, 5
      %v1290 = vsel %vm1132, %v1285, %v1289
      %v1291 = vshrl.u32 %v1101, 16
      %v1293 = vrot.slane %v1291, 4
      %v1294 = vor.u32 %v1293, %v1289
      %v1295 = vrot.slane %v1294, 4
      %v1297 = vshll.u32 %v1102, 16
      %v1299 = vrot.slane %v1297, 5
      %v1300 = vsel %vm1132, %v1295, %v1299
      %v1302 = vshrl.u32 %v1103, 16
      %v1304 = vrot.slane %v1302, 4
      %v1305 = vshll.u32 %v1103, 16
      %v1307 = vrot.slane %v1305, 5
      %v1308 = vor.u32 %v1304, %v1307
      %v1309 = vrot.slane %v1308, 4
      %v1311 = vshll.u32 %v1104, 16
      %v1313 = vrot.slane %v1311, 5
      %v1314 = vsel %vm1132, %v1309, %v1313
      %v1315 = vshrl.u32 %v1104, 16
      %v1317 = vrot.slane %v1315, 4
      %v1318 = vor.u32 %v1317, %v1313
      %v1319 = vrot.slane %v1318, 4
      %v1321 = vshll.u32 %v1105, 16
      %v1323 = vrot.slane %v1321, 5
      %v1324 = vsel %vm1132, %v1319, %v1323
      %v1326 = vshrl.u32 %v1106, 16
      %v1328 = vrot.slane %v1326, 4
      %v1329 = vshll.u32 %v1106, 16
      %v1331 = vrot.slane %v1329, 5
      %v1332 = vor.u32 %v1328, %v1331
      %v1333 = vrot.slane %v1332, 4
      %v1335 = vshll.u32 %v1107, 16
      %v1337 = vrot.slane %v1335, 5
      %v1338 = vsel %vm1132, %v1333, %v1337
      %v1339 = vshrl.u32 %v1107, 16
      %v1341 = vrot.slane %v1339, 4
      %v1342 = vor.u32 %v1341, %v1337
      %v1343 = vrot.slane %v1342, 4
      %v1345 = vshll.u32 %v1108, 16
      %v1347 = vrot.slane %v1345, 5
      %v1348 = vsel %vm1132, %v1343, %v1347
      %v1350 = vshrl.u32 %v1109, 16
      %v1352 = vrot.slane %v1350, 4
      %v1353 = vshll.u32 %v1109, 16
      %v1355 = vrot.slane %v1353, 5
      %v1356 = vor.u32 %v1352, %v1355
      %v1357 = vrot.slane %v1356, 4
      %v1359 = vshll.u32 %v1110, 16
      %v1361 = vrot.slane %v1359, 5
      %v1362 = vsel %vm1132, %v1357, %v1361
      %v1363 = vshrl.u32 %v1110, 16
      %v1365 = vrot.slane %v1363, 4
      %v1366 = vor.u32 %v1365, %v1361
      %v1367 = vrot.slane %v1366, 4
      %v1369 = vshll.u32 %v1111, 16
      %v1371 = vrot.slane %v1369, 5
      %v1372 = vsel %vm1132, %v1367, %v1371
      %v1374 = vshrl.u32 %v1112, 16
      %v1376 = vrot.slane %v1374, 4
      %v1377 = vshll.u32 %v1112, 16
      %v1379 = vrot.slane %v1377, 5
      %v1380 = vor.u32 %v1376, %v1379
      %v1381 = vrot.slane %v1380, 4
      %v1383 = vshll.u32 %v1113, 16
      %v1385 = vrot.slane %v1383, 5
      %v1386 = vsel %vm1132, %v1381, %v1385
      %v1387 = vshrl.u32 %v1113, 16
      %v1389 = vrot.slane %v1387, 4
      %v1390 = vor.u32 %v1389, %v1385
      %v1391 = vrot.slane %v1390, 4
      %v1393 = vshll.u32 %v1114, 16
      %v1395 = vrot.slane %v1393, 5
      %v1396 = vsel %vm1132, %v1391, %v1395
      %v1398 = vshrl.u32 %v1115, 16
      %v1400 = vrot.slane %v1398, 4
      %v1401 = vshll.u32 %v1115, 16
      %v1403 = vrot.slane %v1401, 5
      %v1404 = vor.u32 %v1400, %v1403
      %v1405 = vrot.slane %v1404, 4
      %v1407 = vshll.u32 %v1116, 16
      %v1409 = vrot.slane %v1407, 5
      %v1410 = vsel %vm1132, %v1405, %v1409
      %v1411 = vshrl.u32 %v1116, 16
      %v1413 = vrot.slane %v1411, 4
      %v1414 = vor.u32 %v1413, %v1409
      %v1415 = vrot.slane %v1414, 4
      %v1417 = vshll.u32 %v1117, 16
      %v1419 = vrot.slane %v1417, 5
      %v1420 = vsel %vm1132, %v1415, %v1419
      %v1422 = vshrl.u32 %v1118, 16
      %v1424 = vrot.slane %v1422, 4
      %v1425 = vshll.u32 %v1118, 16
      %v1427 = vrot.slane %v1425, 5
      %v1428 = vor.u32 %v1424, %v1427
      %v1429 = vrot.slane %v1428, 4
      %v1431 = vshll.u32 %v1119, 16
      %v1433 = vrot.slane %v1431, 5
      %v1434 = vsel %vm1132, %v1429, %v1433
      %v1435 = vshrl.u32 %v1119, 16
      %v1437 = vrot.slane %v1435, 4
      %v1438 = vor.u32 %v1437, %v1433
      %v1439 = vrot.slane %v1438, 4
      %v1441 = vshll.u32 %v1120, 16
      %v1443 = vrot.slane %v1441, 5
      %v1444 = vsel %vm1132, %v1439, %v1443
      %v1446 = vshrl.u32 %v1121, 16
      %v1448 = vrot.slane %v1446, 4
      %v1449 = vshll.u32 %v1121, 16
      %v1451 = vrot.slane %v1449, 5
      %v1452 = vor.u32 %v1448, %v1451
      %v1453 = vrot.slane %v1452, 4
      %v1455 = vshll.u32 %v1122, 16
      %v1457 = vrot.slane %v1455, 5
      %v1458 = vsel %vm1132, %v1453, %v1457
      %v1459 = vshrl.u32 %v1122, 16
      %v1461 = vrot.slane %v1459, 4
      %v1462 = vor.u32 %v1461, %v1457
      %v1463 = vrot.slane %v1462, 4
      %v1465 = vshll.u32 %v1123, 16
      %v1467 = vrot.slane %v1465, 5
      %v1468 = vsel %vm1132, %v1463, %v1467
      %v1470 = vshrl.u32 %v1124, 16
      %v1472 = vrot.slane %v1470, 4
      %v1473 = vshll.u32 %v1124, 16
      %v1475 = vrot.slane %v1473, 5
      %v1476 = vor.u32 %v1472, %v1475
      %v1477 = vrot.slane %v1476, 4
      %v1479 = vshll.u32 %v1125, 16
      %v1481 = vrot.slane %v1479, 5
      %v1482 = vsel %vm1132, %v1477, %v1481
      %v1483 = vshrl.u32 %v1125, 16
      %v1485 = vrot.slane %v1483, 4
      %v1486 = vor.u32 %v1485, %v1481
      %v1487 = vrot.slane %v1486, 4
      %v1489 = vshll.u32 %v1126, 16
      %v1491 = vrot.slane %v1489, 5
      %v1492 = vsel %vm1132, %v1487, %v1491
      %v1494 = vshrl.u32 %v1127, 16
      %v1496 = vrot.slane %v1494, 4
      %v1497 = vshll.u32 %v1127, 16
      %v1499 = vrot.slane %v1497, 5
      %v1500 = vor.u32 %v1496, %v1499
      %v1501 = vrot.slane %v1500, 4
      %v1503 = vshll.u32 %v1128, 16
      %v1505 = vrot.slane %v1503, 5
      %v1506 = vsel %vm1132, %v1501, %v1505
      %v1507 = vshrl.u32 %v1128, 16
      %v1509 = vrot.slane %v1507, 4
      %v1510 = vor.u32 %v1509, %v1505
      %v1511 = vrot.slane %v1510, 4
      %v1513 = vshll.u32 %v1129, 16
      %v1515 = vrot.slane %v1513, 5
      %v1516 = vsel %vm1132, %v1511, %v1515
      %v1517 = vunpack.c.l.b16 %v1146
      %v1518 = vunpack.c.l.b16 %v1156
      %v1519 = vunpack.c.l.b16 %v1170
      %v1520 = vunpack.c.l.b16 %v1180
      %v1521 = vunpack.c.l.b16 %v1194
      %v1522 = vunpack.c.l.b16 %v1204
      %v1523 = vunpack.c.l.b16 %v1218
      %v1524 = vunpack.c.l.b16 %v1228
      %v1525 = vunpack.c.l.b16 %v1242
      %v1526 = vunpack.c.l.b16 %v1252
      %v1527 = vunpack.c.l.b16 %v1266
      %v1528 = vunpack.c.l.b16 %v1276
      %v1529 = vunpack.c.l.b16 %v1290
      %v1530 = vunpack.c.l.b16 %v1300
      %v1531 = vunpack.c.l.b16 %v1314
      %v1532 = vunpack.c.l.b16 %v1324
      %v1533 = vunpack.c.l.b16 %v1338
      %v1534 = vunpack.c.l.b16 %v1348
      %v1535 = vunpack.c.l.b16 %v1362
      %v1536 = vunpack.c.l.b16 %v1372
      %v1537 = vunpack.c.l.b16 %v1386
      %v1538 = vunpack.c.l.b16 %v1396
      %v1539 = vunpack.c.l.b16 %v1410
      %v1540 = vunpack.c.l.b16 %v1420
      %v1541 = vunpack.c.l.b16 %v1434
      %v1542 = vunpack.c.l.b16 %v1444
      %v1543 = vunpack.c.l.b16 %v1458
      %v1544 = vunpack.c.l.b16 %v1468
      %v1545 = vunpack.c.l.b16 %v1482
      %v1546 = vunpack.c.l.b16 %v1492
      %v1547 = vunpack.c.l.b16 %v1506
      %v1548 = vunpack.c.l.b16 %v1516
      %v1549 = vpack.c.b16 %v1518, %v1517
      %v1550 = vpack.c.b16 %v1520, %v1519
      %v1551 = vpack.c.b16 %v1522, %v1521
      %v1552 = vpack.c.b16 %v1524, %v1523
      %v1553 = vpack.c.b16 %v1526, %v1525
      %v1554 = vpack.c.b16 %v1528, %v1527
      %v1555 = vpack.c.b16 %v1530, %v1529
      %v1556 = vpack.c.b16 %v1532, %v1531
      %v1557 = vpack.c.b16 %v1534, %v1533
      %v1558 = vpack.c.b16 %v1536, %v1535
      %v1559 = vpack.c.b16 %v1538, %v1537
      %v1560 = vpack.c.b16 %v1540, %v1539
      %v1561 = vpack.c.b16 %v1542, %v1541
      %v1562 = vpack.c.b16 %v1544, %v1543
      %v1563 = vpack.c.b16 %v1546, %v1545
      %v1564 = vpack.c.b16 %v1548, %v1547
      %1581 = vst [vmem:[#allocation3 + $0x8] sm:$0xff] %v1549
      %1582 = vst [vmem:[#allocation3 + $0x50] sm:$0xff] %v1550
      %1583 = vst [vmem:[#allocation3 + $0x98] sm:$0xff] %v1551
      %1584 = vst [vmem:[#allocation3 + $0xe0] sm:$0xff] %v1552
      %1585 = vst [vmem:[#allocation3 + $0x128] sm:$0xff] %v1553
      %1586 = vst [vmem:[#allocation3 + $0x170] sm:$0xff] %v1554
      %1587 = vst [vmem:[#allocation3 + $0x1b8] sm:$0xff] %v1555
      %1588 = vst [vmem:[#allocation3 + $0x200] sm:$0xff] %v1556
      %1589 = vst [vmem:[#allocation3 + $0x248] sm:$0xff] %v1557
      %1590 = vst [vmem:[#allocation3 + $0x290] sm:$0xff] %v1558
      %1591 = vst [vmem:[#allocation3 + $0x2d8] sm:$0xff] %v1559
      %1592 = vst [vmem:[#allocation3 + $0x320] sm:$0xff] %v1560
      %1593 = vst [vmem:[#allocation3 + $0x368] sm:$0xff] %v1561
      %1594 = vst [vmem:[#allocation3 + $0x3b0] sm:$0xff] %v1562
      %1595 = vst [vmem:[#allocation3 + $0x3f8] sm:$0xff] %v1563
      %1596 = vst [vmem:[#allocation3 + $0x440] sm:$0xff] %v1564
      %v1597 = vld [vmem:[#allocation2] sm:$0xe]
      %v1598 = vld [vmem:[#allocation2 + $0x4] sm:$0xf]
      %v1599 = vld [vmem:[#allocation2 + $0x8] sm:$0x1]
      %v1600 = vld [vmem:[#allocation2 + $0xc] sm:$0xe]
      %v1601 = vld [vmem:[#allocation2 + $0x10] sm:$0xf]
      %v1602 = vld [vmem:[#allocation2 + $0x14] sm:$0x1]
      %v1603 = vld [vmem:[#allocation2 + $0x18] sm:$0xe]
      %v1604 = vld [vmem:[#allocation2 + $0x1c] sm:$0xf]
      %v1605 = vld [vmem:[#allocation2 + $0x20] sm:$0x1]
      %v1606 = vld [vmem:[#allocation2 + $0x24] sm:$0xe]
      %v1607 = vld [vmem:[#allocation2 + $0x28] sm:$0xf]
      %v1608 = vld [vmem:[#allocation2 + $0x2c] sm:$0x1]
      %v1609 = vld [vmem:[#allocation2 + $0x30] sm:$0xe]
      %v1610 = vld [vmem:[#allocation2 + $0x34] sm:$0xf]
      %v1611 = vld [vmem:[#allocation2 + $0x38] sm:$0x1]
      %v1612 = vld [vmem:[#allocation2 + $0x3c] sm:$0xe]
      %v1613 = vld [vmem:[#allocation2 + $0x40] sm:$0xf]
      %v1614 = vld [vmem:[#allocation2 + $0x44] sm:$0x1]
      %v1615 = vld [vmem:[#allocation2 + $0x48] sm:$0xe]
      %v1616 = vld [vmem:[#allocation2 + $0x4c] sm:$0xf]
      %v1617 = vld [vmem:[#allocation2 + $0x50] sm:$0x1]
      %v1618 = vld [vmem:[#allocation2 + $0x54] sm:$0xe]
      %v1619 = vld [vmem:[#allocation2 + $0x58] sm:$0xf]
      %v1620 = vld [vmem:[#allocation2 + $0x5c] sm:$0x1]
      %v1621 = vld [vmem:[#allocation2 + $0x60] sm:$0xe]
      %v1622 = vld [vmem:[#allocation2 + $0x64] sm:$0xf]
      %v1623 = vld [vmem:[#allocation2 + $0x68] sm:$0x1]
      %v1624 = vld [vmem:[#allocation2 + $0x6c] sm:$0xe]
      %v1625 = vld [vmem:[#allocation2 + $0x70] sm:$0xf]
      %v1626 = vld [vmem:[#allocation2 + $0x74] sm:$0x1]
      %v1627 = vld [vmem:[#allocation2 + $0x78] sm:$0xe]
      %v1628 = vld [vmem:[#allocation2 + $0x7c] sm:$0xf]
      %v1629 = vld [vmem:[#allocation2 + $0x80] sm:$0x1]
      %v1630 = vld [vmem:[#allocation2 + $0x84] sm:$0xe]
      %v1631 = vld [vmem:[#allocation2 + $0x88] sm:$0xf]
      %v1632 = vld [vmem:[#allocation2 + $0x8c] sm:$0x1]
      %v1633 = vld [vmem:[#allocation2 + $0x90] sm:$0xe]
      %v1634 = vld [vmem:[#allocation2 + $0x94] sm:$0xf]
      %v1635 = vld [vmem:[#allocation2 + $0x98] sm:$0x1]
      %v1636 = vld [vmem:[#allocation2 + $0x9c] sm:$0xe]
      %v1637 = vld [vmem:[#allocation2 + $0xa0] sm:$0xf]
      %v1638 = vld [vmem:[#allocation2 + $0xa4] sm:$0x1]
      %v1639 = vld [vmem:[#allocation2 + $0xa8] sm:$0xe]
      %v1640 = vld [vmem:[#allocation2 + $0xac] sm:$0xf]
      %v1641 = vld [vmem:[#allocation2 + $0xb0] sm:$0x1]
      %v1642 = vld [vmem:[#allocation2 + $0xb4] sm:$0xe]
      %v1643 = vld [vmem:[#allocation2 + $0xb8] sm:$0xf]
      %v1644 = vld [vmem:[#allocation2 + $0xbc] sm:$0x1]
      %vm1693 = vcmask 1042432
      %vm1694 = vcmask 1046532
      %vm1695 = vmor %vm1693, %vm1694
      %v1696 = vrot.slane %v1597, 5
      %v1697 = vrot.slane %v1696, 4
      %v1698 = vrot.slane %v1598, 5
      %v1699 = vsel %vm1695, %v1697, %v1698
      %v1700 = vrot.slane %v1698, 4
      %v1701 = vrot.slane %v1599, 5
      %v1702 = vsel %vm1695, %v1700, %v1701
      %v1703 = vrot.slane %v1600, 5
      %v1704 = vrot.slane %v1703, 4
      %v1705 = vrot.slane %v1601, 5
      %v1706 = vsel %vm1695, %v1704, %v1705
      %v1707 = vrot.slane %v1705, 4
      %v1708 = vrot.slane %v1602, 5
      %v1709 = vsel %vm1695, %v1707, %v1708
      %v1710 = vrot.slane %v1603, 5
      %v1711 = vrot.slane %v1710, 4
      %v1712 = vrot.slane %v1604, 5
      %v1713 = vsel %vm1695, %v1711, %v1712
      %v1714 = vrot.slane %v1712, 4
      %v1715 = vrot.slane %v1605, 5
      %v1716 = vsel %vm1695, %v1714, %v1715
      %v1717 = vrot.slane %v1606, 5
      %v1718 = vrot.slane %v1717, 4
      %v1719 = vrot.slane %v1607, 5
      %v1720 = vsel %vm1695, %v1718, %v1719
      %v1721 = vrot.slane %v1719, 4
      %v1722 = vrot.slane %v1608, 5
      %v1723 = vsel %vm1695, %v1721, %v1722
      %v1724 = vrot.slane %v1609, 5
      %v1725 = vrot.slane %v1724, 4
      %v1726 = vrot.slane %v1610, 5
      %v1727 = vsel %vm1695, %v1725, %v1726
      %v1728 = vrot.slane %v1726, 4
      %v1729 = vrot.slane %v1611, 5
      %v1730 = vsel %vm1695, %v1728, %v1729
      %v1731 = vrot.slane %v1612, 5
      %v1732 = vrot.slane %v1731, 4
      %v1733 = vrot.slane %v1613, 5
      %v1734 = vsel %vm1695, %v1732, %v1733
      %v1735 = vrot.slane %v1733, 4
      %v1736 = vrot.slane %v1614, 5
      %v1737 = vsel %vm1695, %v1735, %v1736
      %v1738 = vrot.slane %v1615, 5
      %v1739 = vrot.slane %v1738, 4
      %v1740 = vrot.slane %v1616, 5
      %v1741 = vsel %vm1695, %v1739, %v1740
      %v1742 = vrot.slane %v1740, 4
      %v1743 = vrot.slane %v1617, 5
      %v1744 = vsel %vm1695, %v1742, %v1743
      %v1745 = vrot.slane %v1618, 5
      %v1746 = vrot.slane %v1745, 4
      %v1747 = vrot.slane %v1619, 5
      %v1748 = vsel %vm1695, %v1746, %v1747
      %v1749 = vrot.slane %v1747, 4
      %v1750 = vrot.slane %v1620, 5
      %v1751 = vsel %vm1695, %v1749, %v1750
      %v1752 = vrot.slane %v1621, 5
      %v1753 = vrot.slane %v1752, 4
      %v1754 = vrot.slane %v1622, 5
      %v1755 = vsel %vm1695, %v1753, %v1754
      %v1756 = vrot.slane %v1754, 4
      %v1757 = vrot.slane %v1623, 5
      %v1758 = vsel %vm1695, %v1756, %v1757
      %v1759 = vrot.slane %v1624, 5
      %v1760 = vrot.slane %v1759, 4
      %v1761 = vrot.slane %v1625, 5
      %v1762 = vsel %vm1695, %v1760, %v1761
      %v1763 = vrot.slane %v1761, 4
      %v1764 = vrot.slane %v1626, 5
      %v1765 = vsel %vm1695, %v1763, %v1764
      %v1766 = vrot.slane %v1627, 5
      %v1767 = vrot.slane %v1766, 4
      %v1768 = vrot.slane %v1628, 5
      %v1769 = vsel %vm1695, %v1767, %v1768
      %v1770 = vrot.slane %v1768, 4
      %v1771 = vrot.slane %v1629, 5
      %v1772 = vsel %vm1695, %v1770, %v1771
      %v1773 = vrot.slane %v1630, 5
      %v1774 = vrot.slane %v1773, 4
      %v1775 = vrot.slane %v1631, 5
      %v1776 = vsel %vm1695, %v1774, %v1775
      %v1777 = vrot.slane %v1775, 4
      %v1778 = vrot.slane %v1632, 5
      %v1779 = vsel %vm1695, %v1777, %v1778
      %v1780 = vrot.slane %v1633, 5
      %v1781 = vrot.slane %v1780, 4
      %v1782 = vrot.slane %v1634, 5
      %v1783 = vsel %vm1695, %v1781, %v1782
      %v1784 = vrot.slane %v1782, 4
      %v1785 = vrot.slane %v1635, 5
      %v1786 = vsel %vm1695, %v1784, %v1785
      %v1787 = vrot.slane %v1636, 5
      %v1788 = vrot.slane %v1787, 4
      %v1789 = vrot.slane %v1637, 5
      %v1790 = vsel %vm1695, %v1788, %v1789
      %v1791 = vrot.slane %v1789, 4
      %v1792 = vrot.slane %v1638, 5
      %v1793 = vsel %vm1695, %v1791, %v1792
      %v1794 = vrot.slane %v1639, 5
      %v1795 = vrot.slane %v1794, 4
      %v1796 = vrot.slane %v1640, 5
      %v1797 = vsel %vm1695, %v1795, %v1796
      %v1798 = vrot.slane %v1796, 4
      %v1799 = vrot.slane %v1641, 5
      %v1800 = vsel %vm1695, %v1798, %v1799
      %v1801 = vrot.slane %v1642, 5
      %v1802 = vrot.slane %v1801, 4
      %v1803 = vrot.slane %v1643, 5
      %v1804 = vsel %vm1695, %v1802, %v1803
      %v1805 = vrot.slane %v1803, 4
      %v1806 = vrot.slane %v1644, 5
      %v1807 = vsel %vm1695, %v1805, %v1806
      %v1808 = vunpack.c.l.b16 %v1699
      %v1809 = vunpack.c.l.b16 %v1702
      %v1810 = vunpack.c.l.b16 %v1706
      %v1811 = vunpack.c.l.b16 %v1709
      %v1812 = vunpack.c.l.b16 %v1713
      %v1813 = vunpack.c.l.b16 %v1716
      %v1814 = vunpack.c.l.b16 %v1720
      %v1815 = vunpack.c.l.b16 %v1723
      %v1816 = vunpack.c.l.b16 %v1727
      %v1817 = vunpack.c.l.b16 %v1730
      %v1818 = vunpack.c.l.b16 %v1734
      %v1819 = vunpack.c.l.b16 %v1737
      %v1820 = vunpack.c.l.b16 %v1741
      %v1821 = vunpack.c.l.b16 %v1744
      %v1822 = vunpack.c.l.b16 %v1748
      %v1823 = vunpack.c.l.b16 %v1751
      %v1824 = vunpack.c.l.b16 %v1755
      %v1825 = vunpack.c.l.b16 %v1758
      %v1826 = vunpack.c.l.b16 %v1762
      %v1827 = vunpack.c.l.b16 %v1765
      %v1828 = vunpack.c.l.b16 %v1769
      %v1829 = vunpack.c.l.b16 %v1772
      %v1830 = vunpack.c.l.b16 %v1776
      %v1831 = vunpack.c.l.b16 %v1779
      %v1832 = vunpack.c.l.b16 %v1783
      %v1833 = vunpack.c.l.b16 %v1786
      %v1834 = vunpack.c.l.b16 %v1790
      %v1835 = vunpack.c.l.b16 %v1793
      %v1836 = vunpack.c.l.b16 %v1797
      %v1837 = vunpack.c.l.b16 %v1800
      %v1838 = vunpack.c.l.b16 %v1804
      %v1839 = vunpack.c.l.b16 %v1807
      %v1840 = vpack.c.b16 %v1809, %v1808
      %v1841 = vpack.c.b16 %v1811, %v1810
      %v1842 = vpack.c.b16 %v1813, %v1812
      %v1843 = vpack.c.b16 %v1815, %v1814
      %v1844 = vpack.c.b16 %v1817, %v1816
      %v1845 = vpack.c.b16 %v1819, %v1818
      %v1846 = vpack.c.b16 %v1821, %v1820
      %v1847 = vpack.c.b16 %v1823, %v1822
      %v1848 = vpack.c.b16 %v1825, %v1824
      %v1849 = vpack.c.b16 %v1827, %v1826
      %v1850 = vpack.c.b16 %v1829, %v1828
      %v1851 = vpack.c.b16 %v1831, %v1830
      %v1852 = vpack.c.b16 %v1833, %v1832
      %v1853 = vpack.c.b16 %v1835, %v1834
      %v1854 = vpack.c.b16 %v1837, %v1836
      %v1855 = vpack.c.b16 %v1839, %v1838
      %1872 = vst [vmem:[#allocation3 + $0x10] sm:$0xff] %v1840
      %1873 = vst [vmem:[#allocation3 + $0x58] sm:$0xff] %v1841
      %1874 = vst [vmem:[#allocation3 + $0xa0] sm:$0xff] %v1842
      %1875 = vst [vmem:[#allocation3 + $0xe8] sm:$0xff] %v1843
      %1876 = vst [vmem:[#allocation3 + $0x130] sm:$0xff] %v1844
      %1877 = vst [vmem:[#allocation3 + $0x178] sm:$0xff] %v1845
      %1878 = vst [vmem:[#allocation3 + $0x1c0] sm:$0xff] %v1846
      %1879 = vst [vmem:[#allocation3 + $0x208] sm:$0xff] %v1847
      %1880 = vst [vmem:[#allocation3 + $0x250] sm:$0xff] %v1848
      %1881 = vst [vmem:[#allocation3 + $0x298] sm:$0xff] %v1849
      %1882 = vst [vmem:[#allocation3 + $0x2e0] sm:$0xff] %v1850
      %1883 = vst [vmem:[#allocation3 + $0x328] sm:$0xff] %v1851
      %1884 = vst [vmem:[#allocation3 + $0x370] sm:$0xff] %v1852
      %1885 = vst [vmem:[#allocation3 + $0x3b8] sm:$0xff] %v1853
      %1886 = vst [vmem:[#allocation3 + $0x400] sm:$0xff] %v1854
      %1887 = vst [vmem:[#allocation3 + $0x448] sm:$0xff] %v1855
      %v1888 = vld [vmem:[%s368] sm:$0xf]
      %v1889 = vld [vmem:[%s368 + $0x4] sm:$0xf]
      %v1890 = vld [vmem:[%s368 + $0xc] sm:$0xf]
      %v1891 = vld [vmem:[%s368 + $0x10] sm:$0xf]
      %v1892 = vld [vmem:[%s368 + $0x18] sm:$0xf]
      %v1893 = vld [vmem:[%s368 + $0x1c] sm:$0xf]
      %v1894 = vld [vmem:[%s368 + $0x24] sm:$0xf]
      %v1895 = vld [vmem:[%s368 + $0x28] sm:$0xf]
      %v1896 = vld [vmem:[%s368 + $0x30] sm:$0xf]
      %v1897 = vld [vmem:[%s368 + $0x34] sm:$0xf]
      %v1898 = vld [vmem:[%s368 + $0x3c] sm:$0xf]
      %v1899 = vld [vmem:[%s368 + $0x40] sm:$0xf]
      %v1900 = vld [vmem:[%s368 + $0x48] sm:$0xf]
      %v1901 = vld [vmem:[%s368 + $0x4c] sm:$0xf]
      %v1902 = vld [vmem:[%s368 + $0x54] sm:$0xf]
      %v1903 = vld [vmem:[%s368 + $0x58] sm:$0xf]
      %v1904 = vld [vmem:[%s368 + $0x60] sm:$0xf]
      %v1905 = vld [vmem:[%s368 + $0x64] sm:$0xf]
      %v1906 = vld [vmem:[%s368 + $0x6c] sm:$0xf]
      %v1907 = vld [vmem:[%s368 + $0x70] sm:$0xf]
      %v1908 = vld [vmem:[%s368 + $0x78] sm:$0xf]
      %v1909 = vld [vmem:[%s368 + $0x7c] sm:$0xf]
      %v1910 = vld [vmem:[%s368 + $0x84] sm:$0xf]
      %v1911 = vld [vmem:[%s368 + $0x88] sm:$0xf]
      %v1912 = vld [vmem:[%s368 + $0x90] sm:$0xf]
      %v1913 = vld [vmem:[%s368 + $0x94] sm:$0xf]
      %v1914 = vld [vmem:[%s368 + $0x9c] sm:$0xf]
      %v1915 = vld [vmem:[%s368 + $0xa0] sm:$0xf]
      %v1916 = vld [vmem:[%s368 + $0xa8] sm:$0xf]
      %v1917 = vld [vmem:[%s368 + $0xac] sm:$0xf]
      %v1918 = vld [vmem:[%s368 + $0xb4] sm:$0xf]
      %v1919 = vld [vmem:[%s368 + $0xb8] sm:$0xf]
      %v1952 = vunpack.c.l.b16 %v1888
      %v1953 = vunpack.c.l.b16 %v1889
      %v1954 = vunpack.c.l.b16 %v1890
      %v1955 = vunpack.c.l.b16 %v1891
      %v1956 = vunpack.c.l.b16 %v1892
      %v1957 = vunpack.c.l.b16 %v1893
      %v1958 = vunpack.c.l.b16 %v1894
      %v1959 = vunpack.c.l.b16 %v1895
      %v1960 = vunpack.c.l.b16 %v1896
      %v1961 = vunpack.c.l.b16 %v1897
      %v1962 = vunpack.c.l.b16 %v1898
      %v1963 = vunpack.c.l.b16 %v1899
      %v1964 = vunpack.c.l.b16 %v1900
      %v1965 = vunpack.c.l.b16 %v1901
      %v1966 = vunpack.c.l.b16 %v1902
      %v1967 = vunpack.c.l.b16 %v1903
      %v1968 = vunpack.c.l.b16 %v1904
      %v1969 = vunpack.c.l.b16 %v1905
      %v1970 = vunpack.c.l.b16 %v1906
      %v1971 = vunpack.c.l.b16 %v1907
      %v1972 = vunpack.c.l.b16 %v1908
      %v1973 = vunpack.c.l.b16 %v1909
      %v1974 = vunpack.c.l.b16 %v1910
      %v1975 = vunpack.c.l.b16 %v1911
      %v1976 = vunpack.c.l.b16 %v1912
      %v1977 = vunpack.c.l.b16 %v1913
      %v1978 = vunpack.c.l.b16 %v1914
      %v1979 = vunpack.c.l.b16 %v1915
      %v1980 = vunpack.c.l.b16 %v1916
      %v1981 = vunpack.c.l.b16 %v1917
      %v1982 = vunpack.c.l.b16 %v1918
      %v1983 = vunpack.c.l.b16 %v1919
      %v1984 = vpack.c.b16 %v1953, %v1952
      %v1985 = vpack.c.b16 %v1955, %v1954
      %v1986 = vpack.c.b16 %v1957, %v1956
      %v1987 = vpack.c.b16 %v1959, %v1958
      %v1988 = vpack.c.b16 %v1961, %v1960
      %v1989 = vpack.c.b16 %v1963, %v1962
      %v1990 = vpack.c.b16 %v1965, %v1964
      %v1991 = vpack.c.b16 %v1967, %v1966
      %v1992 = vpack.c.b16 %v1969, %v1968
      %v1993 = vpack.c.b16 %v1971, %v1970
      %v1994 = vpack.c.b16 %v1973, %v1972
      %v1995 = vpack.c.b16 %v1975, %v1974
      %v1996 = vpack.c.b16 %v1977, %v1976
      %v1997 = vpack.c.b16 %v1979, %v1978
      %v1998 = vpack.c.b16 %v1981, %v1980
      %v1999 = vpack.c.b16 %v1983, %v1982
      %2016 = vst [vmem:[#allocation3 + $0x18] sm:$0xff] %v1984
      %2017 = vst [vmem:[#allocation3 + $0x60] sm:$0xff] %v1985
      %2018 = vst [vmem:[#allocation3 + $0xa8] sm:$0xff] %v1986
      %2019 = vst [vmem:[#allocation3 + $0xf0] sm:$0xff] %v1987
      %2020 = vst [vmem:[#allocation3 + $0x138] sm:$0xff] %v1988
      %2021 = vst [vmem:[#allocation3 + $0x180] sm:$0xff] %v1989
      %2022 = vst [vmem:[#allocation3 + $0x1c8] sm:$0xff] %v1990
      %2023 = vst [vmem:[#allocation3 + $0x210] sm:$0xff] %v1991
      %2024 = vst [vmem:[#allocation3 + $0x258] sm:$0xff] %v1992
      %2025 = vst [vmem:[#allocation3 + $0x2a0] sm:$0xff] %v1993
      %2026 = vst [vmem:[#allocation3 + $0x2e8] sm:$0xff] %v1994
      %2027 = vst [vmem:[#allocation3 + $0x330] sm:$0xff] %v1995
      %2028 = vst [vmem:[#allocation3 + $0x378] sm:$0xff] %v1996
      %2029 = vst [vmem:[#allocation3 + $0x3c0] sm:$0xff] %v1997
      %2030 = vst [vmem:[#allocation3 + $0x408] sm:$0xff] %v1998
      %2031 = vst [vmem:[#allocation3 + $0x450] sm:$0xff] %v1999
      %v2032 = vld [vmem:[%s368] sm:$0xf]
      %v2033 = vld [vmem:[%s368 + $0x4] sm:$0xf]
      %v2034 = vld [vmem:[%s368 + $0x8] sm:$0x1]
      %v2035 = vld [vmem:[%s368 + $0xc] sm:$0xf]
      %v2036 = vld [vmem:[%s368 + $0x10] sm:$0xf]
      %v2037 = vld [vmem:[%s368 + $0x14] sm:$0x1]
      %v2038 = vld [vmem:[%s368 + $0x18] sm:$0xf]
      %v2039 = vld [vmem:[%s368 + $0x1c] sm:$0xf]
      %v2040 = vld [vmem:[%s368 + $0x20] sm:$0x1]
      %v2041 = vld [vmem:[%s368 + $0x24] sm:$0xf]
      %v2042 = vld [vmem:[%s368 + $0x28] sm:$0xf]
      %v2043 = vld [vmem:[%s368 + $0x2c] sm:$0x1]
      %v2044 = vld [vmem:[%s368 + $0x30] sm:$0xf]
      %v2045 = vld [vmem:[%s368 + $0x34] sm:$0xf]
      %v2046 = vld [vmem:[%s368 + $0x38] sm:$0x1]
      %v2047 = vld [vmem:[%s368 + $0x3c] sm:$0xf]
      %v2048 = vld [vmem:[%s368 + $0x40] sm:$0xf]
      %v2049 = vld [vmem:[%s368 + $0x44] sm:$0x1]
      %v2050 = vld [vmem:[%s368 + $0x48] sm:$0xf]
      %v2051 = vld [vmem:[%s368 + $0x4c] sm:$0xf]
      %v2052 = vld [vmem:[%s368 + $0x50] sm:$0x1]
      %v2053 = vld [vmem:[%s368 + $0x54] sm:$0xf]
      %v2054 = vld [vmem:[%s368 + $0x58] sm:$0xf]
      %v2055 = vld [vmem:[%s368 + $0x5c] sm:$0x1]
      %v2056 = vld [vmem:[%s368 + $0x60] sm:$0xf]
      %v2057 = vld [vmem:[%s368 + $0x64] sm:$0xf]
      %v2058 = vld [vmem:[%s368 + $0x68] sm:$0x1]
      %v2059 = vld [vmem:[%s368 + $0x6c] sm:$0xf]
      %v2060 = vld [vmem:[%s368 + $0x70] sm:$0xf]
      %v2061 = vld [vmem:[%s368 + $0x74] sm:$0x1]
      %v2062 = vld [vmem:[%s368 + $0x78] sm:$0xf]
      %v2063 = vld [vmem:[%s368 + $0x7c] sm:$0xf]
      %v2064 = vld [vmem:[%s368 + $0x80] sm:$0x1]
      %v2065 = vld [vmem:[%s368 + $0x84] sm:$0xf]
      %v2066 = vld [vmem:[%s368 + $0x88] sm:$0xf]
      %v2067 = vld [vmem:[%s368 + $0x8c] sm:$0x1]
      %v2068 = vld [vmem:[%s368 + $0x90] sm:$0xf]
      %v2069 = vld [vmem:[%s368 + $0x94] sm:$0xf]
      %v2070 = vld [vmem:[%s368 + $0x98] sm:$0x1]
      %v2071 = vld [vmem:[%s368 + $0x9c] sm:$0xf]
      %v2072 = vld [vmem:[%s368 + $0xa0] sm:$0xf]
      %v2073 = vld [vmem:[%s368 + $0xa4] sm:$0x1]
      %v2074 = vld [vmem:[%s368 + $0xa8] sm:$0xf]
      %v2075 = vld [vmem:[%s368 + $0xac] sm:$0xf]
      %v2076 = vld [vmem:[%s368 + $0xb0] sm:$0x1]
      %v2077 = vld [vmem:[%s368 + $0xb4] sm:$0xf]
      %v2078 = vld [vmem:[%s368 + $0xb8] sm:$0xf]
      %v2079 = vld [vmem:[%s368 + $0xbc] sm:$0x1]
      %v2081 = vshrl.u32 %v2032, 16
      %v2083 = vrot.slane %v2081, 4
      %v2084 = vshll.u32 %v2032, 16
      %v2086 = vrot.slane %v2084, 5
      %v2087 = vor.u32 %v2083, %v2086
      %v2088 = vrot.slane %v2087, 4
      %v2090 = vshll.u32 %v2033, 16
      %v2092 = vrot.slane %v2090, 5
      %v2093 = vsel %vm1132, %v2088, %v2092
      %v2094 = vshrl.u32 %v2033, 16
      %v2096 = vrot.slane %v2094, 4
      %v2097 = vor.u32 %v2096, %v2092
      %v2098 = vrot.slane %v2097, 4
      %v2100 = vshll.u32 %v2034, 16
      %v2102 = vrot.slane %v2100, 5
      %v2103 = vsel %vm1132, %v2098, %v2102
      %v2105 = vshrl.u32 %v2035, 16
      %v2107 = vrot.slane %v2105, 4
      %v2108 = vshll.u32 %v2035, 16
      %v2110 = vrot.slane %v2108, 5
      %v2111 = vor.u32 %v2107, %v2110
      %v2112 = vrot.slane %v2111, 4
      %v2114 = vshll.u32 %v2036, 16
      %v2116 = vrot.slane %v2114, 5
      %v2117 = vsel %vm1132, %v2112, %v2116
      %v2118 = vshrl.u32 %v2036, 16
      %v2120 = vrot.slane %v2118, 4
      %v2121 = vor.u32 %v2120, %v2116
      %v2122 = vrot.slane %v2121, 4
      %v2124 = vshll.u32 %v2037, 16
      %v2126 = vrot.slane %v2124, 5
      %v2127 = vsel %vm1132, %v2122, %v2126
      %v2129 = vshrl.u32 %v2038, 16
      %v2131 = vrot.slane %v2129, 4
      %v2132 = vshll.u32 %v2038, 16
      %v2134 = vrot.slane %v2132, 5
      %v2135 = vor.u32 %v2131, %v2134
      %v2136 = vrot.slane %v2135, 4
      %v2138 = vshll.u32 %v2039, 16
      %v2140 = vrot.slane %v2138, 5
      %v2141 = vsel %vm1132, %v2136, %v2140
      %v2142 = vshrl.u32 %v2039, 16
      %v2144 = vrot.slane %v2142, 4
      %v2145 = vor.u32 %v2144, %v2140
      %v2146 = vrot.slane %v2145, 4
      %v2148 = vshll.u32 %v2040, 16
      %v2150 = vrot.slane %v2148, 5
      %v2151 = vsel %vm1132, %v2146, %v2150
      %v2153 = vshrl.u32 %v2041, 16
      %v2155 = vrot.slane %v2153, 4
      %v2156 = vshll.u32 %v2041, 16
      %v2158 = vrot.slane %v2156, 5
      %v2159 = vor.u32 %v2155, %v2158
      %v2160 = vrot.slane %v2159, 4
      %v2162 = vshll.u32 %v2042, 16
      %v2164 = vrot.slane %v2162, 5
      %v2165 = vsel %vm1132, %v2160, %v2164
      %v2166 = vshrl.u32 %v2042, 16
      %v2168 = vrot.slane %v2166, 4
      %v2169 = vor.u32 %v2168, %v2164
      %v2170 = vrot.slane %v2169, 4
      %v2172 = vshll.u32 %v2043, 16
      %v2174 = vrot.slane %v2172, 5
      %v2175 = vsel %vm1132, %v2170, %v2174
      %v2177 = vshrl.u32 %v2044, 16
      %v2179 = vrot.slane %v2177, 4
      %v2180 = vshll.u32 %v2044, 16
      %v2182 = vrot.slane %v2180, 5
      %v2183 = vor.u32 %v2179, %v2182
      %v2184 = vrot.slane %v2183, 4
      %v2186 = vshll.u32 %v2045, 16
      %v2188 = vrot.slane %v2186, 5
      %v2189 = vsel %vm1132, %v2184, %v2188
      %v2190 = vshrl.u32 %v2045, 16
      %v2192 = vrot.slane %v2190, 4
      %v2193 = vor.u32 %v2192, %v2188
      %v2194 = vrot.slane %v2193, 4
      %v2196 = vshll.u32 %v2046, 16
      %v2198 = vrot.slane %v2196, 5
      %v2199 = vsel %vm1132, %v2194, %v2198
      %v2201 = vshrl.u32 %v2047, 16
      %v2203 = vrot.slane %v2201, 4
      %v2204 = vshll.u32 %v2047, 16
      %v2206 = vrot.slane %v2204, 5
      %v2207 = vor.u32 %v2203, %v2206
      %v2208 = vrot.slane %v2207, 4
      %v2210 = vshll.u32 %v2048, 16
      %v2212 = vrot.slane %v2210, 5
      %v2213 = vsel %vm1132, %v2208, %v2212
      %v2214 = vshrl.u32 %v2048, 16
      %v2216 = vrot.slane %v2214, 4
      %v2217 = vor.u32 %v2216, %v2212
      %v2218 = vrot.slane %v2217, 4
      %v2220 = vshll.u32 %v2049, 16
      %v2222 = vrot.slane %v2220, 5
      %v2223 = vsel %vm1132, %v2218, %v2222
      %v2225 = vshrl.u32 %v2050, 16
      %v2227 = vrot.slane %v2225, 4
      %v2228 = vshll.u32 %v2050, 16
      %v2230 = vrot.slane %v2228, 5
      %v2231 = vor.u32 %v2227, %v2230
      %v2232 = vrot.slane %v2231, 4
      %v2234 = vshll.u32 %v2051, 16
      %v2236 = vrot.slane %v2234, 5
      %v2237 = vsel %vm1132, %v2232, %v2236
      %v2238 = vshrl.u32 %v2051, 16
      %v2240 = vrot.slane %v2238, 4
      %v2241 = vor.u32 %v2240, %v2236
      %v2242 = vrot.slane %v2241, 4
      %v2244 = vshll.u32 %v2052, 16
      %v2246 = vrot.slane %v2244, 5
      %v2247 = vsel %vm1132, %v2242, %v2246
      %v2249 = vshrl.u32 %v2053, 16
      %v2251 = vrot.slane %v2249, 4
      %v2252 = vshll.u32 %v2053, 16
      %v2254 = vrot.slane %v2252, 5
      %v2255 = vor.u32 %v2251, %v2254
      %v2256 = vrot.slane %v2255, 4
      %v2258 = vshll.u32 %v2054, 16
      %v2260 = vrot.slane %v2258, 5
      %v2261 = vsel %vm1132, %v2256, %v2260
      %v2262 = vshrl.u32 %v2054, 16
      %v2264 = vrot.slane %v2262, 4
      %v2265 = vor.u32 %v2264, %v2260
      %v2266 = vrot.slane %v2265, 4
      %v2268 = vshll.u32 %v2055, 16
      %v2270 = vrot.slane %v2268, 5
      %v2271 = vsel %vm1132, %v2266, %v2270
      %v2273 = vshrl.u32 %v2056, 16
      %v2275 = vrot.slane %v2273, 4
      %v2276 = vshll.u32 %v2056, 16
      %v2278 = vrot.slane %v2276, 5
      %v2279 = vor.u32 %v2275, %v2278
      %v2280 = vrot.slane %v2279, 4
      %v2282 = vshll.u32 %v2057, 16
      %v2284 = vrot.slane %v2282, 5
      %v2285 = vsel %vm1132, %v2280, %v2284
      %v2286 = vshrl.u32 %v2057, 16
      %v2288 = vrot.slane %v2286, 4
      %v2289 = vor.u32 %v2288, %v2284
      %v2290 = vrot.slane %v2289, 4
      %v2292 = vshll.u32 %v2058, 16
      %v2294 = vrot.slane %v2292, 5
      %v2295 = vsel %vm1132, %v2290, %v2294
      %v2297 = vshrl.u32 %v2059, 16
      %v2299 = vrot.slane %v2297, 4
      %v2300 = vshll.u32 %v2059, 16
      %v2302 = vrot.slane %v2300, 5
      %v2303 = vor.u32 %v2299, %v2302
      %v2304 = vrot.slane %v2303, 4
      %v2306 = vshll.u32 %v2060, 16
      %v2308 = vrot.slane %v2306, 5
      %v2309 = vsel %vm1132, %v2304, %v2308
      %v2310 = vshrl.u32 %v2060, 16
      %v2312 = vrot.slane %v2310, 4
      %v2313 = vor.u32 %v2312, %v2308
      %v2314 = vrot.slane %v2313, 4
      %v2316 = vshll.u32 %v2061, 16
      %v2318 = vrot.slane %v2316, 5
      %v2319 = vsel %vm1132, %v2314, %v2318
      %v2321 = vshrl.u32 %v2062, 16
      %v2323 = vrot.slane %v2321, 4
      %v2324 = vshll.u32 %v2062, 16
      %v2326 = vrot.slane %v2324, 5
      %v2327 = vor.u32 %v2323, %v2326
      %v2328 = vrot.slane %v2327, 4
      %v2330 = vshll.u32 %v2063, 16
      %v2332 = vrot.slane %v2330, 5
      %v2333 = vsel %vm1132, %v2328, %v2332
      %v2334 = vshrl.u32 %v2063, 16
      %v2336 = vrot.slane %v2334, 4
      %v2337 = vor.u32 %v2336, %v2332
      %v2338 = vrot.slane %v2337, 4
      %v2340 = vshll.u32 %v2064, 16
      %v2342 = vrot.slane %v2340, 5
      %v2343 = vsel %vm1132, %v2338, %v2342
      %v2345 = vshrl.u32 %v2065, 16
      %v2347 = vrot.slane %v2345, 4
      %v2348 = vshll.u32 %v2065, 16
      %v2350 = vrot.slane %v2348, 5
      %v2351 = vor.u32 %v2347, %v2350
      %v2352 = vrot.slane %v2351, 4
      %v2354 = vshll.u32 %v2066, 16
      %v2356 = vrot.slane %v2354, 5
      %v2357 = vsel %vm1132, %v2352, %v2356
      %v2358 = vshrl.u32 %v2066, 16
      %v2360 = vrot.slane %v2358, 4
      %v2361 = vor.u32 %v2360, %v2356
      %v2362 = vrot.slane %v2361, 4
      %v2364 = vshll.u32 %v2067, 16
      %v2366 = vrot.slane %v2364, 5
      %v2367 = vsel %vm1132, %v2362, %v2366
      %v2369 = vshrl.u32 %v2068, 16
      %v2371 = vrot.slane %v2369, 4
      %v2372 = vshll.u32 %v2068, 16
      %v2374 = vrot.slane %v2372, 5
      %v2375 = vor.u32 %v2371, %v2374
      %v2376 = vrot.slane %v2375, 4
      %v2378 = vshll.u32 %v2069, 16
      %v2380 = vrot.slane %v2378, 5
      %v2381 = vsel %vm1132, %v2376, %v2380
      %v2382 = vshrl.u32 %v2069, 16
      %v2384 = vrot.slane %v2382, 4
      %v2385 = vor.u32 %v2384, %v2380
      %v2386 = vrot.slane %v2385, 4
      %v2388 = vshll.u32 %v2070, 16
      %v2390 = vrot.slane %v2388, 5
      %v2391 = vsel %vm1132, %v2386, %v2390
      %v2393 = vshrl.u32 %v2071, 16
      %v2395 = vrot.slane %v2393, 4
      %v2396 = vshll.u32 %v2071, 16
      %v2398 = vrot.slane %v2396, 5
      %v2399 = vor.u32 %v2395, %v2398
      %v2400 = vrot.slane %v2399, 4
      %v2402 = vshll.u32 %v2072, 16
      %v2404 = vrot.slane %v2402, 5
      %v2405 = vsel %vm1132, %v2400, %v2404
      %v2406 = vshrl.u32 %v2072, 16
      %v2408 = vrot.slane %v2406, 4
      %v2409 = vor.u32 %v2408, %v2404
      %v2410 = vrot.slane %v2409, 4
      %v2412 = vshll.u32 %v2073, 16
      %v2414 = vrot.slane %v2412, 5
      %v2415 = vsel %vm1132, %v2410, %v2414
      %v2417 = vshrl.u32 %v2074, 16
      %v2419 = vrot.slane %v2417, 4
      %v2420 = vshll.u32 %v2074, 16
      %v2422 = vrot.slane %v2420, 5
      %v2423 = vor.u32 %v2419, %v2422
      %v2424 = vrot.slane %v2423, 4
      %v2426 = vshll.u32 %v2075, 16
      %v2428 = vrot.slane %v2426, 5
      %v2429 = vsel %vm1132, %v2424, %v2428
      %v2430 = vshrl.u32 %v2075, 16
      %v2432 = vrot.slane %v2430, 4
      %v2433 = vor.u32 %v2432, %v2428
      %v2434 = vrot.slane %v2433, 4
      %v2436 = vshll.u32 %v2076, 16
      %v2438 = vrot.slane %v2436, 5
      %v2439 = vsel %vm1132, %v2434, %v2438
      %v2441 = vshrl.u32 %v2077, 16
      %v2443 = vrot.slane %v2441, 4
      %v2444 = vshll.u32 %v2077, 16
      %v2446 = vrot.slane %v2444, 5
      %v2447 = vor.u32 %v2443, %v2446
      %v2448 = vrot.slane %v2447, 4
      %v2450 = vshll.u32 %v2078, 16
      %v2452 = vrot.slane %v2450, 5
      %v2453 = vsel %vm1132, %v2448, %v2452
      %v2454 = vshrl.u32 %v2078, 16
      %v2456 = vrot.slane %v2454, 4
      %v2457 = vor.u32 %v2456, %v2452
      %v2458 = vrot.slane %v2457, 4
      %v2460 = vshll.u32 %v2079, 16
      %v2462 = vrot.slane %v2460, 5
      %v2463 = vsel %vm1132, %v2458, %v2462
      %v2464 = vunpack.c.l.b16 %v2093
      %v2465 = vunpack.c.l.b16 %v2103
      %v2466 = vunpack.c.l.b16 %v2117
      %v2467 = vunpack.c.l.b16 %v2127
      %v2468 = vunpack.c.l.b16 %v2141
      %v2469 = vunpack.c.l.b16 %v2151
      %v2470 = vunpack.c.l.b16 %v2165
      %v2471 = vunpack.c.l.b16 %v2175
      %v2472 = vunpack.c.l.b16 %v2189
      %v2473 = vunpack.c.l.b16 %v2199
      %v2474 = vunpack.c.l.b16 %v2213
      %v2475 = vunpack.c.l.b16 %v2223
      %v2476 = vunpack.c.l.b16 %v2237
      %v2477 = vunpack.c.l.b16 %v2247
      %v2478 = vunpack.c.l.b16 %v2261
      %v2479 = vunpack.c.l.b16 %v2271
      %v2480 = vunpack.c.l.b16 %v2285
      %v2481 = vunpack.c.l.b16 %v2295
      %v2482 = vunpack.c.l.b16 %v2309
      %v2483 = vunpack.c.l.b16 %v2319
      %v2484 = vunpack.c.l.b16 %v2333
      %v2485 = vunpack.c.l.b16 %v2343
      %v2486 = vunpack.c.l.b16 %v2357
      %v2487 = vunpack.c.l.b16 %v2367
      %v2488 = vunpack.c.l.b16 %v2381
      %v2489 = vunpack.c.l.b16 %v2391
      %v2490 = vunpack.c.l.b16 %v2405
      %v2491 = vunpack.c.l.b16 %v2415
      %v2492 = vunpack.c.l.b16 %v2429
      %v2493 = vunpack.c.l.b16 %v2439
      %v2494 = vunpack.c.l.b16 %v2453
      %v2495 = vunpack.c.l.b16 %v2463
      %v2496 = vpack.c.b16 %v2465, %v2464
      %v2497 = vpack.c.b16 %v2467, %v2466
      %v2498 = vpack.c.b16 %v2469, %v2468
      %v2499 = vpack.c.b16 %v2471, %v2470
      %v2500 = vpack.c.b16 %v2473, %v2472
      %v2501 = vpack.c.b16 %v2475, %v2474
      %v2502 = vpack.c.b16 %v2477, %v2476
      %v2503 = vpack.c.b16 %v2479, %v2478
      %v2504 = vpack.c.b16 %v2481, %v2480
      %v2505 = vpack.c.b16 %v2483, %v2482
      %v2506 = vpack.c.b16 %v2485, %v2484
      %v2507 = vpack.c.b16 %v2487, %v2486
      %v2508 = vpack.c.b16 %v2489, %v2488
      %v2509 = vpack.c.b16 %v2491, %v2490
      %v2510 = vpack.c.b16 %v2493, %v2492
      %v2511 = vpack.c.b16 %v2495, %v2494
      %2528 = vst [vmem:[#allocation3 + $0x20] sm:$0xff] %v2496
      %2529 = vst [vmem:[#allocation3 + $0x68] sm:$0xff] %v2497
      %2530 = vst [vmem:[#allocation3 + $0xb0] sm:$0xff] %v2498
      %2531 = vst [vmem:[#allocation3 + $0xf8] sm:$0xff] %v2499
      %2532 = vst [vmem:[#allocation3 + $0x140] sm:$0xff] %v2500
      %2533 = vst [vmem:[#allocation3 + $0x188] sm:$0xff] %v2501
      %2534 = vst [vmem:[#allocation3 + $0x1d0] sm:$0xff] %v2502
      %2535 = vst [vmem:[#allocation3 + $0x218] sm:$0xff] %v2503
      %2536 = vst [vmem:[#allocation3 + $0x260] sm:$0xff] %v2504
      %2537 = vst [vmem:[#allocation3 + $0x2a8] sm:$0xff] %v2505
      %2538 = vst [vmem:[#allocation3 + $0x2f0] sm:$0xff] %v2506
      %2539 = vst [vmem:[#allocation3 + $0x338] sm:$0xff] %v2507
      %2540 = vst [vmem:[#allocation3 + $0x380] sm:$0xff] %v2508
      %2541 = vst [vmem:[#allocation3 + $0x3c8] sm:$0xff] %v2509
      %2542 = vst [vmem:[#allocation3 + $0x410] sm:$0xff] %v2510
      %2543 = vst [vmem:[#allocation3 + $0x458] sm:$0xff] %v2511
      %v2544 = vld [vmem:[%s368] sm:$0xe]
      %v2545 = vld [vmem:[%s368 + $0x4] sm:$0xf]
      %v2546 = vld [vmem:[%s368 + $0x8] sm:$0x1]
      %v2547 = vld [vmem:[%s368 + $0xc] sm:$0xe]
      %v2548 = vld [vmem:[%s368 + $0x10] sm:$0xf]
      %v2549 = vld [vmem:[%s368 + $0x14] sm:$0x1]
      %v2550 = vld [vmem:[%s368 + $0x18] sm:$0xe]
      %v2551 = vld [vmem:[%s368 + $0x1c] sm:$0xf]
      %v2552 = vld [vmem:[%s368 + $0x20] sm:$0x1]
      %v2553 = vld [vmem:[%s368 + $0x24] sm:$0xe]
      %v2554 = vld [vmem:[%s368 + $0x28] sm:$0xf]
      %v2555 = vld [vmem:[%s368 + $0x2c] sm:$0x1]
      %v2556 = vld [vmem:[%s368 + $0x30] sm:$0xe]
      %v2557 = vld [vmem:[%s368 + $0x34] sm:$0xf]
      %v2558 = vld [vmem:[%s368 + $0x38] sm:$0x1]
      %v2559 = vld [vmem:[%s368 + $0x3c] sm:$0xe]
      %v2560 = vld [vmem:[%s368 + $0x40] sm:$0xf]
      %v2561 = vld [vmem:[%s368 + $0x44] sm:$0x1]
      %v2562 = vld [vmem:[%s368 + $0x48] sm:$0xe]
      %v2563 = vld [vmem:[%s368 + $0x4c] sm:$0xf]
      %v2564 = vld [vmem:[%s368 + $0x50] sm:$0x1]
      %v2565 = vld [vmem:[%s368 + $0x54] sm:$0xe]
      %v2566 = vld [vmem:[%s368 + $0x58] sm:$0xf]
      %v2567 = vld [vmem:[%s368 + $0x5c] sm:$0x1]
      %v2568 = vld [vmem:[%s368 + $0x60] sm:$0xe]
      %v2569 = vld [vmem:[%s368 + $0x64] sm:$0xf]
      %v2570 = vld [vmem:[%s368 + $0x68] sm:$0x1]
      %v2571 = vld [vmem:[%s368 + $0x6c] sm:$0xe]
      %v2572 = vld [vmem:[%s368 + $0x70] sm:$0xf]
      %v2573 = vld [vmem:[%s368 + $0x74] sm:$0x1]
      %v2574 = vld [vmem:[%s368 + $0x78] sm:$0xe]
      %v2575 = vld [vmem:[%s368 + $0x7c] sm:$0xf]
      %v2576 = vld [vmem:[%s368 + $0x80] sm:$0x1]
      %v2577 = vld [vmem:[%s368 + $0x84] sm:$0xe]
      %v2578 = vld [vmem:[%s368 + $0x88] sm:$0xf]
      %v2579 = vld [vmem:[%s368 + $0x8c] sm:$0x1]
      %v2580 = vld [vmem:[%s368 + $0x90] sm:$0xe]
      %v2581 = vld [vmem:[%s368 + $0x94] sm:$0xf]
      %v2582 = vld [vmem:[%s368 + $0x98] sm:$0x1]
      %v2583 = vld [vmem:[%s368 + $0x9c] sm:$0xe]
      %v2584 = vld [vmem:[%s368 + $0xa0] sm:$0xf]
      %v2585 = vld [vmem:[%s368 + $0xa4] sm:$0x1]
      %v2586 = vld [vmem:[%s368 + $0xa8] sm:$0xe]
      %v2587 = vld [vmem:[%s368 + $0xac] sm:$0xf]
      %v2588 = vld [vmem:[%s368 + $0xb0] sm:$0x1]
      %v2589 = vld [vmem:[%s368 + $0xb4] sm:$0xe]
      %v2590 = vld [vmem:[%s368 + $0xb8] sm:$0xf]
      %v2591 = vld [vmem:[%s368 + $0xbc] sm:$0x1]
      %v2640 = vrot.slane %v2544, 5
      %v2641 = vrot.slane %v2640, 4
      %v2642 = vrot.slane %v2545, 5
      %v2643 = vsel %vm1695, %v2641, %v2642
      %v2644 = vrot.slane %v2642, 4
      %v2645 = vrot.slane %v2546, 5
      %v2646 = vsel %vm1695, %v2644, %v2645
      %v2647 = vrot.slane %v2547, 5
      %v2648 = vrot.slane %v2647, 4
      %v2649 = vrot.slane %v2548, 5
      %v2650 = vsel %vm1695, %v2648, %v2649
      %v2651 = vrot.slane %v2649, 4
      %v2652 = vrot.slane %v2549, 5
      %v2653 = vsel %vm1695, %v2651, %v2652
      %v2654 = vrot.slane %v2550, 5
      %v2655 = vrot.slane %v2654, 4
      %v2656 = vrot.slane %v2551, 5
      %v2657 = vsel %vm1695, %v2655, %v2656
      %v2658 = vrot.slane %v2656, 4
      %v2659 = vrot.slane %v2552, 5
      %v2660 = vsel %vm1695, %v2658, %v2659
      %v2661 = vrot.slane %v2553, 5
      %v2662 = vrot.slane %v2661, 4
      %v2663 = vrot.slane %v2554, 5
      %v2664 = vsel %vm1695, %v2662, %v2663
      %v2665 = vrot.slane %v2663, 4
      %v2666 = vrot.slane %v2555, 5
      %v2667 = vsel %vm1695, %v2665, %v2666
      %v2668 = vrot.slane %v2556, 5
      %v2669 = vrot.slane %v2668, 4
      %v2670 = vrot.slane %v2557, 5
      %v2671 = vsel %vm1695, %v2669, %v2670
      %v2672 = vrot.slane %v2670, 4
      %v2673 = vrot.slane %v2558, 5
      %v2674 = vsel %vm1695, %v2672, %v2673
      %v2675 = vrot.slane %v2559, 5
      %v2676 = vrot.slane %v2675, 4
      %v2677 = vrot.slane %v2560, 5
      %v2678 = vsel %vm1695, %v2676, %v2677
      %v2679 = vrot.slane %v2677, 4
      %v2680 = vrot.slane %v2561, 5
      %v2681 = vsel %vm1695, %v2679, %v2680
      %v2682 = vrot.slane %v2562, 5
      %v2683 = vrot.slane %v2682, 4
      %v2684 = vrot.slane %v2563, 5
      %v2685 = vsel %vm1695, %v2683, %v2684
      %v2686 = vrot.slane %v2684, 4
      %v2687 = vrot.slane %v2564, 5
      %v2688 = vsel %vm1695, %v2686, %v2687
      %v2689 = vrot.slane %v2565, 5
      %v2690 = vrot.slane %v2689, 4
      %v2691 = vrot.slane %v2566, 5
      %v2692 = vsel %vm1695, %v2690, %v2691
      %v2693 = vrot.slane %v2691, 4
      %v2694 = vrot.slane %v2567, 5
      %v2695 = vsel %vm1695, %v2693, %v2694
      %v2696 = vrot.slane %v2568, 5
      %v2697 = vrot.slane %v2696, 4
      %v2698 = vrot.slane %v2569, 5
      %v2699 = vsel %vm1695, %v2697, %v2698
      %v2700 = vrot.slane %v2698, 4
      %v2701 = vrot.slane %v2570, 5
      %v2702 = vsel %vm1695, %v2700, %v2701
      %v2703 = vrot.slane %v2571, 5
      %v2704 = vrot.slane %v2703, 4
      %v2705 = vrot.slane %v2572, 5
      %v2706 = vsel %vm1695, %v2704, %v2705
      %v2707 = vrot.slane %v2705, 4
      %v2708 = vrot.slane %v2573, 5
      %v2709 = vsel %vm1695, %v2707, %v2708
      %v2710 = vrot.slane %v2574, 5
      %v2711 = vrot.slane %v2710, 4
      %v2712 = vrot.slane %v2575, 5
      %v2713 = vsel %vm1695, %v2711, %v2712
      %v2714 = vrot.slane %v2712, 4
      %v2715 = vrot.slane %v2576, 5
      %v2716 = vsel %vm1695, %v2714, %v2715
      %v2717 = vrot.slane %v2577, 5
      %v2718 = vrot.slane %v2717, 4
      %v2719 = vrot.slane %v2578, 5
      %v2720 = vsel %vm1695, %v2718, %v2719
      %v2721 = vrot.slane %v2719, 4
      %v2722 = vrot.slane %v2579, 5
      %v2723 = vsel %vm1695, %v2721, %v2722
      %v2724 = vrot.slane %v2580, 5
      %v2725 = vrot.slane %v2724, 4
      %v2726 = vrot.slane %v2581, 5
      %v2727 = vsel %vm1695, %v2725, %v2726
      %v2728 = vrot.slane %v2726, 4
      %v2729 = vrot.slane %v2582, 5
      %v2730 = vsel %vm1695, %v2728, %v2729
      %v2731 = vrot.slane %v2583, 5
      %v2732 = vrot.slane %v2731, 4
      %v2733 = vrot.slane %v2584, 5
      %v2734 = vsel %vm1695, %v2732, %v2733
      %v2735 = vrot.slane %v2733, 4
      %v2736 = vrot.slane %v2585, 5
      %v2737 = vsel %vm1695, %v2735, %v2736
      %v2738 = vrot.slane %v2586, 5
      %v2739 = vrot.slane %v2738, 4
      %v2740 = vrot.slane %v2587, 5
      %v2741 = vsel %vm1695, %v2739, %v2740
      %v2742 = vrot.slane %v2740, 4
      %v2743 = vrot.slane %v2588, 5
      %v2744 = vsel %vm1695, %v2742, %v2743
      %v2745 = vrot.slane %v2589, 5
      %v2746 = vrot.slane %v2745, 4
      %v2747 = vrot.slane %v2590, 5
      %v2748 = vsel %vm1695, %v2746, %v2747
      %v2749 = vrot.slane %v2747, 4
      %v2750 = vrot.slane %v2591, 5
      %v2751 = vsel %vm1695, %v2749, %v2750
      %v2752 = vunpack.c.l.b16 %v2643
      %v2753 = vunpack.c.l.b16 %v2646
      %v2754 = vunpack.c.l.b16 %v2650
      %v2755 = vunpack.c.l.b16 %v2653
      %v2756 = vunpack.c.l.b16 %v2657
      %v2757 = vunpack.c.l.b16 %v2660
      %v2758 = vunpack.c.l.b16 %v2664
      %v2759 = vunpack.c.l.b16 %v2667
      %v2760 = vunpack.c.l.b16 %v2671
      %v2761 = vunpack.c.l.b16 %v2674
      %v2762 = vunpack.c.l.b16 %v2678
      %v2763 = vunpack.c.l.b16 %v2681
      %v2764 = vunpack.c.l.b16 %v2685
      %v2765 = vunpack.c.l.b16 %v2688
      %v2766 = vunpack.c.l.b16 %v2692
      %v2767 = vunpack.c.l.b16 %v2695
      %v2768 = vunpack.c.l.b16 %v2699
      %v2769 = vunpack.c.l.b16 %v2702
      %v2770 = vunpack.c.l.b16 %v2706
      %v2771 = vunpack.c.l.b16 %v2709
      %v2772 = vunpack.c.l.b16 %v2713
      %v2773 = vunpack.c.l.b16 %v2716
      %v2774 = vunpack.c.l.b16 %v2720
      %v2775 = vunpack.c.l.b16 %v2723
      %v2776 = vunpack.c.l.b16 %v2727
      %v2777 = vunpack.c.l.b16 %v2730
      %v2778 = vunpack.c.l.b16 %v2734
      %v2779 = vunpack.c.l.b16 %v2737
      %v2780 = vunpack.c.l.b16 %v2741
      %v2781 = vunpack.c.l.b16 %v2744
      %v2782 = vunpack.c.l.b16 %v2748
      %v2783 = vunpack.c.l.b16 %v2751
      %v2784 = vpack.c.b16 %v2753, %v2752
      %v2785 = vpack.c.b16 %v2755, %v2754
      %v2786 = vpack.c.b16 %v2757, %v2756
      %v2787 = vpack.c.b16 %v2759, %v2758
      %v2788 = vpack.c.b16 %v2761, %v2760
      %v2789 = vpack.c.b16 %v2763, %v2762
      %v2790 = vpack.c.b16 %v2765, %v2764
      %v2791 = vpack.c.b16 %v2767, %v2766
      %v2792 = vpack.c.b16 %v2769, %v2768
      %v2793 = vpack.c.b16 %v2771, %v2770
      %v2794 = vpack.c.b16 %v2773, %v2772
      %v2795 = vpack.c.b16 %v2775, %v2774
      %v2796 = vpack.c.b16 %v2777, %v2776
      %v2797 = vpack.c.b16 %v2779, %v2778
      %v2798 = vpack.c.b16 %v2781, %v2780
      %v2799 = vpack.c.b16 %v2783, %v2782
      %2816 = vst [vmem:[#allocation3 + $0x28] sm:$0xff] %v2784
      %2817 = vst [vmem:[#allocation3 + $0x70] sm:$0xff] %v2785
      %2818 = vst [vmem:[#allocation3 + $0xb8] sm:$0xff] %v2786
      %2819 = vst [vmem:[#allocation3 + $0x100] sm:$0xff] %v2787
      %2820 = vst [vmem:[#allocation3 + $0x148] sm:$0xff] %v2788
      %2821 = vst [vmem:[#allocation3 + $0x190] sm:$0xff] %v2789
      %2822 = vst [vmem:[#allocation3 + $0x1d8] sm:$0xff] %v2790
      %2823 = vst [vmem:[#allocation3 + $0x220] sm:$0xff] %v2791
      %2824 = vst [vmem:[#allocation3 + $0x268] sm:$0xff] %v2792
      %2825 = vst [vmem:[#allocation3 + $0x2b0] sm:$0xff] %v2793
      %2826 = vst [vmem:[#allocation3 + $0x2f8] sm:$0xff] %v2794
      %2827 = vst [vmem:[#allocation3 + $0x340] sm:$0xff] %v2795
      %2828 = vst [vmem:[#allocation3 + $0x388] sm:$0xff] %v2796
      %2829 = vst [vmem:[#allocation3 + $0x3d0] sm:$0xff] %v2797
      %2830 = vst [vmem:[#allocation3 + $0x418] sm:$0xff] %v2798
      %2831 = vst [vmem:[#allocation3 + $0x460] sm:$0xff] %v2799
      %s2832 = scalar_lea.vmem [#allocation2], 24
      %v2833 = vld [vmem:[%s2832] sm:$0xf]
      %v2834 = vld [vmem:[%s2832 + $0x4] sm:$0xf]
      %v2835 = vld [vmem:[%s2832 + $0xc] sm:$0xf]
      %v2836 = vld [vmem:[%s2832 + $0x10] sm:$0xf]
      %v2837 = vld [vmem:[%s2832 + $0x18] sm:$0xf]
      %v2838 = vld [vmem:[%s2832 + $0x1c] sm:$0xf]
      %v2839 = vld [vmem:[%s2832 + $0x24] sm:$0xf]
      %v2840 = vld [vmem:[%s2832 + $0x28] sm:$0xf]
      %v2841 = vld [vmem:[%s2832 + $0x30] sm:$0xf]
      %v2842 = vld [vmem:[%s2832 + $0x34] sm:$0xf]
      %v2843 = vld [vmem:[%s2832 + $0x3c] sm:$0xf]
      %v2844 = vld [vmem:[%s2832 + $0x40] sm:$0xf]
      %v2845 = vld [vmem:[%s2832 + $0x48] sm:$0xf]
      %v2846 = vld [vmem:[%s2832 + $0x4c] sm:$0xf]
      %v2847 = vld [vmem:[%s2832 + $0x54] sm:$0xf]
      %v2848 = vld [vmem:[%s2832 + $0x58] sm:$0xf]
      %v2849 = vld [vmem:[%s2832 + $0x60] sm:$0xf]
      %v2850 = vld [vmem:[%s2832 + $0x64] sm:$0xf]
      %v2851 = vld [vmem:[%s2832 + $0x6c] sm:$0xf]
      %v2852 = vld [vmem:[%s2832 + $0x70] sm:$0xf]
      %v2853 = vld [vmem:[%s2832 + $0x78] sm:$0xf]
      %v2854 = vld [vmem:[%s2832 + $0x7c] sm:$0xf]
      %v2855 = vld [vmem:[%s2832 + $0x84] sm:$0xf]
      %v2856 = vld [vmem:[%s2832 + $0x88] sm:$0xf]
      %v2857 = vld [vmem:[%s2832 + $0x90] sm:$0xf]
      %v2858 = vld [vmem:[%s2832 + $0x94] sm:$0xf]
      %v2859 = vld [vmem:[%s2832 + $0x9c] sm:$0xf]
      %v2860 = vld [vmem:[%s2832 + $0xa0] sm:$0xf]
      %v2861 = vld [vmem:[%s2832 + $0xa8] sm:$0xf]
      %v2862 = vld [vmem:[%s2832 + $0xac] sm:$0xf]
      %v2863 = vld [vmem:[%s2832 + $0xb4] sm:$0xf]
      %v2864 = vld [vmem:[%s2832 + $0xb8] sm:$0xf]
      %v2897 = vunpack.c.l.b16 %v2833
      %v2898 = vunpack.c.l.b16 %v2834
      %v2899 = vunpack.c.l.b16 %v2835
      %v2900 = vunpack.c.l.b16 %v2836
      %v2901 = vunpack.c.l.b16 %v2837
      %v2902 = vunpack.c.l.b16 %v2838
      %v2903 = vunpack.c.l.b16 %v2839
      %v2904 = vunpack.c.l.b16 %v2840
      %v2905 = vunpack.c.l.b16 %v2841
      %v2906 = vunpack.c.l.b16 %v2842
      %v2907 = vunpack.c.l.b16 %v2843
      %v2908 = vunpack.c.l.b16 %v2844
      %v2909 = vunpack.c.l.b16 %v2845
      %v2910 = vunpack.c.l.b16 %v2846
      %v2911 = vunpack.c.l.b16 %v2847
      %v2912 = vunpack.c.l.b16 %v2848
      %v2913 = vunpack.c.l.b16 %v2849
      %v2914 = vunpack.c.l.b16 %v2850
      %v2915 = vunpack.c.l.b16 %v2851
      %v2916 = vunpack.c.l.b16 %v2852
      %v2917 = vunpack.c.l.b16 %v2853
      %v2918 = vunpack.c.l.b16 %v2854
      %v2919 = vunpack.c.l.b16 %v2855
      %v2920 = vunpack.c.l.b16 %v2856
      %v2921 = vunpack.c.l.b16 %v2857
      %v2922 = vunpack.c.l.b16 %v2858
      %v2923 = vunpack.c.l.b16 %v2859
      %v2924 = vunpack.c.l.b16 %v2860
      %v2925 = vunpack.c.l.b16 %v2861
      %v2926 = vunpack.c.l.b16 %v2862
      %v2927 = vunpack.c.l.b16 %v2863
      %v2928 = vunpack.c.l.b16 %v2864
      %v2929 = vpack.c.b16 %v2898, %v2897
      %v2930 = vpack.c.b16 %v2900, %v2899
      %v2931 = vpack.c.b16 %v2902, %v2901
      %v2932 = vpack.c.b16 %v2904, %v2903
      %v2933 = vpack.c.b16 %v2906, %v2905
      %v2934 = vpack.c.b16 %v2908, %v2907
      %v2935 = vpack.c.b16 %v2910, %v2909
      %v2936 = vpack.c.b16 %v2912, %v2911
      %v2937 = vpack.c.b16 %v2914, %v2913
      %v2938 = vpack.c.b16 %v2916, %v2915
      %v2939 = vpack.c.b16 %v2918, %v2917
      %v2940 = vpack.c.b16 %v2920, %v2919
      %v2941 = vpack.c.b16 %v2922, %v2921
      %v2942 = vpack.c.b16 %v2924, %v2923
      %v2943 = vpack.c.b16 %v2926, %v2925
      %v2944 = vpack.c.b16 %v2928, %v2927
      %2961 = vst [vmem:[#allocation3 + $0x30] sm:$0xff] %v2929
      %2962 = vst [vmem:[#allocation3 + $0x78] sm:$0xff] %v2930
      %2963 = vst [vmem:[#allocation3 + $0xc0] sm:$0xff] %v2931
      %2964 = vst [vmem:[#allocation3 + $0x108] sm:$0xff] %v2932
      %2965 = vst [vmem:[#allocation3 + $0x150] sm:$0xff] %v2933
      %2966 = vst [vmem:[#allocation3 + $0x198] sm:$0xff] %v2934
      %2967 = vst [vmem:[#allocation3 + $0x1e0] sm:$0xff] %v2935
      %2968 = vst [vmem:[#allocation3 + $0x228] sm:$0xff] %v2936
      %2969 = vst [vmem:[#allocation3 + $0x270] sm:$0xff] %v2937
      %2970 = vst [vmem:[#allocation3 + $0x2b8] sm:$0xff] %v2938
      %2971 = vst [vmem:[#allocation3 + $0x300] sm:$0xff] %v2939
      %2972 = vst [vmem:[#allocation3 + $0x348] sm:$0xff] %v2940
      %2973 = vst [vmem:[#allocation3 + $0x390] sm:$0xff] %v2941
      %2974 = vst [vmem:[#allocation3 + $0x3d8] sm:$0xff] %v2942
      %2975 = vst [vmem:[#allocation3 + $0x420] sm:$0xff] %v2943
      %2976 = vst [vmem:[#allocation3 + $0x468] sm:$0xff] %v2944
      %v2977 = vld [vmem:[%s2832] sm:$0xf]
      %v2978 = vld [vmem:[%s2832 + $0x4] sm:$0xf]
      %v2979 = vld [vmem:[%s2832 + $0x8] sm:$0x1]
      %v2980 = vld [vmem:[%s2832 + $0xc] sm:$0xf]
      %v2981 = vld [vmem:[%s2832 + $0x10] sm:$0xf]
      %v2982 = vld [vmem:[%s2832 + $0x14] sm:$0x1]
      %v2983 = vld [vmem:[%s2832 + $0x18] sm:$0xf]
      %v2984 = vld [vmem:[%s2832 + $0x1c] sm:$0xf]
      %v2985 = vld [vmem:[%s2832 + $0x20] sm:$0x1]
      %v2986 = vld [vmem:[%s2832 + $0x24] sm:$0xf]
      %v2987 = vld [vmem:[%s2832 + $0x28] sm:$0xf]
      %v2988 = vld [vmem:[%s2832 + $0x2c] sm:$0x1]
      %v2989 = vld [vmem:[%s2832 + $0x30] sm:$0xf]
      %v2990 = vld [vmem:[%s2832 + $0x34] sm:$0xf]
      %v2991 = vld [vmem:[%s2832 + $0x38] sm:$0x1]
      %v2992 = vld [vmem:[%s2832 + $0x3c] sm:$0xf]
      %v2993 = vld [vmem:[%s2832 + $0x40] sm:$0xf]
      %v2994 = vld [vmem:[%s2832 + $0x44] sm:$0x1]
      %v2995 = vld [vmem:[%s2832 + $0x48] sm:$0xf]
      %v2996 = vld [vmem:[%s2832 + $0x4c] sm:$0xf]
      %v2997 = vld [vmem:[%s2832 + $0x50] sm:$0x1]
      %v2998 = vld [vmem:[%s2832 + $0x54] sm:$0xf]
      %v2999 = vld [vmem:[%s2832 + $0x58] sm:$0xf]
      %v3000 = vld [vmem:[%s2832 + $0x5c] sm:$0x1]
      %v3001 = vld [vmem:[%s2832 + $0x60] sm:$0xf]
      %v3002 = vld [vmem:[%s2832 + $0x64] sm:$0xf]
      %v3003 = vld [vmem:[%s2832 + $0x68] sm:$0x1]
      %v3004 = vld [vmem:[%s2832 + $0x6c] sm:$0xf]
      %v3005 = vld [vmem:[%s2832 + $0x70] sm:$0xf]
      %v3006 = vld [vmem:[%s2832 + $0x74] sm:$0x1]
      %v3007 = vld [vmem:[%s2832 + $0x78] sm:$0xf]
      %v3008 = vld [vmem:[%s2832 + $0x7c] sm:$0xf]
      %v3009 = vld [vmem:[%s2832 + $0x80] sm:$0x1]
      %v3010 = vld [vmem:[%s2832 + $0x84] sm:$0xf]
      %v3011 = vld [vmem:[%s2832 + $0x88] sm:$0xf]
      %v3012 = vld [vmem:[%s2832 + $0x8c] sm:$0x1]
      %v3013 = vld [vmem:[%s2832 + $0x90] sm:$0xf]
      %v3014 = vld [vmem:[%s2832 + $0x94] sm:$0xf]
      %v3015 = vld [vmem:[%s2832 + $0x98] sm:$0x1]
      %v3016 = vld [vmem:[%s2832 + $0x9c] sm:$0xf]
      %v3017 = vld [vmem:[%s2832 + $0xa0] sm:$0xf]
      %v3018 = vld [vmem:[%s2832 + $0xa4] sm:$0x1]
      %v3019 = vld [vmem:[%s2832 + $0xa8] sm:$0xf]
      %v3020 = vld [vmem:[%s2832 + $0xac] sm:$0xf]
      %v3021 = vld [vmem:[%s2832 + $0xb0] sm:$0x1]
      %v3022 = vld [vmem:[%s2832 + $0xb4] sm:$0xf]
      %v3023 = vld [vmem:[%s2832 + $0xb8] sm:$0xf]
      %v3024 = vld [vmem:[%s2832 + $0xbc] sm:$0x1]
      %v3026 = vshrl.u32 %v2977, 16
      %v3028 = vrot.slane %v3026, 4
      %v3029 = vshll.u32 %v2977, 16
      %v3031 = vrot.slane %v3029, 5
      %v3032 = vor.u32 %v3028, %v3031
      %v3033 = vrot.slane %v3032, 4
      %v3035 = vshll.u32 %v2978, 16
      %v3037 = vrot.slane %v3035, 5
      %v3038 = vsel %vm1132, %v3033, %v3037
      %v3039 = vshrl.u32 %v2978, 16
      %v3041 = vrot.slane %v3039, 4
      %v3042 = vor.u32 %v3041, %v3037
      %v3043 = vrot.slane %v3042, 4
      %v3045 = vshll.u32 %v2979, 16
      %v3047 = vrot.slane %v3045, 5
      %v3048 = vsel %vm1132, %v3043, %v3047
      %v3050 = vshrl.u32 %v2980, 16
      %v3052 = vrot.slane %v3050, 4
      %v3053 = vshll.u32 %v2980, 16
      %v3055 = vrot.slane %v3053, 5
      %v3056 = vor.u32 %v3052, %v3055
      %v3057 = vrot.slane %v3056, 4
      %v3059 = vshll.u32 %v2981, 16
      %v3061 = vrot.slane %v3059, 5
      %v3062 = vsel %vm1132, %v3057, %v3061
      %v3063 = vshrl.u32 %v2981, 16
      %v3065 = vrot.slane %v3063, 4
      %v3066 = vor.u32 %v3065, %v3061
      %v3067 = vrot.slane %v3066, 4
      %v3069 = vshll.u32 %v2982, 16
      %v3071 = vrot.slane %v3069, 5
      %v3072 = vsel %vm1132, %v3067, %v3071
      %v3074 = vshrl.u32 %v2983, 16
      %v3076 = vrot.slane %v3074, 4
      %v3077 = vshll.u32 %v2983, 16
      %v3079 = vrot.slane %v3077, 5
      %v3080 = vor.u32 %v3076, %v3079
      %v3081 = vrot.slane %v3080, 4
      %v3083 = vshll.u32 %v2984, 16
      %v3085 = vrot.slane %v3083, 5
      %v3086 = vsel %vm1132, %v3081, %v3085
      %v3087 = vshrl.u32 %v2984, 16
      %v3089 = vrot.slane %v3087, 4
      %v3090 = vor.u32 %v3089, %v3085
      %v3091 = vrot.slane %v3090, 4
      %v3093 = vshll.u32 %v2985, 16
      %v3095 = vrot.slane %v3093, 5
      %v3096 = vsel %vm1132, %v3091, %v3095
      %v3098 = vshrl.u32 %v2986, 16
      %v3100 = vrot.slane %v3098, 4
      %v3101 = vshll.u32 %v2986, 16
      %v3103 = vrot.slane %v3101, 5
      %v3104 = vor.u32 %v3100, %v3103
      %v3105 = vrot.slane %v3104, 4
      %v3107 = vshll.u32 %v2987, 16
      %v3109 = vrot.slane %v3107, 5
      %v3110 = vsel %vm1132, %v3105, %v3109
      %v3111 = vshrl.u32 %v2987, 16
      %v3113 = vrot.slane %v3111, 4
      %v3114 = vor.u32 %v3113, %v3109
      %v3115 = vrot.slane %v3114, 4
      %v3117 = vshll.u32 %v2988, 16
      %v3119 = vrot.slane %v3117, 5
      %v3120 = vsel %vm1132, %v3115, %v3119
      %v3122 = vshrl.u32 %v2989, 16
      %v3124 = vrot.slane %v3122, 4
      %v3125 = vshll.u32 %v2989, 16
      %v3127 = vrot.slane %v3125, 5
      %v3128 = vor.u32 %v3124, %v3127
      %v3129 = vrot.slane %v3128, 4
      %v3131 = vshll.u32 %v2990, 16
      %v3133 = vrot.slane %v3131, 5
      %v3134 = vsel %vm1132, %v3129, %v3133
      %v3135 = vshrl.u32 %v2990, 16
      %v3137 = vrot.slane %v3135, 4
      %v3138 = vor.u32 %v3137, %v3133
      %v3139 = vrot.slane %v3138, 4
      %v3141 = vshll.u32 %v2991, 16
      %v3143 = vrot.slane %v3141, 5
      %v3144 = vsel %vm1132, %v3139, %v3143
      %v3146 = vshrl.u32 %v2992, 16
      %v3148 = vrot.slane %v3146, 4
      %v3149 = vshll.u32 %v2992, 16
      %v3151 = vrot.slane %v3149, 5
      %v3152 = vor.u32 %v3148, %v3151
      %v3153 = vrot.slane %v3152, 4
      %v3155 = vshll.u32 %v2993, 16
      %v3157 = vrot.slane %v3155, 5
      %v3158 = vsel %vm1132, %v3153, %v3157
      %v3159 = vshrl.u32 %v2993, 16
      %v3161 = vrot.slane %v3159, 4
      %v3162 = vor.u32 %v3161, %v3157
      %v3163 = vrot.slane %v3162, 4
      %v3165 = vshll.u32 %v2994, 16
      %v3167 = vrot.slane %v3165, 5
      %v3168 = vsel %vm1132, %v3163, %v3167
      %v3170 = vshrl.u32 %v2995, 16
      %v3172 = vrot.slane %v3170, 4
      %v3173 = vshll.u32 %v2995, 16
      %v3175 = vrot.slane %v3173, 5
      %v3176 = vor.u32 %v3172, %v3175
      %v3177 = vrot.slane %v3176, 4
      %v3179 = vshll.u32 %v2996, 16
      %v3181 = vrot.slane %v3179, 5
      %v3182 = vsel %vm1132, %v3177, %v3181
      %v3183 = vshrl.u32 %v2996, 16
      %v3185 = vrot.slane %v3183, 4
      %v3186 = vor.u32 %v3185, %v3181
      %v3187 = vrot.slane %v3186, 4
      %v3189 = vshll.u32 %v2997, 16
      %v3191 = vrot.slane %v3189, 5
      %v3192 = vsel %vm1132, %v3187, %v3191
      %v3194 = vshrl.u32 %v2998, 16
      %v3196 = vrot.slane %v3194, 4
      %v3197 = vshll.u32 %v2998, 16
      %v3199 = vrot.slane %v3197, 5
      %v3200 = vor.u32 %v3196, %v3199
      %v3201 = vrot.slane %v3200, 4
      %v3203 = vshll.u32 %v2999, 16
      %v3205 = vrot.slane %v3203, 5
      %v3206 = vsel %vm1132, %v3201, %v3205
      %v3207 = vshrl.u32 %v2999, 16
      %v3209 = vrot.slane %v3207, 4
      %v3210 = vor.u32 %v3209, %v3205
      %v3211 = vrot.slane %v3210, 4
      %v3213 = vshll.u32 %v3000, 16
      %v3215 = vrot.slane %v3213, 5
      %v3216 = vsel %vm1132, %v3211, %v3215
      %v3218 = vshrl.u32 %v3001, 16
      %v3220 = vrot.slane %v3218, 4
      %v3221 = vshll.u32 %v3001, 16
      %v3223 = vrot.slane %v3221, 5
      %v3224 = vor.u32 %v3220, %v3223
      %v3225 = vrot.slane %v3224, 4
      %v3227 = vshll.u32 %v3002, 16
      %v3229 = vrot.slane %v3227, 5
      %v3230 = vsel %vm1132, %v3225, %v3229
      %v3231 = vshrl.u32 %v3002, 16
      %v3233 = vrot.slane %v3231, 4
      %v3234 = vor.u32 %v3233, %v3229
      %v3235 = vrot.slane %v3234, 4
      %v3237 = vshll.u32 %v3003, 16
      %v3239 = vrot.slane %v3237, 5
      %v3240 = vsel %vm1132, %v3235, %v3239
      %v3242 = vshrl.u32 %v3004, 16
      %v3244 = vrot.slane %v3242, 4
      %v3245 = vshll.u32 %v3004, 16
      %v3247 = vrot.slane %v3245, 5
      %v3248 = vor.u32 %v3244, %v3247
      %v3249 = vrot.slane %v3248, 4
      %v3251 = vshll.u32 %v3005, 16
      %v3253 = vrot.slane %v3251, 5
      %v3254 = vsel %vm1132, %v3249, %v3253
      %v3255 = vshrl.u32 %v3005, 16
      %v3257 = vrot.slane %v3255, 4
      %v3258 = vor.u32 %v3257, %v3253
      %v3259 = vrot.slane %v3258, 4
      %v3261 = vshll.u32 %v3006, 16
      %v3263 = vrot.slane %v3261, 5
      %v3264 = vsel %vm1132, %v3259, %v3263
      %v3266 = vshrl.u32 %v3007, 16
      %v3268 = vrot.slane %v3266, 4
      %v3269 = vshll.u32 %v3007, 16
      %v3271 = vrot.slane %v3269, 5
      %v3272 = vor.u32 %v3268, %v3271
      %v3273 = vrot.slane %v3272, 4
      %v3275 = vshll.u32 %v3008, 16
      %v3277 = vrot.slane %v3275, 5
      %v3278 = vsel %vm1132, %v3273, %v3277
      %v3279 = vshrl.u32 %v3008, 16
      %v3281 = vrot.slane %v3279, 4
      %v3282 = vor.u32 %v3281, %v3277
      %v3283 = vrot.slane %v3282, 4
      %v3285 = vshll.u32 %v3009, 16
      %v3287 = vrot.slane %v3285, 5
      %v3288 = vsel %vm1132, %v3283, %v3287
      %v3290 = vshrl.u32 %v3010, 16
      %v3292 = vrot.slane %v3290, 4
      %v3293 = vshll.u32 %v3010, 16
      %v3295 = vrot.slane %v3293, 5
      %v3296 = vor.u32 %v3292, %v3295
      %v3297 = vrot.slane %v3296, 4
      %v3299 = vshll.u32 %v3011, 16
      %v3301 = vrot.slane %v3299, 5
      %v3302 = vsel %vm1132, %v3297, %v3301
      %v3303 = vshrl.u32 %v3011, 16
      %v3305 = vrot.slane %v3303, 4
      %v3306 = vor.u32 %v3305, %v3301
      %v3307 = vrot.slane %v3306, 4
      %v3309 = vshll.u32 %v3012, 16
      %v3311 = vrot.slane %v3309, 5
      %v3312 = vsel %vm1132, %v3307, %v3311
      %v3314 = vshrl.u32 %v3013, 16
      %v3316 = vrot.slane %v3314, 4
      %v3317 = vshll.u32 %v3013, 16
      %v3319 = vrot.slane %v3317, 5
      %v3320 = vor.u32 %v3316, %v3319
      %v3321 = vrot.slane %v3320, 4
      %v3323 = vshll.u32 %v3014, 16
      %v3325 = vrot.slane %v3323, 5
      %v3326 = vsel %vm1132, %v3321, %v3325
      %v3327 = vshrl.u32 %v3014, 16
      %v3329 = vrot.slane %v3327, 4
      %v3330 = vor.u32 %v3329, %v3325
      %v3331 = vrot.slane %v3330, 4
      %v3333 = vshll.u32 %v3015, 16
      %v3335 = vrot.slane %v3333, 5
      %v3336 = vsel %vm1132, %v3331, %v3335
      %v3338 = vshrl.u32 %v3016, 16
      %v3340 = vrot.slane %v3338, 4
      %v3341 = vshll.u32 %v3016, 16
      %v3343 = vrot.slane %v3341, 5
      %v3344 = vor.u32 %v3340, %v3343
      %v3345 = vrot.slane %v3344, 4
      %v3347 = vshll.u32 %v3017, 16
      %v3349 = vrot.slane %v3347, 5
      %v3350 = vsel %vm1132, %v3345, %v3349
      %v3351 = vshrl.u32 %v3017, 16
      %v3353 = vrot.slane %v3351, 4
      %v3354 = vor.u32 %v3353, %v3349
      %v3355 = vrot.slane %v3354, 4
      %v3357 = vshll.u32 %v3018, 16
      %v3359 = vrot.slane %v3357, 5
      %v3360 = vsel %vm1132, %v3355, %v3359
      %v3362 = vshrl.u32 %v3019, 16
      %v3364 = vrot.slane %v3362, 4
      %v3365 = vshll.u32 %v3019, 16
      %v3367 = vrot.slane %v3365, 5
      %v3368 = vor.u32 %v3364, %v3367
      %v3369 = vrot.slane %v3368, 4
      %v3371 = vshll.u32 %v3020, 16
      %v3373 = vrot.slane %v3371, 5
      %v3374 = vsel %vm1132, %v3369, %v3373
      %v3375 = vshrl.u32 %v3020, 16
      %v3377 = vrot.slane %v3375, 4
      %v3378 = vor.u32 %v3377, %v3373
      %v3379 = vrot.slane %v3378, 4
      %v3381 = vshll.u32 %v3021, 16
      %v3383 = vrot.slane %v3381, 5
      %v3384 = vsel %vm1132, %v3379, %v3383
      %v3386 = vshrl.u32 %v3022, 16
      %v3388 = vrot.slane %v3386, 4
      %v3389 = vshll.u32 %v3022, 16
      %v3391 = vrot.slane %v3389, 5
      %v3392 = vor.u32 %v3388, %v3391
      %v3393 = vrot.slane %v3392, 4
      %v3395 = vshll.u32 %v3023, 16
      %v3397 = vrot.slane %v3395, 5
      %v3398 = vsel %vm1132, %v3393, %v3397
      %v3399 = vshrl.u32 %v3023, 16
      %v3401 = vrot.slane %v3399, 4
      %v3402 = vor.u32 %v3401, %v3397
      %v3403 = vrot.slane %v3402, 4
      %v3405 = vshll.u32 %v3024, 16
      %v3407 = vrot.slane %v3405, 5
      %v3408 = vsel %vm1132, %v3403, %v3407
      %v3409 = vunpack.c.l.b16 %v3038
      %v3410 = vunpack.c.l.b16 %v3048
      %v3411 = vunpack.c.l.b16 %v3062
      %v3412 = vunpack.c.l.b16 %v3072
      %v3413 = vunpack.c.l.b16 %v3086
      %v3414 = vunpack.c.l.b16 %v3096
      %v3415 = vunpack.c.l.b16 %v3110
      %v3416 = vunpack.c.l.b16 %v3120
      %v3417 = vunpack.c.l.b16 %v3134
      %v3418 = vunpack.c.l.b16 %v3144
      %v3419 = vunpack.c.l.b16 %v3158
      %v3420 = vunpack.c.l.b16 %v3168
      %v3421 = vunpack.c.l.b16 %v3182
      %v3422 = vunpack.c.l.b16 %v3192
      %v3423 = vunpack.c.l.b16 %v3206
      %v3424 = vunpack.c.l.b16 %v3216
      %v3425 = vunpack.c.l.b16 %v3230
      %v3426 = vunpack.c.l.b16 %v3240
      %v3427 = vunpack.c.l.b16 %v3254
      %v3428 = vunpack.c.l.b16 %v3264
      %v3429 = vunpack.c.l.b16 %v3278
      %v3430 = vunpack.c.l.b16 %v3288
      %v3431 = vunpack.c.l.b16 %v3302
      %v3432 = vunpack.c.l.b16 %v3312
      %v3433 = vunpack.c.l.b16 %v3326
      %v3434 = vunpack.c.l.b16 %v3336
      %v3435 = vunpack.c.l.b16 %v3350
      %v3436 = vunpack.c.l.b16 %v3360
      %v3437 = vunpack.c.l.b16 %v3374
      %v3438 = vunpack.c.l.b16 %v3384
      %v3439 = vunpack.c.l.b16 %v3398
      %v3440 = vunpack.c.l.b16 %v3408
      %v3441 = vpack.c.b16 %v3410, %v3409
      %v3442 = vpack.c.b16 %v3412, %v3411
      %v3443 = vpack.c.b16 %v3414, %v3413
      %v3444 = vpack.c.b16 %v3416, %v3415
      %v3445 = vpack.c.b16 %v3418, %v3417
      %v3446 = vpack.c.b16 %v3420, %v3419
      %v3447 = vpack.c.b16 %v3422, %v3421
      %v3448 = vpack.c.b16 %v3424, %v3423
      %v3449 = vpack.c.b16 %v3426, %v3425
      %v3450 = vpack.c.b16 %v3428, %v3427
      %v3451 = vpack.c.b16 %v3430, %v3429
      %v3452 = vpack.c.b16 %v3432, %v3431
      %v3453 = vpack.c.b16 %v3434, %v3433
      %v3454 = vpack.c.b16 %v3436, %v3435
      %v3455 = vpack.c.b16 %v3438, %v3437
      %v3456 = vpack.c.b16 %v3440, %v3439
      %3473 = vst [vmem:[#allocation3 + $0x38] sm:$0xff] %v3441
      %3474 = vst [vmem:[#allocation3 + $0x80] sm:$0xff] %v3442
      %3475 = vst [vmem:[#allocation3 + $0xc8] sm:$0xff] %v3443
      %3476 = vst [vmem:[#allocation3 + $0x110] sm:$0xff] %v3444
      %3477 = vst [vmem:[#allocation3 + $0x158] sm:$0xff] %v3445
      %3478 = vst [vmem:[#allocation3 + $0x1a0] sm:$0xff] %v3446
      %3479 = vst [vmem:[#allocation3 + $0x1e8] sm:$0xff] %v3447
      %3480 = vst [vmem:[#allocation3 + $0x230] sm:$0xff] %v3448
      %3481 = vst [vmem:[#allocation3 + $0x278] sm:$0xff] %v3449
      %3482 = vst [vmem:[#allocation3 + $0x2c0] sm:$0xff] %v3450
      %3483 = vst [vmem:[#allocation3 + $0x308] sm:$0xff] %v3451
      %3484 = vst [vmem:[#allocation3 + $0x350] sm:$0xff] %v3452
      %3485 = vst [vmem:[#allocation3 + $0x398] sm:$0xff] %v3453
      %3486 = vst [vmem:[#allocation3 + $0x3e0] sm:$0xff] %v3454
      %3487 = vst [vmem:[#allocation3 + $0x428] sm:$0xff] %v3455
      %3488 = vst [vmem:[#allocation3 + $0x470] sm:$0xff] %v3456
      %v3489 = vld [vmem:[%s2832] sm:$0xe]
      %v3490 = vld [vmem:[%s2832 + $0x4] sm:$0xf]
      %v3491 = vld [vmem:[%s2832 + $0x8] sm:$0x1]
      %v3492 = vld [vmem:[%s2832 + $0xc] sm:$0xe]
      %v3493 = vld [vmem:[%s2832 + $0x10] sm:$0xf]
      %v3494 = vld [vmem:[%s2832 + $0x14] sm:$0x1]
      %v3495 = vld [vmem:[%s2832 + $0x18] sm:$0xe]
      %v3496 = vld [vmem:[%s2832 + $0x1c] sm:$0xf]
      %v3497 = vld [vmem:[%s2832 + $0x20] sm:$0x1]
      %v3498 = vld [vmem:[%s2832 + $0x24] sm:$0xe]
      %v3499 = vld [vmem:[%s2832 + $0x28] sm:$0xf]
      %v3500 = vld [vmem:[%s2832 + $0x2c] sm:$0x1]
      %v3501 = vld [vmem:[%s2832 + $0x30] sm:$0xe]
      %v3502 = vld [vmem:[%s2832 + $0x34] sm:$0xf]
      %v3503 = vld [vmem:[%s2832 + $0x38] sm:$0x1]
      %v3504 = vld [vmem:[%s2832 + $0x3c] sm:$0xe]
      %v3505 = vld [vmem:[%s2832 + $0x40] sm:$0xf]
      %v3506 = vld [vmem:[%s2832 + $0x44] sm:$0x1]
      %v3507 = vld [vmem:[%s2832 + $0x48] sm:$0xe]
      %v3508 = vld [vmem:[%s2832 + $0x4c] sm:$0xf]
      %v3509 = vld [vmem:[%s2832 + $0x50] sm:$0x1]
      %v3510 = vld [vmem:[%s2832 + $0x54] sm:$0xe]
      %v3511 = vld [vmem:[%s2832 + $0x58] sm:$0xf]
      %v3512 = vld [vmem:[%s2832 + $0x5c] sm:$0x1]
      %v3513 = vld [vmem:[%s2832 + $0x60] sm:$0xe]
      %v3514 = vld [vmem:[%s2832 + $0x64] sm:$0xf]
      %v3515 = vld [vmem:[%s2832 + $0x68] sm:$0x1]
      %v3516 = vld [vmem:[%s2832 + $0x6c] sm:$0xe]
      %v3517 = vld [vmem:[%s2832 + $0x70] sm:$0xf]
      %v3518 = vld [vmem:[%s2832 + $0x74] sm:$0x1]
      %v3519 = vld [vmem:[%s2832 + $0x78] sm:$0xe]
      %v3520 = vld [vmem:[%s2832 + $0x7c] sm:$0xf]
      %v3521 = vld [vmem:[%s2832 + $0x80] sm:$0x1]
      %v3522 = vld [vmem:[%s2832 + $0x84] sm:$0xe]
      %v3523 = vld [vmem:[%s2832 + $0x88] sm:$0xf]
      %v3524 = vld [vmem:[%s2832 + $0x8c] sm:$0x1]
      %v3525 = vld [vmem:[%s2832 + $0x90] sm:$0xe]
      %v3526 = vld [vmem:[%s2832 + $0x94] sm:$0xf]
      %v3527 = vld [vmem:[%s2832 + $0x98] sm:$0x1]
      %v3528 = vld [vmem:[%s2832 + $0x9c] sm:$0xe]
      %v3529 = vld [vmem:[%s2832 + $0xa0] sm:$0xf]
      %v3530 = vld [vmem:[%s2832 + $0xa4] sm:$0x1]
      %v3531 = vld [vmem:[%s2832 + $0xa8] sm:$0xe]
      %v3532 = vld [vmem:[%s2832 + $0xac] sm:$0xf]
      %v3533 = vld [vmem:[%s2832 + $0xb0] sm:$0x1]
      %v3534 = vld [vmem:[%s2832 + $0xb4] sm:$0xe]
      %v3535 = vld [vmem:[%s2832 + $0xb8] sm:$0xf]
      %v3536 = vld [vmem:[%s2832 + $0xbc] sm:$0x1]
      %v3585 = vrot.slane %v3489, 5
      %v3586 = vrot.slane %v3585, 4
      %v3587 = vrot.slane %v3490, 5
      %v3588 = vsel %vm1695, %v3586, %v3587
      %v3589 = vrot.slane %v3587, 4
      %v3590 = vrot.slane %v3491, 5
      %v3591 = vsel %vm1695, %v3589, %v3590
      %v3592 = vrot.slane %v3492, 5
      %v3593 = vrot.slane %v3592, 4
      %v3594 = vrot.slane %v3493, 5
      %v3595 = vsel %vm1695, %v3593, %v3594
      %v3596 = vrot.slane %v3594, 4
      %v3597 = vrot.slane %v3494, 5
      %v3598 = vsel %vm1695, %v3596, %v3597
      %v3599 = vrot.slane %v3495, 5
      %v3600 = vrot.slane %v3599, 4
      %v3601 = vrot.slane %v3496, 5
      %v3602 = vsel %vm1695, %v3600, %v3601
      %v3603 = vrot.slane %v3601, 4
      %v3604 = vrot.slane %v3497, 5
      %v3605 = vsel %vm1695, %v3603, %v3604
      %v3606 = vrot.slane %v3498, 5
      %v3607 = vrot.slane %v3606, 4
      %v3608 = vrot.slane %v3499, 5
      %v3609 = vsel %vm1695, %v3607, %v3608
      %v3610 = vrot.slane %v3608, 4
      %v3611 = vrot.slane %v3500, 5
      %v3612 = vsel %vm1695, %v3610, %v3611
      %v3613 = vrot.slane %v3501, 5
      %v3614 = vrot.slane %v3613, 4
      %v3615 = vrot.slane %v3502, 5
      %v3616 = vsel %vm1695, %v3614, %v3615
      %v3617 = vrot.slane %v3615, 4
      %v3618 = vrot.slane %v3503, 5
      %v3619 = vsel %vm1695, %v3617, %v3618
      %v3620 = vrot.slane %v3504, 5
      %v3621 = vrot.slane %v3620, 4
      %v3622 = vrot.slane %v3505, 5
      %v3623 = vsel %vm1695, %v3621, %v3622
      %v3624 = vrot.slane %v3622, 4
      %v3625 = vrot.slane %v3506, 5
      %v3626 = vsel %vm1695, %v3624, %v3625
      %v3627 = vrot.slane %v3507, 5
      %v3628 = vrot.slane %v3627, 4
      %v3629 = vrot.slane %v3508, 5
      %v3630 = vsel %vm1695, %v3628, %v3629
      %v3631 = vrot.slane %v3629, 4
      %v3632 = vrot.slane %v3509, 5
      %v3633 = vsel %vm1695, %v3631, %v3632
      %v3634 = vrot.slane %v3510, 5
      %v3635 = vrot.slane %v3634, 4
      %v3636 = vrot.slane %v3511, 5
      %v3637 = vsel %vm1695, %v3635, %v3636
      %v3638 = vrot.slane %v3636, 4
      %v3639 = vrot.slane %v3512, 5
      %v3640 = vsel %vm1695, %v3638, %v3639
      %v3641 = vrot.slane %v3513, 5
      %v3642 = vrot.slane %v3641, 4
      %v3643 = vrot.slane %v3514, 5
      %v3644 = vsel %vm1695, %v3642, %v3643
      %v3645 = vrot.slane %v3643, 4
      %v3646 = vrot.slane %v3515, 5
      %v3647 = vsel %vm1695, %v3645, %v3646
      %v3648 = vrot.slane %v3516, 5
      %v3649 = vrot.slane %v3648, 4
      %v3650 = vrot.slane %v3517, 5
      %v3651 = vsel %vm1695, %v3649, %v3650
      %v3652 = vrot.slane %v3650, 4
      %v3653 = vrot.slane %v3518, 5
      %v3654 = vsel %vm1695, %v3652, %v3653
      %v3655 = vrot.slane %v3519, 5
      %v3656 = vrot.slane %v3655, 4
      %v3657 = vrot.slane %v3520, 5
      %v3658 = vsel %vm1695, %v3656, %v3657
      %v3659 = vrot.slane %v3657, 4
      %v3660 = vrot.slane %v3521, 5
      %v3661 = vsel %vm1695, %v3659, %v3660
      %v3662 = vrot.slane %v3522, 5
      %v3663 = vrot.slane %v3662, 4
      %v3664 = vrot.slane %v3523, 5
      %v3665 = vsel %vm1695, %v3663, %v3664
      %v3666 = vrot.slane %v3664, 4
      %v3667 = vrot.slane %v3524, 5
      %v3668 = vsel %vm1695, %v3666, %v3667
      %v3669 = vrot.slane %v3525, 5
      %v3670 = vrot.slane %v3669, 4
      %v3671 = vrot.slane %v3526, 5
      %v3672 = vsel %vm1695, %v3670, %v3671
      %v3673 = vrot.slane %v3671, 4
      %v3674 = vrot.slane %v3527, 5
      %v3675 = vsel %vm1695, %v3673, %v3674
      %v3676 = vrot.slane %v3528, 5
      %v3677 = vrot.slane %v3676, 4
      %v3678 = vrot.slane %v3529, 5
      %v3679 = vsel %vm1695, %v3677, %v3678
      %v3680 = vrot.slane %v3678, 4
      %v3681 = vrot.slane %v3530, 5
      %v3682 = vsel %vm1695, %v3680, %v3681
      %v3683 = vrot.slane %v3531, 5
      %v3684 = vrot.slane %v3683, 4
      %v3685 = vrot.slane %v3532, 5
      %v3686 = vsel %vm1695, %v3684, %v3685
      %v3687 = vrot.slane %v3685, 4
      %v3688 = vrot.slane %v3533, 5
      %v3689 = vsel %vm1695, %v3687, %v3688
      %v3690 = vrot.slane %v3534, 5
      %v3691 = vrot.slane %v3690, 4
      %v3692 = vrot.slane %v3535, 5
      %v3693 = vsel %vm1695, %v3691, %v3692
      %v3694 = vrot.slane %v3692, 4
      %v3695 = vrot.slane %v3536, 5
      %v3696 = vsel %vm1695, %v3694, %v3695
      %v3697 = vunpack.c.l.b16 %v3588
      %v3698 = vunpack.c.l.b16 %v3591
      %v3699 = vunpack.c.l.b16 %v3595
      %v3700 = vunpack.c.l.b16 %v3598
      %v3701 = vunpack.c.l.b16 %v3602
      %v3702 = vunpack.c.l.b16 %v3605
      %v3703 = vunpack.c.l.b16 %v3609
      %v3704 = vunpack.c.l.b16 %v3612
      %v3705 = vunpack.c.l.b16 %v3616
      %v3706 = vunpack.c.l.b16 %v3619
      %v3707 = vunpack.c.l.b16 %v3623
      %v3708 = vunpack.c.l.b16 %v3626
      %v3709 = vunpack.c.l.b16 %v3630
      %v3710 = vunpack.c.l.b16 %v3633
      %v3711 = vunpack.c.l.b16 %v3637
      %v3712 = vunpack.c.l.b16 %v3640
      %v3713 = vunpack.c.l.b16 %v3644
      %v3714 = vunpack.c.l.b16 %v3647
      %v3715 = vunpack.c.l.b16 %v3651
      %v3716 = vunpack.c.l.b16 %v3654
      %v3717 = vunpack.c.l.b16 %v3658
      %v3718 = vunpack.c.l.b16 %v3661
      %v3719 = vunpack.c.l.b16 %v3665
      %v3720 = vunpack.c.l.b16 %v3668
      %v3721 = vunpack.c.l.b16 %v3672
      %v3722 = vunpack.c.l.b16 %v3675
      %v3723 = vunpack.c.l.b16 %v3679
      %v3724 = vunpack.c.l.b16 %v3682
      %v3725 = vunpack.c.l.b16 %v3686
      %v3726 = vunpack.c.l.b16 %v3689
      %v3727 = vunpack.c.l.b16 %v3693
      %v3728 = vunpack.c.l.b16 %v3696
      %v3729 = vpack.c.b16 %v3698, %v3697
      %v3730 = vpack.c.b16 %v3700, %v3699
      %v3731 = vpack.c.b16 %v3702, %v3701
      %v3732 = vpack.c.b16 %v3704, %v3703
      %v3733 = vpack.c.b16 %v3706, %v3705
      %v3734 = vpack.c.b16 %v3708, %v3707
      %v3735 = vpack.c.b16 %v3710, %v3709
      %v3736 = vpack.c.b16 %v3712, %v3711
      %v3737 = vpack.c.b16 %v3714, %v3713
      %v3738 = vpack.c.b16 %v3716, %v3715
      %v3739 = vpack.c.b16 %v3718, %v3717
      %v3740 = vpack.c.b16 %v3720, %v3719
      %v3741 = vpack.c.b16 %v3722, %v3721
      %v3742 = vpack.c.b16 %v3724, %v3723
      %v3743 = vpack.c.b16 %v3726, %v3725
      %v3744 = vpack.c.b16 %v3728, %v3727
      %3761 = vst [vmem:[#allocation3 + $0x40] sm:$0xff] %v3729
      %3762 = vst [vmem:[#allocation3 + $0x88] sm:$0xff] %v3730
      %3763 = vst [vmem:[#allocation3 + $0xd0] sm:$0xff] %v3731
      %3764 = vst [vmem:[#allocation3 + $0x118] sm:$0xff] %v3732
      %3765 = vst [vmem:[#allocation3 + $0x160] sm:$0xff] %v3733
      %3766 = vst [vmem:[#allocation3 + $0x1a8] sm:$0xff] %v3734
      %3767 = vst [vmem:[#allocation3 + $0x1f0] sm:$0xff] %v3735
      %3768 = vst [vmem:[#allocation3 + $0x238] sm:$0xff] %v3736
      %3769 = vst [vmem:[#allocation3 + $0x280] sm:$0xff] %v3737
      %3770 = vst [vmem:[#allocation3 + $0x2c8] sm:$0xff] %v3738
      %3771 = vst [vmem:[#allocation3 + $0x310] sm:$0xff] %v3739
      %3772 = vst [vmem:[#allocation3 + $0x358] sm:$0xff] %v3740
      %3773 = vst [vmem:[#allocation3 + $0x3a0] sm:$0xff] %v3741
      %3774 = vst [vmem:[#allocation3 + $0x3e8] sm:$0xff] %v3742
      %3775 = vst [vmem:[#allocation3 + $0x430] sm:$0xff] %v3743
      %3776 = vst [vmem:[#allocation3 + $0x478] sm:$0xff] %v3744
      %v3777 = vld [vmem:[#allocation3] sm:$0xff]
      %v3778 = vld [vmem:[#allocation3 + $0x8] sm:$0xff]
      %v3779 = vld [vmem:[#allocation3 + $0x10] sm:$0xff]
      %v3780 = vld [vmem:[#allocation3 + $0x18] sm:$0xff]
      %v3781 = vld [vmem:[#allocation3 + $0x20] sm:$0xff]
      %v3782 = vld [vmem:[#allocation3 + $0x28] sm:$0xff]
      %v3783 = vld [vmem:[#allocation3 + $0x30] sm:$0xff]
      %v3784 = vld [vmem:[#allocation3 + $0x38] sm:$0xff]
      %v3785 = vld [vmem:[#allocation3 + $0x40] sm:$0xff]
      %v3786 = vld [vmem:[#allocation3 + $0x48] sm:$0xff]
      %v3787 = vld [vmem:[#allocation3 + $0x50] sm:$0xff]
      %v3788 = vld [vmem:[#allocation3 + $0x58] sm:$0xff]
      %v3789 = vld [vmem:[#allocation3 + $0x60] sm:$0xff]
      %v3790 = vld [vmem:[#allocation3 + $0x68] sm:$0xff]
      %v3791 = vld [vmem:[#allocation3 + $0x70] sm:$0xff]
      %v3792 = vld [vmem:[#allocation3 + $0x78] sm:$0xff]
      %v3793 = vld [vmem:[#allocation3 + $0x80] sm:$0xff]
      %v3794 = vld [vmem:[#allocation3 + $0x88] sm:$0xff]
      %v3795 = vld [vmem:[#allocation3 + $0x90] sm:$0xff]
      %v3796 = vld [vmem:[#allocation3 + $0x98] sm:$0xff]
      %v3797 = vld [vmem:[#allocation3 + $0xa0] sm:$0xff]
      %v3798 = vld [vmem:[#allocation3 + $0xa8] sm:$0xff]
      %v3799 = vld [vmem:[#allocation3 + $0xb0] sm:$0xff]
      %v3800 = vld [vmem:[#allocation3 + $0xb8] sm:$0xff]
      %v3801 = vld [vmem:[#allocation3 + $0xc0] sm:$0xff]
      %v3802 = vld [vmem:[#allocation3 + $0xc8] sm:$0xff]
      %v3803 = vld [vmem:[#allocation3 + $0xd0] sm:$0xff]
      %v3804 = vld [vmem:[#allocation3 + $0xd8] sm:$0xff]
      %v3805 = vld [vmem:[#allocation3 + $0xe0] sm:$0xff]
      %v3806 = vld [vmem:[#allocation3 + $0xe8] sm:$0xff]
      %v3807 = vld [vmem:[#allocation3 + $0xf0] sm:$0xff]
      %v3808 = vld [vmem:[#allocation3 + $0xf8] sm:$0xff]
      %v3809 = vld [vmem:[#allocation3 + $0x100] sm:$0xff]
      %v3810 = vld [vmem:[#allocation3 + $0x108] sm:$0xff]
      %v3811 = vld [vmem:[#allocation3 + $0x110] sm:$0xff]
      %v3812 = vld [vmem:[#allocation3 + $0x118] sm:$0xff]
      %v3813 = vld [vmem:[#allocation3 + $0x120] sm:$0xff]
      %v3814 = vld [vmem:[#allocation3 + $0x128] sm:$0xff]
      %v3815 = vld [vmem:[#allocation3 + $0x130] sm:$0xff]
      %v3816 = vld [vmem:[#allocation3 + $0x138] sm:$0xff]
      %v3817 = vld [vmem:[#allocation3 + $0x140] sm:$0xff]
      %v3818 = vld [vmem:[#allocation3 + $0x148] sm:$0xff]
      %v3819 = vld [vmem:[#allocation3 + $0x150] sm:$0xff]
      %v3820 = vld [vmem:[#allocation3 + $0x158] sm:$0xff]
      %v3821 = vld [vmem:[#allocation3 + $0x160] sm:$0xff]
      %v3822 = vld [vmem:[#allocation3 + $0x168] sm:$0xff]
      %v3823 = vld [vmem:[#allocation3 + $0x170] sm:$0xff]
      %v3824 = vld [vmem:[#allocation3 + $0x178] sm:$0xff]
      %v3825 = vld [vmem:[#allocation3 + $0x180] sm:$0xff]
      %v3826 = vld [vmem:[#allocation3 + $0x188] sm:$0xff]
      %v3827 = vld [vmem:[#allocation3 + $0x190] sm:$0xff]
      %v3828 = vld [vmem:[#allocation3 + $0x198] sm:$0xff]
      %v3829 = vld [vmem:[#allocation3 + $0x1a0] sm:$0xff]
      %v3830 = vld [vmem:[#allocation3 + $0x1a8] sm:$0xff]
      %v3831 = vld [vmem:[#allocation3 + $0x1b0] sm:$0xff]
      %v3832 = vld [vmem:[#allocation3 + $0x1b8] sm:$0xff]
      %v3833 = vld [vmem:[#allocation3 + $0x1c0] sm:$0xff]
      %v3834 = vld [vmem:[#allocation3 + $0x1c8] sm:$0xff]
      %v3835 = vld [vmem:[#allocation3 + $0x1d0] sm:$0xff]
      %v3836 = vld [vmem:[#allocation3 + $0x1d8] sm:$0xff]
      %v3837 = vld [vmem:[#allocation3 + $0x1e0] sm:$0xff]
      %v3838 = vld [vmem:[#allocation3 + $0x1e8] sm:$0xff]
      %v3839 = vld [vmem:[#allocation3 + $0x1f0] sm:$0xff]
      %v3840 = vld [vmem:[#allocation3 + $0x1f8] sm:$0xff]
      %v3841 = vld [vmem:[#allocation3 + $0x200] sm:$0xff]
      %v3842 = vld [vmem:[#allocation3 + $0x208] sm:$0xff]
      %v3843 = vld [vmem:[#allocation3 + $0x210] sm:$0xff]
      %v3844 = vld [vmem:[#allocation3 + $0x218] sm:$0xff]
      %v3845 = vld [vmem:[#allocation3 + $0x220] sm:$0xff]
      %v3846 = vld [vmem:[#allocation3 + $0x228] sm:$0xff]
      %v3847 = vld [vmem:[#allocation3 + $0x230] sm:$0xff]
      %v3848 = vld [vmem:[#allocation3 + $0x238] sm:$0xff]
      %v3849 = vld [vmem:[#allocation3 + $0x240] sm:$0xff]
      %v3850 = vld [vmem:[#allocation3 + $0x248] sm:$0xff]
      %v3851 = vld [vmem:[#allocation3 + $0x250] sm:$0xff]
      %v3852 = vld [vmem:[#allocation3 + $0x258] sm:$0xff]
      %v3853 = vld [vmem:[#allocation3 + $0x260] sm:$0xff]
      %v3854 = vld [vmem:[#allocation3 + $0x268] sm:$0xff]
      %v3855 = vld [vmem:[#allocation3 + $0x270] sm:$0xff]
      %v3856 = vld [vmem:[#allocation3 + $0x278] sm:$0xff]
      %v3857 = vld [vmem:[#allocation3 + $0x280] sm:$0xff]
      %v3858 = vld [vmem:[#allocation3 + $0x288] sm:$0xff]
      %v3859 = vld [vmem:[#allocation3 + $0x290] sm:$0xff]
      %v3860 = vld [vmem:[#allocation3 + $0x298] sm:$0xff]
      %v3861 = vld [vmem:[#allocation3 + $0x2a0] sm:$0xff]
      %v3862 = vld [vmem:[#allocation3 + $0x2a8] sm:$0xff]
      %v3863 = vld [vmem:[#allocation3 + $0x2b0] sm:$0xff]
      %v3864 = vld [vmem:[#allocation3 + $0x2b8] sm:$0xff]
      %v3865 = vld [vmem:[#allocation3 + $0x2c0] sm:$0xff]
      %v3866 = vld [vmem:[#allocation3 + $0x2c8] sm:$0xff]
      %v3867 = vld [vmem:[#allocation3 + $0x2d0] sm:$0xff]
      %v3868 = vld [vmem:[#allocation3 + $0x2d8] sm:$0xff]
      %v3869 = vld [vmem:[#allocation3 + $0x2e0] sm:$0xff]
      %v3870 = vld [vmem:[#allocation3 + $0x2e8] sm:$0xff]
      %v3871 = vld [vmem:[#allocation3 + $0x2f0] sm:$0xff]
      %v3872 = vld [vmem:[#allocation3 + $0x2f8] sm:$0xff]
      %v3873 = vld [vmem:[#allocation3 + $0x300] sm:$0xff]
      %v3874 = vld [vmem:[#allocation3 + $0x308] sm:$0xff]
      %v3875 = vld [vmem:[#allocation3 + $0x310] sm:$0xff]
      %v3876 = vld [vmem:[#allocation3 + $0x318] sm:$0xff]
      %v3877 = vld [vmem:[#allocation3 + $0x320] sm:$0xff]
      %v3878 = vld [vmem:[#allocation3 + $0x328] sm:$0xff]
      %v3879 = vld [vmem:[#allocation3 + $0x330] sm:$0xff]
      %v3880 = vld [vmem:[#allocation3 + $0x338] sm:$0xff]
      %v3881 = vld [vmem:[#allocation3 + $0x340] sm:$0xff]
      %v3882 = vld [vmem:[#allocation3 + $0x348] sm:$0xff]
      %v3883 = vld [vmem:[#allocation3 + $0x350] sm:$0xff]
      %v3884 = vld [vmem:[#allocation3 + $0x358] sm:$0xff]
      %v3885 = vld [vmem:[#allocation3 + $0x360] sm:$0xff]
      %v3886 = vld [vmem:[#allocation3 + $0x368] sm:$0xff]
      %v3887 = vld [vmem:[#allocation3 + $0x370] sm:$0xff]
      %v3888 = vld [vmem:[#allocation3 + $0x378] sm:$0xff]
      %v3889 = vld [vmem:[#allocation3 + $0x380] sm:$0xff]
      %v3890 = vld [vmem:[#allocation3 + $0x388] sm:$0xff]
      %v3891 = vld [vmem:[#allocation3 + $0x390] sm:$0xff]
      %v3892 = vld [vmem:[#allocation3 + $0x398] sm:$0xff]
      %v3893 = vld [vmem:[#allocation3 + $0x3a0] sm:$0xff]
      %v3894 = vld [vmem:[#allocation3 + $0x3a8] sm:$0xff]
      %v3895 = vld [vmem:[#allocation3 + $0x3b0] sm:$0xff]
      %v3896 = vld [vmem:[#allocation3 + $0x3b8] sm:$0xff]
      %v3897 = vld [vmem:[#allocation3 + $0x3c0] sm:$0xff]
      %v3898 = vld [vmem:[#allocation3 + $0x3c8] sm:$0xff]
      %v3899 = vld [vmem:[#allocation3 + $0x3d0] sm:$0xff]
      %v3900 = vld [vmem:[#allocation3 + $0x3d8] sm:$0xff]
      %v3901 = vld [vmem:[#allocation3 + $0x3e0] sm:$0xff]
      %v3902 = vld [vmem:[#allocation3 + $0x3e8] sm:$0xff]
      %v3903 = vld [vmem:[#allocation3 + $0x3f0] sm:$0xff]
      %v3904 = vld [vmem:[#allocation3 + $0x3f8] sm:$0xff]
      %v3905 = vld [vmem:[#allocation3 + $0x400] sm:$0xff]
      %v3906 = vld [vmem:[#allocation3 + $0x408] sm:$0xff]
      %v3907 = vld [vmem:[#allocation3 + $0x410] sm:$0xff]
      %v3908 = vld [vmem:[#allocation3 + $0x418] sm:$0xff]
      %v3909 = vld [vmem:[#allocation3 + $0x420] sm:$0xff]
      %v3910 = vld [vmem:[#allocation3 + $0x428] sm:$0xff]
      %v3911 = vld [vmem:[#allocation3 + $0x430] sm:$0xff]
      %v3912 = vld [vmem:[#allocation3 + $0x438] sm:$0xff]
      %v3913 = vld [vmem:[#allocation3 + $0x440] sm:$0xff]
      %v3914 = vld [vmem:[#allocation3 + $0x448] sm:$0xff]
      %v3915 = vld [vmem:[#allocation3 + $0x450] sm:$0xff]
      %v3916 = vld [vmem:[#allocation3 + $0x458] sm:$0xff]
      %v3917 = vld [vmem:[#allocation3 + $0x460] sm:$0xff]
      %v3918 = vld [vmem:[#allocation3 + $0x468] sm:$0xff]
      %v3919 = vld [vmem:[#allocation3 + $0x470] sm:$0xff]
      %v3920 = vld [vmem:[#allocation3 + $0x478] sm:$0xff]
      %v3921 = vld [vmem:[%s1] sm:$0xf]
      %v3922 = vld [vmem:[%s1 + $0x4] sm:$0xf]
      %v3923 = vld [vmem:[%s1 + $0x8] sm:$0xf]
      %v3924 = vld [vmem:[%s1 + $0xc] sm:$0xf]
      %v3925 = vld [vmem:[%s1 + $0x10] sm:$0xf]
      %v3926 = vld [vmem:[%s1 + $0x14] sm:$0xf]
      %v3927 = vld [vmem:[%s1 + $0x18] sm:$0xf]
      %v3928 = vld [vmem:[%s1 + $0x1c] sm:$0xf]
      %v3929 = vld [vmem:[%s1 + $0x20] sm:$0xf]
      %v3930 = vld [vmem:[%s1 + $0x24] sm:$0xf]
      %v3931 = vld [vmem:[%s1 + $0x28] sm:$0xf]
      %v3932 = vld [vmem:[%s1 + $0x2c] sm:$0xf]
      %v3933 = vld [vmem:[%s1 + $0x30] sm:$0xf]
      %v3934 = vld [vmem:[%s1 + $0x34] sm:$0xf]
      %v3935 = vld [vmem:[%s1 + $0x38] sm:$0xf]
      %v3936 = vld [vmem:[%s1 + $0x3c] sm:$0xf]
      %v3937 = vld [vmem:[%s1 + $0x40] sm:$0xf]
      %v3938 = vld [vmem:[%s1 + $0x44] sm:$0xf]
      %v3939 = vld [vmem:[%s1 + $0x48] sm:$0xf]
      %v3940 = vld [vmem:[%s1 + $0x4c] sm:$0xf]
      %v3941 = vld [vmem:[%s1 + $0x50] sm:$0xf]
      %v3942 = vld [vmem:[%s1 + $0x54] sm:$0xf]
      %v3943 = vld [vmem:[%s1 + $0x58] sm:$0xf]
      %v3944 = vld [vmem:[%s1 + $0x5c] sm:$0xf]
      %v3945 = vld [vmem:[%s1 + $0x60] sm:$0xf]
      %v3946 = vld [vmem:[%s1 + $0x64] sm:$0xf]
      %v3947 = vld [vmem:[%s1 + $0x68] sm:$0xf]
      %v3948 = vld [vmem:[%s1 + $0x6c] sm:$0xf]
      %v3949 = vld [vmem:[%s1 + $0x70] sm:$0xf]
      %v3950 = vld [vmem:[%s1 + $0x74] sm:$0xf]
      %v3951 = vld [vmem:[%s1 + $0x78] sm:$0xf]
      %v3952 = vld [vmem:[%s1 + $0x7c] sm:$0xf]
      %v3953 = vld [vmem:[%s1 + $0x80] sm:$0xf]
      %v3954 = vld [vmem:[%s1 + $0x84] sm:$0xf]
      %v3955 = vld [vmem:[%s1 + $0x88] sm:$0xf]
      %v3956 = vld [vmem:[%s1 + $0x8c] sm:$0xf]
      %v3957 = vld [vmem:[%s1 + $0x90] sm:$0xf]
      %v3958 = vld [vmem:[%s1 + $0x94] sm:$0xf]
      %v3959 = vld [vmem:[%s1 + $0x98] sm:$0xf]
      %v3960 = vld [vmem:[%s1 + $0x9c] sm:$0xf]
      %v3961 = vld [vmem:[%s1 + $0xa0] sm:$0xf]
      %v3962 = vld [vmem:[%s1 + $0xa4] sm:$0xf]
      %v3963 = vld [vmem:[%s1 + $0xa8] sm:$0xf]
      %v3964 = vld [vmem:[%s1 + $0xac] sm:$0xf]
      %v3965 = vld [vmem:[%s1 + $0xb0] sm:$0xf]
      %v3966 = vld [vmem:[%s1 + $0xb4] sm:$0xf]
      %v3967 = vld [vmem:[%s1 + $0xb8] sm:$0xf]
      %v3968 = vld [vmem:[%s1 + $0xbc] sm:$0xf]
      %v3969 = vld [vmem:[%s1 + $0xc0] sm:$0xf]
      %v3970 = vld [vmem:[%s1 + $0xc4] sm:$0xf]
      %v3971 = vld [vmem:[%s1 + $0xc8] sm:$0xf]
      %v3972 = vld [vmem:[%s1 + $0xcc] sm:$0xf]
      %v3973 = vld [vmem:[%s1 + $0xd0] sm:$0xf]
      %v3974 = vld [vmem:[%s1 + $0xd4] sm:$0xf]
      %v3975 = vld [vmem:[%s1 + $0xd8] sm:$0xf]
      %v3976 = vld [vmem:[%s1 + $0xdc] sm:$0xf]
      %v3977 = vld [vmem:[%s1 + $0xe0] sm:$0xf]
      %v3978 = vld [vmem:[%s1 + $0xe4] sm:$0xf]
      %v3979 = vld [vmem:[%s1 + $0xe8] sm:$0xf]
      %v3980 = vld [vmem:[%s1 + $0xec] sm:$0xf]
      %v3981 = vld [vmem:[%s1 + $0xf0] sm:$0xf]
      %v3982 = vld [vmem:[%s1 + $0xf4] sm:$0xf]
      %v3983 = vld [vmem:[%s1 + $0xf8] sm:$0xf]
      %v3984 = vld [vmem:[%s1 + $0xfc] sm:$0xf]
      %v3985 = vld [vmem:[%s1 + $0x100] sm:$0xf]
      %v3986 = vld [vmem:[%s1 + $0x104] sm:$0xf]
      %v3987 = vld [vmem:[%s1 + $0x108] sm:$0xf]
      %v3988 = vld [vmem:[%s1 + $0x10c] sm:$0xf]
      %v3989 = vld [vmem:[%s1 + $0x110] sm:$0xf]
      %v3990 = vld [vmem:[%s1 + $0x114] sm:$0xf]
      %v3991 = vld [vmem:[%s1 + $0x118] sm:$0xf]
      %v3992 = vld [vmem:[%s1 + $0x11c] sm:$0xf]
      %v3993 = vld [vmem:[%s1 + $0x120] sm:$0xf]
      %v3994 = vld [vmem:[%s1 + $0x124] sm:$0xf]
      %v3995 = vld [vmem:[%s1 + $0x128] sm:$0xf]
      %v3996 = vld [vmem:[%s1 + $0x12c] sm:$0xf]
      %v3997 = vld [vmem:[%s1 + $0x130] sm:$0xf]
      %v3998 = vld [vmem:[%s1 + $0x134] sm:$0xf]
      %v3999 = vld [vmem:[%s1 + $0x138] sm:$0xf]
      %v4000 = vld [vmem:[%s1 + $0x13c] sm:$0xf]
      %v4001 = vld [vmem:[%s1 + $0x140] sm:$0xf]
      %v4002 = vld [vmem:[%s1 + $0x144] sm:$0xf]
      %v4003 = vld [vmem:[%s1 + $0x148] sm:$0xf]
      %v4004 = vld [vmem:[%s1 + $0x14c] sm:$0xf]
      %v4005 = vld [vmem:[%s1 + $0x150] sm:$0xf]
      %v4006 = vld [vmem:[%s1 + $0x154] sm:$0xf]
      %v4007 = vld [vmem:[%s1 + $0x158] sm:$0xf]
      %v4008 = vld [vmem:[%s1 + $0x15c] sm:$0xf]
      %v4009 = vld [vmem:[%s1 + $0x160] sm:$0xf]
      %v4010 = vld [vmem:[%s1 + $0x164] sm:$0xf]
      %v4011 = vld [vmem:[%s1 + $0x168] sm:$0xf]
      %v4012 = vld [vmem:[%s1 + $0x16c] sm:$0xf]
      %v4013 = vld [vmem:[%s1 + $0x170] sm:$0xf]
      %v4014 = vld [vmem:[%s1 + $0x174] sm:$0xf]
      %v4015 = vld [vmem:[%s1 + $0x178] sm:$0xf]
      %v4016 = vld [vmem:[%s1 + $0x17c] sm:$0xf]
      %v4017 = vld [vmem:[%s1 + $0x180] sm:$0xf]
      %v4018 = vld [vmem:[%s1 + $0x184] sm:$0xf]
      %v4019 = vld [vmem:[%s1 + $0x188] sm:$0xf]
      %v4020 = vld [vmem:[%s1 + $0x18c] sm:$0xf]
      %v4021 = vld [vmem:[%s1 + $0x190] sm:$0xf]
      %v4022 = vld [vmem:[%s1 + $0x194] sm:$0xf]
      %v4023 = vld [vmem:[%s1 + $0x198] sm:$0xf]
      %v4024 = vld [vmem:[%s1 + $0x19c] sm:$0xf]
      %v4025 = vld [vmem:[%s1 + $0x1a0] sm:$0xf]
      %v4026 = vld [vmem:[%s1 + $0x1a4] sm:$0xf]
      %v4027 = vld [vmem:[%s1 + $0x1a8] sm:$0xf]
      %v4028 = vld [vmem:[%s1 + $0x1ac] sm:$0xf]
      %v4029 = vld [vmem:[%s1 + $0x1b0] sm:$0xf]
      %v4030 = vld [vmem:[%s1 + $0x1b4] sm:$0xf]
      %v4031 = vld [vmem:[%s1 + $0x1b8] sm:$0xf]
      %v4032 = vld [vmem:[%s1 + $0x1bc] sm:$0xf]
      %v4033 = vld [vmem:[%s1 + $0x1c0] sm:$0xf]
      %v4034 = vld [vmem:[%s1 + $0x1c4] sm:$0xf]
      %v4035 = vld [vmem:[%s1 + $0x1c8] sm:$0xf]
      %v4036 = vld [vmem:[%s1 + $0x1cc] sm:$0xf]
      %v4037 = vld [vmem:[%s1 + $0x1d0] sm:$0xf]
      %v4038 = vld [vmem:[%s1 + $0x1d4] sm:$0xf]
      %v4039 = vld [vmem:[%s1 + $0x1d8] sm:$0xf]
      %v4040 = vld [vmem:[%s1 + $0x1dc] sm:$0xf]
      %v4041 = vld [vmem:[%s1 + $0x1e0] sm:$0xf]
      %v4042 = vld [vmem:[%s1 + $0x1e4] sm:$0xf]
      %v4043 = vld [vmem:[%s1 + $0x1e8] sm:$0xf]
      %v4044 = vld [vmem:[%s1 + $0x1ec] sm:$0xf]
      %v4045 = vld [vmem:[%s1 + $0x1f0] sm:$0xf]
      %v4046 = vld [vmem:[%s1 + $0x1f4] sm:$0xf]
      %v4047 = vld [vmem:[%s1 + $0x1f8] sm:$0xf]
      %v4048 = vld [vmem:[%s1 + $0x1fc] sm:$0xf]
      %v4049 = vld [vmem:[%s1 + $0x200] sm:$0xf]
      %v4050 = vld [vmem:[%s1 + $0x204] sm:$0xf]
      %v4051 = vld [vmem:[%s1 + $0x208] sm:$0xf]
      %v4052 = vld [vmem:[%s1 + $0x20c] sm:$0xf]
      %v4053 = vld [vmem:[%s1 + $0x210] sm:$0xf]
      %v4054 = vld [vmem:[%s1 + $0x214] sm:$0xf]
      %v4055 = vld [vmem:[%s1 + $0x218] sm:$0xf]
      %v4056 = vld [vmem:[%s1 + $0x21c] sm:$0xf]
      %v4057 = vld [vmem:[%s1 + $0x220] sm:$0xf]
      %v4058 = vld [vmem:[%s1 + $0x224] sm:$0xf]
      %v4059 = vld [vmem:[%s1 + $0x228] sm:$0xf]
      %v4060 = vld [vmem:[%s1 + $0x22c] sm:$0xf]
      %v4061 = vld [vmem:[%s1 + $0x230] sm:$0xf]
      %v4062 = vld [vmem:[%s1 + $0x234] sm:$0xf]
      %v4063 = vld [vmem:[%s1 + $0x238] sm:$0xf]
      %v4064 = vld [vmem:[%s1 + $0x23c] sm:$0xf]
      %v4065 = vld [vmem:[%s2] sm:$0x1]
      %v4067 = vlaneseq
      %v4068 = vshrl.u32 %v4067, 7
      %v4069 = vsub.s32 0, %v4068
      %v4070 = vrot.slane %v4065, %v4069
      %v4216 = vunpack.c.l.b16 %v3921
      %v4217 = vunpack.c.l.b16 %v3922
      %v4218 = vunpack.c.l.b16 %v3923
      %v4219 = vunpack.c.l.b16 %v3924
      %v4220 = vunpack.c.l.b16 %v3925
      %v4221 = vunpack.c.l.b16 %v3926
      %v4222 = vunpack.c.l.b16 %v3927
      %v4223 = vunpack.c.l.b16 %v3928
      %v4224 = vunpack.c.l.b16 %v3929
      %v4225 = vunpack.c.l.b16 %v3930
      %v4226 = vunpack.c.l.b16 %v3931
      %v4227 = vunpack.c.l.b16 %v3932
      %v4228 = vunpack.c.l.b16 %v3933
      %v4229 = vunpack.c.l.b16 %v3934
      %v4230 = vunpack.c.l.b16 %v3935
      %v4231 = vunpack.c.l.b16 %v3936
      %v4232 = vunpack.c.l.b16 %v3937
      %v4233 = vunpack.c.l.b16 %v3938
      %v4234 = vunpack.c.l.b16 %v3939
      %v4235 = vunpack.c.l.b16 %v3940
      %v4236 = vunpack.c.l.b16 %v3941
      %v4237 = vunpack.c.l.b16 %v3942
      %v4238 = vunpack.c.l.b16 %v3943
      %v4239 = vunpack.c.l.b16 %v3944
      %v4240 = vunpack.c.l.b16 %v3945
      %v4241 = vunpack.c.l.b16 %v3946
      %v4242 = vunpack.c.l.b16 %v3947
      %v4243 = vunpack.c.l.b16 %v3948
      %v4244 = vunpack.c.l.b16 %v3949
      %v4245 = vunpack.c.l.b16 %v3950
      %v4246 = vunpack.c.l.b16 %v3951
      %v4247 = vunpack.c.l.b16 %v3952
      %v4248 = vunpack.c.l.b16 %v3953
      %v4249 = vunpack.c.l.b16 %v3954
      %v4250 = vunpack.c.l.b16 %v3955
      %v4251 = vunpack.c.l.b16 %v3956
      %v4252 = vunpack.c.l.b16 %v3957
      %v4253 = vunpack.c.l.b16 %v3958
      %v4254 = vunpack.c.l.b16 %v3959
      %v4255 = vunpack.c.l.b16 %v3960
      %v4256 = vunpack.c.l.b16 %v3961
      %v4257 = vunpack.c.l.b16 %v3962
      %v4258 = vunpack.c.l.b16 %v3963
      %v4259 = vunpack.c.l.b16 %v3964
      %v4260 = vunpack.c.l.b16 %v3965
      %v4261 = vunpack.c.l.b16 %v3966
      %v4262 = vunpack.c.l.b16 %v3967
      %v4263 = vunpack.c.l.b16 %v3968
      %v4264 = vunpack.c.l.b16 %v3969
      %v4265 = vunpack.c.l.b16 %v3970
      %v4266 = vunpack.c.l.b16 %v3971
      %v4267 = vunpack.c.l.b16 %v3972
      %v4268 = vunpack.c.l.b16 %v3973
      %v4269 = vunpack.c.l.b16 %v3974
      %v4270 = vunpack.c.l.b16 %v3975
      %v4271 = vunpack.c.l.b16 %v3976
      %v4272 = vunpack.c.l.b16 %v3977
      %v4273 = vunpack.c.l.b16 %v3978
      %v4274 = vunpack.c.l.b16 %v3979
      %v4275 = vunpack.c.l.b16 %v3980
      %v4276 = vunpack.c.l.b16 %v3981
      %v4277 = vunpack.c.l.b16 %v3982
      %v4278 = vunpack.c.l.b16 %v3983
      %v4279 = vunpack.c.l.b16 %v3984
      %v4280 = vunpack.c.l.b16 %v3985
      %v4281 = vunpack.c.l.b16 %v3986
      %v4282 = vunpack.c.l.b16 %v3987
      %v4283 = vunpack.c.l.b16 %v3988
      %v4284 = vunpack.c.l.b16 %v3989
      %v4285 = vunpack.c.l.b16 %v3990
      %v4286 = vunpack.c.l.b16 %v3991
      %v4287 = vunpack.c.l.b16 %v3992
      %v4288 = vunpack.c.l.b16 %v3993
      %v4289 = vunpack.c.l.b16 %v3994
      %v4290 = vunpack.c.l.b16 %v3995
      %v4291 = vunpack.c.l.b16 %v3996
      %v4292 = vunpack.c.l.b16 %v3997
      %v4293 = vunpack.c.l.b16 %v3998
      %v4294 = vunpack.c.l.b16 %v3999
      %v4295 = vunpack.c.l.b16 %v4000
      %v4296 = vunpack.c.l.b16 %v4001
      %v4297 = vunpack.c.l.b16 %v4002
      %v4298 = vunpack.c.l.b16 %v4003
      %v4299 = vunpack.c.l.b16 %v4004
      %v4300 = vunpack.c.l.b16 %v4005
      %v4301 = vunpack.c.l.b16 %v4006
      %v4302 = vunpack.c.l.b16 %v4007
      %v4303 = vunpack.c.l.b16 %v4008
      %v4304 = vunpack.c.l.b16 %v4009
      %v4305 = vunpack.c.l.b16 %v4010
      %v4306 = vunpack.c.l.b16 %v4011
      %v4307 = vunpack.c.l.b16 %v4012
      %v4308 = vunpack.c.l.b16 %v4013
      %v4309 = vunpack.c.l.b16 %v4014
      %v4310 = vunpack.c.l.b16 %v4015
      %v4311 = vunpack.c.l.b16 %v4016
      %v4312 = vunpack.c.l.b16 %v4017
      %v4313 = vunpack.c.l.b16 %v4018
      %v4314 = vunpack.c.l.b16 %v4019
      %v4315 = vunpack.c.l.b16 %v4020
      %v4316 = vunpack.c.l.b16 %v4021
      %v4317 = vunpack.c.l.b16 %v4022
      %v4318 = vunpack.c.l.b16 %v4023
      %v4319 = vunpack.c.l.b16 %v4024
      %v4320 = vunpack.c.l.b16 %v4025
      %v4321 = vunpack.c.l.b16 %v4026
      %v4322 = vunpack.c.l.b16 %v4027
      %v4323 = vunpack.c.l.b16 %v4028
      %v4324 = vunpack.c.l.b16 %v4029
      %v4325 = vunpack.c.l.b16 %v4030
      %v4326 = vunpack.c.l.b16 %v4031
      %v4327 = vunpack.c.l.b16 %v4032
      %v4328 = vunpack.c.l.b16 %v4033
      %v4329 = vunpack.c.l.b16 %v4034
      %v4330 = vunpack.c.l.b16 %v4035
      %v4331 = vunpack.c.l.b16 %v4036
      %v4332 = vunpack.c.l.b16 %v4037
      %v4333 = vunpack.c.l.b16 %v4038
      %v4334 = vunpack.c.l.b16 %v4039
      %v4335 = vunpack.c.l.b16 %v4040
      %v4336 = vunpack.c.l.b16 %v4041
      %v4337 = vunpack.c.l.b16 %v4042
      %v4338 = vunpack.c.l.b16 %v4043
      %v4339 = vunpack.c.l.b16 %v4044
      %v4340 = vunpack.c.l.b16 %v4045
      %v4341 = vunpack.c.l.b16 %v4046
      %v4342 = vunpack.c.l.b16 %v4047
      %v4343 = vunpack.c.l.b16 %v4048
      %v4344 = vunpack.c.l.b16 %v4049
      %v4345 = vunpack.c.l.b16 %v4050
      %v4346 = vunpack.c.l.b16 %v4051
      %v4347 = vunpack.c.l.b16 %v4052
      %v4348 = vunpack.c.l.b16 %v4053
      %v4349 = vunpack.c.l.b16 %v4054
      %v4350 = vunpack.c.l.b16 %v4055
      %v4351 = vunpack.c.l.b16 %v4056
      %v4352 = vunpack.c.l.b16 %v4057
      %v4353 = vunpack.c.l.b16 %v4058
      %v4354 = vunpack.c.l.b16 %v4059
      %v4355 = vunpack.c.l.b16 %v4060
      %v4356 = vunpack.c.l.b16 %v4061
      %v4357 = vunpack.c.l.b16 %v4062
      %v4358 = vunpack.c.l.b16 %v4063
      %v4359 = vunpack.c.l.b16 %v4064
      %v4360 = vpack.c.b16 %v4217, %v4216
      %v4361 = vpack.c.b16 %v4219, %v4218
      %v4362 = vpack.c.b16 %v4221, %v4220
      %v4363 = vpack.c.b16 %v4223, %v4222
      %v4364 = vpack.c.b16 %v4225, %v4224
      %v4365 = vpack.c.b16 %v4227, %v4226
      %v4366 = vpack.c.b16 %v4229, %v4228
      %v4367 = vpack.c.b16 %v4231, %v4230
      %v4368 = vpack.c.b16 %v4233, %v4232
      %v4369 = vpack.c.b16 %v4235, %v4234
      %v4370 = vpack.c.b16 %v4237, %v4236
      %v4371 = vpack.c.b16 %v4239, %v4238
      %v4372 = vpack.c.b16 %v4241, %v4240
      %v4373 = vpack.c.b16 %v4243, %v4242
      %v4374 = vpack.c.b16 %v4245, %v4244
      %v4375 = vpack.c.b16 %v4247, %v4246
      %v4376 = vpack.c.b16 %v4249, %v4248
      %v4377 = vpack.c.b16 %v4251, %v4250
      %v4378 = vpack.c.b16 %v4253, %v4252
      %v4379 = vpack.c.b16 %v4255, %v4254
      %v4380 = vpack.c.b16 %v4257, %v4256
      %v4381 = vpack.c.b16 %v4259, %v4258
      %v4382 = vpack.c.b16 %v4261, %v4260
      %v4383 = vpack.c.b16 %v4263, %v4262
      %v4384 = vpack.c.b16 %v4265, %v4264
      %v4385 = vpack.c.b16 %v4267, %v4266
      %v4386 = vpack.c.b16 %v4269, %v4268
      %v4387 = vpack.c.b16 %v4271, %v4270
      %v4388 = vpack.c.b16 %v4273, %v4272
      %v4389 = vpack.c.b16 %v4275, %v4274
      %v4390 = vpack.c.b16 %v4277, %v4276
      %v4391 = vpack.c.b16 %v4279, %v4278
      %v4392 = vpack.c.b16 %v4281, %v4280
      %v4393 = vpack.c.b16 %v4283, %v4282
      %v4394 = vpack.c.b16 %v4285, %v4284
      %v4395 = vpack.c.b16 %v4287, %v4286
      %v4396 = vpack.c.b16 %v4289, %v4288
      %v4397 = vpack.c.b16 %v4291, %v4290
      %v4398 = vpack.c.b16 %v4293, %v4292
      %v4399 = vpack.c.b16 %v4295, %v4294
      %v4400 = vpack.c.b16 %v4297, %v4296
      %v4401 = vpack.c.b16 %v4299, %v4298
      %v4402 = vpack.c.b16 %v4301, %v4300
      %v4403 = vpack.c.b16 %v4303, %v4302
      %v4404 = vpack.c.b16 %v4305, %v4304
      %v4405 = vpack.c.b16 %v4307, %v4306
      %v4406 = vpack.c.b16 %v4309, %v4308
      %v4407 = vpack.c.b16 %v4311, %v4310
      %v4408 = vpack.c.b16 %v4313, %v4312
      %v4409 = vpack.c.b16 %v4315, %v4314
      %v4410 = vpack.c.b16 %v4317, %v4316
      %v4411 = vpack.c.b16 %v4319, %v4318
      %v4412 = vpack.c.b16 %v4321, %v4320
      %v4413 = vpack.c.b16 %v4323, %v4322
      %v4414 = vpack.c.b16 %v4325, %v4324
      %v4415 = vpack.c.b16 %v4327, %v4326
      %v4416 = vpack.c.b16 %v4329, %v4328
      %v4417 = vpack.c.b16 %v4331, %v4330
      %v4418 = vpack.c.b16 %v4333, %v4332
      %v4419 = vpack.c.b16 %v4335, %v4334
      %v4420 = vpack.c.b16 %v4337, %v4336
      %v4421 = vpack.c.b16 %v4339, %v4338
      %v4422 = vpack.c.b16 %v4341, %v4340
      %v4423 = vpack.c.b16 %v4343, %v4342
      %v4424 = vpack.c.b16 %v4345, %v4344
      %v4425 = vpack.c.b16 %v4347, %v4346
      %v4426 = vpack.c.b16 %v4349, %v4348
      %v4427 = vpack.c.b16 %v4351, %v4350
      %v4428 = vpack.c.b16 %v4353, %v4352
      %v4429 = vpack.c.b16 %v4355, %v4354
      %v4430 = vpack.c.b16 %v4357, %v4356
      %v4431 = vpack.c.b16 %v4359, %v4358
      %4504 = vmatprep.subr.bf16.mxu0 0
      %4505 = vmatpush1.bf16.msra.mxu0 %v4360
      %4506 = vmatprep.subr.bf16.mxu0 0
      %4507 = vmatpush1.bf16.msra.mxu0 %v4361
      %4508 = vmatprep.subr.bf16.mxu0 0
      %4509 = vmatpush1.bf16.msra.mxu0 %v4362
      %4510 = vmatprep.subr.bf16.mxu0 0
      %4511 = vmatpush1.bf16.msra.mxu0 %v4363
      %4512 = vmatprep.subr.bf16.mxu0 0
      %4513 = vmatpush1.bf16.msra.mxu0 %v4364
      %4514 = vmatprep.subr.bf16.mxu0 0
      %4515 = vmatpush1.bf16.msra.mxu0 %v4365
      %4516 = vmatprep.subr.bf16.mxu0 0
      %4517 = vmatpush1.bf16.msra.mxu0 %v4366
      %4518 = vmatprep.subr.bf16.mxu0 0
      %4519 = vmatpush1.bf16.msra.mxu0 %v4367
      %4520 = vmatprep.subr.bf16.mxu0 0
      %4521 = vmatpush1.bf16.msra.mxu0 %v4368
      %4522 = vmatprep.subr.bf16.mxu0 0
      %4523 = vmatpush1.bf16.msra.mxu0 %v4369
      %4524 = vmatprep.subr.bf16.mxu0 0
      %4525 = vmatpush1.bf16.msra.mxu0 %v4370
      %4526 = vmatprep.subr.bf16.mxu0 0
      %4527 = vmatpush1.bf16.msra.mxu0 %v4371
      %4528 = vmatprep.subr.bf16.mxu0 0
      %4529 = vmatpush1.bf16.msra.mxu0 %v4372
      %4530 = vmatprep.subr.bf16.mxu0 0
      %4531 = vmatpush1.bf16.msra.mxu0 %v4373
      %4532 = vmatprep.subr.bf16.mxu0 0
      %4533 = vmatpush1.bf16.msra.mxu0 %v4374
      %4534 = vmatprep.subr.bf16.mxu0 0
      %4535 = vmatpush1.bf16.msra.mxu0 %v4375
      %4536 = vmatprep.mubr.bf16.mxu0 %v3778
      %4537 = vmatmul.mubr.bf16.gmra.mrb[0].mxu0 %v3777
      %v4538 = vpop.f32.mrb[0].mxu0
      %v4539 = vadd.f32 %v4070, %v4538
      %v4540 = vpop.f32.mrb[0].mxu0
      %v4541 = vpop.f32.mrb[0].mxu0
      %v4542 = vadd.f32 %v4070, %v4541
      %v4543 = vpop.f32.mrb[0].mxu0
      %4544 = vmatprep.mubr.bf16.mxu0 %v3787
      %4545 = vmatmul.mubr.bf16.gmra.mrb[0].mxu0 %v3786
      %v4546 = vpop.f32.mrb[0].mxu0
      %v4547 = vadd.f32 %v4070, %v4546
      %v4548 = vpop.f32.mrb[0].mxu0
      %v4549 = vpop.f32.mrb[0].mxu0
      %v4550 = vadd.f32 %v4070, %v4549
      %v4551 = vpop.f32.mrb[0].mxu0
      %4552 = vmatprep.mubr.bf16.mxu0 %v3796
      %4553 = vmatmul.mubr.bf16.gmra.mrb[0].mxu0 %v3795
      %v4554 = vpop.f32.mrb[0].mxu0
      %v4555 = vadd.f32 %v4070, %v4554
      %v4556 = vpop.f32.mrb[0].mxu0
      %v4557 = vpop.f32.mrb[0].mxu0
      %v4558 = vadd.f32 %v4070, %v4557
      %v4559 = vpop.f32.mrb[0].mxu0
      %4560 = vmatprep.mubr.bf16.mxu0 %v3805
      %4561 = vmatmul.mubr.bf16.gmra.mrb[0].mxu0 %v3804
      %v4562 = vpop.f32.mrb[0].mxu0
      %v4563 = vadd.f32 %v4070, %v4562
      %v4564 = vpop.f32.mrb[0].mxu0
      %v4565 = vpop.f32.mrb[0].mxu0
      %v4566 = vadd.f32 %v4070, %v4565
      %v4567 = vpop.f32.mrb[0].mxu0
      %4568 = vmatprep.mubr.bf16.mxu0 %v3814
      %4569 = vmatmul.mubr.bf16.gmra.mrb[0].mxu0 %v3813
      %v4570 = vpop.f32.mrb[0].mxu0
      %v4571 = vadd.f32 %v4070, %v4570
      %v4572 = vpop.f32.mrb[0].mxu0
      %v4573 = vpop.f32.mrb[0].mxu0
      %v4574 = vadd.f32 %v4070, %v4573
      %v4575 = vpop.f32.mrb[0].mxu0
      %4576 = vmatprep.mubr.bf16.mxu0 %v3823
      %4577 = vmatmul.mubr.bf16.gmra.mrb[0].mxu0 %v3822
      %v4578 = vpop.f32.mrb[0].mxu0
      %v4579 = vadd.f32 %v4070, %v4578
      %v4580 = vpop.f32.mrb[0].mxu0
      %v4581 = vpop.f32.mrb[0].mxu0
      %v4582 = vadd.f32 %v4070, %v4581
      %v4583 = vpop.f32.mrb[0].mxu0
      %4584 = vmatprep.mubr.bf16.mxu0 %v3832
      %4585 = vmatmul.mubr.bf16.gmra.mrb[0].mxu0 %v3831
      %v4586 = vpop.f32.mrb[0].mxu0
      %v4587 = vadd.f32 %v4070, %v4586
      %v4588 = vpop.f32.mrb[0].mxu0
      %v4589 = vpop.f32.mrb[0].mxu0
      %v4590 = vadd.f32 %v4070, %v4589
      %v4591 = vpop.f32.mrb[0].mxu0
      %4592 = vmatprep.mubr.bf16.mxu0 %v3841
      %4593 = vmatmul.mubr.bf16.gmra.mrb[0].mxu0 %v3840
      %v4594 = vpop.f32.mrb[0].mxu0
      %v4595 = vadd.f32 %v4070, %v4594
      %v4596 = vpop.f32.mrb[0].mxu0
      %v4597 = vpop.f32.mrb[0].mxu0
      %v4598 = vadd.f32 %v4070, %v4597
      %v4599 = vpop.f32.mrb[0].mxu0
      %4600 = vmatprep.mubr.bf16.mxu0 %v3850
      %4601 = vmatmul.mubr.bf16.gmra.mrb[0].mxu0 %v3849
      %v4602 = vpop.f32.mrb[0].mxu0
      %v4603 = vadd.f32 %v4070, %v4602
      %v4604 = vpop.f32.mrb[0].mxu0
      %v4605 = vpop.f32.mrb[0].mxu0
      %v4606 = vadd.f32 %v4070, %v4605
      %v4607 = vpop.f32.mrb[0].mxu0
      %4608 = vmatprep.mubr.bf16.mxu0 %v3859
      %4609 = vmatmul.mubr.bf16.gmra.mrb[0].mxu0 %v3858
      %v4610 = vpop.f32.mrb[0].mxu0
      %v4611 = vadd.f32 %v4070, %v4610
      %v4612 = vpop.f32.mrb[0].mxu0
      %v4613 = vpop.f32.mrb[0].mxu0
      %v4614 = vadd.f32 %v4070, %v4613
      %v4615 = vpop.f32.mrb[0].mxu0
      %4616 = vmatprep.mubr.bf16.mxu0 %v3868
      %4617 = vmatmul.mubr.bf16.gmra.mrb[0].mxu0 %v3867
      %v4618 = vpop.f32.mrb[0].mxu0
      %v4619 = vadd.f32 %v4070, %v4618
      %v4620 = vpop.f32.mrb[0].mxu0
      %v4621 = vpop.f32.mrb[0].mxu0
      %v4622 = vadd.f32 %v4070, %v4621
      %v4623 = vpop.f32.mrb[0].mxu0
      %4624 = vmatprep.mubr.bf16.mxu0 %v3877
      %4625 = vmatmul.mubr.bf16.gmra.mrb[0].mxu0 %v3876
      %v4626 = vpop.f32.mrb[0].mxu0
      %v4627 = vadd.f32 %v4070, %v4626
      %v4628 = vpop.f32.mrb[0].mxu0
      %v4629 = vpop.f32.mrb[0].mxu0
      %v4630 = vadd.f32 %v4070, %v4629
      %v4631 = vpop.f32.mrb[0].mxu0
      %4632 = vmatprep.mubr.bf16.mxu0 %v3886
      %4633 = vmatmul.mubr.bf16.gmra.mrb[0].mxu0 %v3885
      %v4634 = vpop.f32.mrb[0].mxu0
      %v4635 = vadd.f32 %v4070, %v4634
      %v4636 = vpop.f32.mrb[0].mxu0
      %v4637 = vpop.f32.mrb[0].mxu0
      %v4638 = vadd.f32 %v4070, %v4637
      %v4639 = vpop.f32.mrb[0].mxu0
      %4640 = vmatprep.mubr.bf16.mxu0 %v3895
      %4641 = vmatmul.mubr.bf16.gmra.mrb[0].mxu0 %v3894
      %v4642 = vpop.f32.mrb[0].mxu0
      %v4643 = vadd.f32 %v4070, %v4642
      %v4644 = vpop.f32.mrb[0].mxu0
      %v4645 = vpop.f32.mrb[0].mxu0
      %v4646 = vadd.f32 %v4070, %v4645
      %v4647 = vpop.f32.mrb[0].mxu0
      %4648 = vmatprep.mubr.bf16.mxu0 %v3904
      %4649 = vmatmul.mubr.bf16.gmra.mrb[0].mxu0 %v3903
      %v4650 = vpop.f32.mrb[0].mxu0
      %v4651 = vadd.f32 %v4070, %v4650
      %v4652 = vpop.f32.mrb[0].mxu0
      %v4653 = vpop.f32.mrb[0].mxu0
      %v4654 = vadd.f32 %v4070, %v4653
      %v4655 = vpop.f32.mrb[0].mxu0
      %4656 = vmatprep.mubr.bf16.mxu0 %v3913
      %4657 = vmatmul.mubr.bf16.gmra.mrb[0].mxu0 %v3912
      %v4658 = vpop.f32.mrb[0].mxu0
      %v4659 = vadd.f32 %v4070, %v4658
      %v4660 = vpop.f32.mrb[0].mxu0
      %v4661 = vpop.f32.mrb[0].mxu0
      %v4662 = vadd.f32 %v4070, %v4661
      %v4663 = vpop.f32.mrb[0].mxu0
      %4664 = vdwg.mxu0
      %4665 = vmatprep.subr.bf16.mxu0 0
      %4666 = vmatpush1.bf16.msra.mxu0 %v4376
      %4667 = vmatprep.subr.bf16.mxu0 0
      %4668 = vmatpush1.bf16.msra.mxu0 %v4377
      %4669 = vmatprep.subr.bf16.mxu0 0
      %4670 = vmatpush1.bf16.msra.mxu0 %v4378
      %4671 = vmatprep.subr.bf16.mxu0 0
      %4672 = vmatpush1.bf16.msra.mxu0 %v4379
      %4673 = vmatprep.subr.bf16.mxu0 0
      %4674 = vmatpush1.bf16.msra.mxu0 %v4380
      %4675 = vmatprep.subr.bf16.mxu0 0
      %4676 = vmatpush1.bf16.msra.mxu0 %v4381
      %4677 = vmatprep.subr.bf16.mxu0 0
      %4678 = vmatpush1.bf16.msra.mxu0 %v4382
      %4679 = vmatprep.subr.bf16.mxu0 0
      %4680 = vmatpush1.bf16.msra.mxu0 %v4383
      %4681 = vmatprep.subr.bf16.mxu0 0
      %4682 = vmatpush1.bf16.msra.mxu0 %v4384
      %4683 = vmatprep.subr.bf16.mxu0 0
      %4684 = vmatpush1.bf16.msra.mxu0 %v4385
      %4685 = vmatprep.subr.bf16.mxu0 0
      %4686 = vmatpush1.bf16.msra.mxu0 %v4386
      %4687 = vmatprep.subr.bf16.mxu0 0
      %4688 = vmatpush1.bf16.msra.mxu0 %v4387
      %4689 = vmatprep.subr.bf16.mxu0 0
      %4690 = vmatpush1.bf16.msra.mxu0 %v4388
      %4691 = vmatprep.subr.bf16.mxu0 0
      %4692 = vmatpush1.bf16.msra.mxu0 %v4389
      %4693 = vmatprep.subr.bf16.mxu0 0
      %4694 = vmatpush1.bf16.msra.mxu0 %v4390
      %4695 = vmatprep.subr.bf16.mxu0 0
      %4696 = vmatpush1.bf16.msra.mxu0 %v4391
      %4697 = vmatprep.mubr.bf16.mxu0 %v3780
      %4698 = vmatmul.mubr.bf16.gmra.mrb[0].mxu0 %v3779
      %v4699 = vpop.f32.mrb[0].mxu0
      %v4700 = vadd.f32 %v4539, %v4699
      %v4701 = vpop.f32.mrb[0].mxu0
      %v4702 = vpop.f32.mrb[0].mxu0
      %v4703 = vadd.f32 %v4542, %v4702
      %v4704 = vpop.f32.mrb[0].mxu0
      %4705 = vmatprep.mubr.bf16.mxu0 %v3789
      %4706 = vmatmul.mubr.bf16.gmra.mrb[0].mxu0 %v3788
      %v4707 = vpop.f32.mrb[0].mxu0
      %v4708 = vadd.f32 %v4547, %v4707
      %v4709 = vpop.f32.mrb[0].mxu0
      %v4710 = vpop.f32.mrb[0].mxu0
      %v4711 = vadd.f32 %v4550, %v4710
      %v4712 = vpop.f32.mrb[0].mxu0
      %4713 = vmatprep.mubr.bf16.mxu0 %v3798
      %4714 = vmatmul.mubr.bf16.gmra.mrb[0].mxu0 %v3797
      %v4715 = vpop.f32.mrb[0].mxu0
      %v4716 = vadd.f32 %v4555, %v4715
      %v4717 = vpop.f32.mrb[0].mxu0
      %v4718 = vpop.f32.mrb[0].mxu0
      %v4719 = vadd.f32 %v4558, %v4718
      %v4720 = vpop.f32.mrb[0].mxu0
      %4721 = vmatprep.mubr.bf16.mxu0 %v3807
      %4722 = vmatmul.mubr.bf16.gmra.mrb[0].mxu0 %v3806
      %v4723 = vpop.f32.mrb[0].mxu0
      %v4724 = vadd.f32 %v4563, %v4723
      %v4725 = vpop.f32.mrb[0].mxu0
      %v4726 = vpop.f32.mrb[0].mxu0
      %v4727 = vadd.f32 %v4566, %v4726
      %v4728 = vpop.f32.mrb[0].mxu0
      %4729 = vmatprep.mubr.bf16.mxu0 %v3816
      %4730 = vmatmul.mubr.bf16.gmra.mrb[0].mxu0 %v3815
      %v4731 = vpop.f32.mrb[0].mxu0
      %v4732 = vadd.f32 %v4571, %v4731
      %v4733 = vpop.f32.mrb[0].mxu0
      %v4734 = vpop.f32.mrb[0].mxu0
      %v4735 = vadd.f32 %v4574, %v4734
      %v4736 = vpop.f32.mrb[0].mxu0
      %4737 = vmatprep.mubr.bf16.mxu0 %v3825
      %4738 = vmatmul.mubr.bf16.gmra.mrb[0].mxu0 %v3824
      %v4739 = vpop.f32.mrb[0].mxu0
      %v4740 = vadd.f32 %v4579, %v4739
      %v4741 = vpop.f32.mrb[0].mxu0
      %v4742 = vpop.f32.mrb[0].mxu0
      %v4743 = vadd.f32 %v4582, %v4742
      %v4744 = vpop.f32.mrb[0].mxu0
      %4745 = vmatprep.mubr.bf16.mxu0 %v3834
      %4746 = vmatmul.mubr.bf16.gmra.mrb[0].mxu0 %v3833
      %v4747 = vpop.f32.mrb[0].mxu0
      %v4748 = vadd.f32 %v4587, %v4747
      %v4749 = vpop.f32.mrb[0].mxu0
      %v4750 = vpop.f32.mrb[0].mxu0
      %v4751 = vadd.f32 %v4590, %v4750
      %v4752 = vpop.f32.mrb[0].mxu0
      %4753 = vmatprep.mubr.bf16.mxu0 %v3843
      %4754 = vmatmul.mubr.bf16.gmra.mrb[0].mxu0 %v3842
      %v4755 = vpop.f32.mrb[0].mxu0
      %v4756 = vadd.f32 %v4595, %v4755
      %v4757 = vpop.f32.mrb[0].mxu0
      %v4758 = vpop.f32.mrb[0].mxu0
      %v4759 = vadd.f32 %v4598, %v4758
      %v4760 = vpop.f32.mrb[0].mxu0
      %4761 = vmatprep.mubr.bf16.mxu0 %v3852
      %4762 = vmatmul.mubr.bf16.gmra.mrb[0].mxu0 %v3851
      %v4763 = vpop.f32.mrb[0].mxu0
      %v4764 = vadd.f32 %v4603, %v4763
      %v4765 = vpop.f32.mrb[0].mxu0
      %v4766 = vpop.f32.mrb[0].mxu0
      %v4767 = vadd.f32 %v4606, %v4766
      %v4768 = vpop.f32.mrb[0].mxu0
      %4769 = vmatprep.mubr.bf16.mxu0 %v3861
      %4770 = vmatmul.mubr.bf16.gmra.mrb[0].mxu0 %v3860
      %v4771 = vpop.f32.mrb[0].mxu0
      %v4772 = vadd.f32 %v4611, %v4771
      %v4773 = vpop.f32.mrb[0].mxu0
      %v4774 = vpop.f32.mrb[0].mxu0
      %v4775 = vadd.f32 %v4614, %v4774
      %v4776 = vpop.f32.mrb[0].mxu0
      %4777 = vmatprep.mubr.bf16.mxu0 %v3870
      %4778 = vmatmul.mubr.bf16.gmra.mrb[0].mxu0 %v3869
      %v4779 = vpop.f32.mrb[0].mxu0
      %v4780 = vadd.f32 %v4619, %v4779
      %v4781 = vpop.f32.mrb[0].mxu0
      %v4782 = vpop.f32.mrb[0].mxu0
      %v4783 = vadd.f32 %v4622, %v4782
      %v4784 = vpop.f32.mrb[0].mxu0
      %4785 = vmatprep.mubr.bf16.mxu0 %v3879
      %4786 = vmatmul.mubr.bf16.gmra.mrb[0].mxu0 %v3878
      %v4787 = vpop.f32.mrb[0].mxu0
      %v4788 = vadd.f32 %v4627, %v4787
      %v4789 = vpop.f32.mrb[0].mxu0
      %v4790 = vpop.f32.mrb[0].mxu0
      %v4791 = vadd.f32 %v4630, %v4790
      %v4792 = vpop.f32.mrb[0].mxu0
      %4793 = vmatprep.mubr.bf16.mxu0 %v3888
      %4794 = vmatmul.mubr.bf16.gmra.mrb[0].mxu0 %v3887
      %v4795 = vpop.f32.mrb[0].mxu0
      %v4796 = vadd.f32 %v4635, %v4795
      %v4797 = vpop.f32.mrb[0].mxu0
      %v4798 = vpop.f32.mrb[0].mxu0
      %v4799 = vadd.f32 %v4638, %v4798
      %v4800 = vpop.f32.mrb[0].mxu0
      %4801 = vmatprep.mubr.bf16.mxu0 %v3897
      %4802 = vmatmul.mubr.bf16.gmra.mrb[0].mxu0 %v3896
      %v4803 = vpop.f32.mrb[0].mxu0
      %v4804 = vadd.f32 %v4643, %v4803
      %v4805 = vpop.f32.mrb[0].mxu0
      %v4806 = vpop.f32.mrb[0].mxu0
      %v4807 = vadd.f32 %v4646, %v4806
      %v4808 = vpop.f32.mrb[0].mxu0
      %4809 = vmatprep.mubr.bf16.mxu0 %v3906
      %4810 = vmatmul.mubr.bf16.gmra.mrb[0].mxu0 %v3905
      %v4811 = vpop.f32.mrb[0].mxu0
      %v4812 = vadd.f32 %v4651, %v4811
      %v4813 = vpop.f32.mrb[0].mxu0
      %v4814 = vpop.f32.mrb[0].mxu0
      %v4815 = vadd.f32 %v4654, %v4814
      %v4816 = vpop.f32.mrb[0].mxu0
      %4817 = vmatprep.mubr.bf16.mxu0 %v3915
      %4818 = vmatmul.mubr.bf16.gmra.mrb[0].mxu0 %v3914
      %v4819 = vpop.f32.mrb[0].mxu0
      %v4820 = vadd.f32 %v4659, %v4819
      %v4821 = vpop.f32.mrb[0].mxu0
      %v4822 = vpop.f32.mrb[0].mxu0
      %v4823 = vadd.f32 %v4662, %v4822
      %v4824 = vpop.f32.mrb[0].mxu0
      %4825 = vdwg.mxu0
      %4826 = vmatprep.subr.bf16.mxu0 0
      %4827 = vmatpush1.bf16.msra.mxu0 %v4392
      %4828 = vmatprep.subr.bf16.mxu0 0
      %4829 = vmatpush1.bf16.msra.mxu0 %v4393
      %4830 = vmatprep.subr.bf16.mxu0 0
      %4831 = vmatpush1.bf16.msra.mxu0 %v4394
      %4832 = vmatprep.subr.bf16.mxu0 0
      %4833 = vmatpush1.bf16.msra.mxu0 %v4395
      %4834 = vmatprep.subr.bf16.mxu0 0
      %4835 = vmatpush1.bf16.msra.mxu0 %v4396
      %4836 = vmatprep.subr.bf16.mxu0 0
      %4837 = vmatpush1.bf16.msra.mxu0 %v4397
      %4838 = vmatprep.subr.bf16.mxu0 0
      %4839 = vmatpush1.bf16.msra.mxu0 %v4398
      %4840 = vmatprep.subr.bf16.mxu0 0
      %4841 = vmatpush1.bf16.msra.mxu0 %v4399
      %4842 = vmatprep.subr.bf16.mxu0 0
      %4843 = vmatpush1.bf16.msra.mxu0 %v4400
      %4844 = vmatprep.subr.bf16.mxu0 0
      %4845 = vmatpush1.bf16.msra.mxu0 %v4401
      %4846 = vmatprep.subr.bf16.mxu0 0
      %4847 = vmatpush1.bf16.msra.mxu0 %v4402
      %4848 = vmatprep.subr.bf16.mxu0 0
      %4849 = vmatpush1.bf16.msra.mxu0 %v4403
      %4850 = vmatprep.subr.bf16.mxu0 0
      %4851 = vmatpush1.bf16.msra.mxu0 %v4404
      %4852 = vmatprep.subr.bf16.mxu0 0
      %4853 = vmatpush1.bf16.msra.mxu0 %v4405
      %4854 = vmatprep.subr.bf16.mxu0 0
      %4855 = vmatpush1.bf16.msra.mxu0 %v4406
      %4856 = vmatprep.subr.bf16.mxu0 0
      %4857 = vmatpush1.bf16.msra.mxu0 %v4407
      %4858 = vmatprep.mubr.bf16.mxu0 %v3782
      %4859 = vmatmul.mubr.bf16.gmra.mrb[0].mxu0 %v3781
      %v4860 = vpop.f32.mrb[0].mxu0
      %v4861 = vadd.f32 %v4700, %v4860
      %v4862 = vpop.f32.mrb[0].mxu0
      %v4863 = vpop.f32.mrb[0].mxu0
      %v4864 = vadd.f32 %v4703, %v4863
      %v4865 = vpop.f32.mrb[0].mxu0
      %4866 = vmatprep.mubr.bf16.mxu0 %v3791
      %4867 = vmatmul.mubr.bf16.gmra.mrb[0].mxu0 %v3790
      %v4868 = vpop.f32.mrb[0].mxu0
      %v4869 = vadd.f32 %v4708, %v4868
      %v4870 = vpop.f32.mrb[0].mxu0
      %v4871 = vpop.f32.mrb[0].mxu0
      %v4872 = vadd.f32 %v4711, %v4871
      %v4873 = vpop.f32.mrb[0].mxu0
      %4874 = vmatprep.mubr.bf16.mxu0 %v3800
      %4875 = vmatmul.mubr.bf16.gmra.mrb[0].mxu0 %v3799
      %v4876 = vpop.f32.mrb[0].mxu0
      %v4877 = vadd.f32 %v4716, %v4876
      %v4878 = vpop.f32.mrb[0].mxu0
      %v4879 = vpop.f32.mrb[0].mxu0
      %v4880 = vadd.f32 %v4719, %v4879
      %v4881 = vpop.f32.mrb[0].mxu0
      %4882 = vmatprep.mubr.bf16.mxu0 %v3809
      %4883 = vmatmul.mubr.bf16.gmra.mrb[0].mxu0 %v3808
      %v4884 = vpop.f32.mrb[0].mxu0
      %v4885 = vadd.f32 %v4724, %v4884
      %v4886 = vpop.f32.mrb[0].mxu0
      %v4887 = vpop.f32.mrb[0].mxu0
      %v4888 = vadd.f32 %v4727, %v4887
      %v4889 = vpop.f32.mrb[0].mxu0
      %4890 = vmatprep.mubr.bf16.mxu0 %v3818
      %4891 = vmatmul.mubr.bf16.gmra.mrb[0].mxu0 %v3817
      %v4892 = vpop.f32.mrb[0].mxu0
      %v4893 = vadd.f32 %v4732, %v4892
      %v4894 = vpop.f32.mrb[0].mxu0
      %v4895 = vpop.f32.mrb[0].mxu0
      %v4896 = vadd.f32 %v4735, %v4895
      %v4897 = vpop.f32.mrb[0].mxu0
      %4898 = vmatprep.mubr.bf16.mxu0 %v3827
      %4899 = vmatmul.mubr.bf16.gmra.mrb[0].mxu0 %v3826
      %v4900 = vpop.f32.mrb[0].mxu0
      %v4901 = vadd.f32 %v4740, %v4900
      %v4902 = vpop.f32.mrb[0].mxu0
      %v4903 = vpop.f32.mrb[0].mxu0
      %v4904 = vadd.f32 %v4743, %v4903
      %v4905 = vpop.f32.mrb[0].mxu0
      %4906 = vmatprep.mubr.bf16.mxu0 %v3836
      %4907 = vmatmul.mubr.bf16.gmra.mrb[0].mxu0 %v3835
      %v4908 = vpop.f32.mrb[0].mxu0
      %v4909 = vadd.f32 %v4748, %v4908
      %v4910 = vpop.f32.mrb[0].mxu0
      %v4911 = vpop.f32.mrb[0].mxu0
      %v4912 = vadd.f32 %v4751, %v4911
      %v4913 = vpop.f32.mrb[0].mxu0
      %4914 = vmatprep.mubr.bf16.mxu0 %v3845
      %4915 = vmatmul.mubr.bf16.gmra.mrb[0].mxu0 %v3844
      %v4916 = vpop.f32.mrb[0].mxu0
      %v4917 = vadd.f32 %v4756, %v4916
      %v4918 = vpop.f32.mrb[0].mxu0
      %v4919 = vpop.f32.mrb[0].mxu0
      %v4920 = vadd.f32 %v4759, %v4919
      %v4921 = vpop.f32.mrb[0].mxu0
      %4922 = vmatprep.mubr.bf16.mxu0 %v3854
      %4923 = vmatmul.mubr.bf16.gmra.mrb[0].mxu0 %v3853
      %v4924 = vpop.f32.mrb[0].mxu0
      %v4925 = vadd.f32 %v4764, %v4924
      %v4926 = vpop.f32.mrb[0].mxu0
      %v4927 = vpop.f32.mrb[0].mxu0
      %v4928 = vadd.f32 %v4767, %v4927
      %v4929 = vpop.f32.mrb[0].mxu0
      %4930 = vmatprep.mubr.bf16.mxu0 %v3863
      %4931 = vmatmul.mubr.bf16.gmra.mrb[0].mxu0 %v3862
      %v4932 = vpop.f32.mrb[0].mxu0
      %v4933 = vadd.f32 %v4772, %v4932
      %v4934 = vpop.f32.mrb[0].mxu0
      %v4935 = vpop.f32.mrb[0].mxu0
      %v4936 = vadd.f32 %v4775, %v4935
      %v4937 = vpop.f32.mrb[0].mxu0
      %4938 = vmatprep.mubr.bf16.mxu0 %v3872
      %4939 = vmatmul.mubr.bf16.gmra.mrb[0].mxu0 %v3871
      %v4940 = vpop.f32.mrb[0].mxu0
      %v4941 = vadd.f32 %v4780, %v4940
      %v4942 = vpop.f32.mrb[0].mxu0
      %v4943 = vpop.f32.mrb[0].mxu0
      %v4944 = vadd.f32 %v4783, %v4943
      %v4945 = vpop.f32.mrb[0].mxu0
      %4946 = vmatprep.mubr.bf16.mxu0 %v3881
      %4947 = vmatmul.mubr.bf16.gmra.mrb[0].mxu0 %v3880
      %v4948 = vpop.f32.mrb[0].mxu0
      %v4949 = vadd.f32 %v4788, %v4948
      %v4950 = vpop.f32.mrb[0].mxu0
      %v4951 = vpop.f32.mrb[0].mxu0
      %v4952 = vadd.f32 %v4791, %v4951
      %v4953 = vpop.f32.mrb[0].mxu0
      %4954 = vmatprep.mubr.bf16.mxu0 %v3890
      %4955 = vmatmul.mubr.bf16.gmra.mrb[0].mxu0 %v3889
      %v4956 = vpop.f32.mrb[0].mxu0
      %v4957 = vadd.f32 %v4796, %v4956
      %v4958 = vpop.f32.mrb[0].mxu0
      %v4959 = vpop.f32.mrb[0].mxu0
      %v4960 = vadd.f32 %v4799, %v4959
      %v4961 = vpop.f32.mrb[0].mxu0
      %4962 = vmatprep.mubr.bf16.mxu0 %v3899
      %4963 = vmatmul.mubr.bf16.gmra.mrb[0].mxu0 %v3898
      %v4964 = vpop.f32.mrb[0].mxu0
      %v4965 = vadd.f32 %v4804, %v4964
      %v4966 = vpop.f32.mrb[0].mxu0
      %v4967 = vpop.f32.mrb[0].mxu0
      %v4968 = vadd.f32 %v4807, %v4967
      %v4969 = vpop.f32.mrb[0].mxu0
      %4970 = vmatprep.mubr.bf16.mxu0 %v3908
      %4971 = vmatmul.mubr.bf16.gmra.mrb[0].mxu0 %v3907
      %v4972 = vpop.f32.mrb[0].mxu0
      %v4973 = vadd.f32 %v4812, %v4972
      %v4974 = vpop.f32.mrb[0].mxu0
      %v4975 = vpop.f32.mrb[0].mxu0
      %v4976 = vadd.f32 %v4815, %v4975
      %v4977 = vpop.f32.mrb[0].mxu0
      %4978 = vmatprep.mubr.bf16.mxu0 %v3917
      %4979 = vmatmul.mubr.bf16.gmra.mrb[0].mxu0 %v3916
      %v4980 = vpop.f32.mrb[0].mxu0
      %v4981 = vadd.f32 %v4820, %v4980
      %v4982 = vpop.f32.mrb[0].mxu0
      %v4983 = vpop.f32.mrb[0].mxu0
      %v4984 = vadd.f32 %v4823, %v4983
      %v4985 = vpop.f32.mrb[0].mxu0
      %4986 = vdwg.mxu0
      %4987 = vmatprep.subr.bf16.mxu0 0
      %4988 = vmatpush1.bf16.msra.mxu0 %v4408
      %4989 = vmatprep.subr.bf16.mxu0 0
      %4990 = vmatpush1.bf16.msra.mxu0 %v4409
      %4991 = vmatprep.subr.bf16.mxu0 0
      %4992 = vmatpush1.bf16.msra.mxu0 %v4410
      %4993 = vmatprep.subr.bf16.mxu0 0
      %4994 = vmatpush1.bf16.msra.mxu0 %v4411
      %4995 = vmatprep.subr.bf16.mxu0 0
      %4996 = vmatpush1.bf16.msra.mxu0 %v4412
      %4997 = vmatprep.subr.bf16.mxu0 0
      %4998 = vmatpush1.bf16.msra.mxu0 %v4413
      %4999 = vmatprep.subr.bf16.mxu0 0
      %5000 = vmatpush1.bf16.msra.mxu0 %v4414
      %5001 = vmatprep.subr.bf16.mxu0 0
      %5002 = vmatpush1.bf16.msra.mxu0 %v4415
      %5003 = vmatprep.subr.bf16.mxu0 0
      %5004 = vmatpush1.bf16.msra.mxu0 %v4416
      %5005 = vmatprep.subr.bf16.mxu0 0
      %5006 = vmatpush1.bf16.msra.mxu0 %v4417
      %5007 = vmatprep.subr.bf16.mxu0 0
      %5008 = vmatpush1.bf16.msra.mxu0 %v4418
      %5009 = vmatprep.subr.bf16.mxu0 0
      %5010 = vmatpush1.bf16.msra.mxu0 %v4419
      %5011 = vmatprep.subr.bf16.mxu0 0
      %5012 = vmatpush1.bf16.msra.mxu0 %v4420
      %5013 = vmatprep.subr.bf16.mxu0 0
      %5014 = vmatpush1.bf16.msra.mxu0 %v4421
      %5015 = vmatprep.subr.bf16.mxu0 0
      %5016 = vmatpush1.bf16.msra.mxu0 %v4422
      %5017 = vmatprep.subr.bf16.mxu0 0
      %5018 = vmatpush1.bf16.msra.mxu0 %v4423
      %5019 = vmatprep.mubr.bf16.mxu0 %v3784
      %5020 = vmatmul.mubr.bf16.gmra.mrb[0].mxu0 %v3783
      %v5021 = vpop.f32.mrb[0].mxu0
      %v5022 = vadd.f32 %v4861, %v5021
      %v5023 = vpop.f32.mrb[0].mxu0
      %v5024 = vpop.f32.mrb[0].mxu0
      %v5025 = vadd.f32 %v4864, %v5024
      %v5026 = vpop.f32.mrb[0].mxu0
      %5027 = vmatprep.mubr.bf16.mxu0 %v3793
      %5028 = vmatmul.mubr.bf16.gmra.mrb[0].mxu0 %v3792
      %v5029 = vpop.f32.mrb[0].mxu0
      %v5030 = vadd.f32 %v4869, %v5029
      %v5031 = vpop.f32.mrb[0].mxu0
      %v5032 = vpop.f32.mrb[0].mxu0
      %v5033 = vadd.f32 %v4872, %v5032
      %v5034 = vpop.f32.mrb[0].mxu0
      %5035 = vmatprep.mubr.bf16.mxu0 %v3802
      %5036 = vmatmul.mubr.bf16.gmra.mrb[0].mxu0 %v3801
      %v5037 = vpop.f32.mrb[0].mxu0
      %v5038 = vadd.f32 %v4877, %v5037
      %v5039 = vpop.f32.mrb[0].mxu0
      %v5040 = vpop.f32.mrb[0].mxu0
      %v5041 = vadd.f32 %v4880, %v5040
      %v5042 = vpop.f32.mrb[0].mxu0
      %5043 = vmatprep.mubr.bf16.mxu0 %v3811
      %5044 = vmatmul.mubr.bf16.gmra.mrb[0].mxu0 %v3810
      %v5045 = vpop.f32.mrb[0].mxu0
      %v5046 = vadd.f32 %v4885, %v5045
      %v5047 = vpop.f32.mrb[0].mxu0
      %v5048 = vpop.f32.mrb[0].mxu0
      %v5049 = vadd.f32 %v4888, %v5048
      %v5050 = vpop.f32.mrb[0].mxu0
      %5051 = vmatprep.mubr.bf16.mxu0 %v3820
      %5052 = vmatmul.mubr.bf16.gmra.mrb[0].mxu0 %v3819
      %v5053 = vpop.f32.mrb[0].mxu0
      %v5054 = vadd.f32 %v4893, %v5053
      %v5055 = vpop.f32.mrb[0].mxu0
      %v5056 = vpop.f32.mrb[0].mxu0
      %v5057 = vadd.f32 %v4896, %v5056
      %v5058 = vpop.f32.mrb[0].mxu0
      %5059 = vmatprep.mubr.bf16.mxu0 %v3829
      %5060 = vmatmul.mubr.bf16.gmra.mrb[0].mxu0 %v3828
      %v5061 = vpop.f32.mrb[0].mxu0
      %v5062 = vadd.f32 %v4901, %v5061
      %v5063 = vpop.f32.mrb[0].mxu0
      %v5064 = vpop.f32.mrb[0].mxu0
      %v5065 = vadd.f32 %v4904, %v5064
      %v5066 = vpop.f32.mrb[0].mxu0
      %5067 = vmatprep.mubr.bf16.mxu0 %v3838
      %5068 = vmatmul.mubr.bf16.gmra.mrb[0].mxu0 %v3837
      %v5069 = vpop.f32.mrb[0].mxu0
      %v5070 = vadd.f32 %v4909, %v5069
      %v5071 = vpop.f32.mrb[0].mxu0
      %v5072 = vpop.f32.mrb[0].mxu0
      %v5073 = vadd.f32 %v4912, %v5072
      %v5074 = vpop.f32.mrb[0].mxu0
      %5075 = vmatprep.mubr.bf16.mxu0 %v3847
      %5076 = vmatmul.mubr.bf16.gmra.mrb[0].mxu0 %v3846
      %v5077 = vpop.f32.mrb[0].mxu0
      %v5078 = vadd.f32 %v4917, %v5077
      %v5079 = vpop.f32.mrb[0].mxu0
      %v5080 = vpop.f32.mrb[0].mxu0
      %v5081 = vadd.f32 %v4920, %v5080
      %v5082 = vpop.f32.mrb[0].mxu0
      %5083 = vmatprep.mubr.bf16.mxu0 %v3856
      %5084 = vmatmul.mubr.bf16.gmra.mrb[0].mxu0 %v3855
      %v5085 = vpop.f32.mrb[0].mxu0
      %v5086 = vadd.f32 %v4925, %v5085
      %v5087 = vpop.f32.mrb[0].mxu0
      %v5088 = vpop.f32.mrb[0].mxu0
      %v5089 = vadd.f32 %v4928, %v5088
      %v5090 = vpop.f32.mrb[0].mxu0
      %5091 = vmatprep.mubr.bf16.mxu0 %v3865
      %5092 = vmatmul.mubr.bf16.gmra.mrb[0].mxu0 %v3864
      %v5093 = vpop.f32.mrb[0].mxu0
      %v5094 = vadd.f32 %v4933, %v5093
      %v5095 = vpop.f32.mrb[0].mxu0
      %v5096 = vpop.f32.mrb[0].mxu0
      %v5097 = vadd.f32 %v4936, %v5096
      %v5098 = vpop.f32.mrb[0].mxu0
      %5099 = vmatprep.mubr.bf16.mxu0 %v3874
      %5100 = vmatmul.mubr.bf16.gmra.mrb[0].mxu0 %v3873
      %v5101 = vpop.f32.mrb[0].mxu0
      %v5102 = vadd.f32 %v4941, %v5101
      %v5103 = vpop.f32.mrb[0].mxu0
      %v5104 = vpop.f32.mrb[0].mxu0
      %v5105 = vadd.f32 %v4944, %v5104
      %v5106 = vpop.f32.mrb[0].mxu0
      %5107 = vmatprep.mubr.bf16.mxu0 %v3883
      %5108 = vmatmul.mubr.bf16.gmra.mrb[0].mxu0 %v3882
      %v5109 = vpop.f32.mrb[0].mxu0
      %v5110 = vadd.f32 %v4949, %v5109
      %v5111 = vpop.f32.mrb[0].mxu0
      %v5112 = vpop.f32.mrb[0].mxu0
      %v5113 = vadd.f32 %v4952, %v5112
      %v5114 = vpop.f32.mrb[0].mxu0
      %5115 = vmatprep.mubr.bf16.mxu0 %v3892
      %5116 = vmatmul.mubr.bf16.gmra.mrb[0].mxu0 %v3891
      %v5117 = vpop.f32.mrb[0].mxu0
      %v5118 = vadd.f32 %v4957, %v5117
      %v5119 = vpop.f32.mrb[0].mxu0
      %v5120 = vpop.f32.mrb[0].mxu0
      %v5121 = vadd.f32 %v4960, %v5120
      %v5122 = vpop.f32.mrb[0].mxu0
      %5123 = vmatprep.mubr.bf16.mxu0 %v3901
      %5124 = vmatmul.mubr.bf16.gmra.mrb[0].mxu0 %v3900
      %v5125 = vpop.f32.mrb[0].mxu0
      %v5126 = vadd.f32 %v4965, %v5125
      %v5127 = vpop.f32.mrb[0].mxu0
      %v5128 = vpop.f32.mrb[0].mxu0
      %v5129 = vadd.f32 %v4968, %v5128
      %v5130 = vpop.f32.mrb[0].mxu0
      %5131 = vmatprep.mubr.bf16.mxu0 %v3910
      %5132 = vmatmul.mubr.bf16.gmra.mrb[0].mxu0 %v3909
      %v5133 = vpop.f32.mrb[0].mxu0
      %v5134 = vadd.f32 %v4973, %v5133
      %v5135 = vpop.f32.mrb[0].mxu0
      %v5136 = vpop.f32.mrb[0].mxu0
      %v5137 = vadd.f32 %v4976, %v5136
      %v5138 = vpop.f32.mrb[0].mxu0
      %5139 = vmatprep.mubr.bf16.mxu0 %v3919
      %5140 = vmatmul.mubr.bf16.gmra.mrb[0].mxu0 %v3918
      %v5141 = vpop.f32.mrb[0].mxu0
      %v5142 = vadd.f32 %v4981, %v5141
      %v5143 = vpop.f32.mrb[0].mxu0
      %v5144 = vpop.f32.mrb[0].mxu0
      %v5145 = vadd.f32 %v4984, %v5144
      %v5146 = vpop.f32.mrb[0].mxu0
      %5147 = vdwg.mxu0
      %5148 = vmatprep.subr.bf16.mxu0 0
      %5149 = vmatpush1.bf16.msra.mxu0 %v4424
      %5150 = vmatprep.subr.bf16.mxu0 0
      %5151 = vmatpush1.bf16.msra.mxu0 %v4425
      %5152 = vmatprep.subr.bf16.mxu0 0
      %5153 = vmatpush1.bf16.msra.mxu0 %v4426
      %5154 = vmatprep.subr.bf16.mxu0 0
      %5155 = vmatpush1.bf16.msra.mxu0 %v4427
      %5156 = vmatprep.subr.bf16.mxu0 0
      %5157 = vmatpush1.bf16.msra.mxu0 %v4428
      %5158 = vmatprep.subr.bf16.mxu0 0
      %5159 = vmatpush1.bf16.msra.mxu0 %v4429
      %5160 = vmatprep.subr.bf16.mxu0 0
      %5161 = vmatpush1.bf16.msra.mxu0 %v4430
      %5162 = vmatprep.subr.bf16.mxu0 0
      %5163 = vmatpush1.bf16.msra.mxu0 %v4431
      %5164 = vmatprep.subr.bf16.mxu0 0
      %5165 = vmatpush1.bf16.msra.mxu0 0
      %5166 = vmatprep.subr.bf16.mxu0 0
      %5167 = vmatpush1.bf16.msra.mxu0 0
      %5168 = vmatprep.subr.bf16.mxu0 0
      %5169 = vmatpush1.bf16.msra.mxu0 0
      %5170 = vmatprep.subr.bf16.mxu0 0
      %5171 = vmatpush1.bf16.msra.mxu0 0
      %5172 = vmatprep.subr.bf16.mxu0 0
      %5173 = vmatpush1.bf16.msra.mxu0 0
      %5174 = vmatprep.subr.bf16.mxu0 0
      %5175 = vmatpush1.bf16.msra.mxu0 0
      %5176 = vmatprep.subr.bf16.mxu0 0
      %5177 = vmatpush1.bf16.msra.mxu0 0
      %5178 = vmatprep.subr.bf16.mxu0 0
      %5179 = vmatpush1.bf16.msra.mxu0 0
      %5180 = vmatprep.mubr.bf16.mxu0 0
      %5181 = vmatmul.mubr.bf16.gmra.mrb[0].mxu0 %v3785
      %v5182 = vpop.f32.mrb[0].mxu0
      %v5183 = vadd.f32 %v5022, %v5182
      %v5184 = vpop.f32.mrb[0].mxu0
      %v5185 = vpop.f32.mrb[0].mxu0
      %v5186 = vadd.f32 %v5025, %v5185
      %v5187 = vpop.f32.mrb[0].mxu0
      %5188 = vmatprep.mubr.bf16.mxu0 0
      %5189 = vmatmul.mubr.bf16.gmra.mrb[0].mxu0 %v3794
      %v5190 = vpop.f32.mrb[0].mxu0
      %v5191 = vadd.f32 %v5030, %v5190
      %v5192 = vpop.f32.mrb[0].mxu0
      %v5193 = vpop.f32.mrb[0].mxu0
      %v5194 = vadd.f32 %v5033, %v5193
      %v5195 = vpop.f32.mrb[0].mxu0
      %5196 = vmatprep.mubr.bf16.mxu0 0
      %5197 = vmatmul.mubr.bf16.gmra.mrb[0].mxu0 %v3803
      %v5198 = vpop.f32.mrb[0].mxu0
      %v5199 = vadd.f32 %v5038, %v5198
      %v5200 = vpop.f32.mrb[0].mxu0
      %v5201 = vpop.f32.mrb[0].mxu0
      %v5202 = vadd.f32 %v5041, %v5201
      %v5203 = vpop.f32.mrb[0].mxu0
      %5204 = vmatprep.mubr.bf16.mxu0 0
      %5205 = vmatmul.mubr.bf16.gmra.mrb[0].mxu0 %v3812
      %v5206 = vpop.f32.mrb[0].mxu0
      %v5207 = vadd.f32 %v5046, %v5206
      %v5208 = vpop.f32.mrb[0].mxu0
      %v5209 = vpop.f32.mrb[0].mxu0
      %v5210 = vadd.f32 %v5049, %v5209
      %v5211 = vpop.f32.mrb[0].mxu0
      %5212 = vmatprep.mubr.bf16.mxu0 0
      %5213 = vmatmul.mubr.bf16.gmra.mrb[0].mxu0 %v3821
      %v5214 = vpop.f32.mrb[0].mxu0
      %v5215 = vadd.f32 %v5054, %v5214
      %v5216 = vpop.f32.mrb[0].mxu0
      %v5217 = vpop.f32.mrb[0].mxu0
      %v5218 = vadd.f32 %v5057, %v5217
      %v5219 = vpop.f32.mrb[0].mxu0
      %5220 = vmatprep.mubr.bf16.mxu0 0
      %5221 = vmatmul.mubr.bf16.gmra.mrb[0].mxu0 %v3830
      %v5222 = vpop.f32.mrb[0].mxu0
      %v5223 = vadd.f32 %v5062, %v5222
      %v5224 = vpop.f32.mrb[0].mxu0
      %v5225 = vpop.f32.mrb[0].mxu0
      %v5226 = vadd.f32 %v5065, %v5225
      %v5227 = vpop.f32.mrb[0].mxu0
      %5228 = vmatprep.mubr.bf16.mxu0 0
      %5229 = vmatmul.mubr.bf16.gmra.mrb[0].mxu0 %v3839
      %v5230 = vpop.f32.mrb[0].mxu0
      %v5231 = vadd.f32 %v5070, %v5230
      %v5232 = vpop.f32.mrb[0].mxu0
      %v5233 = vpop.f32.mrb[0].mxu0
      %v5234 = vadd.f32 %v5073, %v5233
      %v5235 = vpop.f32.mrb[0].mxu0
      %5236 = vmatprep.mubr.bf16.mxu0 0
      %5237 = vmatmul.mubr.bf16.gmra.mrb[0].mxu0 %v3848
      %v5238 = vpop.f32.mrb[0].mxu0
      %v5239 = vadd.f32 %v5078, %v5238
      %v5240 = vpop.f32.mrb[0].mxu0
      %v5241 = vpop.f32.mrb[0].mxu0
      %v5242 = vadd.f32 %v5081, %v5241
      %v5243 = vpop.f32.mrb[0].mxu0
      %5244 = vmatprep.mubr.bf16.mxu0 0
      %5245 = vmatmul.mubr.bf16.gmra.mrb[0].mxu0 %v3857
      %v5246 = vpop.f32.mrb[0].mxu0
      %v5247 = vadd.f32 %v5086, %v5246
      %v5248 = vpop.f32.mrb[0].mxu0
      %v5249 = vpop.f32.mrb[0].mxu0
      %v5250 = vadd.f32 %v5089, %v5249
      %v5251 = vpop.f32.mrb[0].mxu0
      %5252 = vmatprep.mubr.bf16.mxu0 0
      %5253 = vmatmul.mubr.bf16.gmra.mrb[0].mxu0 %v3866
      %v5254 = vpop.f32.mrb[0].mxu0
      %v5255 = vadd.f32 %v5094, %v5254
      %v5256 = vpop.f32.mrb[0].mxu0
      %v5257 = vpop.f32.mrb[0].mxu0
      %v5258 = vadd.f32 %v5097, %v5257
      %v5259 = vpop.f32.mrb[0].mxu0
      %5260 = vmatprep.mubr.bf16.mxu0 0
      %5261 = vmatmul.mubr.bf16.gmra.mrb[0].mxu0 %v3875
      %v5262 = vpop.f32.mrb[0].mxu0
      %v5263 = vadd.f32 %v5102, %v5262
      %v5264 = vpop.f32.mrb[0].mxu0
      %v5265 = vpop.f32.mrb[0].mxu0
      %v5266 = vadd.f32 %v5105, %v5265
      %v5267 = vpop.f32.mrb[0].mxu0
      %5268 = vmatprep.mubr.bf16.mxu0 0
      %5269 = vmatmul.mubr.bf16.gmra.mrb[0].mxu0 %v3884
      %v5270 = vpop.f32.mrb[0].mxu0
      %v5271 = vadd.f32 %v5110, %v5270
      %v5272 = vpop.f32.mrb[0].mxu0
      %v5273 = vpop.f32.mrb[0].mxu0
      %v5274 = vadd.f32 %v5113, %v5273
      %v5275 = vpop.f32.mrb[0].mxu0
      %5276 = vmatprep.mubr.bf16.mxu0 0
      %5277 = vmatmul.mubr.bf16.gmra.mrb[0].mxu0 %v3893
      %v5278 = vpop.f32.mrb[0].mxu0
      %v5279 = vadd.f32 %v5118, %v5278
      %v5280 = vpop.f32.mrb[0].mxu0
      %v5281 = vpop.f32.mrb[0].mxu0
      %v5282 = vadd.f32 %v5121, %v5281
      %v5283 = vpop.f32.mrb[0].mxu0
      %5284 = vmatprep.mubr.bf16.mxu0 0
      %5285 = vmatmul.mubr.bf16.gmra.mrb[0].mxu0 %v3902
      %v5286 = vpop.f32.mrb[0].mxu0
      %v5287 = vadd.f32 %v5126, %v5286
      %v5288 = vpop.f32.mrb[0].mxu0
      %v5289 = vpop.f32.mrb[0].mxu0
      %v5290 = vadd.f32 %v5129, %v5289
      %v5291 = vpop.f32.mrb[0].mxu0
      %5292 = vmatprep.mubr.bf16.mxu0 0
      %5293 = vmatmul.mubr.bf16.gmra.mrb[0].mxu0 %v3911
      %v5294 = vpop.f32.mrb[0].mxu0
      %v5295 = vadd.f32 %v5134, %v5294
      %v5296 = vpop.f32.mrb[0].mxu0
      %v5297 = vpop.f32.mrb[0].mxu0
      %v5298 = vadd.f32 %v5137, %v5297
      %v5299 = vpop.f32.mrb[0].mxu0
      %5300 = vmatprep.mubr.bf16.mxu0 0
      %5301 = vmatmul.mubr.bf16.gmra.mrb[0].mxu0 %v3920
      %v5302 = vpop.f32.mrb[0].mxu0
      %v5303 = vadd.f32 %v5142, %v5302
      %v5304 = vpop.f32.mrb[0].mxu0
      %v5305 = vpop.f32.mrb[0].mxu0
      %v5306 = vadd.f32 %v5145, %v5305
      %v5307 = vpop.f32.mrb[0].mxu0
      %5308 = vdwg.mxu0
      %v5309 = vld [vmem:[%s3] sm:$0x1]
      %v5310 = vld [vmem:[%s4] sm:$0x1]
      %v5311 = vadd.f32 %v5183, %v5186
      %v5312 = vadd.f32 %v5311, %v5191
      %v5313 = vadd.f32 %v5312, %v5194
      %v5314 = vadd.f32 %v5313, %v5199
      %v5315 = vadd.f32 %v5314, %v5202
      %v5316 = vadd.f32 %v5315, %v5207
      %v5317 = vadd.f32 %v5316, %v5210
      %v5318 = vadd.f32 %v5317, %v5215
      %v5319 = vadd.f32 %v5318, %v5218
      %v5320 = vadd.f32 %v5319, %v5223
      %v5321 = vadd.f32 %v5320, %v5226
      %v5322 = vadd.f32 %v5321, %v5231
      %v5323 = vadd.f32 %v5322, %v5234
      %v5324 = vadd.f32 %v5323, %v5239
      %v5325 = vadd.f32 %v5324, %v5242
      %v5326 = vadd.f32 %v5325, %v5247
      %v5327 = vadd.f32 %v5326, %v5250
      %v5328 = vadd.f32 %v5327, %v5255
      %v5329 = vadd.f32 %v5328, %v5258
      %v5330 = vadd.f32 %v5329, %v5263
      %v5331 = vadd.f32 %v5330, %v5266
      %v5332 = vadd.f32 %v5331, %v5271
      %v5333 = vadd.f32 %v5332, %v5274
      %v5334 = vadd.f32 %v5333, %v5279
      %v5335 = vadd.f32 %v5334, %v5282
      %v5336 = vadd.f32 %v5335, %v5287
      %v5337 = vadd.f32 %v5336, %v5290
      %v5338 = vadd.f32 %v5337, %v5295
      %v5339 = vadd.f32 %v5338, %v5298
      %v5340 = vadd.f32 %v5339, %v5303
      %v5341 = vadd.f32 %v5340, %v5306
      %v5342 = vrot.slane %v5341, 4
      %v5343 = vadd.f32 %v5341, %v5342
      %v5344 = vrot.slane %v5343, 2
      %v5345 = vadd.f32 %v5343, %v5344
      %v5346 = vrot.slane %v5345, 1
      %v5347 = vadd.f32 %v5345, %v5346
      %v5348 = vmul.f32 %v5183, %v5183
      %v5349 = vmul.f32 %v5186, %v5186
      %v5350 = vmul.f32 %v5191, %v5191
      %v5351 = vmul.f32 %v5194, %v5194
      %v5352 = vmul.f32 %v5199, %v5199
      %v5353 = vmul.f32 %v5202, %v5202
      %v5354 = vmul.f32 %v5207, %v5207
      %v5355 = vmul.f32 %v5210, %v5210
      %v5356 = vmul.f32 %v5215, %v5215
      %v5357 = vmul.f32 %v5218, %v5218
      %v5358 = vmul.f32 %v5223, %v5223
      %v5359 = vmul.f32 %v5226, %v5226
      %v5360 = vmul.f32 %v5231, %v5231
      %v5361 = vmul.f32 %v5234, %v5234
      %v5362 = vmul.f32 %v5239, %v5239
      %v5363 = vmul.f32 %v5242, %v5242
      %v5364 = vmul.f32 %v5247, %v5247
      %v5365 = vmul.f32 %v5250, %v5250
      %v5366 = vmul.f32 %v5255, %v5255
      %v5367 = vmul.f32 %v5258, %v5258
      %v5368 = vmul.f32 %v5263, %v5263
      %v5369 = vmul.f32 %v5266, %v5266
      %v5370 = vmul.f32 %v5271, %v5271
      %v5371 = vmul.f32 %v5274, %v5274
      %v5372 = vmul.f32 %v5279, %v5279
      %v5373 = vmul.f32 %v5282, %v5282
      %v5374 = vmul.f32 %v5287, %v5287
      %v5375 = vmul.f32 %v5290, %v5290
      %v5376 = vmul.f32 %v5295, %v5295
      %v5377 = vmul.f32 %v5298, %v5298
      %v5378 = vmul.f32 %v5303, %v5303
      %v5379 = vmul.f32 %v5306, %v5306
      %v5380 = vadd.f32 %v5348, %v5349
      %v5381 = vadd.f32 %v5380, %v5350
      %v5382 = vadd.f32 %v5381, %v5351
      %v5383 = vadd.f32 %v5382, %v5352
      %v5384 = vadd.f32 %v5383, %v5353
      %v5385 = vadd.f32 %v5384, %v5354
      %v5386 = vadd.f32 %v5385, %v5355
      %v5387 = vadd.f32 %v5386, %v5356
      %v5388 = vadd.f32 %v5387, %v5357
      %v5389 = vadd.f32 %v5388, %v5358
      %v5390 = vadd.f32 %v5389, %v5359
      %v5391 = vadd.f32 %v5390, %v5360
      %v5392 = vadd.f32 %v5391, %v5361
      %v5393 = vadd.f32 %v5392, %v5362
      %v5394 = vadd.f32 %v5393, %v5363
      %v5395 = vadd.f32 %v5394, %v5364
      %v5396 = vadd.f32 %v5395, %v5365
      %v5397 = vadd.f32 %v5396, %v5366
      %v5398 = vadd.f32 %v5397, %v5367
      %v5399 = vadd.f32 %v5398, %v5368
      %v5400 = vadd.f32 %v5399, %v5369
      %v5401 = vadd.f32 %v5400, %v5370
      %v5402 = vadd.f32 %v5401, %v5371
      %v5403 = vadd.f32 %v5402, %v5372
      %v5404 = vadd.f32 %v5403, %v5373
      %v5405 = vadd.f32 %v5404, %v5374
      %v5406 = vadd.f32 %v5405, %v5375
      %v5407 = vadd.f32 %v5406, %v5376
      %v5408 = vadd.f32 %v5407, %v5377
      %v5409 = vadd.f32 %v5408, %v5378
      %v5410 = vadd.f32 %v5409, %v5379
      %v5411 = vrot.slane %v5410, 4
      %v5412 = vadd.f32 %v5410, %v5411
      %v5413 = vrot.slane %v5412, 2
      %v5414 = vadd.f32 %v5412, %v5413
      %v5415 = vrot.slane %v5414, 1
      %v5416 = vadd.f32 %v5414, %v5415
      %v5417 = vld [vmem:[%s9] sm:$0xff]
      %v5418 = vld [vmem:[%s9 + $0x8] sm:$0xff]
      %v5419 = vld [vmem:[%s9 + $0x10] sm:$0xff]
      %v5420 = vld [vmem:[%s9 + $0x18] sm:$0xff]
      %v5421 = vld [vmem:[%s9 + $0x20] sm:$0xff]
      %v5422 = vld [vmem:[%s9 + $0x28] sm:$0xff]
      %v5423 = vld [vmem:[%s9 + $0x30] sm:$0xff]
      %v5424 = vld [vmem:[%s9 + $0x38] sm:$0xff]
      %v5425 = vld [vmem:[%s9 + $0x40] sm:$0xff]
      %v5426 = vld [vmem:[%s9 + $0x48] sm:$0xff]
      %v5427 = vld [vmem:[%s9 + $0x50] sm:$0xff]
      %v5428 = vld [vmem:[%s9 + $0x58] sm:$0xff]
      %v5429 = vld [vmem:[%s9 + $0x60] sm:$0xff]
      %v5430 = vld [vmem:[%s9 + $0x68] sm:$0xff]
      %v5431 = vld [vmem:[%s9 + $0x70] sm:$0xff]
      %v5432 = vld [vmem:[%s9 + $0x78] sm:$0xff]
      %5433 = vmatprep.subr.mxu0 0.0
      %5434 = vmatpush1.msra.mxu0 %v5417
      %5435 = vmatprep.subr.mxu0 0.0
      %5436 = vmatpush1.msra.mxu0 %v5418
      %5437 = vmatprep.subr.mxu0 0.0
      %5438 = vmatpush1.msra.mxu0 %v5419
      %5439 = vmatprep.subr.mxu0 0.0
      %5440 = vmatpush1.msra.mxu0 %v5420
      %5441 = vmatprep.subr.mxu0 0.0
      %5442 = vmatpush1.msra.mxu0 %v5421
      %5443 = vmatprep.subr.mxu0 0.0
      %5444 = vmatpush1.msra.mxu0 %v5422
      %5445 = vmatprep.subr.mxu0 0.0
      %5446 = vmatpush1.msra.mxu0 %v5423
      %5447 = vmatprep.subr.mxu0 0.0
      %5448 = vmatpush1.msra.mxu0 %v5424
      %5449 = vmatprep.subr.mxu0 0.0
      %5450 = vmatpush1.msra.mxu0 %v5425
      %5451 = vmatprep.subr.mxu0 0.0
      %5452 = vmatpush1.msra.mxu0 %v5426
      %5453 = vmatprep.subr.mxu0 0.0
      %5454 = vmatpush1.msra.mxu0 %v5427
      %5455 = vmatprep.subr.mxu0 0.0
      %5456 = vmatpush1.msra.mxu0 %v5428
      %5457 = vmatprep.subr.mxu0 0.0
      %5458 = vmatpush1.msra.mxu0 %v5429
      %5459 = vmatprep.subr.mxu0 0.0
      %5460 = vmatpush1.msra.mxu0 %v5430
      %5461 = vmatprep.subr.mxu0 0.0
      %5462 = vmatpush1.msra.mxu0 %v5431
      %5463 = vmatprep.subr.mxu0 0.0
      %5464 = vmatpush1.msra.mxu0 %v5432
      %5465 = vmatprep.subr.mxu0 0.0
      %5466 = vmatpush1.msra.mxu0 0.0
      %5467 = vmatprep.subr.mxu0 0.0
      %5468 = vmatpush1.msra.mxu0 0.0
      %5469 = vmatprep.subr.mxu0 0.0
      %5470 = vmatpush1.msra.mxu0 0.0
      %5471 = vmatprep.subr.mxu0 0.0
      %5472 = vmatpush1.msra.mxu0 0.0
      %5473 = vmatprep.subr.mxu0 0.0
      %5474 = vmatpush1.msra.mxu0 0.0
      %5475 = vmatprep.subr.mxu0 0.0
      %5476 = vmatpush1.msra.mxu0 0.0
      %5477 = vmatprep.subr.mxu0 0.0
      %5478 = vmatpush1.msra.mxu0 0.0
      %5479 = vmatprep.subr.mxu0 0.0
      %5480 = vmatpush1.msra.mxu0 0.0
      %5481 = vmatprep.subr.mxu0 0.0
      %5482 = vmatpush1.msra.mxu0 0.0
      %5483 = vmatprep.subr.mxu0 0.0
      %5484 = vmatpush1.msra.mxu0 0.0
      %5485 = vmatprep.subr.mxu0 0.0
      %5486 = vmatpush1.msra.mxu0 0.0
      %5487 = vmatprep.subr.mxu0 0.0
      %5488 = vmatpush1.msra.mxu0 0.0
      %5489 = vmatprep.subr.mxu0 0.0
      %5490 = vmatpush1.msra.mxu0 0.0
      %5491 = vmatprep.subr.mxu0 0.0
      %5492 = vmatpush1.msra.mxu0 0.0
      %5493 = vmatprep.subr.mxu0 0.0
      %5494 = vmatpush1.msra.mxu0 0.0
      %5495 = vmatprep.subr.mxu0 0.0
      %5496 = vmatpush1.msra.mxu0 0.0
      %5497 = vmatprep.mubr.f32.mxu0 0.0
      %5498 = vmatmul.mubr.f32.gmra.mrb[0].mxu0 %v5347
      %v5499 = vpop.f32.mrb[0].mxu0
      %v5500 = vadd.f32 0.0, %v5499
      %v5501 = vpop.f32.mrb[0].mxu0
      %5502 = vdwg.mxu0
      %5503 = vmatprep.subr.mxu0 0.0
      %5504 = vmatpush1.msra.mxu0 %v5417
      %5505 = vmatprep.subr.mxu0 0.0
      %5506 = vmatpush1.msra.mxu0 %v5418
      %5507 = vmatprep.subr.mxu0 0.0
      %5508 = vmatpush1.msra.mxu0 %v5419
      %5509 = vmatprep.subr.mxu0 0.0
      %5510 = vmatpush1.msra.mxu0 %v5420
      %5511 = vmatprep.subr.mxu0 0.0
      %5512 = vmatpush1.msra.mxu0 %v5421
      %5513 = vmatprep.subr.mxu0 0.0
      %5514 = vmatpush1.msra.mxu0 %v5422
      %5515 = vmatprep.subr.mxu0 0.0
      %5516 = vmatpush1.msra.mxu0 %v5423
      %5517 = vmatprep.subr.mxu0 0.0
      %5518 = vmatpush1.msra.mxu0 %v5424
      %5519 = vmatprep.subr.mxu0 0.0
      %5520 = vmatpush1.msra.mxu0 %v5425
      %5521 = vmatprep.subr.mxu0 0.0
      %5522 = vmatpush1.msra.mxu0 %v5426
      %5523 = vmatprep.subr.mxu0 0.0
      %5524 = vmatpush1.msra.mxu0 %v5427
      %5525 = vmatprep.subr.mxu0 0.0
      %5526 = vmatpush1.msra.mxu0 %v5428
      %5527 = vmatprep.subr.mxu0 0.0
      %5528 = vmatpush1.msra.mxu0 %v5429
      %5529 = vmatprep.subr.mxu0 0.0
      %5530 = vmatpush1.msra.mxu0 %v5430
      %5531 = vmatprep.subr.mxu0 0.0
      %5532 = vmatpush1.msra.mxu0 %v5431
      %5533 = vmatprep.subr.mxu0 0.0
      %5534 = vmatpush1.msra.mxu0 %v5432
      %5535 = vmatprep.subr.mxu0 0.0
      %5536 = vmatpush1.msra.mxu0 0.0
      %5537 = vmatprep.subr.mxu0 0.0
      %5538 = vmatpush1.msra.mxu0 0.0
      %5539 = vmatprep.subr.mxu0 0.0
      %5540 = vmatpush1.msra.mxu0 0.0
      %5541 = vmatprep.subr.mxu0 0.0
      %5542 = vmatpush1.msra.mxu0 0.0
      %5543 = vmatprep.subr.mxu0 0.0
      %5544 = vmatpush1.msra.mxu0 0.0
      %5545 = vmatprep.subr.mxu0 0.0
      %5546 = vmatpush1.msra.mxu0 0.0
      %5547 = vmatprep.subr.mxu0 0.0
      %5548 = vmatpush1.msra.mxu0 0.0
      %5549 = vmatprep.subr.mxu0 0.0
      %5550 = vmatpush1.msra.mxu0 0.0
      %5551 = vmatprep.subr.mxu0 0.0
      %5552 = vmatpush1.msra.mxu0 0.0
      %5553 = vmatprep.subr.mxu0 0.0
      %5554 = vmatpush1.msra.mxu0 0.0
      %5555 = vmatprep.subr.mxu0 0.0
      %5556 = vmatpush1.msra.mxu0 0.0
      %5557 = vmatprep.subr.mxu0 0.0
      %5558 = vmatpush1.msra.mxu0 0.0
      %5559 = vmatprep.subr.mxu0 0.0
      %5560 = vmatpush1.msra.mxu0 0.0
      %5561 = vmatprep.subr.mxu0 0.0
      %5562 = vmatpush1.msra.mxu0 0.0
      %5563 = vmatprep.subr.mxu0 0.0
      %5564 = vmatpush1.msra.mxu0 0.0
      %5565 = vmatprep.subr.mxu0 0.0
      %5566 = vmatpush1.msra.mxu0 0.0
      %5567 = vmatprep.mubr.f32.mxu0 0.0
      %5568 = vmatmul.mubr.f32.gmra.mrb[0].mxu0 %v5416
      %v5569 = vpop.f32.mrb[0].mxu0
      %v5570 = vadd.f32 0.0, %v5569
      %v5571 = vpop.f32.mrb[0].mxu0
      %5572 = vdwg.mxu0
      %v5573 = vmul.f32 %v5500, %v5500
      %v5574 = vsub.f32 %v5570, %v5573
      %v5575 = vmax.f32 %v5574, 0.0
      %v5576 = vadd.f32 %v5575, 1e-05
      %v5577 = vrsqrt.pop %v5576
      %v5578 = vmul.f32 %v5577, %v5309
      %v5579 = vmul.f32 %v5500, %v5578
      %v5580 = vsub.f32 %v5310, %v5579
      %v5581 = vlaneseq
      %v5582 = vshrl.u32 %v5581, 7
      %v5583 = vsub.s32 0, %v5582
      %v5584 = vrot.slane %v5578, %v5583
      %v5585 = vmul.f32 %v5183, %v5584
      %v5586 = vmul.f32 %v5186, %v5584
      %v5587 = vmul.f32 %v5191, %v5584
      %v5588 = vmul.f32 %v5194, %v5584
      %v5589 = vmul.f32 %v5199, %v5584
      %v5590 = vmul.f32 %v5202, %v5584
      %v5591 = vmul.f32 %v5207, %v5584
      %v5592 = vmul.f32 %v5210, %v5584
      %v5593 = vmul.f32 %v5215, %v5584
      %v5594 = vmul.f32 %v5218, %v5584
      %v5595 = vmul.f32 %v5223, %v5584
      %v5596 = vmul.f32 %v5226, %v5584
      %v5597 = vmul.f32 %v5231, %v5584
      %v5598 = vmul.f32 %v5234, %v5584
      %v5599 = vmul.f32 %v5239, %v5584
      %v5600 = vmul.f32 %v5242, %v5584
      %v5601 = vmul.f32 %v5247, %v5584
      %v5602 = vmul.f32 %v5250, %v5584
      %v5603 = vmul.f32 %v5255, %v5584
      %v5604 = vmul.f32 %v5258, %v5584
      %v5605 = vmul.f32 %v5263, %v5584
      %v5606 = vmul.f32 %v5266, %v5584
      %v5607 = vmul.f32 %v5271, %v5584
      %v5608 = vmul.f32 %v5274, %v5584
      %v5609 = vmul.f32 %v5279, %v5584
      %v5610 = vmul.f32 %v5282, %v5584
      %v5611 = vmul.f32 %v5287, %v5584
      %v5612 = vmul.f32 %v5290, %v5584
      %v5613 = vmul.f32 %v5295, %v5584
      %v5614 = vmul.f32 %v5298, %v5584
      %v5615 = vmul.f32 %v5303, %v5584
      %v5616 = vmul.f32 %v5306, %v5584
      %v5618 = vlaneseq
      %v5619 = vshrl.u32 %v5618, 7
      %v5620 = vsub.s32 0, %v5619
      %v5621 = vrot.slane %v5580, %v5620
      %v5623 = vadd.f32 %v5585, %v5621
      %v5624 = vadd.f32 %v5586, %v5621
      %v5625 = vadd.f32 %v5587, %v5621
      %v5626 = vadd.f32 %v5588, %v5621
      %v5627 = vadd.f32 %v5589, %v5621
      %v5628 = vadd.f32 %v5590, %v5621
      %v5629 = vadd.f32 %v5591, %v5621
      %v5630 = vadd.f32 %v5592, %v5621
      %v5631 = vadd.f32 %v5593, %v5621
      %v5632 = vadd.f32 %v5594, %v5621
      %v5633 = vadd.f32 %v5595, %v5621
      %v5634 = vadd.f32 %v5596, %v5621
      %v5635 = vadd.f32 %v5597, %v5621
      %v5636 = vadd.f32 %v5598, %v5621
      %v5637 = vadd.f32 %v5599, %v5621
      %v5638 = vadd.f32 %v5600, %v5621
      %v5639 = vadd.f32 %v5601, %v5621
      %v5640 = vadd.f32 %v5602, %v5621
      %v5641 = vadd.f32 %v5603, %v5621
      %v5642 = vadd.f32 %v5604, %v5621
      %v5643 = vadd.f32 %v5605, %v5621
      %v5644 = vadd.f32 %v5606, %v5621
      %v5645 = vadd.f32 %v5607, %v5621
      %v5646 = vadd.f32 %v5608, %v5621
      %v5647 = vadd.f32 %v5609, %v5621
      %v5648 = vadd.f32 %v5610, %v5621
      %v5649 = vadd.f32 %v5611, %v5621
      %v5650 = vadd.f32 %v5612, %v5621
      %v5651 = vadd.f32 %v5613, %v5621
      %v5652 = vadd.f32 %v5614, %v5621
      %v5653 = vadd.f32 %v5615, %v5621
      %v5654 = vadd.f32 %v5616, %v5621
      %v5655 = vmax.f32 %v5623, 0.0
      %v5656 = vmax.f32 %v5624, 0.0
      %v5657 = vmax.f32 %v5625, 0.0
      %v5658 = vmax.f32 %v5626, 0.0
      %v5659 = vmax.f32 %v5627, 0.0
      %v5660 = vmax.f32 %v5628, 0.0
      %v5661 = vmax.f32 %v5629, 0.0
      %v5662 = vmax.f32 %v5630, 0.0
      %v5663 = vmax.f32 %v5631, 0.0
      %v5664 = vmax.f32 %v5632, 0.0
      %v5665 = vmax.f32 %v5633, 0.0
      %v5666 = vmax.f32 %v5634, 0.0
      %v5667 = vmax.f32 %v5635, 0.0
      %v5668 = vmax.f32 %v5636, 0.0
      %v5669 = vmax.f32 %v5637, 0.0
      %v5670 = vmax.f32 %v5638, 0.0
      %v5671 = vmax.f32 %v5639, 0.0
      %v5672 = vmax.f32 %v5640, 0.0
      %v5673 = vmax.f32 %v5641, 0.0
      %v5674 = vmax.f32 %v5642, 0.0
      %v5675 = vmax.f32 %v5643, 0.0
      %v5676 = vmax.f32 %v5644, 0.0
      %v5677 = vmax.f32 %v5645, 0.0
      %v5678 = vmax.f32 %v5646, 0.0
      %v5679 = vmax.f32 %v5647, 0.0
      %v5680 = vmax.f32 %v5648, 0.0
      %v5681 = vmax.f32 %v5649, 0.0
      %v5682 = vmax.f32 %v5650, 0.0
      %v5683 = vmax.f32 %v5651, 0.0
      %v5684 = vmax.f32 %v5652, 0.0
      %v5685 = vmax.f32 %v5653, 0.0
      %v5686 = vmax.f32 %v5654, 0.0
      %v5687 = vpack.c.bf16 %v5656, %v5655
      %v5688 = vpack.c.bf16 %v5658, %v5657
      %v5689 = vpack.c.bf16 %v5660, %v5659
      %v5690 = vpack.c.bf16 %v5662, %v5661
      %v5691 = vpack.c.bf16 %v5664, %v5663
      %v5692 = vpack.c.bf16 %v5666, %v5665
      %v5693 = vpack.c.bf16 %v5668, %v5667
      %v5694 = vpack.c.bf16 %v5670, %v5669
      %v5695 = vpack.c.bf16 %v5672, %v5671
      %v5696 = vpack.c.bf16 %v5674, %v5673
      %v5697 = vpack.c.bf16 %v5676, %v5675
      %v5698 = vpack.c.bf16 %v5678, %v5677
      %v5699 = vpack.c.bf16 %v5680, %v5679
      %v5700 = vpack.c.bf16 %v5682, %v5681
      %v5701 = vpack.c.bf16 %v5684, %v5683
      %v5702 = vpack.c.bf16 %v5686, %v5685
      %v5719 = vunpack.c.l.b16 %v5687
      %v5720 = vunpack.c.h.b16 %v5687
      %v5721 = vunpack.c.l.b16 %v5688
      %v5722 = vunpack.c.h.b16 %v5688
      %v5723 = vunpack.c.l.b16 %v5689
      %v5724 = vunpack.c.h.b16 %v5689
      %v5725 = vunpack.c.l.b16 %v5690
      %v5726 = vunpack.c.h.b16 %v5690
      %v5727 = vunpack.c.l.b16 %v5691
      %v5728 = vunpack.c.h.b16 %v5691
      %v5729 = vunpack.c.l.b16 %v5692
      %v5730 = vunpack.c.h.b16 %v5692
      %v5731 = vunpack.c.l.b16 %v5693
      %v5732 = vunpack.c.h.b16 %v5693
      %v5733 = vunpack.c.l.b16 %v5694
      %v5734 = vunpack.c.h.b16 %v5694
      %v5735 = vunpack.c.l.b16 %v5695
      %v5736 = vunpack.c.h.b16 %v5695
      %v5737 = vunpack.c.l.b16 %v5696
      %v5738 = vunpack.c.h.b16 %v5696
      %v5739 = vunpack.c.l.b16 %v5697
      %v5740 = vunpack.c.h.b16 %v5697
      %v5741 = vunpack.c.l.b16 %v5698
      %v5742 = vunpack.c.h.b16 %v5698
      %v5743 = vunpack.c.l.b16 %v5699
      %v5744 = vunpack.c.h.b16 %v5699
      %v5745 = vunpack.c.l.b16 %v5700
      %v5746 = vunpack.c.h.b16 %v5700
      %v5747 = vunpack.c.l.b16 %v5701
      %v5748 = vunpack.c.h.b16 %v5701
      %v5749 = vunpack.c.l.b16 %v5702
      %v5750 = vunpack.c.h.b16 %v5702
      %v5751 = vpack.c.b16 %v5719, %v5719
      %v5752 = vpack.c.b16 %v5720, %v5720
      %v5753 = vpack.c.b16 %v5721, %v5721
      %v5754 = vpack.c.b16 %v5722, %v5722
      %v5755 = vpack.c.b16 %v5723, %v5723
      %v5756 = vpack.c.b16 %v5724, %v5724
      %v5757 = vpack.c.b16 %v5725, %v5725
      %v5758 = vpack.c.b16 %v5726, %v5726
      %v5759 = vpack.c.b16 %v5727, %v5727
      %v5760 = vpack.c.b16 %v5728, %v5728
      %v5761 = vpack.c.b16 %v5729, %v5729
      %v5762 = vpack.c.b16 %v5730, %v5730
      %v5763 = vpack.c.b16 %v5731, %v5731
      %v5764 = vpack.c.b16 %v5732, %v5732
      %v5765 = vpack.c.b16 %v5733, %v5733
      %v5766 = vpack.c.b16 %v5734, %v5734
      %v5767 = vpack.c.b16 %v5735, %v5735
      %v5768 = vpack.c.b16 %v5736, %v5736
      %v5769 = vpack.c.b16 %v5737, %v5737
      %v5770 = vpack.c.b16 %v5738, %v5738
      %v5771 = vpack.c.b16 %v5739, %v5739
      %v5772 = vpack.c.b16 %v5740, %v5740
      %v5773 = vpack.c.b16 %v5741, %v5741
      %v5774 = vpack.c.b16 %v5742, %v5742
      %v5775 = vpack.c.b16 %v5743, %v5743
      %v5776 = vpack.c.b16 %v5744, %v5744
      %v5777 = vpack.c.b16 %v5745, %v5745
      %v5778 = vpack.c.b16 %v5746, %v5746
      %v5779 = vpack.c.b16 %v5747, %v5747
      %v5780 = vpack.c.b16 %v5748, %v5748
      %v5781 = vpack.c.b16 %v5749, %v5749
      %v5782 = vpack.c.b16 %v5750, %v5750
      %v5784 = vshrl.u32 %v5751, 16
      %v5786 = vrot.slane %v5784, 7
      %v5787 = vshll.u32 %v5751, 16
      %v5789 = vor.u32 %v5786, %v5787
      %v5790 = vrot.slane %v5786, 4
      %v5792 = vshrl.u32 %v5752, 16
      %v5794 = vrot.slane %v5792, 7
      %v5795 = vshll.u32 %v5752, 16
      %v5797 = vor.u32 %v5794, %v5795
      %v5798 = vsel %vm503, %v5790, %v5797
      %v5799 = vrot.slane %v5794, 4
      %v5801 = vshrl.u32 %v5753, 16
      %v5803 = vrot.slane %v5801, 7
      %v5804 = vshll.u32 %v5753, 16
      %v5806 = vor.u32 %v5803, %v5804
      %v5807 = vrot.slane %v5803, 4
      %v5809 = vshrl.u32 %v5754, 16
      %v5811 = vrot.slane %v5809, 7
      %v5812 = vshll.u32 %v5754, 16
      %v5814 = vor.u32 %v5811, %v5812
      %v5815 = vsel %vm503, %v5807, %v5814
      %v5816 = vrot.slane %v5811, 4
      %v5818 = vshrl.u32 %v5755, 16
      %v5820 = vrot.slane %v5818, 7
      %v5821 = vshll.u32 %v5755, 16
      %v5823 = vor.u32 %v5820, %v5821
      %v5824 = vrot.slane %v5820, 4
      %v5826 = vshrl.u32 %v5756, 16
      %v5828 = vrot.slane %v5826, 7
      %v5829 = vshll.u32 %v5756, 16
      %v5831 = vor.u32 %v5828, %v5829
      %v5832 = vsel %vm503, %v5824, %v5831
      %v5833 = vrot.slane %v5828, 4
      %v5835 = vshrl.u32 %v5757, 16
      %v5837 = vrot.slane %v5835, 7
      %v5838 = vshll.u32 %v5757, 16
      %v5840 = vor.u32 %v5837, %v5838
      %v5841 = vrot.slane %v5837, 4
      %v5843 = vshrl.u32 %v5758, 16
      %v5845 = vrot.slane %v5843, 7
      %v5846 = vshll.u32 %v5758, 16
      %v5848 = vor.u32 %v5845, %v5846
      %v5849 = vsel %vm503, %v5841, %v5848
      %v5850 = vrot.slane %v5845, 4
      %v5852 = vshrl.u32 %v5759, 16
      %v5854 = vrot.slane %v5852, 7
      %v5855 = vshll.u32 %v5759, 16
      %v5857 = vor.u32 %v5854, %v5855
      %v5858 = vrot.slane %v5854, 4
      %v5860 = vshrl.u32 %v5760, 16
      %v5862 = vrot.slane %v5860, 7
      %v5863 = vshll.u32 %v5760, 16
      %v5865 = vor.u32 %v5862, %v5863
      %v5866 = vsel %vm503, %v5858, %v5865
      %v5867 = vrot.slane %v5862, 4
      %v5869 = vshrl.u32 %v5761, 16
      %v5871 = vrot.slane %v5869, 7
      %v5872 = vshll.u32 %v5761, 16
      %v5874 = vor.u32 %v5871, %v5872
      %v5875 = vrot.slane %v5871, 4
      %v5877 = vshrl.u32 %v5762, 16
      %v5879 = vrot.slane %v5877, 7
      %v5880 = vshll.u32 %v5762, 16
      %v5882 = vor.u32 %v5879, %v5880
      %v5883 = vsel %vm503, %v5875, %v5882
      %v5884 = vrot.slane %v5879, 4
      %v5886 = vshrl.u32 %v5763, 16
      %v5888 = vrot.slane %v5886, 7
      %v5889 = vshll.u32 %v5763, 16
      %v5891 = vor.u32 %v5888, %v5889
      %v5892 = vrot.slane %v5888, 4
      %v5894 = vshrl.u32 %v5764, 16
      %v5896 = vrot.slane %v5894, 7
      %v5897 = vshll.u32 %v5764, 16
      %v5899 = vor.u32 %v5896, %v5897
      %v5900 = vsel %vm503, %v5892, %v5899
      %v5901 = vrot.slane %v5896, 4
      %v5903 = vshrl.u32 %v5765, 16
      %v5905 = vrot.slane %v5903, 7
      %v5906 = vshll.u32 %v5765, 16
      %v5908 = vor.u32 %v5905, %v5906
      %v5909 = vrot.slane %v5905, 4
      %v5911 = vshrl.u32 %v5766, 16
      %v5913 = vrot.slane %v5911, 7
      %v5914 = vshll.u32 %v5766, 16
      %v5916 = vor.u32 %v5913, %v5914
      %v5917 = vsel %vm503, %v5909, %v5916
      %v5918 = vrot.slane %v5913, 4
      %v5920 = vshrl.u32 %v5767, 16
      %v5922 = vrot.slane %v5920, 7
      %v5923 = vshll.u32 %v5767, 16
      %v5925 = vor.u32 %v5922, %v5923
      %v5926 = vrot.slane %v5922, 4
      %v5928 = vshrl.u32 %v5768, 16
      %v5930 = vrot.slane %v5928, 7
      %v5931 = vshll.u32 %v5768, 16
      %v5933 = vor.u32 %v5930, %v5931
      %v5934 = vsel %vm503, %v5926, %v5933
      %v5935 = vrot.slane %v5930, 4
      %v5937 = vshrl.u32 %v5769, 16
      %v5939 = vrot.slane %v5937, 7
      %v5940 = vshll.u32 %v5769, 16
      %v5942 = vor.u32 %v5939, %v5940
      %v5943 = vrot.slane %v5939, 4
      %v5945 = vshrl.u32 %v5770, 16
      %v5947 = vrot.slane %v5945, 7
      %v5948 = vshll.u32 %v5770, 16
      %v5950 = vor.u32 %v5947, %v5948
      %v5951 = vsel %vm503, %v5943, %v5950
      %v5952 = vrot.slane %v5947, 4
      %v5954 = vshrl.u32 %v5771, 16
      %v5956 = vrot.slane %v5954, 7
      %v5957 = vshll.u32 %v5771, 16
      %v5959 = vor.u32 %v5956, %v5957
      %v5960 = vrot.slane %v5956, 4
      %v5962 = vshrl.u32 %v5772, 16
      %v5964 = vrot.slane %v5962, 7
      %v5965 = vshll.u32 %v5772, 16
      %v5967 = vor.u32 %v5964, %v5965
      %v5968 = vsel %vm503, %v5960, %v5967
      %v5969 = vrot.slane %v5964, 4
      %v5971 = vshrl.u32 %v5773, 16
      %v5973 = vrot.slane %v5971, 7
      %v5974 = vshll.u32 %v5773, 16
      %v5976 = vor.u32 %v5973, %v5974
      %v5977 = vrot.slane %v5973, 4
      %v5979 = vshrl.u32 %v5774, 16
      %v5981 = vrot.slane %v5979, 7
      %v5982 = vshll.u32 %v5774, 16
      %v5984 = vor.u32 %v5981, %v5982
      %v5985 = vsel %vm503, %v5977, %v5984
      %v5986 = vrot.slane %v5981, 4
      %v5988 = vshrl.u32 %v5775, 16
      %v5990 = vrot.slane %v5988, 7
      %v5991 = vshll.u32 %v5775, 16
      %v5993 = vor.u32 %v5990, %v5991
      %v5994 = vrot.slane %v5990, 4
      %v5996 = vshrl.u32 %v5776, 16
      %v5998 = vrot.slane %v5996, 7
      %v5999 = vshll.u32 %v5776, 16
      %v6001 = vor.u32 %v5998, %v5999
      %v6002 = vsel %vm503, %v5994, %v6001
      %v6003 = vrot.slane %v5998, 4
      %v6005 = vshrl.u32 %v5777, 16
      %v6007 = vrot.slane %v6005, 7
      %v6008 = vshll.u32 %v5777, 16
      %v6010 = vor.u32 %v6007, %v6008
      %v6011 = vrot.slane %v6007, 4
      %v6013 = vshrl.u32 %v5778, 16
      %v6015 = vrot.slane %v6013, 7
      %v6016 = vshll.u32 %v5778, 16
      %v6018 = vor.u32 %v6015, %v6016
      %v6019 = vsel %vm503, %v6011, %v6018
      %v6020 = vrot.slane %v6015, 4
      %v6022 = vshrl.u32 %v5779, 16
      %v6024 = vrot.slane %v6022, 7
      %v6025 = vshll.u32 %v5779, 16
      %v6027 = vor.u32 %v6024, %v6025
      %v6028 = vrot.slane %v6024, 4
      %v6030 = vshrl.u32 %v5780, 16
      %v6032 = vrot.slane %v6030, 7
      %v6033 = vshll.u32 %v5780, 16
      %v6035 = vor.u32 %v6032, %v6033
      %v6036 = vsel %vm503, %v6028, %v6035
      %v6037 = vrot.slane %v6032, 4
      %v6039 = vshrl.u32 %v5781, 16
      %v6041 = vrot.slane %v6039, 7
      %v6042 = vshll.u32 %v5781, 16
      %v6044 = vor.u32 %v6041, %v6042
      %v6045 = vrot.slane %v6041, 4
      %v6047 = vshrl.u32 %v5782, 16
      %v6049 = vrot.slane %v6047, 7
      %v6050 = vshll.u32 %v5782, 16
      %v6052 = vor.u32 %v6049, %v6050
      %v6053 = vsel %vm503, %v6045, %v6052
      %v6054 = vrot.slane %v6049, 4
      %v6103 = vld [vmem:[%s368] sm:$0xf]
      %v6104 = vsel %vm825, %v5789, %v6103
      %6105 = vst [vmem:[%s368] sm:$0xf] %v6104
      %6106 = vst [vmem:[%s368 + $0x4] sm:$0xf] %v5798
      %v6107 = vld [vmem:[%s368 + $0x8] sm:$0x1]
      %v6108 = vsel %vm371, %v5799, %v6107
      %6109 = vst [vmem:[%s368 + $0x8] sm:$0x1] %v6108
      %v6110 = vld [vmem:[%s368 + $0xc] sm:$0xf]
      %v6111 = vsel %vm825, %v5806, %v6110
      %6112 = vst [vmem:[%s368 + $0xc] sm:$0xf] %v6111
      %6113 = vst [vmem:[%s368 + $0x10] sm:$0xf] %v5815
      %v6114 = vld [vmem:[%s368 + $0x14] sm:$0x1]
      %v6115 = vsel %vm371, %v5816, %v6114
      %6116 = vst [vmem:[%s368 + $0x14] sm:$0x1] %v6115
      %v6117 = vld [vmem:[%s368 + $0x18] sm:$0xf]
      %v6118 = vsel %vm825, %v5823, %v6117
      %6119 = vst [vmem:[%s368 + $0x18] sm:$0xf] %v6118
      %6120 = vst [vmem:[%s368 + $0x1c] sm:$0xf] %v5832
      %v6121 = vld [vmem:[%s368 + $0x20] sm:$0x1]
      %v6122 = vsel %vm371, %v5833, %v6121
      %6123 = vst [vmem:[%s368 + $0x20] sm:$0x1] %v6122
      %v6124 = vld [vmem:[%s368 + $0x24] sm:$0xf]
      %v6125 = vsel %vm825, %v5840, %v6124
      %6126 = vst [vmem:[%s368 + $0x24] sm:$0xf] %v6125
      %6127 = vst [vmem:[%s368 + $0x28] sm:$0xf] %v5849
      %v6128 = vld [vmem:[%s368 + $0x2c] sm:$0x1]
      %v6129 = vsel %vm371, %v5850, %v6128
      %6130 = vst [vmem:[%s368 + $0x2c] sm:$0x1] %v6129
      %v6131 = vld [vmem:[%s368 + $0x30] sm:$0xf]
      %v6132 = vsel %vm825, %v5857, %v6131
      %6133 = vst [vmem:[%s368 + $0x30] sm:$0xf] %v6132
      %6134 = vst [vmem:[%s368 + $0x34] sm:$0xf] %v5866
      %v6135 = vld [vmem:[%s368 + $0x38] sm:$0x1]
      %v6136 = vsel %vm371, %v5867, %v6135
      %6137 = vst [vmem:[%s368 + $0x38] sm:$0x1] %v6136
      %v6138 = vld [vmem:[%s368 + $0x3c] sm:$0xf]
      %v6139 = vsel %vm825, %v5874, %v6138
      %6140 = vst [vmem:[%s368 + $0x3c] sm:$0xf] %v6139
      %6141 = vst [vmem:[%s368 + $0x40] sm:$0xf] %v5883
      %v6142 = vld [vmem:[%s368 + $0x44] sm:$0x1]
      %v6143 = vsel %vm371, %v5884, %v6142
      %6144 = vst [vmem:[%s368 + $0x44] sm:$0x1] %v6143
      %v6145 = vld [vmem:[%s368 + $0x48] sm:$0xf]
      %v6146 = vsel %vm825, %v5891, %v6145
      %6147 = vst [vmem:[%s368 + $0x48] sm:$0xf] %v6146
      %6148 = vst [vmem:[%s368 + $0x4c] sm:$0xf] %v5900
      %v6149 = vld [vmem:[%s368 + $0x50] sm:$0x1]
      %v6150 = vsel %vm371, %v5901, %v6149
      %6151 = vst [vmem:[%s368 + $0x50] sm:$0x1] %v6150
      %v6152 = vld [vmem:[%s368 + $0x54] sm:$0xf]
      %v6153 = vsel %vm825, %v5908, %v6152
      %6154 = vst [vmem:[%s368 + $0x54] sm:$0xf] %v6153
      %6155 = vst [vmem:[%s368 + $0x58] sm:$0xf] %v5917
      %v6156 = vld [vmem:[%s368 + $0x5c] sm:$0x1]
      %v6157 = vsel %vm371, %v5918, %v6156
      %6158 = vst [vmem:[%s368 + $0x5c] sm:$0x1] %v6157
      %v6159 = vld [vmem:[%s368 + $0x60] sm:$0xf]
      %v6160 = vsel %vm825, %v5925, %v6159
      %6161 = vst [vmem:[%s368 + $0x60] sm:$0xf] %v6160
      %6162 = vst [vmem:[%s368 + $0x64] sm:$0xf] %v5934
      %v6163 = vld [vmem:[%s368 + $0x68] sm:$0x1]
      %v6164 = vsel %vm371, %v5935, %v6163
      %6165 = vst [vmem:[%s368 + $0x68] sm:$0x1] %v6164
      %v6166 = vld [vmem:[%s368 + $0x6c] sm:$0xf]
      %v6167 = vsel %vm825, %v5942, %v6166
      %6168 = vst [vmem:[%s368 + $0x6c] sm:$0xf] %v6167
      %6169 = vst [vmem:[%s368 + $0x70] sm:$0xf] %v5951
      %v6170 = vld [vmem:[%s368 + $0x74] sm:$0x1]
      %v6171 = vsel %vm371, %v5952, %v6170
      %6172 = vst [vmem:[%s368 + $0x74] sm:$0x1] %v6171
      %v6173 = vld [vmem:[%s368 + $0x78] sm:$0xf]
      %v6174 = vsel %vm825, %v5959, %v6173
      %6175 = vst [vmem:[%s368 + $0x78] sm:$0xf] %v6174
      %6176 = vst [vmem:[%s368 + $0x7c] sm:$0xf] %v5968
      %v6177 = vld [vmem:[%s368 + $0x80] sm:$0x1]
      %v6178 = vsel %vm371, %v5969, %v6177
      %6179 = vst [vmem:[%s368 + $0x80] sm:$0x1] %v6178
      %v6180 = vld [vmem:[%s368 + $0x84] sm:$0xf]
      %v6181 = vsel %vm825, %v5976, %v6180
      %6182 = vst [vmem:[%s368 + $0x84] sm:$0xf] %v6181
      %6183 = vst [vmem:[%s368 + $0x88] sm:$0xf] %v5985
      %v6184 = vld [vmem:[%s368 + $0x8c] sm:$0x1]
      %v6185 = vsel %vm371, %v5986, %v6184
      %6186 = vst [vmem:[%s368 + $0x8c] sm:$0x1] %v6185
      %v6187 = vld [vmem:[%s368 + $0x90] sm:$0xf]
      %v6188 = vsel %vm825, %v5993, %v6187
      %6189 = vst [vmem:[%s368 + $0x90] sm:$0xf] %v6188
      %6190 = vst [vmem:[%s368 + $0x94] sm:$0xf] %v6002
      %v6191 = vld [vmem:[%s368 + $0x98] sm:$0x1]
      %v6192 = vsel %vm371, %v6003, %v6191
      %6193 = vst [vmem:[%s368 + $0x98] sm:$0x1] %v6192
      %v6194 = vld [vmem:[%s368 + $0x9c] sm:$0xf]
      %v6195 = vsel %vm825, %v6010, %v6194
      %6196 = vst [vmem:[%s368 + $0x9c] sm:$0xf] %v6195
      %6197 = vst [vmem:[%s368 + $0xa0] sm:$0xf] %v6019
      %v6198 = vld [vmem:[%s368 + $0xa4] sm:$0x1]
      %v6199 = vsel %vm371, %v6020, %v6198
      %6200 = vst [vmem:[%s368 + $0xa4] sm:$0x1] %v6199
      %v6201 = vld [vmem:[%s368 + $0xa8] sm:$0xf]
      %v6202 = vsel %vm825, %v6027, %v6201
      %6203 = vst [vmem:[%s368 + $0xa8] sm:$0xf] %v6202
      %6204 = vst [vmem:[%s368 + $0xac] sm:$0xf] %v6036
      %v6205 = vld [vmem:[%s368 + $0xb0] sm:$0x1]
      %v6206 = vsel %vm371, %v6037, %v6205
      %6207 = vst [vmem:[%s368 + $0xb0] sm:$0x1] %v6206
      %v6208 = vld [vmem:[%s368 + $0xb4] sm:$0xf]
      %v6209 = vsel %vm825, %v6044, %v6208
      %6210 = vst [vmem:[%s368 + $0xb4] sm:$0xf] %v6209
      %6211 = vst [vmem:[%s368 + $0xb8] sm:$0xf] %v6053
      %v6212 = vld [vmem:[%s368 + $0xbc] sm:$0x1]
      %v6213 = vsel %vm371, %v6054, %v6212
      %6214 = vst [vmem:[%s368 + $0xbc] sm:$0x1] %v6213
      %v6215 = vld [vmem:[#allocation2] sm:$0xf]
      %v6216 = vld [vmem:[#allocation2 + $0x4] sm:$0xf]
      %v6217 = vld [vmem:[#allocation2 + $0xc] sm:$0xf]
      %v6218 = vld [vmem:[#allocation2 + $0x10] sm:$0xf]
      %v6219 = vld [vmem:[#allocation2 + $0x18] sm:$0xf]
      %v6220 = vld [vmem:[#allocation2 + $0x1c] sm:$0xf]
      %v6221 = vld [vmem:[#allocation2 + $0x24] sm:$0xf]
      %v6222 = vld [vmem:[#allocation2 + $0x28] sm:$0xf]
      %v6223 = vld [vmem:[#allocation2 + $0x30] sm:$0xf]
      %v6224 = vld [vmem:[#allocation2 + $0x34] sm:$0xf]
      %v6225 = vld [vmem:[#allocation2 + $0x3c] sm:$0xf]
      %v6226 = vld [vmem:[#allocation2 + $0x40] sm:$0xf]
      %v6227 = vld [vmem:[#allocation2 + $0x48] sm:$0xf]
      %v6228 = vld [vmem:[#allocation2 + $0x4c] sm:$0xf]
      %v6229 = vld [vmem:[#allocation2 + $0x54] sm:$0xf]
      %v6230 = vld [vmem:[#allocation2 + $0x58] sm:$0xf]
      %v6231 = vld [vmem:[#allocation2 + $0x60] sm:$0xf]
      %v6232 = vld [vmem:[#allocation2 + $0x64] sm:$0xf]
      %v6233 = vld [vmem:[#allocation2 + $0x6c] sm:$0xf]
      %v6234 = vld [vmem:[#allocation2 + $0x70] sm:$0xf]
      %v6235 = vld [vmem:[#allocation2 + $0x78] sm:$0xf]
      %v6236 = vld [vmem:[#allocation2 + $0x7c] sm:$0xf]
      %v6237 = vld [vmem:[#allocation2 + $0x84] sm:$0xf]
      %v6238 = vld [vmem:[#allocation2 + $0x88] sm:$0xf]
      %v6239 = vld [vmem:[#allocation2 + $0x90] sm:$0xf]
      %v6240 = vld [vmem:[#allocation2 + $0x94] sm:$0xf]
      %v6241 = vld [vmem:[#allocation2 + $0x9c] sm:$0xf]
      %v6242 = vld [vmem:[#allocation2 + $0xa0] sm:$0xf]
      %v6243 = vld [vmem:[#allocation2 + $0xa8] sm:$0xf]
      %v6244 = vld [vmem:[#allocation2 + $0xac] sm:$0xf]
      %v6245 = vld [vmem:[#allocation2 + $0xb4] sm:$0xf]
      %v6246 = vld [vmem:[#allocation2 + $0xb8] sm:$0xf]
      %v6279 = vunpack.c.l.b16 %v6215
      %v6280 = vunpack.c.l.b16 %v6216
      %v6281 = vunpack.c.l.b16 %v6217
      %v6282 = vunpack.c.l.b16 %v6218
      %v6283 = vunpack.c.l.b16 %v6219
      %v6284 = vunpack.c.l.b16 %v6220
      %v6285 = vunpack.c.l.b16 %v6221
      %v6286 = vunpack.c.l.b16 %v6222
      %v6287 = vunpack.c.l.b16 %v6223
      %v6288 = vunpack.c.l.b16 %v6224
      %v6289 = vunpack.c.l.b16 %v6225
      %v6290 = vunpack.c.l.b16 %v6226
      %v6291 = vunpack.c.l.b16 %v6227
      %v6292 = vunpack.c.l.b16 %v6228
      %v6293 = vunpack.c.l.b16 %v6229
      %v6294 = vunpack.c.l.b16 %v6230
      %v6295 = vunpack.c.l.b16 %v6231
      %v6296 = vunpack.c.l.b16 %v6232
      %v6297 = vunpack.c.l.b16 %v6233
      %v6298 = vunpack.c.l.b16 %v6234
      %v6299 = vunpack.c.l.b16 %v6235
      %v6300 = vunpack.c.l.b16 %v6236
      %v6301 = vunpack.c.l.b16 %v6237
      %v6302 = vunpack.c.l.b16 %v6238
      %v6303 = vunpack.c.l.b16 %v6239
      %v6304 = vunpack.c.l.b16 %v6240
      %v6305 = vunpack.c.l.b16 %v6241
      %v6306 = vunpack.c.l.b16 %v6242
      %v6307 = vunpack.c.l.b16 %v6243
      %v6308 = vunpack.c.l.b16 %v6244
      %v6309 = vunpack.c.l.b16 %v6245
      %v6310 = vunpack.c.l.b16 %v6246
      %v6311 = vpack.c.b16 %v6280, %v6279
      %v6312 = vpack.c.b16 %v6282, %v6281
      %v6313 = vpack.c.b16 %v6284, %v6283
      %v6314 = vpack.c.b16 %v6286, %v6285
      %v6315 = vpack.c.b16 %v6288, %v6287
      %v6316 = vpack.c.b16 %v6290, %v6289
      %v6317 = vpack.c.b16 %v6292, %v6291
      %v6318 = vpack.c.b16 %v6294, %v6293
      %v6319 = vpack.c.b16 %v6296, %v6295
      %v6320 = vpack.c.b16 %v6298, %v6297
      %v6321 = vpack.c.b16 %v6300, %v6299
      %v6322 = vpack.c.b16 %v6302, %v6301
      %v6323 = vpack.c.b16 %v6304, %v6303
      %v6324 = vpack.c.b16 %v6306, %v6305
      %v6325 = vpack.c.b16 %v6308, %v6307
      %v6326 = vpack.c.b16 %v6310, %v6309
      %6343 = vst [vmem:[#allocation3] sm:$0xff] %v6311
      %6344 = vst [vmem:[#allocation3 + $0x48] sm:$0xff] %v6312
      %6345 = vst [vmem:[#allocation3 + $0x90] sm:$0xff] %v6313
      %6346 = vst [vmem:[#allocation3 + $0xd8] sm:$0xff] %v6314
      %6347 = vst [vmem:[#allocation3 + $0x120] sm:$0xff] %v6315
      %6348 = vst [vmem:[#allocation3 + $0x168] sm:$0xff] %v6316
      %6349 = vst [vmem:[#allocation3 + $0x1b0] sm:$0xff] %v6317
      %6350 = vst [vmem:[#allocation3 + $0x1f8] sm:$0xff] %v6318
      %6351 = vst [vmem:[#allocation3 + $0x240] sm:$0xff] %v6319
      %6352 = vst [vmem:[#allocation3 + $0x288] sm:$0xff] %v6320
      %6353 = vst [vmem:[#allocation3 + $0x2d0] sm:$0xff] %v6321
      %6354 = vst [vmem:[#allocation3 + $0x318] sm:$0xff] %v6322
      %6355 = vst [vmem:[#allocation3 + $0x360] sm:$0xff] %v6323
      %6356 = vst [vmem:[#allocation3 + $0x3a8] sm:$0xff] %v6324
      %6357 = vst [vmem:[#allocation3 + $0x3f0] sm:$0xff] %v6325
      %6358 = vst [vmem:[#allocation3 + $0x438] sm:$0xff] %v6326
      %v6359 = vld [vmem:[#allocation2] sm:$0xf]
      %v6360 = vld [vmem:[#allocation2 + $0x4] sm:$0xf]
      %v6361 = vld [vmem:[#allocation2 + $0x8] sm:$0x1]
      %v6362 = vld [vmem:[#allocation2 + $0xc] sm:$0xf]
      %v6363 = vld [vmem:[#allocation2 + $0x10] sm:$0xf]
      %v6364 = vld [vmem:[#allocation2 + $0x14] sm:$0x1]
      %v6365 = vld [vmem:[#allocation2 + $0x18] sm:$0xf]
      %v6366 = vld [vmem:[#allocation2 + $0x1c] sm:$0xf]
      %v6367 = vld [vmem:[#allocation2 + $0x20] sm:$0x1]
      %v6368 = vld [vmem:[#allocation2 + $0x24] sm:$0xf]
      %v6369 = vld [vmem:[#allocation2 + $0x28] sm:$0xf]
      %v6370 = vld [vmem:[#allocation2 + $0x2c] sm:$0x1]
      %v6371 = vld [vmem:[#allocation2 + $0x30] sm:$0xf]
      %v6372 = vld [vmem:[#allocation2 + $0x34] sm:$0xf]
      %v6373 = vld [vmem:[#allocation2 + $0x38] sm:$0x1]
      %v6374 = vld [vmem:[#allocation2 + $0x3c] sm:$0xf]
      %v6375 = vld [vmem:[#allocation2 + $0x40] sm:$0xf]
      %v6376 = vld [vmem:[#allocation2 + $0x44] sm:$0x1]
      %v6377 = vld [vmem:[#allocation2 + $0x48] sm:$0xf]
      %v6378 = vld [vmem:[#allocation2 + $0x4c] sm:$0xf]
      %v6379 = vld [vmem:[#allocation2 + $0x50] sm:$0x1]
      %v6380 = vld [vmem:[#allocation2 + $0x54] sm:$0xf]
      %v6381 = vld [vmem:[#allocation2 + $0x58] sm:$0xf]
      %v6382 = vld [vmem:[#allocation2 + $0x5c] sm:$0x1]
      %v6383 = vld [vmem:[#allocation2 + $0x60] sm:$0xf]
      %v6384 = vld [vmem:[#allocation2 + $0x64] sm:$0xf]
      %v6385 = vld [vmem:[#allocation2 + $0x68] sm:$0x1]
      %v6386 = vld [vmem:[#allocation2 + $0x6c] sm:$0xf]
      %v6387 = vld [vmem:[#allocation2 + $0x70] sm:$0xf]
      %v6388 = vld [vmem:[#allocation2 + $0x74] sm:$0x1]
      %v6389 = vld [vmem:[#allocation2 + $0x78] sm:$0xf]
      %v6390 = vld [vmem:[#allocation2 + $0x7c] sm:$0xf]
      %v6391 = vld [vmem:[#allocation2 + $0x80] sm:$0x1]
      %v6392 = vld [vmem:[#allocation2 + $0x84] sm:$0xf]
      %v6393 = vld [vmem:[#allocation2 + $0x88] sm:$0xf]
      %v6394 = vld [vmem:[#allocation2 + $0x8c] sm:$0x1]
      %v6395 = vld [vmem:[#allocation2 + $0x90] sm:$0xf]
      %v6396 = vld [vmem:[#allocation2 + $0x94] sm:$0xf]
      %v6397 = vld [vmem:[#allocation2 + $0x98] sm:$0x1]
      %v6398 = vld [vmem:[#allocation2 + $0x9c] sm:$0xf]
      %v6399 = vld [vmem:[#allocation2 + $0xa0] sm:$0xf]
      %v6400 = vld [vmem:[#allocation2 + $0xa4] sm:$0x1]
      %v6401 = vld [vmem:[#allocation2 + $0xa8] sm:$0xf]
      %v6402 = vld [vmem:[#allocation2 + $0xac] sm:$0xf]
      %v6403 = vld [vmem:[#allocation2 + $0xb0] sm:$0x1]
      %v6404 = vld [vmem:[#allocation2 + $0xb4] sm:$0xf]
      %v6405 = vld [vmem:[#allocation2 + $0xb8] sm:$0xf]
      %v6406 = vld [vmem:[#allocation2 + $0xbc] sm:$0x1]
      %v6408 = vshrl.u32 %v6359, 16
      %v6410 = vrot.slane %v6408, 4
      %v6411 = vshll.u32 %v6359, 16
      %v6413 = vrot.slane %v6411, 5
      %v6414 = vor.u32 %v6410, %v6413
      %v6415 = vrot.slane %v6414, 4
      %v6417 = vshll.u32 %v6360, 16
      %v6419 = vrot.slane %v6417, 5
      %v6420 = vsel %vm1132, %v6415, %v6419
      %v6421 = vshrl.u32 %v6360, 16
      %v6423 = vrot.slane %v6421, 4
      %v6424 = vor.u32 %v6423, %v6419
      %v6425 = vrot.slane %v6424, 4
      %v6427 = vshll.u32 %v6361, 16
      %v6429 = vrot.slane %v6427, 5
      %v6430 = vsel %vm1132, %v6425, %v6429
      %v6432 = vshrl.u32 %v6362, 16
      %v6434 = vrot.slane %v6432, 4
      %v6435 = vshll.u32 %v6362, 16
      %v6437 = vrot.slane %v6435, 5
      %v6438 = vor.u32 %v6434, %v6437
      %v6439 = vrot.slane %v6438, 4
      %v6441 = vshll.u32 %v6363, 16
      %v6443 = vrot.slane %v6441, 5
      %v6444 = vsel %vm1132, %v6439, %v6443
      %v6445 = vshrl.u32 %v6363, 16
      %v6447 = vrot.slane %v6445, 4
      %v6448 = vor.u32 %v6447, %v6443
      %v6449 = vrot.slane %v6448, 4
      %v6451 = vshll.u32 %v6364, 16
      %v6453 = vrot.slane %v6451, 5
      %v6454 = vsel %vm1132, %v6449, %v6453
      %v6456 = vshrl.u32 %v6365, 16
      %v6458 = vrot.slane %v6456, 4
      %v6459 = vshll.u32 %v6365, 16
      %v6461 = vrot.slane %v6459, 5
      %v6462 = vor.u32 %v6458, %v6461
      %v6463 = vrot.slane %v6462, 4
      %v6465 = vshll.u32 %v6366, 16
      %v6467 = vrot.slane %v6465, 5
      %v6468 = vsel %vm1132, %v6463, %v6467
      %v6469 = vshrl.u32 %v6366, 16
      %v6471 = vrot.slane %v6469, 4
      %v6472 = vor.u32 %v6471, %v6467
      %v6473 = vrot.slane %v6472, 4
      %v6475 = vshll.u32 %v6367, 16
      %v6477 = vrot.slane %v6475, 5
      %v6478 = vsel %vm1132, %v6473, %v6477
      %v6480 = vshrl.u32 %v6368, 16
      %v6482 = vrot.slane %v6480, 4
      %v6483 = vshll.u32 %v6368, 16
      %v6485 = vrot.slane %v6483, 5
      %v6486 = vor.u32 %v6482, %v6485
      %v6487 = vrot.slane %v6486, 4
      %v6489 = vshll.u32 %v6369, 16
      %v6491 = vrot.slane %v6489, 5
      %v6492 = vsel %vm1132, %v6487, %v6491
      %v6493 = vshrl.u32 %v6369, 16
      %v6495 = vrot.slane %v6493, 4
      %v6496 = vor.u32 %v6495, %v6491
      %v6497 = vrot.slane %v6496, 4
      %v6499 = vshll.u32 %v6370, 16
      %v6501 = vrot.slane %v6499, 5
      %v6502 = vsel %vm1132, %v6497, %v6501
      %v6504 = vshrl.u32 %v6371, 16
      %v6506 = vrot.slane %v6504, 4
      %v6507 = vshll.u32 %v6371, 16
      %v6509 = vrot.slane %v6507, 5
      %v6510 = vor.u32 %v6506, %v6509
      %v6511 = vrot.slane %v6510, 4
      %v6513 = vshll.u32 %v6372, 16
      %v6515 = vrot.slane %v6513, 5
      %v6516 = vsel %vm1132, %v6511, %v6515
      %v6517 = vshrl.u32 %v6372, 16
      %v6519 = vrot.slane %v6517, 4
      %v6520 = vor.u32 %v6519, %v6515
      %v6521 = vrot.slane %v6520, 4
      %v6523 = vshll.u32 %v6373, 16
      %v6525 = vrot.slane %v6523, 5
      %v6526 = vsel %vm1132, %v6521, %v6525
      %v6528 = vshrl.u32 %v6374, 16
      %v6530 = vrot.slane %v6528, 4
      %v6531 = vshll.u32 %v6374, 16
      %v6533 = vrot.slane %v6531, 5
      %v6534 = vor.u32 %v6530, %v6533
      %v6535 = vrot.slane %v6534, 4
      %v6537 = vshll.u32 %v6375, 16
      %v6539 = vrot.slane %v6537, 5
      %v6540 = vsel %vm1132, %v6535, %v6539
      %v6541 = vshrl.u32 %v6375, 16
      %v6543 = vrot.slane %v6541, 4
      %v6544 = vor.u32 %v6543, %v6539
      %v6545 = vrot.slane %v6544, 4
      %v6547 = vshll.u32 %v6376, 16
      %v6549 = vrot.slane %v6547, 5
      %v6550 = vsel %vm1132, %v6545, %v6549
      %v6552 = vshrl.u32 %v6377, 16
      %v6554 = vrot.slane %v6552, 4
      %v6555 = vshll.u32 %v6377, 16
      %v6557 = vrot.slane %v6555, 5
      %v6558 = vor.u32 %v6554, %v6557
      %v6559 = vrot.slane %v6558, 4
      %v6561 = vshll.u32 %v6378, 16
      %v6563 = vrot.slane %v6561, 5
      %v6564 = vsel %vm1132, %v6559, %v6563
      %v6565 = vshrl.u32 %v6378, 16
      %v6567 = vrot.slane %v6565, 4
      %v6568 = vor.u32 %v6567, %v6563
      %v6569 = vrot.slane %v6568, 4
      %v6571 = vshll.u32 %v6379, 16
      %v6573 = vrot.slane %v6571, 5
      %v6574 = vsel %vm1132, %v6569, %v6573
      %v6576 = vshrl.u32 %v6380, 16
      %v6578 = vrot.slane %v6576, 4
      %v6579 = vshll.u32 %v6380, 16
      %v6581 = vrot.slane %v6579, 5
      %v6582 = vor.u32 %v6578, %v6581
      %v6583 = vrot.slane %v6582, 4
      %v6585 = vshll.u32 %v6381, 16
      %v6587 = vrot.slane %v6585, 5
      %v6588 = vsel %vm1132, %v6583, %v6587
      %v6589 = vshrl.u32 %v6381, 16
      %v6591 = vrot.slane %v6589, 4
      %v6592 = vor.u32 %v6591, %v6587
      %v6593 = vrot.slane %v6592, 4
      %v6595 = vshll.u32 %v6382, 16
      %v6597 = vrot.slane %v6595, 5
      %v6598 = vsel %vm1132, %v6593, %v6597
      %v6600 = vshrl.u32 %v6383, 16
      %v6602 = vrot.slane %v6600, 4
      %v6603 = vshll.u32 %v6383, 16
      %v6605 = vrot.slane %v6603, 5
      %v6606 = vor.u32 %v6602, %v6605
      %v6607 = vrot.slane %v6606, 4
      %v6609 = vshll.u32 %v6384, 16
      %v6611 = vrot.slane %v6609, 5
      %v6612 = vsel %vm1132, %v6607, %v6611
      %v6613 = vshrl.u32 %v6384, 16
      %v6615 = vrot.slane %v6613, 4
      %v6616 = vor.u32 %v6615, %v6611
      %v6617 = vrot.slane %v6616, 4
      %v6619 = vshll.u32 %v6385, 16
      %v6621 = vrot.slane %v6619, 5
      %v6622 = vsel %vm1132, %v6617, %v6621
      %v6624 = vshrl.u32 %v6386, 16
      %v6626 = vrot.slane %v6624, 4
      %v6627 = vshll.u32 %v6386, 16
      %v6629 = vrot.slane %v6627, 5
      %v6630 = vor.u32 %v6626, %v6629
      %v6631 = vrot.slane %v6630, 4
      %v6633 = vshll.u32 %v6387, 16
      %v6635 = vrot.slane %v6633, 5
      %v6636 = vsel %vm1132, %v6631, %v6635
      %v6637 = vshrl.u32 %v6387, 16
      %v6639 = vrot.slane %v6637, 4
      %v6640 = vor.u32 %v6639, %v6635
      %v6641 = vrot.slane %v6640, 4
      %v6643 = vshll.u32 %v6388, 16
      %v6645 = vrot.slane %v6643, 5
      %v6646 = vsel %vm1132, %v6641, %v6645
      %v6648 = vshrl.u32 %v6389, 16
      %v6650 = vrot.slane %v6648, 4
      %v6651 = vshll.u32 %v6389, 16
      %v6653 = vrot.slane %v6651, 5
      %v6654 = vor.u32 %v6650, %v6653
      %v6655 = vrot.slane %v6654, 4
      %v6657 = vshll.u32 %v6390, 16
      %v6659 = vrot.slane %v6657, 5
      %v6660 = vsel %vm1132, %v6655, %v6659
      %v6661 = vshrl.u32 %v6390, 16
      %v6663 = vrot.slane %v6661, 4
      %v6664 = vor.u32 %v6663, %v6659
      %v6665 = vrot.slane %v6664, 4
      %v6667 = vshll.u32 %v6391, 16
      %v6669 = vrot.slane %v6667, 5
      %v6670 = vsel %vm1132, %v6665, %v6669
      %v6672 = vshrl.u32 %v6392, 16
      %v6674 = vrot.slane %v6672, 4
      %v6675 = vshll.u32 %v6392, 16
      %v6677 = vrot.slane %v6675, 5
      %v6678 = vor.u32 %v6674, %v6677
      %v6679 = vrot.slane %v6678, 4
      %v6681 = vshll.u32 %v6393, 16
      %v6683 = vrot.slane %v6681, 5
      %v6684 = vsel %vm1132, %v6679, %v6683
      %v6685 = vshrl.u32 %v6393, 16
      %v6687 = vrot.slane %v6685, 4
      %v6688 = vor.u32 %v6687, %v6683
      %v6689 = vrot.slane %v6688, 4
      %v6691 = vshll.u32 %v6394, 16
      %v6693 = vrot.slane %v6691, 5
      %v6694 = vsel %vm1132, %v6689, %v6693
      %v6696 = vshrl.u32 %v6395, 16
      %v6698 = vrot.slane %v6696, 4
      %v6699 = vshll.u32 %v6395, 16
      %v6701 = vrot.slane %v6699, 5
      %v6702 = vor.u32 %v6698, %v6701
      %v6703 = vrot.slane %v6702, 4
      %v6705 = vshll.u32 %v6396, 16
      %v6707 = vrot.slane %v6705, 5
      %v6708 = vsel %vm1132, %v6703, %v6707
      %v6709 = vshrl.u32 %v6396, 16
      %v6711 = vrot.slane %v6709, 4
      %v6712 = vor.u32 %v6711, %v6707
      %v6713 = vrot.slane %v6712, 4
      %v6715 = vshll.u32 %v6397, 16
      %v6717 = vrot.slane %v6715, 5
      %v6718 = vsel %vm1132, %v6713, %v6717
      %v6720 = vshrl.u32 %v6398, 16
      %v6722 = vrot.slane %v6720, 4
      %v6723 = vshll.u32 %v6398, 16
      %v6725 = vrot.slane %v6723, 5
      %v6726 = vor.u32 %v6722, %v6725
      %v6727 = vrot.slane %v6726, 4
      %v6729 = vshll.u32 %v6399, 16
      %v6731 = vrot.slane %v6729, 5
      %v6732 = vsel %vm1132, %v6727, %v6731
      %v6733 = vshrl.u32 %v6399, 16
      %v6735 = vrot.slane %v6733, 4
      %v6736 = vor.u32 %v6735, %v6731
      %v6737 = vrot.slane %v6736, 4
      %v6739 = vshll.u32 %v6400, 16
      %v6741 = vrot.slane %v6739, 5
      %v6742 = vsel %vm1132, %v6737, %v6741
      %v6744 = vshrl.u32 %v6401, 16
      %v6746 = vrot.slane %v6744, 4
      %v6747 = vshll.u32 %v6401, 16
      %v6749 = vrot.slane %v6747, 5
      %v6750 = vor.u32 %v6746, %v6749
      %v6751 = vrot.slane %v6750, 4
      %v6753 = vshll.u32 %v6402, 16
      %v6755 = vrot.slane %v6753, 5
      %v6756 = vsel %vm1132, %v6751, %v6755
      %v6757 = vshrl.u32 %v6402, 16
      %v6759 = vrot.slane %v6757, 4
      %v6760 = vor.u32 %v6759, %v6755
      %v6761 = vrot.slane %v6760, 4
      %v6763 = vshll.u32 %v6403, 16
      %v6765 = vrot.slane %v6763, 5
      %v6766 = vsel %vm1132, %v6761, %v6765
      %v6768 = vshrl.u32 %v6404, 16
      %v6770 = vrot.slane %v6768, 4
      %v6771 = vshll.u32 %v6404, 16
      %v6773 = vrot.slane %v6771, 5
      %v6774 = vor.u32 %v6770, %v6773
      %v6775 = vrot.slane %v6774, 4
      %v6777 = vshll.u32 %v6405, 16
      %v6779 = vrot.slane %v6777, 5
      %v6780 = vsel %vm1132, %v6775, %v6779
      %v6781 = vshrl.u32 %v6405, 16
      %v6783 = vrot.slane %v6781, 4
      %v6784 = vor.u32 %v6783, %v6779
      %v6785 = vrot.slane %v6784, 4
      %v6787 = vshll.u32 %v6406, 16
      %v6789 = vrot.slane %v6787, 5
      %v6790 = vsel %vm1132, %v6785, %v6789
      %v6791 = vunpack.c.l.b16 %v6420
      %v6792 = vunpack.c.l.b16 %v6430
      %v6793 = vunpack.c.l.b16 %v6444
      %v6794 = vunpack.c.l.b16 %v6454
      %v6795 = vunpack.c.l.b16 %v6468
      %v6796 = vunpack.c.l.b16 %v6478
      %v6797 = vunpack.c.l.b16 %v6492
      %v6798 = vunpack.c.l.b16 %v6502
      %v6799 = vunpack.c.l.b16 %v6516
      %v6800 = vunpack.c.l.b16 %v6526
      %v6801 = vunpack.c.l.b16 %v6540
      %v6802 = vunpack.c.l.b16 %v6550
      %v6803 = vunpack.c.l.b16 %v6564
      %v6804 = vunpack.c.l.b16 %v6574
      %v6805 = vunpack.c.l.b16 %v6588
      %v6806 = vunpack.c.l.b16 %v6598
      %v6807 = vunpack.c.l.b16 %v6612
      %v6808 = vunpack.c.l.b16 %v6622
      %v6809 = vunpack.c.l.b16 %v6636
      %v6810 = vunpack.c.l.b16 %v6646
      %v6811 = vunpack.c.l.b16 %v6660
      %v6812 = vunpack.c.l.b16 %v6670
      %v6813 = vunpack.c.l.b16 %v6684
      %v6814 = vunpack.c.l.b16 %v6694
      %v6815 = vunpack.c.l.b16 %v6708
      %v6816 = vunpack.c.l.b16 %v6718
      %v6817 = vunpack.c.l.b16 %v6732
      %v6818 = vunpack.c.l.b16 %v6742
      %v6819 = vunpack.c.l.b16 %v6756
      %v6820 = vunpack.c.l.b16 %v6766
      %v6821 = vunpack.c.l.b16 %v6780
      %v6822 = vunpack.c.l.b16 %v6790
      %v6823 = vpack.c.b16 %v6792, %v6791
      %v6824 = vpack.c.b16 %v6794, %v6793
      %v6825 = vpack.c.b16 %v6796, %v6795
      %v6826 = vpack.c.b16 %v6798, %v6797
      %v6827 = vpack.c.b16 %v6800, %v6799
      %v6828 = vpack.c.b16 %v6802, %v6801
      %v6829 = vpack.c.b16 %v6804, %v6803
      %v6830 = vpack.c.b16 %v6806, %v6805
      %v6831 = vpack.c.b16 %v6808, %v6807
      %v6832 = vpack.c.b16 %v6810, %v6809
      %v6833 = vpack.c.b16 %v6812, %v6811
      %v6834 = vpack.c.b16 %v6814, %v6813
      %v6835 = vpack.c.b16 %v6816, %v6815
      %v6836 = vpack.c.b16 %v6818, %v6817
      %v6837 = vpack.c.b16 %v6820, %v6819
      %v6838 = vpack.c.b16 %v6822, %v6821
      %6855 = vst [vmem:[#allocation3 + $0x8] sm:$0xff] %v6823
      %6856 = vst [vmem:[#allocation3 + $0x50] sm:$0xff] %v6824
      %6857 = vst [vmem:[#allocation3 + $0x98] sm:$0xff] %v6825
      %6858 = vst [vmem:[#allocation3 + $0xe0] sm:$0xff] %v6826
      %6859 = vst [vmem:[#allocation3 + $0x128] sm:$0xff] %v6827
      %6860 = vst [vmem:[#allocation3 + $0x170] sm:$0xff] %v6828
      %6861 = vst [vmem:[#allocation3 + $0x1b8] sm:$0xff] %v6829
      %6862 = vst [vmem:[#allocation3 + $0x200] sm:$0xff] %v6830
      %6863 = vst [vmem:[#allocation3 + $0x248] sm:$0xff] %v6831
      %6864 = vst [vmem:[#allocation3 + $0x290] sm:$0xff] %v6832
      %6865 = vst [vmem:[#allocation3 + $0x2d8] sm:$0xff] %v6833
      %6866 = vst [vmem:[#allocation3 + $0x320] sm:$0xff] %v6834
      %6867 = vst [vmem:[#allocation3 + $0x368] sm:$0xff] %v6835
      %6868 = vst [vmem:[#allocation3 + $0x3b0] sm:$0xff] %v6836
      %6869 = vst [vmem:[#allocation3 + $0x3f8] sm:$0xff] %v6837
      %6870 = vst [vmem:[#allocation3 + $0x440] sm:$0xff] %v6838
      %v6871 = vld [vmem:[#allocation2] sm:$0xe]
      %v6872 = vld [vmem:[#allocation2 + $0x4] sm:$0xf]
      %v6873 = vld [vmem:[#allocation2 + $0x8] sm:$0x1]
      %v6874 = vld [vmem:[#allocation2 + $0xc] sm:$0xe]
      %v6875 = vld [vmem:[#allocation2 + $0x10] sm:$0xf]
      %v6876 = vld [vmem:[#allocation2 + $0x14] sm:$0x1]
      %v6877 = vld [vmem:[#allocation2 + $0x18] sm:$0xe]
      %v6878 = vld [vmem:[#allocation2 + $0x1c] sm:$0xf]
      %v6879 = vld [vmem:[#allocation2 + $0x20] sm:$0x1]
      %v6880 = vld [vmem:[#allocation2 + $0x24] sm:$0xe]
      %v6881 = vld [vmem:[#allocation2 + $0x28] sm:$0xf]
      %v6882 = vld [vmem:[#allocation2 + $0x2c] sm:$0x1]
      %v6883 = vld [vmem:[#allocation2 + $0x30] sm:$0xe]
      %v6884 = vld [vmem:[#allocation2 + $0x34] sm:$0xf]
      %v6885 = vld [vmem:[#allocation2 + $0x38] sm:$0x1]
      %v6886 = vld [vmem:[#allocation2 + $0x3c] sm:$0xe]
      %v6887 = vld [vmem:[#allocation2 + $0x40] sm:$0xf]
      %v6888 = vld [vmem:[#allocation2 + $0x44] sm:$0x1]
      %v6889 = vld [vmem:[#allocation2 + $0x48] sm:$0xe]
      %v6890 = vld [vmem:[#allocation2 + $0x4c] sm:$0xf]
      %v6891 = vld [vmem:[#allocation2 + $0x50] sm:$0x1]
      %v6892 = vld [vmem:[#allocation2 + $0x54] sm:$0xe]
      %v6893 = vld [vmem:[#allocation2 + $0x58] sm:$0xf]
      %v6894 = vld [vmem:[#allocation2 + $0x5c] sm:$0x1]
      %v6895 = vld [vmem:[#allocation2 + $0x60] sm:$0xe]
      %v6896 = vld [vmem:[#allocation2 + $0x64] sm:$0xf]
      %v6897 = vld [vmem:[#allocation2 + $0x68] sm:$0x1]
      %v6898 = vld [vmem:[#allocation2 + $0x6c] sm:$0xe]
      %v6899 = vld [vmem:[#allocation2 + $0x70] sm:$0xf]
      %v6900 = vld [vmem:[#allocation2 + $0x74] sm:$0x1]
      %v6901 = vld [vmem:[#allocation2 + $0x78] sm:$0xe]
      %v6902 = vld [vmem:[#allocation2 + $0x7c] sm:$0xf]
      %v6903 = vld [vmem:[#allocation2 + $0x80] sm:$0x1]
      %v6904 = vld [vmem:[#allocation2 + $0x84] sm:$0xe]
      %v6905 = vld [vmem:[#allocation2 + $0x88] sm:$0xf]
      %v6906 = vld [vmem:[#allocation2 + $0x8c] sm:$0x1]
      %v6907 = vld [vmem:[#allocation2 + $0x90] sm:$0xe]
      %v6908 = vld [vmem:[#allocation2 + $0x94] sm:$0xf]
      %v6909 = vld [vmem:[#allocation2 + $0x98] sm:$0x1]
      %v6910 = vld [vmem:[#allocation2 + $0x9c] sm:$0xe]
      %v6911 = vld [vmem:[#allocation2 + $0xa0] sm:$0xf]
      %v6912 = vld [vmem:[#allocation2 + $0xa4] sm:$0x1]
      %v6913 = vld [vmem:[#allocation2 + $0xa8] sm:$0xe]
      %v6914 = vld [vmem:[#allocation2 + $0xac] sm:$0xf]
      %v6915 = vld [vmem:[#allocation2 + $0xb0] sm:$0x1]
      %v6916 = vld [vmem:[#allocation2 + $0xb4] sm:$0xe]
      %v6917 = vld [vmem:[#allocation2 + $0xb8] sm:$0xf]
      %v6918 = vld [vmem:[#allocation2 + $0xbc] sm:$0x1]
      %v6967 = vrot.slane %v6871, 5
      %v6968 = vrot.slane %v6967, 4
      %v6969 = vrot.slane %v6872, 5
      %v6970 = vsel %vm1695, %v6968, %v6969
      %v6971 = vrot.slane %v6969, 4
      %v6972 = vrot.slane %v6873, 5
      %v6973 = vsel %vm1695, %v6971, %v6972
      %v6974 = vrot.slane %v6874, 5
      %v6975 = vrot.slane %v6974, 4
      %v6976 = vrot.slane %v6875, 5
      %v6977 = vsel %vm1695, %v6975, %v6976
      %v6978 = vrot.slane %v6976, 4
      %v6979 = vrot.slane %v6876, 5
      %v6980 = vsel %vm1695, %v6978, %v6979
      %v6981 = vrot.slane %v6877, 5
      %v6982 = vrot.slane %v6981, 4
      %v6983 = vrot.slane %v6878, 5
      %v6984 = vsel %vm1695, %v6982, %v6983
      %v6985 = vrot.slane %v6983, 4
      %v6986 = vrot.slane %v6879, 5
      %v6987 = vsel %vm1695, %v6985, %v6986
      %v6988 = vrot.slane %v6880, 5
      %v6989 = vrot.slane %v6988, 4
      %v6990 = vrot.slane %v6881, 5
      %v6991 = vsel %vm1695, %v6989, %v6990
      %v6992 = vrot.slane %v6990, 4
      %v6993 = vrot.slane %v6882, 5
      %v6994 = vsel %vm1695, %v6992, %v6993
      %v6995 = vrot.slane %v6883, 5
      %v6996 = vrot.slane %v6995, 4
      %v6997 = vrot.slane %v6884, 5
      %v6998 = vsel %vm1695, %v6996, %v6997
      %v6999 = vrot.slane %v6997, 4
      %v7000 = vrot.slane %v6885, 5
      %v7001 = vsel %vm1695, %v6999, %v7000
      %v7002 = vrot.slane %v6886, 5
      %v7003 = vrot.slane %v7002, 4
      %v7004 = vrot.slane %v6887, 5
      %v7005 = vsel %vm1695, %v7003, %v7004
      %v7006 = vrot.slane %v7004, 4
      %v7007 = vrot.slane %v6888, 5
      %v7008 = vsel %vm1695, %v7006, %v7007
      %v7009 = vrot.slane %v6889, 5
      %v7010 = vrot.slane %v7009, 4
      %v7011 = vrot.slane %v6890, 5
      %v7012 = vsel %vm1695, %v7010, %v7011
      %v7013 = vrot.slane %v7011, 4
      %v7014 = vrot.slane %v6891, 5
      %v7015 = vsel %vm1695, %v7013, %v7014
      %v7016 = vrot.slane %v6892, 5
      %v7017 = vrot.slane %v7016, 4
      %v7018 = vrot.slane %v6893, 5
      %v7019 = vsel %vm1695, %v7017, %v7018
      %v7020 = vrot.slane %v7018, 4
      %v7021 = vrot.slane %v6894, 5
      %v7022 = vsel %vm1695, %v7020, %v7021
      %v7023 = vrot.slane %v6895, 5
      %v7024 = vrot.slane %v7023, 4
      %v7025 = vrot.slane %v6896, 5
      %v7026 = vsel %vm1695, %v7024, %v7025
      %v7027 = vrot.slane %v7025, 4
      %v7028 = vrot.slane %v6897, 5
      %v7029 = vsel %vm1695, %v7027, %v7028
      %v7030 = vrot.slane %v6898, 5
      %v7031 = vrot.slane %v7030, 4
      %v7032 = vrot.slane %v6899, 5
      %v7033 = vsel %vm1695, %v7031, %v7032
      %v7034 = vrot.slane %v7032, 4
      %v7035 = vrot.slane %v6900, 5
      %v7036 = vsel %vm1695, %v7034, %v7035
      %v7037 = vrot.slane %v6901, 5
      %v7038 = vrot.slane %v7037, 4
      %v7039 = vrot.slane %v6902, 5
      %v7040 = vsel %vm1695, %v7038, %v7039
      %v7041 = vrot.slane %v7039, 4
      %v7042 = vrot.slane %v6903, 5
      %v7043 = vsel %vm1695, %v7041, %v7042
      %v7044 = vrot.slane %v6904, 5
      %v7045 = vrot.slane %v7044, 4
      %v7046 = vrot.slane %v6905, 5
      %v7047 = vsel %vm1695, %v7045, %v7046
      %v7048 = vrot.slane %v7046, 4
      %v7049 = vrot.slane %v6906, 5
      %v7050 = vsel %vm1695, %v7048, %v7049
      %v7051 = vrot.slane %v6907, 5
      %v7052 = vrot.slane %v7051, 4
      %v7053 = vrot.slane %v6908, 5
      %v7054 = vsel %vm1695, %v7052, %v7053
      %v7055 = vrot.slane %v7053, 4
      %v7056 = vrot.slane %v6909, 5
      %v7057 = vsel %vm1695, %v7055, %v7056
      %v7058 = vrot.slane %v6910, 5
      %v7059 = vrot.slane %v7058, 4
      %v7060 = vrot.slane %v6911, 5
      %v7061 = vsel %vm1695, %v7059, %v7060
      %v7062 = vrot.slane %v7060, 4
      %v7063 = vrot.slane %v6912, 5
      %v7064 = vsel %vm1695, %v7062, %v7063
      %v7065 = vrot.slane %v6913, 5
      %v7066 = vrot.slane %v7065, 4
      %v7067 = vrot.slane %v6914, 5
      %v7068 = vsel %vm1695, %v7066, %v7067
      %v7069 = vrot.slane %v7067, 4
      %v7070 = vrot.slane %v6915, 5
      %v7071 = vsel %vm1695, %v7069, %v7070
      %v7072 = vrot.slane %v6916, 5
      %v7073 = vrot.slane %v7072, 4
      %v7074 = vrot.slane %v6917, 5
      %v7075 = vsel %vm1695, %v7073, %v7074
      %v7076 = vrot.slane %v7074, 4
      %v7077 = vrot.slane %v6918, 5
      %v7078 = vsel %vm1695, %v7076, %v7077
      %v7079 = vunpack.c.l.b16 %v6970
      %v7080 = vunpack.c.l.b16 %v6973
      %v7081 = vunpack.c.l.b16 %v6977
      %v7082 = vunpack.c.l.b16 %v6980
      %v7083 = vunpack.c.l.b16 %v6984
      %v7084 = vunpack.c.l.b16 %v6987
      %v7085 = vunpack.c.l.b16 %v6991
      %v7086 = vunpack.c.l.b16 %v6994
      %v7087 = vunpack.c.l.b16 %v6998
      %v7088 = vunpack.c.l.b16 %v7001
      %v7089 = vunpack.c.l.b16 %v7005
      %v7090 = vunpack.c.l.b16 %v7008
      %v7091 = vunpack.c.l.b16 %v7012
      %v7092 = vunpack.c.l.b16 %v7015
      %v7093 = vunpack.c.l.b16 %v7019
      %v7094 = vunpack.c.l.b16 %v7022
      %v7095 = vunpack.c.l.b16 %v7026
      %v7096 = vunpack.c.l.b16 %v7029
      %v7097 = vunpack.c.l.b16 %v7033
      %v7098 = vunpack.c.l.b16 %v7036
      %v7099 = vunpack.c.l.b16 %v7040
      %v7100 = vunpack.c.l.b16 %v7043
      %v7101 = vunpack.c.l.b16 %v7047
      %v7102 = vunpack.c.l.b16 %v7050
      %v7103 = vunpack.c.l.b16 %v7054
      %v7104 = vunpack.c.l.b16 %v7057
      %v7105 = vunpack.c.l.b16 %v7061
      %v7106 = vunpack.c.l.b16 %v7064
      %v7107 = vunpack.c.l.b16 %v7068
      %v7108 = vunpack.c.l.b16 %v7071
      %v7109 = vunpack.c.l.b16 %v7075
      %v7110 = vunpack.c.l.b16 %v7078
      %v7111 = vpack.c.b16 %v7080, %v7079
      %v7112 = vpack.c.b16 %v7082, %v7081
      %v7113 = vpack.c.b16 %v7084, %v7083
      %v7114 = vpack.c.b16 %v7086, %v7085
      %v7115 = vpack.c.b16 %v7088, %v7087
      %v7116 = vpack.c.b16 %v7090, %v7089
      %v7117 = vpack.c.b16 %v7092, %v7091
      %v7118 = vpack.c.b16 %v7094, %v7093
      %v7119 = vpack.c.b16 %v7096, %v7095
      %v7120 = vpack.c.b16 %v7098, %v7097
      %v7121 = vpack.c.b16 %v7100, %v7099
      %v7122 = vpack.c.b16 %v7102, %v7101
      %v7123 = vpack.c.b16 %v7104, %v7103
      %v7124 = vpack.c.b16 %v7106, %v7105
      %v7125 = vpack.c.b16 %v7108, %v7107
      %v7126 = vpack.c.b16 %v7110, %v7109
      %7143 = vst [vmem:[#allocation3 + $0x10] sm:$0xff] %v7111
      %7144 = vst [vmem:[#allocation3 + $0x58] sm:$0xff] %v7112
      %7145 = vst [vmem:[#allocation3 + $0xa0] sm:$0xff] %v7113
      %7146 = vst [vmem:[#allocation3 + $0xe8] sm:$0xff] %v7114
      %7147 = vst [vmem:[#allocation3 + $0x130] sm:$0xff] %v7115
      %7148 = vst [vmem:[#allocation3 + $0x178] sm:$0xff] %v7116
      %7149 = vst [vmem:[#allocation3 + $0x1c0] sm:$0xff] %v7117
      %7150 = vst [vmem:[#allocation3 + $0x208] sm:$0xff] %v7118
      %7151 = vst [vmem:[#allocation3 + $0x250] sm:$0xff] %v7119
      %7152 = vst [vmem:[#allocation3 + $0x298] sm:$0xff] %v7120
      %7153 = vst [vmem:[#allocation3 + $0x2e0] sm:$0xff] %v7121
      %7154 = vst [vmem:[#allocation3 + $0x328] sm:$0xff] %v7122
      %7155 = vst [vmem:[#allocation3 + $0x370] sm:$0xff] %v7123
      %7156 = vst [vmem:[#allocation3 + $0x3b8] sm:$0xff] %v7124
      %7157 = vst [vmem:[#allocation3 + $0x400] sm:$0xff] %v7125
      %7158 = vst [vmem:[#allocation3 + $0x448] sm:$0xff] %v7126
      %v7159 = vld [vmem:[%s368] sm:$0xf]
      %v7160 = vld [vmem:[%s368 + $0x4] sm:$0xf]
      %v7161 = vld [vmem:[%s368 + $0xc] sm:$0xf]
      %v7162 = vld [vmem:[%s368 + $0x10] sm:$0xf]
      %v7163 = vld [vmem:[%s368 + $0x18] sm:$0xf]
      %v7164 = vld [vmem:[%s368 + $0x1c] sm:$0xf]
      %v7165 = vld [vmem:[%s368 + $0x24] sm:$0xf]
      %v7166 = vld [vmem:[%s368 + $0x28] sm:$0xf]
      %v7167 = vld [vmem:[%s368 + $0x30] sm:$0xf]
      %v7168 = vld [vmem:[%s368 + $0x34] sm:$0xf]
      %v7169 = vld [vmem:[%s368 + $0x3c] sm:$0xf]
      %v7170 = vld [vmem:[%s368 + $0x40] sm:$0xf]
      %v7171 = vld [vmem:[%s368 + $0x48] sm:$0xf]
      %v7172 = vld [vmem:[%s368 + $0x4c] sm:$0xf]
      %v7173 = vld [vmem:[%s368 + $0x54] sm:$0xf]
      %v7174 = vld [vmem:[%s368 + $0x58] sm:$0xf]
      %v7175 = vld [vmem:[%s368 + $0x60] sm:$0xf]
      %v7176 = vld [vmem:[%s368 + $0x64] sm:$0xf]
      %v7177 = vld [vmem:[%s368 + $0x6c] sm:$0xf]
      %v7178 = vld [vmem:[%s368 + $0x70] sm:$0xf]
      %v7179 = vld [vmem:[%s368 + $0x78] sm:$0xf]
      %v7180 = vld [vmem:[%s368 + $0x7c] sm:$0xf]
      %v7181 = vld [vmem:[%s368 + $0x84] sm:$0xf]
      %v7182 = vld [vmem:[%s368 + $0x88] sm:$0xf]
      %v7183 = vld [vmem:[%s368 + $0x90] sm:$0xf]
      %v7184 = vld [vmem:[%s368 + $0x94] sm:$0xf]
      %v7185 = vld [vmem:[%s368 + $0x9c] sm:$0xf]
      %v7186 = vld [vmem:[%s368 + $0xa0] sm:$0xf]
      %v7187 = vld [vmem:[%s368 + $0xa8] sm:$0xf]
      %v7188 = vld [vmem:[%s368 + $0xac] sm:$0xf]
      %v7189 = vld [vmem:[%s368 + $0xb4] sm:$0xf]
      %v7190 = vld [vmem:[%s368 + $0xb8] sm:$0xf]
      %v7223 = vunpack.c.l.b16 %v7159
      %v7224 = vunpack.c.l.b16 %v7160
      %v7225 = vunpack.c.l.b16 %v7161
      %v7226 = vunpack.c.l.b16 %v7162
      %v7227 = vunpack.c.l.b16 %v7163
      %v7228 = vunpack.c.l.b16 %v7164
      %v7229 = vunpack.c.l.b16 %v7165
      %v7230 = vunpack.c.l.b16 %v7166
      %v7231 = vunpack.c.l.b16 %v7167
      %v7232 = vunpack.c.l.b16 %v7168
      %v7233 = vunpack.c.l.b16 %v7169
      %v7234 = vunpack.c.l.b16 %v7170
      %v7235 = vunpack.c.l.b16 %v7171
      %v7236 = vunpack.c.l.b16 %v7172
      %v7237 = vunpack.c.l.b16 %v7173
      %v7238 = vunpack.c.l.b16 %v7174
      %v7239 = vunpack.c.l.b16 %v7175
      %v7240 = vunpack.c.l.b16 %v7176
      %v7241 = vunpack.c.l.b16 %v7177
      %v7242 = vunpack.c.l.b16 %v7178
      %v7243 = vunpack.c.l.b16 %v7179
      %v7244 = vunpack.c.l.b16 %v7180
      %v7245 = vunpack.c.l.b16 %v7181
      %v7246 = vunpack.c.l.b16 %v7182
      %v7247 = vunpack.c.l.b16 %v7183
      %v7248 = vunpack.c.l.b16 %v7184
      %v7249 = vunpack.c.l.b16 %v7185
      %v7250 = vunpack.c.l.b16 %v7186
      %v7251 = vunpack.c.l.b16 %v7187
      %v7252 = vunpack.c.l.b16 %v7188
      %v7253 = vunpack.c.l.b16 %v7189
      %v7254 = vunpack.c.l.b16 %v7190
      %v7255 = vpack.c.b16 %v7224, %v7223
      %v7256 = vpack.c.b16 %v7226, %v7225
      %v7257 = vpack.c.b16 %v7228, %v7227
      %v7258 = vpack.c.b16 %v7230, %v7229
      %v7259 = vpack.c.b16 %v7232, %v7231
      %v7260 = vpack.c.b16 %v7234, %v7233
      %v7261 = vpack.c.b16 %v7236, %v7235
      %v7262 = vpack.c.b16 %v7238, %v7237
      %v7263 = vpack.c.b16 %v7240, %v7239
      %v7264 = vpack.c.b16 %v7242, %v7241
      %v7265 = vpack.c.b16 %v7244, %v7243
      %v7266 = vpack.c.b16 %v7246, %v7245
      %v7267 = vpack.c.b16 %v7248, %v7247
      %v7268 = vpack.c.b16 %v7250, %v7249
      %v7269 = vpack.c.b16 %v7252, %v7251
      %v7270 = vpack.c.b16 %v7254, %v7253
      %7287 = vst [vmem:[#allocation3 + $0x18] sm:$0xff] %v7255
      %7288 = vst [vmem:[#allocation3 + $0x60] sm:$0xff] %v7256
      %7289 = vst [vmem:[#allocation3 + $0xa8] sm:$0xff] %v7257
      %7290 = vst [vmem:[#allocation3 + $0xf0] sm:$0xff] %v7258
      %7291 = vst [vmem:[#allocation3 + $0x138] sm:$0xff] %v7259
      %7292 = vst [vmem:[#allocation3 + $0x180] sm:$0xff] %v7260
      %7293 = vst [vmem:[#allocation3 + $0x1c8] sm:$0xff] %v7261
      %7294 = vst [vmem:[#allocation3 + $0x210] sm:$0xff] %v7262
      %7295 = vst [vmem:[#allocation3 + $0x258] sm:$0xff] %v7263
      %7296 = vst [vmem:[#allocation3 + $0x2a0] sm:$0xff] %v7264
      %7297 = vst [vmem:[#allocation3 + $0x2e8] sm:$0xff] %v7265
      %7298 = vst [vmem:[#allocation3 + $0x330] sm:$0xff] %v7266
      %7299 = vst [vmem:[#allocation3 + $0x378] sm:$0xff] %v7267
      %7300 = vst [vmem:[#allocation3 + $0x3c0] sm:$0xff] %v7268
      %7301 = vst [vmem:[#allocation3 + $0x408] sm:$0xff] %v7269
      %7302 = vst [vmem:[#allocation3 + $0x450] sm:$0xff] %v7270
      %v7303 = vld [vmem:[%s368] sm:$0xf]
      %v7304 = vld [vmem:[%s368 + $0x4] sm:$0xf]
      %v7305 = vld [vmem:[%s368 + $0x8] sm:$0x1]
      %v7306 = vld [vmem:[%s368 + $0xc] sm:$0xf]
      %v7307 = vld [vmem:[%s368 + $0x10] sm:$0xf]
      %v7308 = vld [vmem:[%s368 + $0x14] sm:$0x1]
      %v7309 = vld [vmem:[%s368 + $0x18] sm:$0xf]
      %v7310 = vld [vmem:[%s368 + $0x1c] sm:$0xf]
      %v7311 = vld [vmem:[%s368 + $0x20] sm:$0x1]
      %v7312 = vld [vmem:[%s368 + $0x24] sm:$0xf]
      %v7313 = vld [vmem:[%s368 + $0x28] sm:$0xf]
      %v7314 = vld [vmem:[%s368 + $0x2c] sm:$0x1]
      %v7315 = vld [vmem:[%s368 + $0x30] sm:$0xf]
      %v7316 = vld [vmem:[%s368 + $0x34] sm:$0xf]
      %v7317 = vld [vmem:[%s368 + $0x38] sm:$0x1]
      %v7318 = vld [vmem:[%s368 + $0x3c] sm:$0xf]
      %v7319 = vld [vmem:[%s368 + $0x40] sm:$0xf]
      %v7320 = vld [vmem:[%s368 + $0x44] sm:$0x1]
      %v7321 = vld [vmem:[%s368 + $0x48] sm:$0xf]
      %v7322 = vld [vmem:[%s368 + $0x4c] sm:$0xf]
      %v7323 = vld [vmem:[%s368 + $0x50] sm:$0x1]
      %v7324 = vld [vmem:[%s368 + $0x54] sm:$0xf]
      %v7325 = vld [vmem:[%s368 + $0x58] sm:$0xf]
      %v7326 = vld [vmem:[%s368 + $0x5c] sm:$0x1]
      %v7327 = vld [vmem:[%s368 + $0x60] sm:$0xf]
      %v7328 = vld [vmem:[%s368 + $0x64] sm:$0xf]
      %v7329 = vld [vmem:[%s368 + $0x68] sm:$0x1]
      %v7330 = vld [vmem:[%s368 + $0x6c] sm:$0xf]
      %v7331 = vld [vmem:[%s368 + $0x70] sm:$0xf]
      %v7332 = vld [vmem:[%s368 + $0x74] sm:$0x1]
      %v7333 = vld [vmem:[%s368 + $0x78] sm:$0xf]
      %v7334 = vld [vmem:[%s368 + $0x7c] sm:$0xf]
      %v7335 = vld [vmem:[%s368 + $0x80] sm:$0x1]
      %v7336 = vld [vmem:[%s368 + $0x84] sm:$0xf]
      %v7337 = vld [vmem:[%s368 + $0x88] sm:$0xf]
      %v7338 = vld [vmem:[%s368 + $0x8c] sm:$0x1]
      %v7339 = vld [vmem:[%s368 + $0x90] sm:$0xf]
      %v7340 = vld [vmem:[%s368 + $0x94] sm:$0xf]
      %v7341 = vld [vmem:[%s368 + $0x98] sm:$0x1]
      %v7342 = vld [vmem:[%s368 + $0x9c] sm:$0xf]
      %v7343 = vld [vmem:[%s368 + $0xa0] sm:$0xf]
      %v7344 = vld [vmem:[%s368 + $0xa4] sm:$0x1]
      %v7345 = vld [vmem:[%s368 + $0xa8] sm:$0xf]
      %v7346 = vld [vmem:[%s368 + $0xac] sm:$0xf]
      %v7347 = vld [vmem:[%s368 + $0xb0] sm:$0x1]
      %v7348 = vld [vmem:[%s368 + $0xb4] sm:$0xf]
      %v7349 = vld [vmem:[%s368 + $0xb8] sm:$0xf]
      %v7350 = vld [vmem:[%s368 + $0xbc] sm:$0x1]
      %v7352 = vshrl.u32 %v7303, 16
      %v7354 = vrot.slane %v7352, 4
      %v7355 = vshll.u32 %v7303, 16
      %v7357 = vrot.slane %v7355, 5
      %v7358 = vor.u32 %v7354, %v7357
      %v7359 = vrot.slane %v7358, 4
      %v7361 = vshll.u32 %v7304, 16
      %v7363 = vrot.slane %v7361, 5
      %v7364 = vsel %vm1132, %v7359, %v7363
      %v7365 = vshrl.u32 %v7304, 16
      %v7367 = vrot.slane %v7365, 4
      %v7368 = vor.u32 %v7367, %v7363
      %v7369 = vrot.slane %v7368, 4
      %v7371 = vshll.u32 %v7305, 16
      %v7373 = vrot.slane %v7371, 5
      %v7374 = vsel %vm1132, %v7369, %v7373
      %v7376 = vshrl.u32 %v7306, 16
      %v7378 = vrot.slane %v7376, 4
      %v7379 = vshll.u32 %v7306, 16
      %v7381 = vrot.slane %v7379, 5
      %v7382 = vor.u32 %v7378, %v7381
      %v7383 = vrot.slane %v7382, 4
      %v7385 = vshll.u32 %v7307, 16
      %v7387 = vrot.slane %v7385, 5
      %v7388 = vsel %vm1132, %v7383, %v7387
      %v7389 = vshrl.u32 %v7307, 16
      %v7391 = vrot.slane %v7389, 4
      %v7392 = vor.u32 %v7391, %v7387
      %v7393 = vrot.slane %v7392, 4
      %v7395 = vshll.u32 %v7308, 16
      %v7397 = vrot.slane %v7395, 5
      %v7398 = vsel %vm1132, %v7393, %v7397
      %v7400 = vshrl.u32 %v7309, 16
      %v7402 = vrot.slane %v7400, 4
      %v7403 = vshll.u32 %v7309, 16
      %v7405 = vrot.slane %v7403, 5
      %v7406 = vor.u32 %v7402, %v7405
      %v7407 = vrot.slane %v7406, 4
      %v7409 = vshll.u32 %v7310, 16
      %v7411 = vrot.slane %v7409, 5
      %v7412 = vsel %vm1132, %v7407, %v7411
      %v7413 = vshrl.u32 %v7310, 16
      %v7415 = vrot.slane %v7413, 4
      %v7416 = vor.u32 %v7415, %v7411
      %v7417 = vrot.slane %v7416, 4
      %v7419 = vshll.u32 %v7311, 16
      %v7421 = vrot.slane %v7419, 5
      %v7422 = vsel %vm1132, %v7417, %v7421
      %v7424 = vshrl.u32 %v7312, 16
      %v7426 = vrot.slane %v7424, 4
      %v7427 = vshll.u32 %v7312, 16
      %v7429 = vrot.slane %v7427, 5
      %v7430 = vor.u32 %v7426, %v7429
      %v7431 = vrot.slane %v7430, 4
      %v7433 = vshll.u32 %v7313, 16
      %v7435 = vrot.slane %v7433, 5
      %v7436 = vsel %vm1132, %v7431, %v7435
      %v7437 = vshrl.u32 %v7313, 16
      %v7439 = vrot.slane %v7437, 4
      %v7440 = vor.u32 %v7439, %v7435
      %v7441 = vrot.slane %v7440, 4
      %v7443 = vshll.u32 %v7314, 16
      %v7445 = vrot.slane %v7443, 5
      %v7446 = vsel %vm1132, %v7441, %v7445
      %v7448 = vshrl.u32 %v7315, 16
      %v7450 = vrot.slane %v7448, 4
      %v7451 = vshll.u32 %v7315, 16
      %v7453 = vrot.slane %v7451, 5
      %v7454 = vor.u32 %v7450, %v7453
      %v7455 = vrot.slane %v7454, 4
      %v7457 = vshll.u32 %v7316, 16
      %v7459 = vrot.slane %v7457, 5
      %v7460 = vsel %vm1132, %v7455, %v7459
      %v7461 = vshrl.u32 %v7316, 16
      %v7463 = vrot.slane %v7461, 4
      %v7464 = vor.u32 %v7463, %v7459
      %v7465 = vrot.slane %v7464, 4
      %v7467 = vshll.u32 %v7317, 16
      %v7469 = vrot.slane %v7467, 5
      %v7470 = vsel %vm1132, %v7465, %v7469
      %v7472 = vshrl.u32 %v7318, 16
      %v7474 = vrot.slane %v7472, 4
      %v7475 = vshll.u32 %v7318, 16
      %v7477 = vrot.slane %v7475, 5
      %v7478 = vor.u32 %v7474, %v7477
      %v7479 = vrot.slane %v7478, 4
      %v7481 = vshll.u32 %v7319, 16
      %v7483 = vrot.slane %v7481, 5
      %v7484 = vsel %vm1132, %v7479, %v7483
      %v7485 = vshrl.u32 %v7319, 16
      %v7487 = vrot.slane %v7485, 4
      %v7488 = vor.u32 %v7487, %v7483
      %v7489 = vrot.slane %v7488, 4
      %v7491 = vshll.u32 %v7320, 16
      %v7493 = vrot.slane %v7491, 5
      %v7494 = vsel %vm1132, %v7489, %v7493
      %v7496 = vshrl.u32 %v7321, 16
      %v7498 = vrot.slane %v7496, 4
      %v7499 = vshll.u32 %v7321, 16
      %v7501 = vrot.slane %v7499, 5
      %v7502 = vor.u32 %v7498, %v7501
      %v7503 = vrot.slane %v7502, 4
      %v7505 = vshll.u32 %v7322, 16
      %v7507 = vrot.slane %v7505, 5
      %v7508 = vsel %vm1132, %v7503, %v7507
      %v7509 = vshrl.u32 %v7322, 16
      %v7511 = vrot.slane %v7509, 4
      %v7512 = vor.u32 %v7511, %v7507
      %v7513 = vrot.slane %v7512, 4
      %v7515 = vshll.u32 %v7323, 16
      %v7517 = vrot.slane %v7515, 5
      %v7518 = vsel %vm1132, %v7513, %v7517
      %v7520 = vshrl.u32 %v7324, 16
      %v7522 = vrot.slane %v7520, 4
      %v7523 = vshll.u32 %v7324, 16
      %v7525 = vrot.slane %v7523, 5
      %v7526 = vor.u32 %v7522, %v7525
      %v7527 = vrot.slane %v7526, 4
      %v7529 = vshll.u32 %v7325, 16
      %v7531 = vrot.slane %v7529, 5
      %v7532 = vsel %vm1132, %v7527, %v7531
      %v7533 = vshrl.u32 %v7325, 16
      %v7535 = vrot.slane %v7533, 4
      %v7536 = vor.u32 %v7535, %v7531
      %v7537 = vrot.slane %v7536, 4
      %v7539 = vshll.u32 %v7326, 16
      %v7541 = vrot.slane %v7539, 5
      %v7542 = vsel %vm1132, %v7537, %v7541
      %v7544 = vshrl.u32 %v7327, 16
      %v7546 = vrot.slane %v7544, 4
      %v7547 = vshll.u32 %v7327, 16
      %v7549 = vrot.slane %v7547, 5
      %v7550 = vor.u32 %v7546, %v7549
      %v7551 = vrot.slane %v7550, 4
      %v7553 = vshll.u32 %v7328, 16
      %v7555 = vrot.slane %v7553, 5
      %v7556 = vsel %vm1132, %v7551, %v7555
      %v7557 = vshrl.u32 %v7328, 16
      %v7559 = vrot.slane %v7557, 4
      %v7560 = vor.u32 %v7559, %v7555
      %v7561 = vrot.slane %v7560, 4
      %v7563 = vshll.u32 %v7329, 16
      %v7565 = vrot.slane %v7563, 5
      %v7566 = vsel %vm1132, %v7561, %v7565
      %v7568 = vshrl.u32 %v7330, 16
      %v7570 = vrot.slane %v7568, 4
      %v7571 = vshll.u32 %v7330, 16
      %v7573 = vrot.slane %v7571, 5
      %v7574 = vor.u32 %v7570, %v7573
      %v7575 = vrot.slane %v7574, 4
      %v7577 = vshll.u32 %v7331, 16
      %v7579 = vrot.slane %v7577, 5
      %v7580 = vsel %vm1132, %v7575, %v7579
      %v7581 = vshrl.u32 %v7331, 16
      %v7583 = vrot.slane %v7581, 4
      %v7584 = vor.u32 %v7583, %v7579
      %v7585 = vrot.slane %v7584, 4
      %v7587 = vshll.u32 %v7332, 16
      %v7589 = vrot.slane %v7587, 5
      %v7590 = vsel %vm1132, %v7585, %v7589
      %v7592 = vshrl.u32 %v7333, 16
      %v7594 = vrot.slane %v7592, 4
      %v7595 = vshll.u32 %v7333, 16
      %v7597 = vrot.slane %v7595, 5
      %v7598 = vor.u32 %v7594, %v7597
      %v7599 = vrot.slane %v7598, 4
      %v7601 = vshll.u32 %v7334, 16
      %v7603 = vrot.slane %v7601, 5
      %v7604 = vsel %vm1132, %v7599, %v7603
      %v7605 = vshrl.u32 %v7334, 16
      %v7607 = vrot.slane %v7605, 4
      %v7608 = vor.u32 %v7607, %v7603
      %v7609 = vrot.slane %v7608, 4
      %v7611 = vshll.u32 %v7335, 16
      %v7613 = vrot.slane %v7611, 5
      %v7614 = vsel %vm1132, %v7609, %v7613
      %v7616 = vshrl.u32 %v7336, 16
      %v7618 = vrot.slane %v7616, 4
      %v7619 = vshll.u32 %v7336, 16
      %v7621 = vrot.slane %v7619, 5
      %v7622 = vor.u32 %v7618, %v7621
      %v7623 = vrot.slane %v7622, 4
      %v7625 = vshll.u32 %v7337, 16
      %v7627 = vrot.slane %v7625, 5
      %v7628 = vsel %vm1132, %v7623, %v7627
      %v7629 = vshrl.u32 %v7337, 16
      %v7631 = vrot.slane %v7629, 4
      %v7632 = vor.u32 %v7631, %v7627
      %v7633 = vrot.slane %v7632, 4
      %v7635 = vshll.u32 %v7338, 16
      %v7637 = vrot.slane %v7635, 5
      %v7638 = vsel %vm1132, %v7633, %v7637
      %v7640 = vshrl.u32 %v7339, 16
      %v7642 = vrot.slane %v7640, 4
      %v7643 = vshll.u32 %v7339, 16
      %v7645 = vrot.slane %v7643, 5
      %v7646 = vor.u32 %v7642, %v7645
      %v7647 = vrot.slane %v7646, 4
      %v7649 = vshll.u32 %v7340, 16
      %v7651 = vrot.slane %v7649, 5
      %v7652 = vsel %vm1132, %v7647, %v7651
      %v7653 = vshrl.u32 %v7340, 16
      %v7655 = vrot.slane %v7653, 4
      %v7656 = vor.u32 %v7655, %v7651
      %v7657 = vrot.slane %v7656, 4
      %v7659 = vshll.u32 %v7341, 16
      %v7661 = vrot.slane %v7659, 5
      %v7662 = vsel %vm1132, %v7657, %v7661
      %v7664 = vshrl.u32 %v7342, 16
      %v7666 = vrot.slane %v7664, 4
      %v7667 = vshll.u32 %v7342, 16
      %v7669 = vrot.slane %v7667, 5
      %v7670 = vor.u32 %v7666, %v7669
      %v7671 = vrot.slane %v7670, 4
      %v7673 = vshll.u32 %v7343, 16
      %v7675 = vrot.slane %v7673, 5
      %v7676 = vsel %vm1132, %v7671, %v7675
      %v7677 = vshrl.u32 %v7343, 16
      %v7679 = vrot.slane %v7677, 4
      %v7680 = vor.u32 %v7679, %v7675
      %v7681 = vrot.slane %v7680, 4
      %v7683 = vshll.u32 %v7344, 16
      %v7685 = vrot.slane %v7683, 5
      %v7686 = vsel %vm1132, %v7681, %v7685
      %v7688 = vshrl.u32 %v7345, 16
      %v7690 = vrot.slane %v7688, 4
      %v7691 = vshll.u32 %v7345, 16
      %v7693 = vrot.slane %v7691, 5
      %v7694 = vor.u32 %v7690, %v7693
      %v7695 = vrot.slane %v7694, 4
      %v7697 = vshll.u32 %v7346, 16
      %v7699 = vrot.slane %v7697, 5
      %v7700 = vsel %vm1132, %v7695, %v7699
      %v7701 = vshrl.u32 %v7346, 16
      %v7703 = vrot.slane %v7701, 4
      %v7704 = vor.u32 %v7703, %v7699
      %v7705 = vrot.slane %v7704, 4
      %v7707 = vshll.u32 %v7347, 16
      %v7709 = vrot.slane %v7707, 5
      %v7710 = vsel %vm1132, %v7705, %v7709
      %v7712 = vshrl.u32 %v7348, 16
      %v7714 = vrot.slane %v7712, 4
      %v7715 = vshll.u32 %v7348, 16
      %v7717 = vrot.slane %v7715, 5
      %v7718 = vor.u32 %v7714, %v7717
      %v7719 = vrot.slane %v7718, 4
      %v7721 = vshll.u32 %v7349, 16
      %v7723 = vrot.slane %v7721, 5
      %v7724 = vsel %vm1132, %v7719, %v7723
      %v7725 = vshrl.u32 %v7349, 16
      %v7727 = vrot.slane %v7725, 4
      %v7728 = vor.u32 %v7727, %v7723
      %v7729 = vrot.slane %v7728, 4
      %v7731 = vshll.u32 %v7350, 16
      %v7733 = vrot.slane %v7731, 5
      %v7734 = vsel %vm1132, %v7729, %v7733
      %v7735 = vunpack.c.l.b16 %v7364
      %v7736 = vunpack.c.l.b16 %v7374
      %v7737 = vunpack.c.l.b16 %v7388
      %v7738 = vunpack.c.l.b16 %v7398
      %v7739 = vunpack.c.l.b16 %v7412
      %v7740 = vunpack.c.l.b16 %v7422
      %v7741 = vunpack.c.l.b16 %v7436
      %v7742 = vunpack.c.l.b16 %v7446
      %v7743 = vunpack.c.l.b16 %v7460
      %v7744 = vunpack.c.l.b16 %v7470
      %v7745 = vunpack.c.l.b16 %v7484
      %v7746 = vunpack.c.l.b16 %v7494
      %v7747 = vunpack.c.l.b16 %v7508
      %v7748 = vunpack.c.l.b16 %v7518
      %v7749 = vunpack.c.l.b16 %v7532
      %v7750 = vunpack.c.l.b16 %v7542
      %v7751 = vunpack.c.l.b16 %v7556
      %v7752 = vunpack.c.l.b16 %v7566
      %v7753 = vunpack.c.l.b16 %v7580
      %v7754 = vunpack.c.l.b16 %v7590
      %v7755 = vunpack.c.l.b16 %v7604
      %v7756 = vunpack.c.l.b16 %v7614
      %v7757 = vunpack.c.l.b16 %v7628
      %v7758 = vunpack.c.l.b16 %v7638
      %v7759 = vunpack.c.l.b16 %v7652
      %v7760 = vunpack.c.l.b16 %v7662
      %v7761 = vunpack.c.l.b16 %v7676
      %v7762 = vunpack.c.l.b16 %v7686
      %v7763 = vunpack.c.l.b16 %v7700
      %v7764 = vunpack.c.l.b16 %v7710
      %v7765 = vunpack.c.l.b16 %v7724
      %v7766 = vunpack.c.l.b16 %v7734
      %v7767 = vpack.c.b16 %v7736, %v7735
      %v7768 = vpack.c.b16 %v7738, %v7737
      %v7769 = vpack.c.b16 %v7740, %v7739
      %v7770 = vpack.c.b16 %v7742, %v7741
      %v7771 = vpack.c.b16 %v7744, %v7743
      %v7772 = vpack.c.b16 %v7746, %v7745
      %v7773 = vpack.c.b16 %v7748, %v7747
      %v7774 = vpack.c.b16 %v7750, %v7749
      %v7775 = vpack.c.b16 %v7752, %v7751
      %v7776 = vpack.c.b16 %v7754, %v7753
      %v7777 = vpack.c.b16 %v7756, %v7755
      %v7778 = vpack.c.b16 %v7758, %v7757
      %v7779 = vpack.c.b16 %v7760, %v7759
      %v7780 = vpack.c.b16 %v7762, %v7761
      %v7781 = vpack.c.b16 %v7764, %v7763
      %v7782 = vpack.c.b16 %v7766, %v7765
      %7799 = vst [vmem:[#allocation3 + $0x20] sm:$0xff] %v7767
      %7800 = vst [vmem:[#allocation3 + $0x68] sm:$0xff] %v7768
      %7801 = vst [vmem:[#allocation3 + $0xb0] sm:$0xff] %v7769
      %7802 = vst [vmem:[#allocation3 + $0xf8] sm:$0xff] %v7770
      %7803 = vst [vmem:[#allocation3 + $0x140] sm:$0xff] %v7771
      %7804 = vst [vmem:[#allocation3 + $0x188] sm:$0xff] %v7772
      %7805 = vst [vmem:[#allocation3 + $0x1d0] sm:$0xff] %v7773
      %7806 = vst [vmem:[#allocation3 + $0x218] sm:$0xff] %v7774
      %7807 = vst [vmem:[#allocation3 + $0x260] sm:$0xff] %v7775
      %7808 = vst [vmem:[#allocation3 + $0x2a8] sm:$0xff] %v7776
      %7809 = vst [vmem:[#allocation3 + $0x2f0] sm:$0xff] %v7777
      %7810 = vst [vmem:[#allocation3 + $0x338] sm:$0xff] %v7778
      %7811 = vst [vmem:[#allocation3 + $0x380] sm:$0xff] %v7779
      %7812 = vst [vmem:[#allocation3 + $0x3c8] sm:$0xff] %v7780
      %7813 = vst [vmem:[#allocation3 + $0x410] sm:$0xff] %v7781
      %7814 = vst [vmem:[#allocation3 + $0x458] sm:$0xff] %v7782
      %v7815 = vld [vmem:[%s368] sm:$0xe]
      %v7816 = vld [vmem:[%s368 + $0x4] sm:$0xf]
      %v7817 = vld [vmem:[%s368 + $0x8] sm:$0x1]
      %v7818 = vld [vmem:[%s368 + $0xc] sm:$0xe]
      %v7819 = vld [vmem:[%s368 + $0x10] sm:$0xf]
      %v7820 = vld [vmem:[%s368 + $0x14] sm:$0x1]
      %v7821 = vld [vmem:[%s368 + $0x18] sm:$0xe]
      %v7822 = vld [vmem:[%s368 + $0x1c] sm:$0xf]
      %v7823 = vld [vmem:[%s368 + $0x20] sm:$0x1]
      %v7824 = vld [vmem:[%s368 + $0x24] sm:$0xe]
      %v7825 = vld [vmem:[%s368 + $0x28] sm:$0xf]
      %v7826 = vld [vmem:[%s368 + $0x2c] sm:$0x1]
      %v7827 = vld [vmem:[%s368 + $0x30] sm:$0xe]
      %v7828 = vld [vmem:[%s368 + $0x34] sm:$0xf]
      %v7829 = vld [vmem:[%s368 + $0x38] sm:$0x1]
      %v7830 = vld [vmem:[%s368 + $0x3c] sm:$0xe]
      %v7831 = vld [vmem:[%s368 + $0x40] sm:$0xf]
      %v7832 = vld [vmem:[%s368 + $0x44] sm:$0x1]
      %v7833 = vld [vmem:[%s368 + $0x48] sm:$0xe]
      %v7834 = vld [vmem:[%s368 + $0x4c] sm:$0xf]
      %v7835 = vld [vmem:[%s368 + $0x50] sm:$0x1]
      %v7836 = vld [vmem:[%s368 + $0x54] sm:$0xe]
      %v7837 = vld [vmem:[%s368 + $0x58] sm:$0xf]
      %v7838 = vld [vmem:[%s368 + $0x5c] sm:$0x1]
      %v7839 = vld [vmem:[%s368 + $0x60] sm:$0xe]
      %v7840 = vld [vmem:[%s368 + $0x64] sm:$0xf]
      %v7841 = vld [vmem:[%s368 + $0x68] sm:$0x1]
      %v7842 = vld [vmem:[%s368 + $0x6c] sm:$0xe]
      %v7843 = vld [vmem:[%s368 + $0x70] sm:$0xf]
      %v7844 = vld [vmem:[%s368 + $0x74] sm:$0x1]
      %v7845 = vld [vmem:[%s368 + $0x78] sm:$0xe]
      %v7846 = vld [vmem:[%s368 + $0x7c] sm:$0xf]
      %v7847 = vld [vmem:[%s368 + $0x80] sm:$0x1]
      %v7848 = vld [vmem:[%s368 + $0x84] sm:$0xe]
      %v7849 = vld [vmem:[%s368 + $0x88] sm:$0xf]
      %v7850 = vld [vmem:[%s368 + $0x8c] sm:$0x1]
      %v7851 = vld [vmem:[%s368 + $0x90] sm:$0xe]
      %v7852 = vld [vmem:[%s368 + $0x94] sm:$0xf]
      %v7853 = vld [vmem:[%s368 + $0x98] sm:$0x1]
      %v7854 = vld [vmem:[%s368 + $0x9c] sm:$0xe]
      %v7855 = vld [vmem:[%s368 + $0xa0] sm:$0xf]
      %v7856 = vld [vmem:[%s368 + $0xa4] sm:$0x1]
      %v7857 = vld [vmem:[%s368 + $0xa8] sm:$0xe]
      %v7858 = vld [vmem:[%s368 + $0xac] sm:$0xf]
      %v7859 = vld [vmem:[%s368 + $0xb0] sm:$0x1]
      %v7860 = vld [vmem:[%s368 + $0xb4] sm:$0xe]
      %v7861 = vld [vmem:[%s368 + $0xb8] sm:$0xf]
      %v7862 = vld [vmem:[%s368 + $0xbc] sm:$0x1]
      %v7911 = vrot.slane %v7815, 5
      %v7912 = vrot.slane %v7911, 4
      %v7913 = vrot.slane %v7816, 5
      %v7914 = vsel %vm1695, %v7912, %v7913
      %v7915 = vrot.slane %v7913, 4
      %v7916 = vrot.slane %v7817, 5
      %v7917 = vsel %vm1695, %v7915, %v7916
      %v7918 = vrot.slane %v7818, 5
      %v7919 = vrot.slane %v7918, 4
      %v7920 = vrot.slane %v7819, 5
      %v7921 = vsel %vm1695, %v7919, %v7920
      %v7922 = vrot.slane %v7920, 4
      %v7923 = vrot.slane %v7820, 5
      %v7924 = vsel %vm1695, %v7922, %v7923
      %v7925 = vrot.slane %v7821, 5
      %v7926 = vrot.slane %v7925, 4
      %v7927 = vrot.slane %v7822, 5
      %v7928 = vsel %vm1695, %v7926, %v7927
      %v7929 = vrot.slane %v7927, 4
      %v7930 = vrot.slane %v7823, 5
      %v7931 = vsel %vm1695, %v7929, %v7930
      %v7932 = vrot.slane %v7824, 5
      %v7933 = vrot.slane %v7932, 4
      %v7934 = vrot.slane %v7825, 5
      %v7935 = vsel %vm1695, %v7933, %v7934
      %v7936 = vrot.slane %v7934, 4
      %v7937 = vrot.slane %v7826, 5
      %v7938 = vsel %vm1695, %v7936, %v7937
      %v7939 = vrot.slane %v7827, 5
      %v7940 = vrot.slane %v7939, 4
      %v7941 = vrot.slane %v7828, 5
      %v7942 = vsel %vm1695, %v7940, %v7941
      %v7943 = vrot.slane %v7941, 4
      %v7944 = vrot.slane %v7829, 5
      %v7945 = vsel %vm1695, %v7943, %v7944
      %v7946 = vrot.slane %v7830, 5
      %v7947 = vrot.slane %v7946, 4
      %v7948 = vrot.slane %v7831, 5
      %v7949 = vsel %vm1695, %v7947, %v7948
      %v7950 = vrot.slane %v7948, 4
      %v7951 = vrot.slane %v7832, 5
      %v7952 = vsel %vm1695, %v7950, %v7951
      %v7953 = vrot.slane %v7833, 5
      %v7954 = vrot.slane %v7953, 4
      %v7955 = vrot.slane %v7834, 5
      %v7956 = vsel %vm1695, %v7954, %v7955
      %v7957 = vrot.slane %v7955, 4
      %v7958 = vrot.slane %v7835, 5
      %v7959 = vsel %vm1695, %v7957, %v7958
      %v7960 = vrot.slane %v7836, 5
      %v7961 = vrot.slane %v7960, 4
      %v7962 = vrot.slane %v7837, 5
      %v7963 = vsel %vm1695, %v7961, %v7962
      %v7964 = vrot.slane %v7962, 4
      %v7965 = vrot.slane %v7838, 5
      %v7966 = vsel %vm1695, %v7964, %v7965
      %v7967 = vrot.slane %v7839, 5
      %v7968 = vrot.slane %v7967, 4
      %v7969 = vrot.slane %v7840, 5
      %v7970 = vsel %vm1695, %v7968, %v7969
      %v7971 = vrot.slane %v7969, 4
      %v7972 = vrot.slane %v7841, 5
      %v7973 = vsel %vm1695, %v7971, %v7972
      %v7974 = vrot.slane %v7842, 5
      %v7975 = vrot.slane %v7974, 4
      %v7976 = vrot.slane %v7843, 5
      %v7977 = vsel %vm1695, %v7975, %v7976
      %v7978 = vrot.slane %v7976, 4
      %v7979 = vrot.slane %v7844, 5
      %v7980 = vsel %vm1695, %v7978, %v7979
      %v7981 = vrot.slane %v7845, 5
      %v7982 = vrot.slane %v7981, 4
      %v7983 = vrot.slane %v7846, 5
      %v7984 = vsel %vm1695, %v7982, %v7983
      %v7985 = vrot.slane %v7983, 4
      %v7986 = vrot.slane %v7847, 5
      %v7987 = vsel %vm1695, %v7985, %v7986
      %v7988 = vrot.slane %v7848, 5
      %v7989 = vrot.slane %v7988, 4
      %v7990 = vrot.slane %v7849, 5
      %v7991 = vsel %vm1695, %v7989, %v7990
      %v7992 = vrot.slane %v7990, 4
      %v7993 = vrot.slane %v7850, 5
      %v7994 = vsel %vm1695, %v7992, %v7993
      %v7995 = vrot.slane %v7851, 5
      %v7996 = vrot.slane %v7995, 4
      %v7997 = vrot.slane %v7852, 5
      %v7998 = vsel %vm1695, %v7996, %v7997
      %v7999 = vrot.slane %v7997, 4
      %v8000 = vrot.slane %v7853, 5
      %v8001 = vsel %vm1695, %v7999, %v8000
      %v8002 = vrot.slane %v7854, 5
      %v8003 = vrot.slane %v8002, 4
      %v8004 = vrot.slane %v7855, 5
      %v8005 = vsel %vm1695, %v8003, %v8004
      %v8006 = vrot.slane %v8004, 4
      %v8007 = vrot.slane %v7856, 5
      %v8008 = vsel %vm1695, %v8006, %v8007
      %v8009 = vrot.slane %v7857, 5
      %v8010 = vrot.slane %v8009, 4
      %v8011 = vrot.slane %v7858, 5
      %v8012 = vsel %vm1695, %v8010, %v8011
      %v8013 = vrot.slane %v8011, 4
      %v8014 = vrot.slane %v7859, 5
      %v8015 = vsel %vm1695, %v8013, %v8014
      %v8016 = vrot.slane %v7860, 5
      %v8017 = vrot.slane %v8016, 4
      %v8018 = vrot.slane %v7861, 5
      %v8019 = vsel %vm1695, %v8017, %v8018
      %v8020 = vrot.slane %v8018, 4
      %v8021 = vrot.slane %v7862, 5
      %v8022 = vsel %vm1695, %v8020, %v8021
      %v8023 = vunpack.c.l.b16 %v7914
      %v8024 = vunpack.c.l.b16 %v7917
      %v8025 = vunpack.c.l.b16 %v7921
      %v8026 = vunpack.c.l.b16 %v7924
      %v8027 = vunpack.c.l.b16 %v7928
      %v8028 = vunpack.c.l.b16 %v7931
      %v8029 = vunpack.c.l.b16 %v7935
      %v8030 = vunpack.c.l.b16 %v7938
      %v8031 = vunpack.c.l.b16 %v7942
      %v8032 = vunpack.c.l.b16 %v7945
      %v8033 = vunpack.c.l.b16 %v7949
      %v8034 = vunpack.c.l.b16 %v7952
      %v8035 = vunpack.c.l.b16 %v7956
      %v8036 = vunpack.c.l.b16 %v7959
      %v8037 = vunpack.c.l.b16 %v7963
      %v8038 = vunpack.c.l.b16 %v7966
      %v8039 = vunpack.c.l.b16 %v7970
      %v8040 = vunpack.c.l.b16 %v7973
      %v8041 = vunpack.c.l.b16 %v7977
      %v8042 = vunpack.c.l.b16 %v7980
      %v8043 = vunpack.c.l.b16 %v7984
      %v8044 = vunpack.c.l.b16 %v7987
      %v8045 = vunpack.c.l.b16 %v7991
      %v8046 = vunpack.c.l.b16 %v7994
      %v8047 = vunpack.c.l.b16 %v7998
      %v8048 = vunpack.c.l.b16 %v8001
      %v8049 = vunpack.c.l.b16 %v8005
      %v8050 = vunpack.c.l.b16 %v8008
      %v8051 = vunpack.c.l.b16 %v8012
      %v8052 = vunpack.c.l.b16 %v8015
      %v8053 = vunpack.c.l.b16 %v8019
      %v8054 = vunpack.c.l.b16 %v8022
      %v8055 = vpack.c.b16 %v8024, %v8023
      %v8056 = vpack.c.b16 %v8026, %v8025
      %v8057 = vpack.c.b16 %v8028, %v8027
      %v8058 = vpack.c.b16 %v8030, %v8029
      %v8059 = vpack.c.b16 %v8032, %v8031
      %v8060 = vpack.c.b16 %v8034, %v8033
      %v8061 = vpack.c.b16 %v8036, %v8035
      %v8062 = vpack.c.b16 %v8038, %v8037
      %v8063 = vpack.c.b16 %v8040, %v8039
      %v8064 = vpack.c.b16 %v8042, %v8041
      %v8065 = vpack.c.b16 %v8044, %v8043
      %v8066 = vpack.c.b16 %v8046, %v8045
      %v8067 = vpack.c.b16 %v8048, %v8047
      %v8068 = vpack.c.b16 %v8050, %v8049
      %v8069 = vpack.c.b16 %v8052, %v8051
      %v8070 = vpack.c.b16 %v8054, %v8053
      %8087 = vst [vmem:[#allocation3 + $0x28] sm:$0xff] %v8055
      %8088 = vst [vmem:[#allocation3 + $0x70] sm:$0xff] %v8056
      %8089 = vst [vmem:[#allocation3 + $0xb8] sm:$0xff] %v8057
      %8090 = vst [vmem:[#allocation3 + $0x100] sm:$0xff] %v8058
      %8091 = vst [vmem:[#allocation3 + $0x148] sm:$0xff] %v8059
      %8092 = vst [vmem:[#allocation3 + $0x190] sm:$0xff] %v8060
      %8093 = vst [vmem:[#allocation3 + $0x1d8] sm:$0xff] %v8061
      %8094 = vst [vmem:[#allocation3 + $0x220] sm:$0xff] %v8062
      %8095 = vst [vmem:[#allocation3 + $0x268] sm:$0xff] %v8063
      %8096 = vst [vmem:[#allocation3 + $0x2b0] sm:$0xff] %v8064
      %8097 = vst [vmem:[#allocation3 + $0x2f8] sm:$0xff] %v8065
      %8098 = vst [vmem:[#allocation3 + $0x340] sm:$0xff] %v8066
      %8099 = vst [vmem:[#allocation3 + $0x388] sm:$0xff] %v8067
      %8100 = vst [vmem:[#allocation3 + $0x3d0] sm:$0xff] %v8068
      %8101 = vst [vmem:[#allocation3 + $0x418] sm:$0xff] %v8069
      %8102 = vst [vmem:[#allocation3 + $0x460] sm:$0xff] %v8070
      %v8103 = vld [vmem:[%s2832] sm:$0xf]
      %v8104 = vld [vmem:[%s2832 + $0x4] sm:$0xf]
      %v8105 = vld [vmem:[%s2832 + $0xc] sm:$0xf]
      %v8106 = vld [vmem:[%s2832 + $0x10] sm:$0xf]
      %v8107 = vld [vmem:[%s2832 + $0x18] sm:$0xf]
      %v8108 = vld [vmem:[%s2832 + $0x1c] sm:$0xf]
      %v8109 = vld [vmem:[%s2832 + $0x24] sm:$0xf]
      %v8110 = vld [vmem:[%s2832 + $0x28] sm:$0xf]
      %v8111 = vld [vmem:[%s2832 + $0x30] sm:$0xf]
      %v8112 = vld [vmem:[%s2832 + $0x34] sm:$0xf]
      %v8113 = vld [vmem:[%s2832 + $0x3c] sm:$0xf]
      %v8114 = vld [vmem:[%s2832 + $0x40] sm:$0xf]
      %v8115 = vld [vmem:[%s2832 + $0x48] sm:$0xf]
      %v8116 = vld [vmem:[%s2832 + $0x4c] sm:$0xf]
      %v8117 = vld [vmem:[%s2832 + $0x54] sm:$0xf]
      %v8118 = vld [vmem:[%s2832 + $0x58] sm:$0xf]
      %v8119 = vld [vmem:[%s2832 + $0x60] sm:$0xf]
      %v8120 = vld [vmem:[%s2832 + $0x64] sm:$0xf]
      %v8121 = vld [vmem:[%s2832 + $0x6c] sm:$0xf]
      %v8122 = vld [vmem:[%s2832 + $0x70] sm:$0xf]
      %v8123 = vld [vmem:[%s2832 + $0x78] sm:$0xf]
      %v8124 = vld [vmem:[%s2832 + $0x7c] sm:$0xf]
      %v8125 = vld [vmem:[%s2832 + $0x84] sm:$0xf]
      %v8126 = vld [vmem:[%s2832 + $0x88] sm:$0xf]
      %v8127 = vld [vmem:[%s2832 + $0x90] sm:$0xf]
      %v8128 = vld [vmem:[%s2832 + $0x94] sm:$0xf]
      %v8129 = vld [vmem:[%s2832 + $0x9c] sm:$0xf]
      %v8130 = vld [vmem:[%s2832 + $0xa0] sm:$0xf]
      %v8131 = vld [vmem:[%s2832 + $0xa8] sm:$0xf]
      %v8132 = vld [vmem:[%s2832 + $0xac] sm:$0xf]
      %v8133 = vld [vmem:[%s2832 + $0xb4] sm:$0xf]
      %v8134 = vld [vmem:[%s2832 + $0xb8] sm:$0xf]
      %v8167 = vunpack.c.l.b16 %v8103
      %v8168 = vunpack.c.l.b16 %v8104
      %v8169 = vunpack.c.l.b16 %v8105
      %v8170 = vunpack.c.l.b16 %v8106
      %v8171 = vunpack.c.l.b16 %v8107
      %v8172 = vunpack.c.l.b16 %v8108
      %v8173 = vunpack.c.l.b16 %v8109
      %v8174 = vunpack.c.l.b16 %v8110
      %v8175 = vunpack.c.l.b16 %v8111
      %v8176 = vunpack.c.l.b16 %v8112
      %v8177 = vunpack.c.l.b16 %v8113
      %v8178 = vunpack.c.l.b16 %v8114
      %v8179 = vunpack.c.l.b16 %v8115
      %v8180 = vunpack.c.l.b16 %v8116
      %v8181 = vunpack.c.l.b16 %v8117
      %v8182 = vunpack.c.l.b16 %v8118
      %v8183 = vunpack.c.l.b16 %v8119
      %v8184 = vunpack.c.l.b16 %v8120
      %v8185 = vunpack.c.l.b16 %v8121
      %v8186 = vunpack.c.l.b16 %v8122
      %v8187 = vunpack.c.l.b16 %v8123
      %v8188 = vunpack.c.l.b16 %v8124
      %v8189 = vunpack.c.l.b16 %v8125
      %v8190 = vunpack.c.l.b16 %v8126
      %v8191 = vunpack.c.l.b16 %v8127
      %v8192 = vunpack.c.l.b16 %v8128
      %v8193 = vunpack.c.l.b16 %v8129
      %v8194 = vunpack.c.l.b16 %v8130
      %v8195 = vunpack.c.l.b16 %v8131
      %v8196 = vunpack.c.l.b16 %v8132
      %v8197 = vunpack.c.l.b16 %v8133
      %v8198 = vunpack.c.l.b16 %v8134
      %v8199 = vpack.c.b16 %v8168, %v8167
      %v8200 = vpack.c.b16 %v8170, %v8169
      %v8201 = vpack.c.b16 %v8172, %v8171
      %v8202 = vpack.c.b16 %v8174, %v8173
      %v8203 = vpack.c.b16 %v8176, %v8175
      %v8204 = vpack.c.b16 %v8178, %v8177
      %v8205 = vpack.c.b16 %v8180, %v8179
      %v8206 = vpack.c.b16 %v8182, %v8181
      %v8207 = vpack.c.b16 %v8184, %v8183
      %v8208 = vpack.c.b16 %v8186, %v8185
      %v8209 = vpack.c.b16 %v8188, %v8187
      %v8210 = vpack.c.b16 %v8190, %v8189
      %v8211 = vpack.c.b16 %v8192, %v8191
      %v8212 = vpack.c.b16 %v8194, %v8193
      %v8213 = vpack.c.b16 %v8196, %v8195
      %v8214 = vpack.c.b16 %v8198, %v8197
      %8231 = vst [vmem:[#allocation3 + $0x30] sm:$0xff] %v8199
      %8232 = vst [vmem:[#allocation3 + $0x78] sm:$0xff] %v8200
      %8233 = vst [vmem:[#allocation3 + $0xc0] sm:$0xff] %v8201
      %8234 = vst [vmem:[#allocation3 + $0x108] sm:$0xff] %v8202
      %8235 = vst [vmem:[#allocation3 + $0x150] sm:$0xff] %v8203
      %8236 = vst [vmem:[#allocation3 + $0x198] sm:$0xff] %v8204
      %8237 = vst [vmem:[#allocation3 + $0x1e0] sm:$0xff] %v8205
      %8238 = vst [vmem:[#allocation3 + $0x228] sm:$0xff] %v8206
      %8239 = vst [vmem:[#allocation3 + $0x270] sm:$0xff] %v8207
      %8240 = vst [vmem:[#allocation3 + $0x2b8] sm:$0xff] %v8208
      %8241 = vst [vmem:[#allocation3 + $0x300] sm:$0xff] %v8209
      %8242 = vst [vmem:[#allocation3 + $0x348] sm:$0xff] %v8210
      %8243 = vst [vmem:[#allocation3 + $0x390] sm:$0xff] %v8211
      %8244 = vst [vmem:[#allocation3 + $0x3d8] sm:$0xff] %v8212
      %8245 = vst [vmem:[#allocation3 + $0x420] sm:$0xff] %v8213
      %8246 = vst [vmem:[#allocation3 + $0x468] sm:$0xff] %v8214
      %v8247 = vld [vmem:[%s2832] sm:$0xf]
      %v8248 = vld [vmem:[%s2832 + $0x4] sm:$0xf]
      %v8249 = vld [vmem:[%s2832 + $0x8] sm:$0x1]
      %v8250 = vld [vmem:[%s2832 + $0xc] sm:$0xf]
      %v8251 = vld [vmem:[%s2832 + $0x10] sm:$0xf]
      %v8252 = vld [vmem:[%s2832 + $0x14] sm:$0x1]
      %v8253 = vld [vmem:[%s2832 + $0x18] sm:$0xf]
      %v8254 = vld [vmem:[%s2832 + $0x1c] sm:$0xf]
      %v8255 = vld [vmem:[%s2832 + $0x20] sm:$0x1]
      %v8256 = vld [vmem:[%s2832 + $0x24] sm:$0xf]
      %v8257 = vld [vmem:[%s2832 + $0x28] sm:$0xf]
      %v8258 = vld [vmem:[%s2832 + $0x2c] sm:$0x1]
      %v8259 = vld [vmem:[%s2832 + $0x30] sm:$0xf]
      %v8260 = vld [vmem:[%s2832 + $0x34] sm:$0xf]
      %v8261 = vld [vmem:[%s2832 + $0x38] sm:$0x1]
      %v8262 = vld [vmem:[%s2832 + $0x3c] sm:$0xf]
      %v8263 = vld [vmem:[%s2832 + $0x40] sm:$0xf]
      %v8264 = vld [vmem:[%s2832 + $0x44] sm:$0x1]
      %v8265 = vld [vmem:[%s2832 + $0x48] sm:$0xf]
      %v8266 = vld [vmem:[%s2832 + $0x4c] sm:$0xf]
      %v8267 = vld [vmem:[%s2832 + $0x50] sm:$0x1]
      %v8268 = vld [vmem:[%s2832 + $0x54] sm:$0xf]
      %v8269 = vld [vmem:[%s2832 + $0x58] sm:$0xf]
      %v8270 = vld [vmem:[%s2832 + $0x5c] sm:$0x1]
      %v8271 = vld [vmem:[%s2832 + $0x60] sm:$0xf]
      %v8272 = vld [vmem:[%s2832 + $0x64] sm:$0xf]
      %v8273 = vld [vmem:[%s2832 + $0x68] sm:$0x1]
      %v8274 = vld [vmem:[%s2832 + $0x6c] sm:$0xf]
      %v8275 = vld [vmem:[%s2832 + $0x70] sm:$0xf]
      %v8276 = vld [vmem:[%s2832 + $0x74] sm:$0x1]
      %v8277 = vld [vmem:[%s2832 + $0x78] sm:$0xf]
      %v8278 = vld [vmem:[%s2832 + $0x7c] sm:$0xf]
      %v8279 = vld [vmem:[%s2832 + $0x80] sm:$0x1]
      %v8280 = vld [vmem:[%s2832 + $0x84] sm:$0xf]
      %v8281 = vld [vmem:[%s2832 + $0x88] sm:$0xf]
      %v8282 = vld [vmem:[%s2832 + $0x8c] sm:$0x1]
      %v8283 = vld [vmem:[%s2832 + $0x90] sm:$0xf]
      %v8284 = vld [vmem:[%s2832 + $0x94] sm:$0xf]
      %v8285 = vld [vmem:[%s2832 + $0x98] sm:$0x1]
      %v8286 = vld [vmem:[%s2832 + $0x9c] sm:$0xf]
      %v8287 = vld [vmem:[%s2832 + $0xa0] sm:$0xf]
      %v8288 = vld [vmem:[%s2832 + $0xa4] sm:$0x1]
      %v8289 = vld [vmem:[%s2832 + $0xa8] sm:$0xf]
      %v8290 = vld [vmem:[%s2832 + $0xac] sm:$0xf]
      %v8291 = vld [vmem:[%s2832 + $0xb0] sm:$0x1]
      %v8292 = vld [vmem:[%s2832 + $0xb4] sm:$0xf]
      %v8293 = vld [vmem:[%s2832 + $0xb8] sm:$0xf]
      %v8294 = vld [vmem:[%s2832 + $0xbc] sm:$0x1]
      %v8296 = vshrl.u32 %v8247, 16
      %v8298 = vrot.slane %v8296, 4
      %v8299 = vshll.u32 %v8247, 16
      %v8301 = vrot.slane %v8299, 5
      %v8302 = vor.u32 %v8298, %v8301
      %v8303 = vrot.slane %v8302, 4
      %v8305 = vshll.u32 %v8248, 16
      %v8307 = vrot.slane %v8305, 5
      %v8308 = vsel %vm1132, %v8303, %v8307
      %v8309 = vshrl.u32 %v8248, 16
      %v8311 = vrot.slane %v8309, 4
      %v8312 = vor.u32 %v8311, %v8307
      %v8313 = vrot.slane %v8312, 4
      %v8315 = vshll.u32 %v8249, 16
      %v8317 = vrot.slane %v8315, 5
      %v8318 = vsel %vm1132, %v8313, %v8317
      %v8320 = vshrl.u32 %v8250, 16
      %v8322 = vrot.slane %v8320, 4
      %v8323 = vshll.u32 %v8250, 16
      %v8325 = vrot.slane %v8323, 5
      %v8326 = vor.u32 %v8322, %v8325
      %v8327 = vrot.slane %v8326, 4
      %v8329 = vshll.u32 %v8251, 16
      %v8331 = vrot.slane %v8329, 5
      %v8332 = vsel %vm1132, %v8327, %v8331
      %v8333 = vshrl.u32 %v8251, 16
      %v8335 = vrot.slane %v8333, 4
      %v8336 = vor.u32 %v8335, %v8331
      %v8337 = vrot.slane %v8336, 4
      %v8339 = vshll.u32 %v8252, 16
      %v8341 = vrot.slane %v8339, 5
      %v8342 = vsel %vm1132, %v8337, %v8341
      %v8344 = vshrl.u32 %v8253, 16
      %v8346 = vrot.slane %v8344, 4
      %v8347 = vshll.u32 %v8253, 16
      %v8349 = vrot.slane %v8347, 5
      %v8350 = vor.u32 %v8346, %v8349
      %v8351 = vrot.slane %v8350, 4
      %v8353 = vshll.u32 %v8254, 16
      %v8355 = vrot.slane %v8353, 5
      %v8356 = vsel %vm1132, %v8351, %v8355
      %v8357 = vshrl.u32 %v8254, 16
      %v8359 = vrot.slane %v8357, 4
      %v8360 = vor.u32 %v8359, %v8355
      %v8361 = vrot.slane %v8360, 4
      %v8363 = vshll.u32 %v8255, 16
      %v8365 = vrot.slane %v8363, 5
      %v8366 = vsel %vm1132, %v8361, %v8365
      %v8368 = vshrl.u32 %v8256, 16
      %v8370 = vrot.slane %v8368, 4
      %v8371 = vshll.u32 %v8256, 16
      %v8373 = vrot.slane %v8371, 5
      %v8374 = vor.u32 %v8370, %v8373
      %v8375 = vrot.slane %v8374, 4
      %v8377 = vshll.u32 %v8257, 16
      %v8379 = vrot.slane %v8377, 5
      %v8380 = vsel %vm1132, %v8375, %v8379
      %v8381 = vshrl.u32 %v8257, 16
      %v8383 = vrot.slane %v8381, 4
      %v8384 = vor.u32 %v8383, %v8379
      %v8385 = vrot.slane %v8384, 4
      %v8387 = vshll.u32 %v8258, 16
      %v8389 = vrot.slane %v8387, 5
      %v8390 = vsel %vm1132, %v8385, %v8389
      %v8392 = vshrl.u32 %v8259, 16
      %v8394 = vrot.slane %v8392, 4
      %v8395 = vshll.u32 %v8259, 16
      %v8397 = vrot.slane %v8395, 5
      %v8398 = vor.u32 %v8394, %v8397
      %v8399 = vrot.slane %v8398, 4
      %v8401 = vshll.u32 %v8260, 16
      %v8403 = vrot.slane %v8401, 5
      %v8404 = vsel %vm1132, %v8399, %v8403
      %v8405 = vshrl.u32 %v8260, 16
      %v8407 = vrot.slane %v8405, 4
      %v8408 = vor.u32 %v8407, %v8403
      %v8409 = vrot.slane %v8408, 4
      %v8411 = vshll.u32 %v8261, 16
      %v8413 = vrot.slane %v8411, 5
      %v8414 = vsel %vm1132, %v8409, %v8413
      %v8416 = vshrl.u32 %v8262, 16
      %v8418 = vrot.slane %v8416, 4
      %v8419 = vshll.u32 %v8262, 16
      %v8421 = vrot.slane %v8419, 5
      %v8422 = vor.u32 %v8418, %v8421
      %v8423 = vrot.slane %v8422, 4
      %v8425 = vshll.u32 %v8263, 16
      %v8427 = vrot.slane %v8425, 5
      %v8428 = vsel %vm1132, %v8423, %v8427
      %v8429 = vshrl.u32 %v8263, 16
      %v8431 = vrot.slane %v8429, 4
      %v8432 = vor.u32 %v8431, %v8427
      %v8433 = vrot.slane %v8432, 4
      %v8435 = vshll.u32 %v8264, 16
      %v8437 = vrot.slane %v8435, 5
      %v8438 = vsel %vm1132, %v8433, %v8437
      %v8440 = vshrl.u32 %v8265, 16
      %v8442 = vrot.slane %v8440, 4
      %v8443 = vshll.u32 %v8265, 16
      %v8445 = vrot.slane %v8443, 5
      %v8446 = vor.u32 %v8442, %v8445
      %v8447 = vrot.slane %v8446, 4
      %v8449 = vshll.u32 %v8266, 16
      %v8451 = vrot.slane %v8449, 5
      %v8452 = vsel %vm1132, %v8447, %v8451
      %v8453 = vshrl.u32 %v8266, 16
      %v8455 = vrot.slane %v8453, 4
      %v8456 = vor.u32 %v8455, %v8451
      %v8457 = vrot.slane %v8456, 4
      %v8459 = vshll.u32 %v8267, 16
      %v8461 = vrot.slane %v8459, 5
      %v8462 = vsel %vm1132, %v8457, %v8461
      %v8464 = vshrl.u32 %v8268, 16
      %v8466 = vrot.slane %v8464, 4
      %v8467 = vshll.u32 %v8268, 16
      %v8469 = vrot.slane %v8467, 5
      %v8470 = vor.u32 %v8466, %v8469
      %v8471 = vrot.slane %v8470, 4
      %v8473 = vshll.u32 %v8269, 16
      %v8475 = vrot.slane %v8473, 5
      %v8476 = vsel %vm1132, %v8471, %v8475
      %v8477 = vshrl.u32 %v8269, 16
      %v8479 = vrot.slane %v8477, 4
      %v8480 = vor.u32 %v8479, %v8475
      %v8481 = vrot.slane %v8480, 4
      %v8483 = vshll.u32 %v8270, 16
      %v8485 = vrot.slane %v8483, 5
      %v8486 = vsel %vm1132, %v8481, %v8485
      %v8488 = vshrl.u32 %v8271, 16
      %v8490 = vrot.slane %v8488, 4
      %v8491 = vshll.u32 %v8271, 16
      %v8493 = vrot.slane %v8491, 5
      %v8494 = vor.u32 %v8490, %v8493
      %v8495 = vrot.slane %v8494, 4
      %v8497 = vshll.u32 %v8272, 16
      %v8499 = vrot.slane %v8497, 5
      %v8500 = vsel %vm1132, %v8495, %v8499
      %v8501 = vshrl.u32 %v8272, 16
      %v8503 = vrot.slane %v8501, 4
      %v8504 = vor.u32 %v8503, %v8499
      %v8505 = vrot.slane %v8504, 4
      %v8507 = vshll.u32 %v8273, 16
      %v8509 = vrot.slane %v8507, 5
      %v8510 = vsel %vm1132, %v8505, %v8509
      %v8512 = vshrl.u32 %v8274, 16
      %v8514 = vrot.slane %v8512, 4
      %v8515 = vshll.u32 %v8274, 16
      %v8517 = vrot.slane %v8515, 5
      %v8518 = vor.u32 %v8514, %v8517
      %v8519 = vrot.slane %v8518, 4
      %v8521 = vshll.u32 %v8275, 16
      %v8523 = vrot.slane %v8521, 5
      %v8524 = vsel %vm1132, %v8519, %v8523
      %v8525 = vshrl.u32 %v8275, 16
      %v8527 = vrot.slane %v8525, 4
      %v8528 = vor.u32 %v8527, %v8523
      %v8529 = vrot.slane %v8528, 4
      %v8531 = vshll.u32 %v8276, 16
      %v8533 = vrot.slane %v8531, 5
      %v8534 = vsel %vm1132, %v8529, %v8533
      %v8536 = vshrl.u32 %v8277, 16
      %v8538 = vrot.slane %v8536, 4
      %v8539 = vshll.u32 %v8277, 16
      %v8541 = vrot.slane %v8539, 5
      %v8542 = vor.u32 %v8538, %v8541
      %v8543 = vrot.slane %v8542, 4
      %v8545 = vshll.u32 %v8278, 16
      %v8547 = vrot.slane %v8545, 5
      %v8548 = vsel %vm1132, %v8543, %v8547
      %v8549 = vshrl.u32 %v8278, 16
      %v8551 = vrot.slane %v8549, 4
      %v8552 = vor.u32 %v8551, %v8547
      %v8553 = vrot.slane %v8552, 4
      %v8555 = vshll.u32 %v8279, 16
      %v8557 = vrot.slane %v8555, 5
      %v8558 = vsel %vm1132, %v8553, %v8557
      %v8560 = vshrl.u32 %v8280, 16
      %v8562 = vrot.slane %v8560, 4
      %v8563 = vshll.u32 %v8280, 16
      %v8565 = vrot.slane %v8563, 5
      %v8566 = vor.u32 %v8562, %v8565
      %v8567 = vrot.slane %v8566, 4
      %v8569 = vshll.u32 %v8281, 16
      %v8571 = vrot.slane %v8569, 5
      %v8572 = vsel %vm1132, %v8567, %v8571
      %v8573 = vshrl.u32 %v8281, 16
      %v8575 = vrot.slane %v8573, 4
      %v8576 = vor.u32 %v8575, %v8571
      %v8577 = vrot.slane %v8576, 4
      %v8579 = vshll.u32 %v8282, 16
      %v8581 = vrot.slane %v8579, 5
      %v8582 = vsel %vm1132, %v8577, %v8581
      %v8584 = vshrl.u32 %v8283, 16
      %v8586 = vrot.slane %v8584, 4
      %v8587 = vshll.u32 %v8283, 16
      %v8589 = vrot.slane %v8587, 5
      %v8590 = vor.u32 %v8586, %v8589
      %v8591 = vrot.slane %v8590, 4
      %v8593 = vshll.u32 %v8284, 16
      %v8595 = vrot.slane %v8593, 5
      %v8596 = vsel %vm1132, %v8591, %v8595
      %v8597 = vshrl.u32 %v8284, 16
      %v8599 = vrot.slane %v8597, 4
      %v8600 = vor.u32 %v8599, %v8595
      %v8601 = vrot.slane %v8600, 4
      %v8603 = vshll.u32 %v8285, 16
      %v8605 = vrot.slane %v8603, 5
      %v8606 = vsel %vm1132, %v8601, %v8605
      %v8608 = vshrl.u32 %v8286, 16
      %v8610 = vrot.slane %v8608, 4
      %v8611 = vshll.u32 %v8286, 16
      %v8613 = vrot.slane %v8611, 5
      %v8614 = vor.u32 %v8610, %v8613
      %v8615 = vrot.slane %v8614, 4
      %v8617 = vshll.u32 %v8287, 16
      %v8619 = vrot.slane %v8617, 5
      %v8620 = vsel %vm1132, %v8615, %v8619
      %v8621 = vshrl.u32 %v8287, 16
      %v8623 = vrot.slane %v8621, 4
      %v8624 = vor.u32 %v8623, %v8619
      %v8625 = vrot.slane %v8624, 4
      %v8627 = vshll.u32 %v8288, 16
      %v8629 = vrot.slane %v8627, 5
      %v8630 = vsel %vm1132, %v8625, %v8629
      %v8632 = vshrl.u32 %v8289, 16
      %v8634 = vrot.slane %v8632, 4
      %v8635 = vshll.u32 %v8289, 16
      %v8637 = vrot.slane %v8635, 5
      %v8638 = vor.u32 %v8634, %v8637
      %v8639 = vrot.slane %v8638, 4
      %v8641 = vshll.u32 %v8290, 16
      %v8643 = vrot.slane %v8641, 5
      %v8644 = vsel %vm1132, %v8639, %v8643
      %v8645 = vshrl.u32 %v8290, 16
      %v8647 = vrot.slane %v8645, 4
      %v8648 = vor.u32 %v8647, %v8643
      %v8649 = vrot.slane %v8648, 4
      %v8651 = vshll.u32 %v8291, 16
      %v8653 = vrot.slane %v8651, 5
      %v8654 = vsel %vm1132, %v8649, %v8653
      %v8656 = vshrl.u32 %v8292, 16
      %v8658 = vrot.slane %v8656, 4
      %v8659 = vshll.u32 %v8292, 16
      %v8661 = vrot.slane %v8659, 5
      %v8662 = vor.u32 %v8658, %v8661
      %v8663 = vrot.slane %v8662, 4
      %v8665 = vshll.u32 %v8293, 16
      %v8667 = vrot.slane %v8665, 5
      %v8668 = vsel %vm1132, %v8663, %v8667
      %v8669 = vshrl.u32 %v8293, 16
      %v8671 = vrot.slane %v8669, 4
      %v8672 = vor.u32 %v8671, %v8667
      %v8673 = vrot.slane %v8672, 4
      %v8675 = vshll.u32 %v8294, 16
      %v8677 = vrot.slane %v8675, 5
      %v8678 = vsel %vm1132, %v8673, %v8677
      %v8679 = vunpack.c.l.b16 %v8308
      %v8680 = vunpack.c.l.b16 %v8318
      %v8681 = vunpack.c.l.b16 %v8332
      %v8682 = vunpack.c.l.b16 %v8342
      %v8683 = vunpack.c.l.b16 %v8356
      %v8684 = vunpack.c.l.b16 %v8366
      %v8685 = vunpack.c.l.b16 %v8380
      %v8686 = vunpack.c.l.b16 %v8390
      %v8687 = vunpack.c.l.b16 %v8404
      %v8688 = vunpack.c.l.b16 %v8414
      %v8689 = vunpack.c.l.b16 %v8428
      %v8690 = vunpack.c.l.b16 %v8438
      %v8691 = vunpack.c.l.b16 %v8452
      %v8692 = vunpack.c.l.b16 %v8462
      %v8693 = vunpack.c.l.b16 %v8476
      %v8694 = vunpack.c.l.b16 %v8486
      %v8695 = vunpack.c.l.b16 %v8500
      %v8696 = vunpack.c.l.b16 %v8510
      %v8697 = vunpack.c.l.b16 %v8524
      %v8698 = vunpack.c.l.b16 %v8534
      %v8699 = vunpack.c.l.b16 %v8548
      %v8700 = vunpack.c.l.b16 %v8558
      %v8701 = vunpack.c.l.b16 %v8572
      %v8702 = vunpack.c.l.b16 %v8582
      %v8703 = vunpack.c.l.b16 %v8596
      %v8704 = vunpack.c.l.b16 %v8606
      %v8705 = vunpack.c.l.b16 %v8620
      %v8706 = vunpack.c.l.b16 %v8630
      %v8707 = vunpack.c.l.b16 %v8644
      %v8708 = vunpack.c.l.b16 %v8654
      %v8709 = vunpack.c.l.b16 %v8668
      %v8710 = vunpack.c.l.b16 %v8678
      %v8711 = vpack.c.b16 %v8680, %v8679
      %v8712 = vpack.c.b16 %v8682, %v8681
      %v8713 = vpack.c.b16 %v8684, %v8683
      %v8714 = vpack.c.b16 %v8686, %v8685
      %v8715 = vpack.c.b16 %v8688, %v8687
      %v8716 = vpack.c.b16 %v8690, %v8689
      %v8717 = vpack.c.b16 %v8692, %v8691
      %v8718 = vpack.c.b16 %v8694, %v8693
      %v8719 = vpack.c.b16 %v8696, %v8695
      %v8720 = vpack.c.b16 %v8698, %v8697
      %v8721 = vpack.c.b16 %v8700, %v8699
      %v8722 = vpack.c.b16 %v8702, %v8701
      %v8723 = vpack.c.b16 %v8704, %v8703
      %v8724 = vpack.c.b16 %v8706, %v8705
      %v8725 = vpack.c.b16 %v8708, %v8707
      %v8726 = vpack.c.b16 %v8710, %v8709
      %8743 = vst [vmem:[#allocation3 + $0x38] sm:$0xff] %v8711
      %8744 = vst [vmem:[#allocation3 + $0x80] sm:$0xff] %v8712
      %8745 = vst [vmem:[#allocation3 + $0xc8] sm:$0xff] %v8713
      %8746 = vst [vmem:[#allocation3 + $0x110] sm:$0xff] %v8714
      %8747 = vst [vmem:[#allocation3 + $0x158] sm:$0xff] %v8715
      %8748 = vst [vmem:[#allocation3 + $0x1a0] sm:$0xff] %v8716
      %8749 = vst [vmem:[#allocation3 + $0x1e8] sm:$0xff] %v8717
      %8750 = vst [vmem:[#allocation3 + $0x230] sm:$0xff] %v8718
      %8751 = vst [vmem:[#allocation3 + $0x278] sm:$0xff] %v8719
      %8752 = vst [vmem:[#allocation3 + $0x2c0] sm:$0xff] %v8720
      %8753 = vst [vmem:[#allocation3 + $0x308] sm:$0xff] %v8721
      %8754 = vst [vmem:[#allocation3 + $0x350] sm:$0xff] %v8722
      %8755 = vst [vmem:[#allocation3 + $0x398] sm:$0xff] %v8723
      %8756 = vst [vmem:[#allocation3 + $0x3e0] sm:$0xff] %v8724
      %8757 = vst [vmem:[#allocation3 + $0x428] sm:$0xff] %v8725
      %8758 = vst [vmem:[#allocation3 + $0x470] sm:$0xff] %v8726
      %v8759 = vld [vmem:[%s2832] sm:$0xe]
      %v8760 = vld [vmem:[%s2832 + $0x4] sm:$0xf]
      %v8761 = vld [vmem:[%s2832 + $0x8] sm:$0x1]
      %v8762 = vld [vmem:[%s2832 + $0xc] sm:$0xe]
      %v8763 = vld [vmem:[%s2832 + $0x10] sm:$0xf]
      %v8764 = vld [vmem:[%s2832 + $0x14] sm:$0x1]
      %v8765 = vld [vmem:[%s2832 + $0x18] sm:$0xe]
      %v8766 = vld [vmem:[%s2832 + $0x1c] sm:$0xf]
      %v8767 = vld [vmem:[%s2832 + $0x20] sm:$0x1]
      %v8768 = vld [vmem:[%s2832 + $0x24] sm:$0xe]
      %v8769 = vld [vmem:[%s2832 + $0x28] sm:$0xf]
      %v8770 = vld [vmem:[%s2832 + $0x2c] sm:$0x1]
      %v8771 = vld [vmem:[%s2832 + $0x30] sm:$0xe]
      %v8772 = vld [vmem:[%s2832 + $0x34] sm:$0xf]
      %v8773 = vld [vmem:[%s2832 + $0x38] sm:$0x1]
      %v8774 = vld [vmem:[%s2832 + $0x3c] sm:$0xe]
      %v8775 = vld [vmem:[%s2832 + $0x40] sm:$0xf]
      %v8776 = vld [vmem:[%s2832 + $0x44] sm:$0x1]
      %v8777 = vld [vmem:[%s2832 + $0x48] sm:$0xe]
      %v8778 = vld [vmem:[%s2832 + $0x4c] sm:$0xf]
      %v8779 = vld [vmem:[%s2832 + $0x50] sm:$0x1]
      %v8780 = vld [vmem:[%s2832 + $0x54] sm:$0xe]
      %v8781 = vld [vmem:[%s2832 + $0x58] sm:$0xf]
      %v8782 = vld [vmem:[%s2832 + $0x5c] sm:$0x1]
      %v8783 = vld [vmem:[%s2832 + $0x60] sm:$0xe]
      %v8784 = vld [vmem:[%s2832 + $0x64] sm:$0xf]
      %v8785 = vld [vmem:[%s2832 + $0x68] sm:$0x1]
      %v8786 = vld [vmem:[%s2832 + $0x6c] sm:$0xe]
      %v8787 = vld [vmem:[%s2832 + $0x70] sm:$0xf]
      %v8788 = vld [vmem:[%s2832 + $0x74] sm:$0x1]
      %v8789 = vld [vmem:[%s2832 + $0x78] sm:$0xe]
      %v8790 = vld [vmem:[%s2832 + $0x7c] sm:$0xf]
      %v8791 = vld [vmem:[%s2832 + $0x80] sm:$0x1]
      %v8792 = vld [vmem:[%s2832 + $0x84] sm:$0xe]
      %v8793 = vld [vmem:[%s2832 + $0x88] sm:$0xf]
      %v8794 = vld [vmem:[%s2832 + $0x8c] sm:$0x1]
      %v8795 = vld [vmem:[%s2832 + $0x90] sm:$0xe]
      %v8796 = vld [vmem:[%s2832 + $0x94] sm:$0xf]
      %v8797 = vld [vmem:[%s2832 + $0x98] sm:$0x1]
      %v8798 = vld [vmem:[%s2832 + $0x9c] sm:$0xe]
      %v8799 = vld [vmem:[%s2832 + $0xa0] sm:$0xf]
      %v8800 = vld [vmem:[%s2832 + $0xa4] sm:$0x1]
      %v8801 = vld [vmem:[%s2832 + $0xa8] sm:$0xe]
      %v8802 = vld [vmem:[%s2832 + $0xac] sm:$0xf]
      %v8803 = vld [vmem:[%s2832 + $0xb0] sm:$0x1]
      %v8804 = vld [vmem:[%s2832 + $0xb4] sm:$0xe]
      %v8805 = vld [vmem:[%s2832 + $0xb8] sm:$0xf]
      %v8806 = vld [vmem:[%s2832 + $0xbc] sm:$0x1]
      %v8855 = vrot.slane %v8759, 5
      %v8856 = vrot.slane %v8855, 4
      %v8857 = vrot.slane %v8760, 5
      %v8858 = vsel %vm1695, %v8856, %v8857
      %v8859 = vrot.slane %v8857, 4
      %v8860 = vrot.slane %v8761, 5
      %v8861 = vsel %vm1695, %v8859, %v8860
      %v8862 = vrot.slane %v8762, 5
      %v8863 = vrot.slane %v8862, 4
      %v8864 = vrot.slane %v8763, 5
      %v8865 = vsel %vm1695, %v8863, %v8864
      %v8866 = vrot.slane %v8864, 4
      %v8867 = vrot.slane %v8764, 5
      %v8868 = vsel %vm1695, %v8866, %v8867
      %v8869 = vrot.slane %v8765, 5
      %v8870 = vrot.slane %v8869, 4
      %v8871 = vrot.slane %v8766, 5
      %v8872 = vsel %vm1695, %v8870, %v8871
      %v8873 = vrot.slane %v8871, 4
      %v8874 = vrot.slane %v8767, 5
      %v8875 = vsel %vm1695, %v8873, %v8874
      %v8876 = vrot.slane %v8768, 5
      %v8877 = vrot.slane %v8876, 4
      %v8878 = vrot.slane %v8769, 5
      %v8879 = vsel %vm1695, %v8877, %v8878
      %v8880 = vrot.slane %v8878, 4
      %v8881 = vrot.slane %v8770, 5
      %v8882 = vsel %vm1695, %v8880, %v8881
      %v8883 = vrot.slane %v8771, 5
      %v8884 = vrot.slane %v8883, 4
      %v8885 = vrot.slane %v8772, 5
      %v8886 = vsel %vm1695, %v8884, %v8885
      %v8887 = vrot.slane %v8885, 4
      %v8888 = vrot.slane %v8773, 5
      %v8889 = vsel %vm1695, %v8887, %v8888
      %v8890 = vrot.slane %v8774, 5
      %v8891 = vrot.slane %v8890, 4
      %v8892 = vrot.slane %v8775, 5
      %v8893 = vsel %vm1695, %v8891, %v8892
      %v8894 = vrot.slane %v8892, 4
      %v8895 = vrot.slane %v8776, 5
      %v8896 = vsel %vm1695, %v8894, %v8895
      %v8897 = vrot.slane %v8777, 5
      %v8898 = vrot.slane %v8897, 4
      %v8899 = vrot.slane %v8778, 5
      %v8900 = vsel %vm1695, %v8898, %v8899
      %v8901 = vrot.slane %v8899, 4
      %v8902 = vrot.slane %v8779, 5
      %v8903 = vsel %vm1695, %v8901, %v8902
      %v8904 = vrot.slane %v8780, 5
      %v8905 = vrot.slane %v8904, 4
      %v8906 = vrot.slane %v8781, 5
      %v8907 = vsel %vm1695, %v8905, %v8906
      %v8908 = vrot.slane %v8906, 4
      %v8909 = vrot.slane %v8782, 5
      %v8910 = vsel %vm1695, %v8908, %v8909
      %v8911 = vrot.slane %v8783, 5
      %v8912 = vrot.slane %v8911, 4
      %v8913 = vrot.slane %v8784, 5
      %v8914 = vsel %vm1695, %v8912, %v8913
      %v8915 = vrot.slane %v8913, 4
      %v8916 = vrot.slane %v8785, 5
      %v8917 = vsel %vm1695, %v8915, %v8916
      %v8918 = vrot.slane %v8786, 5
      %v8919 = vrot.slane %v8918, 4
      %v8920 = vrot.slane %v8787, 5
      %v8921 = vsel %vm1695, %v8919, %v8920
      %v8922 = vrot.slane %v8920, 4
      %v8923 = vrot.slane %v8788, 5
      %v8924 = vsel %vm1695, %v8922, %v8923
      %v8925 = vrot.slane %v8789, 5
      %v8926 = vrot.slane %v8925, 4
      %v8927 = vrot.slane %v8790, 5
      %v8928 = vsel %vm1695, %v8926, %v8927
      %v8929 = vrot.slane %v8927, 4
      %v8930 = vrot.slane %v8791, 5
      %v8931 = vsel %vm1695, %v8929, %v8930
      %v8932 = vrot.slane %v8792, 5
      %v8933 = vrot.slane %v8932, 4
      %v8934 = vrot.slane %v8793, 5
      %v8935 = vsel %vm1695, %v8933, %v8934
      %v8936 = vrot.slane %v8934, 4
      %v8937 = vrot.slane %v8794, 5
      %v8938 = vsel %vm1695, %v8936, %v8937
      %v8939 = vrot.slane %v8795, 5
      %v8940 = vrot.slane %v8939, 4
      %v8941 = vrot.slane %v8796, 5
      %v8942 = vsel %vm1695, %v8940, %v8941
      %v8943 = vrot.slane %v8941, 4
      %v8944 = vrot.slane %v8797, 5
      %v8945 = vsel %vm1695, %v8943, %v8944
      %v8946 = vrot.slane %v8798, 5
      %v8947 = vrot.slane %v8946, 4
      %v8948 = vrot.slane %v8799, 5
      %v8949 = vsel %vm1695, %v8947, %v8948
      %v8950 = vrot.slane %v8948, 4
      %v8951 = vrot.slane %v8800, 5
      %v8952 = vsel %vm1695, %v8950, %v8951
      %v8953 = vrot.slane %v8801, 5
      %v8954 = vrot.slane %v8953, 4
      %v8955 = vrot.slane %v8802, 5
      %v8956 = vsel %vm1695, %v8954, %v8955
      %v8957 = vrot.slane %v8955, 4
      %v8958 = vrot.slane %v8803, 5
      %v8959 = vsel %vm1695, %v8957, %v8958
      %v8960 = vrot.slane %v8804, 5
      %v8961 = vrot.slane %v8960, 4
      %v8962 = vrot.slane %v8805, 5
      %v8963 = vsel %vm1695, %v8961, %v8962
      %v8964 = vrot.slane %v8962, 4
      %v8965 = vrot.slane %v8806, 5
      %v8966 = vsel %vm1695, %v8964, %v8965
      %v8967 = vunpack.c.l.b16 %v8858
      %v8968 = vunpack.c.l.b16 %v8861
      %v8969 = vunpack.c.l.b16 %v8865
      %v8970 = vunpack.c.l.b16 %v8868
      %v8971 = vunpack.c.l.b16 %v8872
      %v8972 = vunpack.c.l.b16 %v8875
      %v8973 = vunpack.c.l.b16 %v8879
      %v8974 = vunpack.c.l.b16 %v8882
      %v8975 = vunpack.c.l.b16 %v8886
      %v8976 = vunpack.c.l.b16 %v8889
      %v8977 = vunpack.c.l.b16 %v8893
      %v8978 = vunpack.c.l.b16 %v8896
      %v8979 = vunpack.c.l.b16 %v8900
      %v8980 = vunpack.c.l.b16 %v8903
      %v8981 = vunpack.c.l.b16 %v8907
      %v8982 = vunpack.c.l.b16 %v8910
      %v8983 = vunpack.c.l.b16 %v8914
      %v8984 = vunpack.c.l.b16 %v8917
      %v8985 = vunpack.c.l.b16 %v8921
      %v8986 = vunpack.c.l.b16 %v8924
      %v8987 = vunpack.c.l.b16 %v8928
      %v8988 = vunpack.c.l.b16 %v8931
      %v8989 = vunpack.c.l.b16 %v8935
      %v8990 = vunpack.c.l.b16 %v8938
      %v8991 = vunpack.c.l.b16 %v8942
      %v8992 = vunpack.c.l.b16 %v8945
      %v8993 = vunpack.c.l.b16 %v8949
      %v8994 = vunpack.c.l.b16 %v8952
      %v8995 = vunpack.c.l.b16 %v8956
      %v8996 = vunpack.c.l.b16 %v8959
      %v8997 = vunpack.c.l.b16 %v8963
      %v8998 = vunpack.c.l.b16 %v8966
      %v8999 = vpack.c.b16 %v8968, %v8967
      %v9000 = vpack.c.b16 %v8970, %v8969
      %v9001 = vpack.c.b16 %v8972, %v8971
      %v9002 = vpack.c.b16 %v8974, %v8973
      %v9003 = vpack.c.b16 %v8976, %v8975
      %v9004 = vpack.c.b16 %v8978, %v8977
      %v9005 = vpack.c.b16 %v8980, %v8979
      %v9006 = vpack.c.b16 %v8982, %v8981
      %v9007 = vpack.c.b16 %v8984, %v8983
      %v9008 = vpack.c.b16 %v8986, %v8985
      %v9009 = vpack.c.b16 %v8988, %v8987
      %v9010 = vpack.c.b16 %v8990, %v8989
      %v9011 = vpack.c.b16 %v8992, %v8991
      %v9012 = vpack.c.b16 %v8994, %v8993
      %v9013 = vpack.c.b16 %v8996, %v8995
      %v9014 = vpack.c.b16 %v8998, %v8997
      %9031 = vst [vmem:[#allocation3 + $0x40] sm:$0xff] %v8999
      %9032 = vst [vmem:[#allocation3 + $0x88] sm:$0xff] %v9000
      %9033 = vst [vmem:[#allocation3 + $0xd0] sm:$0xff] %v9001
      %9034 = vst [vmem:[#allocation3 + $0x118] sm:$0xff] %v9002
      %9035 = vst [vmem:[#allocation3 + $0x160] sm:$0xff] %v9003
      %9036 = vst [vmem:[#allocation3 + $0x1a8] sm:$0xff] %v9004
      %9037 = vst [vmem:[#allocation3 + $0x1f0] sm:$0xff] %v9005
      %9038 = vst [vmem:[#allocation3 + $0x238] sm:$0xff] %v9006
      %9039 = vst [vmem:[#allocation3 + $0x280] sm:$0xff] %v9007
      %9040 = vst [vmem:[#allocation3 + $0x2c8] sm:$0xff] %v9008
      %9041 = vst [vmem:[#allocation3 + $0x310] sm:$0xff] %v9009
      %9042 = vst [vmem:[#allocation3 + $0x358] sm:$0xff] %v9010
      %9043 = vst [vmem:[#allocation3 + $0x3a0] sm:$0xff] %v9011
      %9044 = vst [vmem:[#allocation3 + $0x3e8] sm:$0xff] %v9012
      %9045 = vst [vmem:[#allocation3 + $0x430] sm:$0xff] %v9013
      %9046 = vst [vmem:[#allocation3 + $0x478] sm:$0xff] %v9014
      %v9047 = vld [vmem:[#allocation3] sm:$0xff]
      %v9048 = vld [vmem:[#allocation3 + $0x8] sm:$0xff]
      %v9049 = vld [vmem:[#allocation3 + $0x10] sm:$0xff]
      %v9050 = vld [vmem:[#allocation3 + $0x18] sm:$0xff]
      %v9051 = vld [vmem:[#allocation3 + $0x20] sm:$0xff]
      %v9052 = vld [vmem:[#allocation3 + $0x28] sm:$0xff]
      %v9053 = vld [vmem:[#allocation3 + $0x30] sm:$0xff]
      %v9054 = vld [vmem:[#allocation3 + $0x38] sm:$0xff]
      %v9055 = vld [vmem:[#allocation3 + $0x40] sm:$0xff]
      %v9056 = vld [vmem:[#allocation3 + $0x48] sm:$0xff]
      %v9057 = vld [vmem:[#allocation3 + $0x50] sm:$0xff]
      %v9058 = vld [vmem:[#allocation3 + $0x58] sm:$0xff]
      %v9059 = vld [vmem:[#allocation3 + $0x60] sm:$0xff]
      %v9060 = vld [vmem:[#allocation3 + $0x68] sm:$0xff]
      %v9061 = vld [vmem:[#allocation3 + $0x70] sm:$0xff]
      %v9062 = vld [vmem:[#allocation3 + $0x78] sm:$0xff]
      %v9063 = vld [vmem:[#allocation3 + $0x80] sm:$0xff]
      %v9064 = vld [vmem:[#allocation3 + $0x88] sm:$0xff]
      %v9065 = vld [vmem:[#allocation3 + $0x90] sm:$0xff]
      %v9066 = vld [vmem:[#allocation3 + $0x98] sm:$0xff]
      %v9067 = vld [vmem:[#allocation3 + $0xa0] sm:$0xff]
      %v9068 = vld [vmem:[#allocation3 + $0xa8] sm:$0xff]
      %v9069 = vld [vmem:[#allocation3 + $0xb0] sm:$0xff]
      %v9070 = vld [vmem:[#allocation3 + $0xb8] sm:$0xff]
      %v9071 = vld [vmem:[#allocation3 + $0xc0] sm:$0xff]
      %v9072 = vld [vmem:[#allocation3 + $0xc8] sm:$0xff]
      %v9073 = vld [vmem:[#allocation3 + $0xd0] sm:$0xff]
      %v9074 = vld [vmem:[#allocation3 + $0xd8] sm:$0xff]
      %v9075 = vld [vmem:[#allocation3 + $0xe0] sm:$0xff]
      %v9076 = vld [vmem:[#allocation3 + $0xe8] sm:$0xff]
      %v9077 = vld [vmem:[#allocation3 + $0xf0] sm:$0xff]
      %v9078 = vld [vmem:[#allocation3 + $0xf8] sm:$0xff]
      %v9079 = vld [vmem:[#allocation3 + $0x100] sm:$0xff]
      %v9080 = vld [vmem:[#allocation3 + $0x108] sm:$0xff]
      %v9081 = vld [vmem:[#allocation3 + $0x110] sm:$0xff]
      %v9082 = vld [vmem:[#allocation3 + $0x118] sm:$0xff]
      %v9083 = vld [vmem:[#allocation3 + $0x120] sm:$0xff]
      %v9084 = vld [vmem:[#allocation3 + $0x128] sm:$0xff]
      %v9085 = vld [vmem:[#allocation3 + $0x130] sm:$0xff]
      %v9086 = vld [vmem:[#allocation3 + $0x138] sm:$0xff]
      %v9087 = vld [vmem:[#allocation3 + $0x140] sm:$0xff]
      %v9088 = vld [vmem:[#allocation3 + $0x148] sm:$0xff]
      %v9089 = vld [vmem:[#allocation3 + $0x150] sm:$0xff]
      %v9090 = vld [vmem:[#allocation3 + $0x158] sm:$0xff]
      %v9091 = vld [vmem:[#allocation3 + $0x160] sm:$0xff]
      %v9092 = vld [vmem:[#allocation3 + $0x168] sm:$0xff]
      %v9093 = vld [vmem:[#allocation3 + $0x170] sm:$0xff]
      %v9094 = vld [vmem:[#allocation3 + $0x178] sm:$0xff]
      %v9095 = vld [vmem:[#allocation3 + $0x180] sm:$0xff]
      %v9096 = vld [vmem:[#allocation3 + $0x188] sm:$0xff]
      %v9097 = vld [vmem:[#allocation3 + $0x190] sm:$0xff]
      %v9098 = vld [vmem:[#allocation3 + $0x198] sm:$0xff]
      %v9099 = vld [vmem:[#allocation3 + $0x1a0] sm:$0xff]
      %v9100 = vld [vmem:[#allocation3 + $0x1a8] sm:$0xff]
      %v9101 = vld [vmem:[#allocation3 + $0x1b0] sm:$0xff]
      %v9102 = vld [vmem:[#allocation3 + $0x1b8] sm:$0xff]
      %v9103 = vld [vmem:[#allocation3 + $0x1c0] sm:$0xff]
      %v9104 = vld [vmem:[#allocation3 + $0x1c8] sm:$0xff]
      %v9105 = vld [vmem:[#allocation3 + $0x1d0] sm:$0xff]
      %v9106 = vld [vmem:[#allocation3 + $0x1d8] sm:$0xff]
      %v9107 = vld [vmem:[#allocation3 + $0x1e0] sm:$0xff]
      %v9108 = vld [vmem:[#allocation3 + $0x1e8] sm:$0xff]
      %v9109 = vld [vmem:[#allocation3 + $0x1f0] sm:$0xff]
      %v9110 = vld [vmem:[#allocation3 + $0x1f8] sm:$0xff]
      %v9111 = vld [vmem:[#allocation3 + $0x200] sm:$0xff]
      %v9112 = vld [vmem:[#allocation3 + $0x208] sm:$0xff]
      %v9113 = vld [vmem:[#allocation3 + $0x210] sm:$0xff]
      %v9114 = vld [vmem:[#allocation3 + $0x218] sm:$0xff]
      %v9115 = vld [vmem:[#allocation3 + $0x220] sm:$0xff]
      %v9116 = vld [vmem:[#allocation3 + $0x228] sm:$0xff]
      %v9117 = vld [vmem:[#allocation3 + $0x230] sm:$0xff]
      %v9118 = vld [vmem:[#allocation3 + $0x238] sm:$0xff]
      %v9119 = vld [vmem:[#allocation3 + $0x240] sm:$0xff]
      %v9120 = vld [vmem:[#allocation3 + $0x248] sm:$0xff]
      %v9121 = vld [vmem:[#allocation3 + $0x250] sm:$0xff]
      %v9122 = vld [vmem:[#allocation3 + $0x258] sm:$0xff]
      %v9123 = vld [vmem:[#allocation3 + $0x260] sm:$0xff]
      %v9124 = vld [vmem:[#allocation3 + $0x268] sm:$0xff]
      %v9125 = vld [vmem:[#allocation3 + $0x270] sm:$0xff]
      %v9126 = vld [vmem:[#allocation3 + $0x278] sm:$0xff]
      %v9127 = vld [vmem:[#allocation3 + $0x280] sm:$0xff]
      %v9128 = vld [vmem:[#allocation3 + $0x288] sm:$0xff]
      %v9129 = vld [vmem:[#allocation3 + $0x290] sm:$0xff]
      %v9130 = vld [vmem:[#allocation3 + $0x298] sm:$0xff]
      %v9131 = vld [vmem:[#allocation3 + $0x2a0] sm:$0xff]
      %v9132 = vld [vmem:[#allocation3 + $0x2a8] sm:$0xff]
      %v9133 = vld [vmem:[#allocation3 + $0x2b0] sm:$0xff]
      %v9134 = vld [vmem:[#allocation3 + $0x2b8] sm:$0xff]
      %v9135 = vld [vmem:[#allocation3 + $0x2c0] sm:$0xff]
      %v9136 = vld [vmem:[#allocation3 + $0x2c8] sm:$0xff]
      %v9137 = vld [vmem:[#allocation3 + $0x2d0] sm:$0xff]
      %v9138 = vld [vmem:[#allocation3 + $0x2d8] sm:$0xff]
      %v9139 = vld [vmem:[#allocation3 + $0x2e0] sm:$0xff]
      %v9140 = vld [vmem:[#allocation3 + $0x2e8] sm:$0xff]
      %v9141 = vld [vmem:[#allocation3 + $0x2f0] sm:$0xff]
      %v9142 = vld [vmem:[#allocation3 + $0x2f8] sm:$0xff]
      %v9143 = vld [vmem:[#allocation3 + $0x300] sm:$0xff]
      %v9144 = vld [vmem:[#allocation3 + $0x308] sm:$0xff]
      %v9145 = vld [vmem:[#allocation3 + $0x310] sm:$0xff]
      %v9146 = vld [vmem:[#allocation3 + $0x318] sm:$0xff]
      %v9147 = vld [vmem:[#allocation3 + $0x320] sm:$0xff]
      %v9148 = vld [vmem:[#allocation3 + $0x328] sm:$0xff]
      %v9149 = vld [vmem:[#allocation3 + $0x330] sm:$0xff]
      %v9150 = vld [vmem:[#allocation3 + $0x338] sm:$0xff]
      %v9151 = vld [vmem:[#allocation3 + $0x340] sm:$0xff]
      %v9152 = vld [vmem:[#allocation3 + $0x348] sm:$0xff]
      %v9153 = vld [vmem:[#allocation3 + $0x350] sm:$0xff]
      %v9154 = vld [vmem:[#allocation3 + $0x358] sm:$0xff]
      %v9155 = vld [vmem:[#allocation3 + $0x360] sm:$0xff]
      %v9156 = vld [vmem:[#allocation3 + $0x368] sm:$0xff]
      %v9157 = vld [vmem:[#allocation3 + $0x370] sm:$0xff]
      %v9158 = vld [vmem:[#allocation3 + $0x378] sm:$0xff]
      %v9159 = vld [vmem:[#allocation3 + $0x380] sm:$0xff]
      %v9160 = vld [vmem:[#allocation3 + $0x388] sm:$0xff]
      %v9161 = vld [vmem:[#allocation3 + $0x390] sm:$0xff]
      %v9162 = vld [vmem:[#allocation3 + $0x398] sm:$0xff]
      %v9163 = vld [vmem:[#allocation3 + $0x3a0] sm:$0xff]
      %v9164 = vld [vmem:[#allocation3 + $0x3a8] sm:$0xff]
      %v9165 = vld [vmem:[#allocation3 + $0x3b0] sm:$0xff]
      %v9166 = vld [vmem:[#allocation3 + $0x3b8] sm:$0xff]
      %v9167 = vld [vmem:[#allocation3 + $0x3c0] sm:$0xff]
      %v9168 = vld [vmem:[#allocation3 + $0x3c8] sm:$0xff]
      %v9169 = vld [vmem:[#allocation3 + $0x3d0] sm:$0xff]
      %v9170 = vld [vmem:[#allocation3 + $0x3d8] sm:$0xff]
      %v9171 = vld [vmem:[#allocation3 + $0x3e0] sm:$0xff]
      %v9172 = vld [vmem:[#allocation3 + $0x3e8] sm:$0xff]
      %v9173 = vld [vmem:[#allocation3 + $0x3f0] sm:$0xff]
      %v9174 = vld [vmem:[#allocation3 + $0x3f8] sm:$0xff]
      %v9175 = vld [vmem:[#allocation3 + $0x400] sm:$0xff]
      %v9176 = vld [vmem:[#allocation3 + $0x408] sm:$0xff]
      %v9177 = vld [vmem:[#allocation3 + $0x410] sm:$0xff]
      %v9178 = vld [vmem:[#allocation3 + $0x418] sm:$0xff]
      %v9179 = vld [vmem:[#allocation3 + $0x420] sm:$0xff]
      %v9180 = vld [vmem:[#allocation3 + $0x428] sm:$0xff]
      %v9181 = vld [vmem:[#allocation3 + $0x430] sm:$0xff]
      %v9182 = vld [vmem:[#allocation3 + $0x438] sm:$0xff]
      %v9183 = vld [vmem:[#allocation3 + $0x440] sm:$0xff]
      %v9184 = vld [vmem:[#allocation3 + $0x448] sm:$0xff]
      %v9185 = vld [vmem:[#allocation3 + $0x450] sm:$0xff]
      %v9186 = vld [vmem:[#allocation3 + $0x458] sm:$0xff]
      %v9187 = vld [vmem:[#allocation3 + $0x460] sm:$0xff]
      %v9188 = vld [vmem:[#allocation3 + $0x468] sm:$0xff]
      %v9189 = vld [vmem:[#allocation3 + $0x470] sm:$0xff]
      %v9190 = vld [vmem:[#allocation3 + $0x478] sm:$0xff]
      %v9191 = vld [vmem:[%s5] sm:$0xf]
      %v9192 = vld [vmem:[%s5 + $0x4] sm:$0xf]
      %v9193 = vld [vmem:[%s5 + $0x8] sm:$0xf]
      %v9194 = vld [vmem:[%s5 + $0xc] sm:$0xf]
      %v9195 = vld [vmem:[%s5 + $0x10] sm:$0xf]
      %v9196 = vld [vmem:[%s5 + $0x14] sm:$0xf]
      %v9197 = vld [vmem:[%s5 + $0x18] sm:$0xf]
      %v9198 = vld [vmem:[%s5 + $0x1c] sm:$0xf]
      %v9199 = vld [vmem:[%s5 + $0x20] sm:$0xf]
      %v9200 = vld [vmem:[%s5 + $0x24] sm:$0xf]
      %v9201 = vld [vmem:[%s5 + $0x28] sm:$0xf]
      %v9202 = vld [vmem:[%s5 + $0x2c] sm:$0xf]
      %v9203 = vld [vmem:[%s5 + $0x30] sm:$0xf]
      %v9204 = vld [vmem:[%s5 + $0x34] sm:$0xf]
      %v9205 = vld [vmem:[%s5 + $0x38] sm:$0xf]
      %v9206 = vld [vmem:[%s5 + $0x3c] sm:$0xf]
      %v9207 = vld [vmem:[%s5 + $0x40] sm:$0xf]
      %v9208 = vld [vmem:[%s5 + $0x44] sm:$0xf]
      %v9209 = vld [vmem:[%s5 + $0x48] sm:$0xf]
      %v9210 = vld [vmem:[%s5 + $0x4c] sm:$0xf]
      %v9211 = vld [vmem:[%s5 + $0x50] sm:$0xf]
      %v9212 = vld [vmem:[%s5 + $0x54] sm:$0xf]
      %v9213 = vld [vmem:[%s5 + $0x58] sm:$0xf]
      %v9214 = vld [vmem:[%s5 + $0x5c] sm:$0xf]
      %v9215 = vld [vmem:[%s5 + $0x60] sm:$0xf]
      %v9216 = vld [vmem:[%s5 + $0x64] sm:$0xf]
      %v9217 = vld [vmem:[%s5 + $0x68] sm:$0xf]
      %v9218 = vld [vmem:[%s5 + $0x6c] sm:$0xf]
      %v9219 = vld [vmem:[%s5 + $0x70] sm:$0xf]
      %v9220 = vld [vmem:[%s5 + $0x74] sm:$0xf]
      %v9221 = vld [vmem:[%s5 + $0x78] sm:$0xf]
      %v9222 = vld [vmem:[%s5 + $0x7c] sm:$0xf]
      %v9223 = vld [vmem:[%s5 + $0x80] sm:$0xf]
      %v9224 = vld [vmem:[%s5 + $0x84] sm:$0xf]
      %v9225 = vld [vmem:[%s5 + $0x88] sm:$0xf]
      %v9226 = vld [vmem:[%s5 + $0x8c] sm:$0xf]
      %v9227 = vld [vmem:[%s5 + $0x90] sm:$0xf]
      %v9228 = vld [vmem:[%s5 + $0x94] sm:$0xf]
      %v9229 = vld [vmem:[%s5 + $0x98] sm:$0xf]
      %v9230 = vld [vmem:[%s5 + $0x9c] sm:$0xf]
      %v9231 = vld [vmem:[%s5 + $0xa0] sm:$0xf]
      %v9232 = vld [vmem:[%s5 + $0xa4] sm:$0xf]
      %v9233 = vld [vmem:[%s5 + $0xa8] sm:$0xf]
      %v9234 = vld [vmem:[%s5 + $0xac] sm:$0xf]
      %v9235 = vld [vmem:[%s5 + $0xb0] sm:$0xf]
      %v9236 = vld [vmem:[%s5 + $0xb4] sm:$0xf]
      %v9237 = vld [vmem:[%s5 + $0xb8] sm:$0xf]
      %v9238 = vld [vmem:[%s5 + $0xbc] sm:$0xf]
      %v9239 = vld [vmem:[%s5 + $0xc0] sm:$0xf]
      %v9240 = vld [vmem:[%s5 + $0xc4] sm:$0xf]
      %v9241 = vld [vmem:[%s5 + $0xc8] sm:$0xf]
      %v9242 = vld [vmem:[%s5 + $0xcc] sm:$0xf]
      %v9243 = vld [vmem:[%s5 + $0xd0] sm:$0xf]
      %v9244 = vld [vmem:[%s5 + $0xd4] sm:$0xf]
      %v9245 = vld [vmem:[%s5 + $0xd8] sm:$0xf]
      %v9246 = vld [vmem:[%s5 + $0xdc] sm:$0xf]
      %v9247 = vld [vmem:[%s5 + $0xe0] sm:$0xf]
      %v9248 = vld [vmem:[%s5 + $0xe4] sm:$0xf]
      %v9249 = vld [vmem:[%s5 + $0xe8] sm:$0xf]
      %v9250 = vld [vmem:[%s5 + $0xec] sm:$0xf]
      %v9251 = vld [vmem:[%s5 + $0xf0] sm:$0xf]
      %v9252 = vld [vmem:[%s5 + $0xf4] sm:$0xf]
      %v9253 = vld [vmem:[%s5 + $0xf8] sm:$0xf]
      %v9254 = vld [vmem:[%s5 + $0xfc] sm:$0xf]
      %v9255 = vld [vmem:[%s5 + $0x100] sm:$0xf]
      %v9256 = vld [vmem:[%s5 + $0x104] sm:$0xf]
      %v9257 = vld [vmem:[%s5 + $0x108] sm:$0xf]
      %v9258 = vld [vmem:[%s5 + $0x10c] sm:$0xf]
      %v9259 = vld [vmem:[%s5 + $0x110] sm:$0xf]
      %v9260 = vld [vmem:[%s5 + $0x114] sm:$0xf]
      %v9261 = vld [vmem:[%s5 + $0x118] sm:$0xf]
      %v9262 = vld [vmem:[%s5 + $0x11c] sm:$0xf]
      %v9263 = vld [vmem:[%s5 + $0x120] sm:$0xf]
      %v9264 = vld [vmem:[%s5 + $0x124] sm:$0xf]
      %v9265 = vld [vmem:[%s5 + $0x128] sm:$0xf]
      %v9266 = vld [vmem:[%s5 + $0x12c] sm:$0xf]
      %v9267 = vld [vmem:[%s5 + $0x130] sm:$0xf]
      %v9268 = vld [vmem:[%s5 + $0x134] sm:$0xf]
      %v9269 = vld [vmem:[%s5 + $0x138] sm:$0xf]
      %v9270 = vld [vmem:[%s5 + $0x13c] sm:$0xf]
      %v9271 = vld [vmem:[%s5 + $0x140] sm:$0xf]
      %v9272 = vld [vmem:[%s5 + $0x144] sm:$0xf]
      %v9273 = vld [vmem:[%s5 + $0x148] sm:$0xf]
      %v9274 = vld [vmem:[%s5 + $0x14c] sm:$0xf]
      %v9275 = vld [vmem:[%s5 + $0x150] sm:$0xf]
      %v9276 = vld [vmem:[%s5 + $0x154] sm:$0xf]
      %v9277 = vld [vmem:[%s5 + $0x158] sm:$0xf]
      %v9278 = vld [vmem:[%s5 + $0x15c] sm:$0xf]
      %v9279 = vld [vmem:[%s5 + $0x160] sm:$0xf]
      %v9280 = vld [vmem:[%s5 + $0x164] sm:$0xf]
      %v9281 = vld [vmem:[%s5 + $0x168] sm:$0xf]
      %v9282 = vld [vmem:[%s5 + $0x16c] sm:$0xf]
      %v9283 = vld [vmem:[%s5 + $0x170] sm:$0xf]
      %v9284 = vld [vmem:[%s5 + $0x174] sm:$0xf]
      %v9285 = vld [vmem:[%s5 + $0x178] sm:$0xf]
      %v9286 = vld [vmem:[%s5 + $0x17c] sm:$0xf]
      %v9287 = vld [vmem:[%s5 + $0x180] sm:$0xf]
      %v9288 = vld [vmem:[%s5 + $0x184] sm:$0xf]
      %v9289 = vld [vmem:[%s5 + $0x188] sm:$0xf]
      %v9290 = vld [vmem:[%s5 + $0x18c] sm:$0xf]
      %v9291 = vld [vmem:[%s5 + $0x190] sm:$0xf]
      %v9292 = vld [vmem:[%s5 + $0x194] sm:$0xf]
      %v9293 = vld [vmem:[%s5 + $0x198] sm:$0xf]
      %v9294 = vld [vmem:[%s5 + $0x19c] sm:$0xf]
      %v9295 = vld [vmem:[%s5 + $0x1a0] sm:$0xf]
      %v9296 = vld [vmem:[%s5 + $0x1a4] sm:$0xf]
      %v9297 = vld [vmem:[%s5 + $0x1a8] sm:$0xf]
      %v9298 = vld [vmem:[%s5 + $0x1ac] sm:$0xf]
      %v9299 = vld [vmem:[%s5 + $0x1b0] sm:$0xf]
      %v9300 = vld [vmem:[%s5 + $0x1b4] sm:$0xf]
      %v9301 = vld [vmem:[%s5 + $0x1b8] sm:$0xf]
      %v9302 = vld [vmem:[%s5 + $0x1bc] sm:$0xf]
      %v9303 = vld [vmem:[%s5 + $0x1c0] sm:$0xf]
      %v9304 = vld [vmem:[%s5 + $0x1c4] sm:$0xf]
      %v9305 = vld [vmem:[%s5 + $0x1c8] sm:$0xf]
      %v9306 = vld [vmem:[%s5 + $0x1cc] sm:$0xf]
      %v9307 = vld [vmem:[%s5 + $0x1d0] sm:$0xf]
      %v9308 = vld [vmem:[%s5 + $0x1d4] sm:$0xf]
      %v9309 = vld [vmem:[%s5 + $0x1d8] sm:$0xf]
      %v9310 = vld [vmem:[%s5 + $0x1dc] sm:$0xf]
      %v9311 = vld [vmem:[%s5 + $0x1e0] sm:$0xf]
      %v9312 = vld [vmem:[%s5 + $0x1e4] sm:$0xf]
      %v9313 = vld [vmem:[%s5 + $0x1e8] sm:$0xf]
      %v9314 = vld [vmem:[%s5 + $0x1ec] sm:$0xf]
      %v9315 = vld [vmem:[%s5 + $0x1f0] sm:$0xf]
      %v9316 = vld [vmem:[%s5 + $0x1f4] sm:$0xf]
      %v9317 = vld [vmem:[%s5 + $0x1f8] sm:$0xf]
      %v9318 = vld [vmem:[%s5 + $0x1fc] sm:$0xf]
      %v9319 = vld [vmem:[%s5 + $0x200] sm:$0xf]
      %v9320 = vld [vmem:[%s5 + $0x204] sm:$0xf]
      %v9321 = vld [vmem:[%s5 + $0x208] sm:$0xf]
      %v9322 = vld [vmem:[%s5 + $0x20c] sm:$0xf]
      %v9323 = vld [vmem:[%s5 + $0x210] sm:$0xf]
      %v9324 = vld [vmem:[%s5 + $0x214] sm:$0xf]
      %v9325 = vld [vmem:[%s5 + $0x218] sm:$0xf]
      %v9326 = vld [vmem:[%s5 + $0x21c] sm:$0xf]
      %v9327 = vld [vmem:[%s5 + $0x220] sm:$0xf]
      %v9328 = vld [vmem:[%s5 + $0x224] sm:$0xf]
      %v9329 = vld [vmem:[%s5 + $0x228] sm:$0xf]
      %v9330 = vld [vmem:[%s5 + $0x22c] sm:$0xf]
      %v9331 = vld [vmem:[%s5 + $0x230] sm:$0xf]
      %v9332 = vld [vmem:[%s5 + $0x234] sm:$0xf]
      %v9333 = vld [vmem:[%s5 + $0x238] sm:$0xf]
      %v9334 = vld [vmem:[%s5 + $0x23c] sm:$0xf]
      %v9335 = vld [vmem:[%s6] sm:$0x1]
      %v9337 = vlaneseq
      %v9338 = vshrl.u32 %v9337, 7
      %v9339 = vsub.s32 0, %v9338
      %v9340 = vrot.slane %v9335, %v9339
      %v9486 = vunpack.c.l.b16 %v9191
      %v9487 = vunpack.c.l.b16 %v9192
      %v9488 = vunpack.c.l.b16 %v9193
      %v9489 = vunpack.c.l.b16 %v9194
      %v9490 = vunpack.c.l.b16 %v9195
      %v9491 = vunpack.c.l.b16 %v9196
      %v9492 = vunpack.c.l.b16 %v9197
      %v9493 = vunpack.c.l.b16 %v9198
      %v9494 = vunpack.c.l.b16 %v9199
      %v9495 = vunpack.c.l.b16 %v9200
      %v9496 = vunpack.c.l.b16 %v9201
      %v9497 = vunpack.c.l.b16 %v9202
      %v9498 = vunpack.c.l.b16 %v9203
      %v9499 = vunpack.c.l.b16 %v9204
      %v9500 = vunpack.c.l.b16 %v9205
      %v9501 = vunpack.c.l.b16 %v9206
      %v9502 = vunpack.c.l.b16 %v9207
      %v9503 = vunpack.c.l.b16 %v9208
      %v9504 = vunpack.c.l.b16 %v9209
      %v9505 = vunpack.c.l.b16 %v9210
      %v9506 = vunpack.c.l.b16 %v9211
      %v9507 = vunpack.c.l.b16 %v9212
      %v9508 = vunpack.c.l.b16 %v9213
      %v9509 = vunpack.c.l.b16 %v9214
      %v9510 = vunpack.c.l.b16 %v9215
      %v9511 = vunpack.c.l.b16 %v9216
      %v9512 = vunpack.c.l.b16 %v9217
      %v9513 = vunpack.c.l.b16 %v9218
      %v9514 = vunpack.c.l.b16 %v9219
      %v9515 = vunpack.c.l.b16 %v9220
      %v9516 = vunpack.c.l.b16 %v9221
      %v9517 = vunpack.c.l.b16 %v9222
      %v9518 = vunpack.c.l.b16 %v9223
      %v9519 = vunpack.c.l.b16 %v9224
      %v9520 = vunpack.c.l.b16 %v9225
      %v9521 = vunpack.c.l.b16 %v9226
      %v9522 = vunpack.c.l.b16 %v9227
      %v9523 = vunpack.c.l.b16 %v9228
      %v9524 = vunpack.c.l.b16 %v9229
      %v9525 = vunpack.c.l.b16 %v9230
      %v9526 = vunpack.c.l.b16 %v9231
      %v9527 = vunpack.c.l.b16 %v9232
      %v9528 = vunpack.c.l.b16 %v9233
      %v9529 = vunpack.c.l.b16 %v9234
      %v9530 = vunpack.c.l.b16 %v9235
      %v9531 = vunpack.c.l.b16 %v9236
      %v9532 = vunpack.c.l.b16 %v9237
      %v9533 = vunpack.c.l.b16 %v9238
      %v9534 = vunpack.c.l.b16 %v9239
      %v9535 = vunpack.c.l.b16 %v9240
      %v9536 = vunpack.c.l.b16 %v9241
      %v9537 = vunpack.c.l.b16 %v9242
      %v9538 = vunpack.c.l.b16 %v9243
      %v9539 = vunpack.c.l.b16 %v9244
      %v9540 = vunpack.c.l.b16 %v9245
      %v9541 = vunpack.c.l.b16 %v9246
      %v9542 = vunpack.c.l.b16 %v9247
      %v9543 = vunpack.c.l.b16 %v9248
      %v9544 = vunpack.c.l.b16 %v9249
      %v9545 = vunpack.c.l.b16 %v9250
      %v9546 = vunpack.c.l.b16 %v9251
      %v9547 = vunpack.c.l.b16 %v9252
      %v9548 = vunpack.c.l.b16 %v9253
      %v9549 = vunpack.c.l.b16 %v9254
      %v9550 = vunpack.c.l.b16 %v9255
      %v9551 = vunpack.c.l.b16 %v9256
      %v9552 = vunpack.c.l.b16 %v9257
      %v9553 = vunpack.c.l.b16 %v9258
      %v9554 = vunpack.c.l.b16 %v9259
      %v9555 = vunpack.c.l.b16 %v9260
      %v9556 = vunpack.c.l.b16 %v9261
      %v9557 = vunpack.c.l.b16 %v9262
      %v9558 = vunpack.c.l.b16 %v9263
      %v9559 = vunpack.c.l.b16 %v9264
      %v9560 = vunpack.c.l.b16 %v9265
      %v9561 = vunpack.c.l.b16 %v9266
      %v9562 = vunpack.c.l.b16 %v9267
      %v9563 = vunpack.c.l.b16 %v9268
      %v9564 = vunpack.c.l.b16 %v9269
      %v9565 = vunpack.c.l.b16 %v9270
      %v9566 = vunpack.c.l.b16 %v9271
      %v9567 = vunpack.c.l.b16 %v9272
      %v9568 = vunpack.c.l.b16 %v9273
      %v9569 = vunpack.c.l.b16 %v9274
      %v9570 = vunpack.c.l.b16 %v9275
      %v9571 = vunpack.c.l.b16 %v9276
      %v9572 = vunpack.c.l.b16 %v9277
      %v9573 = vunpack.c.l.b16 %v9278
      %v9574 = vunpack.c.l.b16 %v9279
      %v9575 = vunpack.c.l.b16 %v9280
      %v9576 = vunpack.c.l.b16 %v9281
      %v9577 = vunpack.c.l.b16 %v9282
      %v9578 = vunpack.c.l.b16 %v9283
      %v9579 = vunpack.c.l.b16 %v9284
      %v9580 = vunpack.c.l.b16 %v9285
      %v9581 = vunpack.c.l.b16 %v9286
      %v9582 = vunpack.c.l.b16 %v9287
      %v9583 = vunpack.c.l.b16 %v9288
      %v9584 = vunpack.c.l.b16 %v9289
      %v9585 = vunpack.c.l.b16 %v9290
      %v9586 = vunpack.c.l.b16 %v9291
      %v9587 = vunpack.c.l.b16 %v9292
      %v9588 = vunpack.c.l.b16 %v9293
      %v9589 = vunpack.c.l.b16 %v9294
      %v9590 = vunpack.c.l.b16 %v9295
      %v9591 = vunpack.c.l.b16 %v9296
      %v9592 = vunpack.c.l.b16 %v9297
      %v9593 = vunpack.c.l.b16 %v9298
      %v9594 = vunpack.c.l.b16 %v9299
      %v9595 = vunpack.c.l.b16 %v9300
      %v9596 = vunpack.c.l.b16 %v9301
      %v9597 = vunpack.c.l.b16 %v9302
      %v9598 = vunpack.c.l.b16 %v9303
      %v9599 = vunpack.c.l.b16 %v9304
      %v9600 = vunpack.c.l.b16 %v9305
      %v9601 = vunpack.c.l.b16 %v9306
      %v9602 = vunpack.c.l.b16 %v9307
      %v9603 = vunpack.c.l.b16 %v9308
      %v9604 = vunpack.c.l.b16 %v9309
      %v9605 = vunpack.c.l.b16 %v9310
      %v9606 = vunpack.c.l.b16 %v9311
      %v9607 = vunpack.c.l.b16 %v9312
      %v9608 = vunpack.c.l.b16 %v9313
      %v9609 = vunpack.c.l.b16 %v9314
      %v9610 = vunpack.c.l.b16 %v9315
      %v9611 = vunpack.c.l.b16 %v9316
      %v9612 = vunpack.c.l.b16 %v9317
      %v9613 = vunpack.c.l.b16 %v9318
      %v9614 = vunpack.c.l.b16 %v9319
      %v9615 = vunpack.c.l.b16 %v9320
      %v9616 = vunpack.c.l.b16 %v9321
      %v9617 = vunpack.c.l.b16 %v9322
      %v9618 = vunpack.c.l.b16 %v9323
      %v9619 = vunpack.c.l.b16 %v9324
      %v9620 = vunpack.c.l.b16 %v9325
      %v9621 = vunpack.c.l.b16 %v9326
      %v9622 = vunpack.c.l.b16 %v9327
      %v9623 = vunpack.c.l.b16 %v9328
      %v9624 = vunpack.c.l.b16 %v9329
      %v9625 = vunpack.c.l.b16 %v9330
      %v9626 = vunpack.c.l.b16 %v9331
      %v9627 = vunpack.c.l.b16 %v9332
      %v9628 = vunpack.c.l.b16 %v9333
      %v9629 = vunpack.c.l.b16 %v9334
      %v9630 = vpack.c.b16 %v9487, %v9486
      %v9631 = vpack.c.b16 %v9489, %v9488
      %v9632 = vpack.c.b16 %v9491, %v9490
      %v9633 = vpack.c.b16 %v9493, %v9492
      %v9634 = vpack.c.b16 %v9495, %v9494
      %v9635 = vpack.c.b16 %v9497, %v9496
      %v9636 = vpack.c.b16 %v9499, %v9498
      %v9637 = vpack.c.b16 %v9501, %v9500
      %v9638 = vpack.c.b16 %v9503, %v9502
      %v9639 = vpack.c.b16 %v9505, %v9504
      %v9640 = vpack.c.b16 %v9507, %v9506
      %v9641 = vpack.c.b16 %v9509, %v9508
      %v9642 = vpack.c.b16 %v9511, %v9510
      %v9643 = vpack.c.b16 %v9513, %v9512
      %v9644 = vpack.c.b16 %v9515, %v9514
      %v9645 = vpack.c.b16 %v9517, %v9516
      %v9646 = vpack.c.b16 %v9519, %v9518
      %v9647 = vpack.c.b16 %v9521, %v9520
      %v9648 = vpack.c.b16 %v9523, %v9522
      %v9649 = vpack.c.b16 %v9525, %v9524
      %v9650 = vpack.c.b16 %v9527, %v9526
      %v9651 = vpack.c.b16 %v9529, %v9528
      %v9652 = vpack.c.b16 %v9531, %v9530
      %v9653 = vpack.c.b16 %v9533, %v9532
      %v9654 = vpack.c.b16 %v9535, %v9534
      %v9655 = vpack.c.b16 %v9537, %v9536
      %v9656 = vpack.c.b16 %v9539, %v9538
      %v9657 = vpack.c.b16 %v9541, %v9540
      %v9658 = vpack.c.b16 %v9543, %v9542
      %v9659 = vpack.c.b16 %v9545, %v9544
      %v9660 = vpack.c.b16 %v9547, %v9546
      %v9661 = vpack.c.b16 %v9549, %v9548
      %v9662 = vpack.c.b16 %v9551, %v9550
      %v9663 = vpack.c.b16 %v9553, %v9552
      %v9664 = vpack.c.b16 %v9555, %v9554
      %v9665 = vpack.c.b16 %v9557, %v9556
      %v9666 = vpack.c.b16 %v9559, %v9558
      %v9667 = vpack.c.b16 %v9561, %v9560
      %v9668 = vpack.c.b16 %v9563, %v9562
      %v9669 = vpack.c.b16 %v9565, %v9564
      %v9670 = vpack.c.b16 %v9567, %v9566
      %v9671 = vpack.c.b16 %v9569, %v9568
      %v9672 = vpack.c.b16 %v9571, %v9570
      %v9673 = vpack.c.b16 %v9573, %v9572
      %v9674 = vpack.c.b16 %v9575, %v9574
      %v9675 = vpack.c.b16 %v9577, %v9576
      %v9676 = vpack.c.b16 %v9579, %v9578
      %v9677 = vpack.c.b16 %v9581, %v9580
      %v9678 = vpack.c.b16 %v9583, %v9582
      %v9679 = vpack.c.b16 %v9585, %v9584
      %v9680 = vpack.c.b16 %v9587, %v9586
      %v9681 = vpack.c.b16 %v9589, %v9588
      %v9682 = vpack.c.b16 %v9591, %v9590
      %v9683 = vpack.c.b16 %v9593, %v9592
      %v9684 = vpack.c.b16 %v9595, %v9594
      %v9685 = vpack.c.b16 %v9597, %v9596
      %v9686 = vpack.c.b16 %v9599, %v9598
      %v9687 = vpack.c.b16 %v9601, %v9600
      %v9688 = vpack.c.b16 %v9603, %v9602
      %v9689 = vpack.c.b16 %v9605, %v9604
      %v9690 = vpack.c.b16 %v9607, %v9606
      %v9691 = vpack.c.b16 %v9609, %v9608
      %v9692 = vpack.c.b16 %v9611, %v9610
      %v9693 = vpack.c.b16 %v9613, %v9612
      %v9694 = vpack.c.b16 %v9615, %v9614
      %v9695 = vpack.c.b16 %v9617, %v9616
      %v9696 = vpack.c.b16 %v9619, %v9618
      %v9697 = vpack.c.b16 %v9621, %v9620
      %v9698 = vpack.c.b16 %v9623, %v9622
      %v9699 = vpack.c.b16 %v9625, %v9624
      %v9700 = vpack.c.b16 %v9627, %v9626
      %v9701 = vpack.c.b16 %v9629, %v9628
      %9774 = vmatprep.subr.bf16.mxu0 0
      %9775 = vmatpush1.bf16.msra.mxu0 %v9630
      %9776 = vmatprep.subr.bf16.mxu0 0
      %9777 = vmatpush1.bf16.msra.mxu0 %v9631
      %9778 = vmatprep.subr.bf16.mxu0 0
      %9779 = vmatpush1.bf16.msra.mxu0 %v9632
      %9780 = vmatprep.subr.bf16.mxu0 0
      %9781 = vmatpush1.bf16.msra.mxu0 %v9633
      %9782 = vmatprep.subr.bf16.mxu0 0
      %9783 = vmatpush1.bf16.msra.mxu0 %v9634
      %9784 = vmatprep.subr.bf16.mxu0 0
      %9785 = vmatpush1.bf16.msra.mxu0 %v9635
      %9786 = vmatprep.subr.bf16.mxu0 0
      %9787 = vmatpush1.bf16.msra.mxu0 %v9636
      %9788 = vmatprep.subr.bf16.mxu0 0
      %9789 = vmatpush1.bf16.msra.mxu0 %v9637
      %9790 = vmatprep.subr.bf16.mxu0 0
      %9791 = vmatpush1.bf16.msra.mxu0 %v9638
      %9792 = vmatprep.subr.bf16.mxu0 0
      %9793 = vmatpush1.bf16.msra.mxu0 %v9639
      %9794 = vmatprep.subr.bf16.mxu0 0
      %9795 = vmatpush1.bf16.msra.mxu0 %v9640
      %9796 = vmatprep.subr.bf16.mxu0 0
      %9797 = vmatpush1.bf16.msra.mxu0 %v9641
      %9798 = vmatprep.subr.bf16.mxu0 0
      %9799 = vmatpush1.bf16.msra.mxu0 %v9642
      %9800 = vmatprep.subr.bf16.mxu0 0
      %9801 = vmatpush1.bf16.msra.mxu0 %v9643
      %9802 = vmatprep.subr.bf16.mxu0 0
      %9803 = vmatpush1.bf16.msra.mxu0 %v9644
      %9804 = vmatprep.subr.bf16.mxu0 0
      %9805 = vmatpush1.bf16.msra.mxu0 %v9645
      %9806 = vmatprep.mubr.bf16.mxu0 %v9048
      %9807 = vmatmul.mubr.bf16.gmra.mrb[0].mxu0 %v9047
      %v9808 = vpop.f32.mrb[0].mxu0
      %v9809 = vadd.f32 %v9340, %v9808
      %v9810 = vpop.f32.mrb[0].mxu0
      %v9811 = vpop.f32.mrb[0].mxu0
      %v9812 = vadd.f32 %v9340, %v9811
      %v9813 = vpop.f32.mrb[0].mxu0
      %9814 = vmatprep.mubr.bf16.mxu0 %v9057
      %9815 = vmatmul.mubr.bf16.gmra.mrb[0].mxu0 %v9056
      %v9816 = vpop.f32.mrb[0].mxu0
      %v9817 = vadd.f32 %v9340, %v9816
      %v9818 = vpop.f32.mrb[0].mxu0
      %v9819 = vpop.f32.mrb[0].mxu0
      %v9820 = vadd.f32 %v9340, %v9819
      %v9821 = vpop.f32.mrb[0].mxu0
      %9822 = vmatprep.mubr.bf16.mxu0 %v9066
      %9823 = vmatmul.mubr.bf16.gmra.mrb[0].mxu0 %v9065
      %v9824 = vpop.f32.mrb[0].mxu0
      %v9825 = vadd.f32 %v9340, %v9824
      %v9826 = vpop.f32.mrb[0].mxu0
      %v9827 = vpop.f32.mrb[0].mxu0
      %v9828 = vadd.f32 %v9340, %v9827
      %v9829 = vpop.f32.mrb[0].mxu0
      %9830 = vmatprep.mubr.bf16.mxu0 %v9075
      %9831 = vmatmul.mubr.bf16.gmra.mrb[0].mxu0 %v9074
      %v9832 = vpop.f32.mrb[0].mxu0
      %v9833 = vadd.f32 %v9340, %v9832
      %v9834 = vpop.f32.mrb[0].mxu0
      %v9835 = vpop.f32.mrb[0].mxu0
      %v9836 = vadd.f32 %v9340, %v9835
      %v9837 = vpop.f32.mrb[0].mxu0
      %9838 = vmatprep.mubr.bf16.mxu0 %v9084
      %9839 = vmatmul.mubr.bf16.gmra.mrb[0].mxu0 %v9083
      %v9840 = vpop.f32.mrb[0].mxu0
      %v9841 = vadd.f32 %v9340, %v9840
      %v9842 = vpop.f32.mrb[0].mxu0
      %v9843 = vpop.f32.mrb[0].mxu0
      %v9844 = vadd.f32 %v9340, %v9843
      %v9845 = vpop.f32.mrb[0].mxu0
      %9846 = vmatprep.mubr.bf16.mxu0 %v9093
      %9847 = vmatmul.mubr.bf16.gmra.mrb[0].mxu0 %v9092
      %v9848 = vpop.f32.mrb[0].mxu0
      %v9849 = vadd.f32 %v9340, %v9848
      %v9850 = vpop.f32.mrb[0].mxu0
      %v9851 = vpop.f32.mrb[0].mxu0
      %v9852 = vadd.f32 %v9340, %v9851
      %v9853 = vpop.f32.mrb[0].mxu0
      %9854 = vmatprep.mubr.bf16.mxu0 %v9102
      %9855 = vmatmul.mubr.bf16.gmra.mrb[0].mxu0 %v9101
      %v9856 = vpop.f32.mrb[0].mxu0
      %v9857 = vadd.f32 %v9340, %v9856
      %v9858 = vpop.f32.mrb[0].mxu0
      %v9859 = vpop.f32.mrb[0].mxu0
      %v9860 = vadd.f32 %v9340, %v9859
      %v9861 = vpop.f32.mrb[0].mxu0
      %9862 = vmatprep.mubr.bf16.mxu0 %v9111
      %9863 = vmatmul.mubr.bf16.gmra.mrb[0].mxu0 %v9110
      %v9864 = vpop.f32.mrb[0].mxu0
      %v9865 = vadd.f32 %v9340, %v9864
      %v9866 = vpop.f32.mrb[0].mxu0
      %v9867 = vpop.f32.mrb[0].mxu0
      %v9868 = vadd.f32 %v9340, %v9867
      %v9869 = vpop.f32.mrb[0].mxu0
      %9870 = vmatprep.mubr.bf16.mxu0 %v9120
      %9871 = vmatmul.mubr.bf16.gmra.mrb[0].mxu0 %v9119
      %v9872 = vpop.f32.mrb[0].mxu0
      %v9873 = vadd.f32 %v9340, %v9872
      %v9874 = vpop.f32.mrb[0].mxu0
      %v9875 = vpop.f32.mrb[0].mxu0
      %v9876 = vadd.f32 %v9340, %v9875
      %v9877 = vpop.f32.mrb[0].mxu0
      %9878 = vmatprep.mubr.bf16.mxu0 %v9129
      %9879 = vmatmul.mubr.bf16.gmra.mrb[0].mxu0 %v9128
      %v9880 = vpop.f32.mrb[0].mxu0
      %v9881 = vadd.f32 %v9340, %v9880
      %v9882 = vpop.f32.mrb[0].mxu0
      %v9883 = vpop.f32.mrb[0].mxu0
      %v9884 = vadd.f32 %v9340, %v9883
      %v9885 = vpop.f32.mrb[0].mxu0
      %9886 = vmatprep.mubr.bf16.mxu0 %v9138
      %9887 = vmatmul.mubr.bf16.gmra.mrb[0].mxu0 %v9137
      %v9888 = vpop.f32.mrb[0].mxu0
      %v9889 = vadd.f32 %v9340, %v9888
      %v9890 = vpop.f32.mrb[0].mxu0
      %v9891 = vpop.f32.mrb[0].mxu0
      %v9892 = vadd.f32 %v9340, %v9891
      %v9893 = vpop.f32.mrb[0].mxu0
      %9894 = vmatprep.mubr.bf16.mxu0 %v9147
      %9895 = vmatmul.mubr.bf16.gmra.mrb[0].mxu0 %v9146
      %v9896 = vpop.f32.mrb[0].mxu0
      %v9897 = vadd.f32 %v9340, %v9896
      %v9898 = vpop.f32.mrb[0].mxu0
      %v9899 = vpop.f32.mrb[0].mxu0
      %v9900 = vadd.f32 %v9340, %v9899
      %v9901 = vpop.f32.mrb[0].mxu0
      %9902 = vmatprep.mubr.bf16.mxu0 %v9156
      %9903 = vmatmul.mubr.bf16.gmra.mrb[0].mxu0 %v9155
      %v9904 = vpop.f32.mrb[0].mxu0
      %v9905 = vadd.f32 %v9340, %v9904
      %v9906 = vpop.f32.mrb[0].mxu0
      %v9907 = vpop.f32.mrb[0].mxu0
      %v9908 = vadd.f32 %v9340, %v9907
      %v9909 = vpop.f32.mrb[0].mxu0
      %9910 = vmatprep.mubr.bf16.mxu0 %v9165
      %9911 = vmatmul.mubr.bf16.gmra.mrb[0].mxu0 %v9164
      %v9912 = vpop.f32.mrb[0].mxu0
      %v9913 = vadd.f32 %v9340, %v9912
      %v9914 = vpop.f32.mrb[0].mxu0
      %v9915 = vpop.f32.mrb[0].mxu0
      %v9916 = vadd.f32 %v9340, %v9915
      %v9917 = vpop.f32.mrb[0].mxu0
      %9918 = vmatprep.mubr.bf16.mxu0 %v9174
      %9919 = vmatmul.mubr.bf16.gmra.mrb[0].mxu0 %v9173
      %v9920 = vpop.f32.mrb[0].mxu0
      %v9921 = vadd.f32 %v9340, %v9920
      %v9922 = vpop.f32.mrb[0].mxu0
      %v9923 = vpop.f32.mrb[0].mxu0
      %v9924 = vadd.f32 %v9340, %v9923
      %v9925 = vpop.f32.mrb[0].mxu0
      %9926 = vmatprep.mubr.bf16.mxu0 %v9183
      %9927 = vmatmul.mubr.bf16.gmra.mrb[0].mxu0 %v9182
      %v9928 = vpop.f32.mrb[0].mxu0
      %v9929 = vadd.f32 %v9340, %v9928
      %v9930 = vpop.f32.mrb[0].mxu0
      %v9931 = vpop.f32.mrb[0].mxu0
      %v9932 = vadd.f32 %v9340, %v9931
      %v9933 = vpop.f32.mrb[0].mxu0
      %9934 = vdwg.mxu0
      %9935 = vmatprep.subr.bf16.mxu0 0
      %9936 = vmatpush1.bf16.msra.mxu0 %v9646
      %9937 = vmatprep.subr.bf16.mxu0 0
      %9938 = vmatpush1.bf16.msra.mxu0 %v9647
      %9939 = vmatprep.subr.bf16.mxu0 0
      %9940 = vmatpush1.bf16.msra.mxu0 %v9648
      %9941 = vmatprep.subr.bf16.mxu0 0
      %9942 = vmatpush1.bf16.msra.mxu0 %v9649
      %9943 = vmatprep.subr.bf16.mxu0 0
      %9944 = vmatpush1.bf16.msra.mxu0 %v9650
      %9945 = vmatprep.subr.bf16.mxu0 0
      %9946 = vmatpush1.bf16.msra.mxu0 %v9651
      %9947 = vmatprep.subr.bf16.mxu0 0
      %9948 = vmatpush1.bf16.msra.mxu0 %v9652
      %9949 = vmatprep.subr.bf16.mxu0 0
      %9950 = vmatpush1.bf16.msra.mxu0 %v9653
      %9951 = vmatprep.subr.bf16.mxu0 0
      %9952 = vmatpush1.bf16.msra.mxu0 %v9654
      %9953 = vmatprep.subr.bf16.mxu0 0
      %9954 = vmatpush1.bf16.msra.mxu0 %v9655
      %9955 = vmatprep.subr.bf16.mxu0 0
      %9956 = vmatpush1.bf16.msra.mxu0 %v9656
      %9957 = vmatprep.subr.bf16.mxu0 0
      %9958 = vmatpush1.bf16.msra.mxu0 %v9657
      %9959 = vmatprep.subr.bf16.mxu0 0
      %9960 = vmatpush1.bf16.msra.mxu0 %v9658
      %9961 = vmatprep.subr.bf16.mxu0 0
      %9962 = vmatpush1.bf16.msra.mxu0 %v9659
      %9963 = vmatprep.subr.bf16.mxu0 0
      %9964 = vmatpush1.bf16.msra.mxu0 %v9660
      %9965 = vmatprep.subr.bf16.mxu0 0
      %9966 = vmatpush1.bf16.msra.mxu0 %v9661
      %9967 = vmatprep.mubr.bf16.mxu0 %v9050
      %9968 = vmatmul.mubr.bf16.gmra.mrb[0].mxu0 %v9049
      %v9969 = vpop.f32.mrb[0].mxu0
      %v9970 = vadd.f32 %v9809, %v9969
      %v9971 = vpop.f32.mrb[0].mxu0
      %v9972 = vpop.f32.mrb[0].mxu0
      %v9973 = vadd.f32 %v9812, %v9972
      %v9974 = vpop.f32.mrb[0].mxu0
      %9975 = vmatprep.mubr.bf16.mxu0 %v9059
      %9976 = vmatmul.mubr.bf16.gmra.mrb[0].mxu0 %v9058
      %v9977 = vpop.f32.mrb[0].mxu0
      %v9978 = vadd.f32 %v9817, %v9977
      %v9979 = vpop.f32.mrb[0].mxu0
      %v9980 = vpop.f32.mrb[0].mxu0
      %v9981 = vadd.f32 %v9820, %v9980
      %v9982 = vpop.f32.mrb[0].mxu0
      %9983 = vmatprep.mubr.bf16.mxu0 %v9068
      %9984 = vmatmul.mubr.bf16.gmra.mrb[0].mxu0 %v9067
      %v9985 = vpop.f32.mrb[0].mxu0
      %v9986 = vadd.f32 %v9825, %v9985
      %v9987 = vpop.f32.mrb[0].mxu0
      %v9988 = vpop.f32.mrb[0].mxu0
      %v9989 = vadd.f32 %v9828, %v9988
      %v9990 = vpop.f32.mrb[0].mxu0
      %9991 = vmatprep.mubr.bf16.mxu0 %v9077
      %9992 = vmatmul.mubr.bf16.gmra.mrb[0].mxu0 %v9076
      %v9993 = vpop.f32.mrb[0].mxu0
      %v9994 = vadd.f32 %v9833, %v9993
      %v9995 = vpop.f32.mrb[0].mxu0
      %v9996 = vpop.f32.mrb[0].mxu0
      %v9997 = vadd.f32 %v9836, %v9996
      %v9998 = vpop.f32.mrb[0].mxu0
      %9999 = vmatprep.mubr.bf16.mxu0 %v9086
      %10000 = vmatmul.mubr.bf16.gmra.mrb[0].mxu0 %v9085
      %v10001 = vpop.f32.mrb[0].mxu0
      %v10002 = vadd.f32 %v9841, %v10001
      %v10003 = vpop.f32.mrb[0].mxu0
      %v10004 = vpop.f32.mrb[0].mxu0
      %v10005 = vadd.f32 %v9844, %v10004
      %v10006 = vpop.f32.mrb[0].mxu0
      %10007 = vmatprep.mubr.bf16.mxu0 %v9095
      %10008 = vmatmul.mubr.bf16.gmra.mrb[0].mxu0 %v9094
      %v10009 = vpop.f32.mrb[0].mxu0
      %v10010 = vadd.f32 %v9849, %v10009
      %v10011 = vpop.f32.mrb[0].mxu0
      %v10012 = vpop.f32.mrb[0].mxu0
      %v10013 = vadd.f32 %v9852, %v10012
      %v10014 = vpop.f32.mrb[0].mxu0
      %10015 = vmatprep.mubr.bf16.mxu0 %v9104
      %10016 = vmatmul.mubr.bf16.gmra.mrb[0].mxu0 %v9103
      %v10017 = vpop.f32.mrb[0].mxu0
      %v10018 = vadd.f32 %v9857, %v10017
      %v10019 = vpop.f32.mrb[0].mxu0
      %v10020 = vpop.f32.mrb[0].mxu0
      %v10021 = vadd.f32 %v9860, %v10020
      %v10022 = vpop.f32.mrb[0].mxu0
      %10023 = vmatprep.mubr.bf16.mxu0 %v9113
      %10024 = vmatmul.mubr.bf16.gmra.mrb[0].mxu0 %v9112
      %v10025 = vpop.f32.mrb[0].mxu0
      %v10026 = vadd.f32 %v9865, %v10025
      %v10027 = vpop.f32.mrb[0].mxu0
      %v10028 = vpop.f32.mrb[0].mxu0
      %v10029 = vadd.f32 %v9868, %v10028
      %v10030 = vpop.f32.mrb[0].mxu0
      %10031 = vmatprep.mubr.bf16.mxu0 %v9122
      %10032 = vmatmul.mubr.bf16.gmra.mrb[0].mxu0 %v9121
      %v10033 = vpop.f32.mrb[0].mxu0
      %v10034 = vadd.f32 %v9873, %v10033
      %v10035 = vpop.f32.mrb[0].mxu0
      %v10036 = vpop.f32.mrb[0].mxu0
      %v10037 = vadd.f32 %v9876, %v10036
      %v10038 = vpop.f32.mrb[0].mxu0
      %10039 = vmatprep.mubr.bf16.mxu0 %v9131
      %10040 = vmatmul.mubr.bf16.gmra.mrb[0].mxu0 %v9130
      %v10041 = vpop.f32.mrb[0].mxu0
      %v10042 = vadd.f32 %v9881, %v10041
      %v10043 = vpop.f32.mrb[0].mxu0
      %v10044 = vpop.f32.mrb[0].mxu0
      %v10045 = vadd.f32 %v9884, %v10044
      %v10046 = vpop.f32.mrb[0].mxu0
      %10047 = vmatprep.mubr.bf16.mxu0 %v9140
      %10048 = vmatmul.mubr.bf16.gmra.mrb[0].mxu0 %v9139
      %v10049 = vpop.f32.mrb[0].mxu0
      %v10050 = vadd.f32 %v9889, %v10049
      %v10051 = vpop.f32.mrb[0].mxu0
      %v10052 = vpop.f32.mrb[0].mxu0
      %v10053 = vadd.f32 %v9892, %v10052
      %v10054 = vpop.f32.mrb[0].mxu0
      %10055 = vmatprep.mubr.bf16.mxu0 %v9149
      %10056 = vmatmul.mubr.bf16.gmra.mrb[0].mxu0 %v9148
      %v10057 = vpop.f32.mrb[0].mxu0
      %v10058 = vadd.f32 %v9897, %v10057
      %v10059 = vpop.f32.mrb[0].mxu0
      %v10060 = vpop.f32.mrb[0].mxu0
      %v10061 = vadd.f32 %v9900, %v10060
      %v10062 = vpop.f32.mrb[0].mxu0
      %10063 = vmatprep.mubr.bf16.mxu0 %v9158
      %10064 = vmatmul.mubr.bf16.gmra.mrb[0].mxu0 %v9157
      %v10065 = vpop.f32.mrb[0].mxu0
      %v10066 = vadd.f32 %v9905, %v10065
      %v10067 = vpop.f32.mrb[0].mxu0
      %v10068 = vpop.f32.mrb[0].mxu0
      %v10069 = vadd.f32 %v9908, %v10068
      %v10070 = vpop.f32.mrb[0].mxu0
      %10071 = vmatprep.mubr.bf16.mxu0 %v9167
      %10072 = vmatmul.mubr.bf16.gmra.mrb[0].mxu0 %v9166
      %v10073 = vpop.f32.mrb[0].mxu0
      %v10074 = vadd.f32 %v9913, %v10073
      %v10075 = vpop.f32.mrb[0].mxu0
      %v10076 = vpop.f32.mrb[0].mxu0
      %v10077 = vadd.f32 %v9916, %v10076
      %v10078 = vpop.f32.mrb[0].mxu0
      %10079 = vmatprep.mubr.bf16.mxu0 %v9176
      %10080 = vmatmul.mubr.bf16.gmra.mrb[0].mxu0 %v9175
      %v10081 = vpop.f32.mrb[0].mxu0
      %v10082 = vadd.f32 %v9921, %v10081
      %v10083 = vpop.f32.mrb[0].mxu0
      %v10084 = vpop.f32.mrb[0].mxu0
      %v10085 = vadd.f32 %v9924, %v10084
      %v10086 = vpop.f32.mrb[0].mxu0
      %10087 = vmatprep.mubr.bf16.mxu0 %v9185
      %10088 = vmatmul.mubr.bf16.gmra.mrb[0].mxu0 %v9184
      %v10089 = vpop.f32.mrb[0].mxu0
      %v10090 = vadd.f32 %v9929, %v10089
      %v10091 = vpop.f32.mrb[0].mxu0
      %v10092 = vpop.f32.mrb[0].mxu0
      %v10093 = vadd.f32 %v9932, %v10092
      %v10094 = vpop.f32.mrb[0].mxu0
      %10095 = vdwg.mxu0
      %10096 = vmatprep.subr.bf16.mxu0 0
      %10097 = vmatpush1.bf16.msra.mxu0 %v9662
      %10098 = vmatprep.subr.bf16.mxu0 0
      %10099 = vmatpush1.bf16.msra.mxu0 %v9663
      %10100 = vmatprep.subr.bf16.mxu0 0
      %10101 = vmatpush1.bf16.msra.mxu0 %v9664
      %10102 = vmatprep.subr.bf16.mxu0 0
      %10103 = vmatpush1.bf16.msra.mxu0 %v9665
      %10104 = vmatprep.subr.bf16.mxu0 0
      %10105 = vmatpush1.bf16.msra.mxu0 %v9666
      %10106 = vmatprep.subr.bf16.mxu0 0
      %10107 = vmatpush1.bf16.msra.mxu0 %v9667
      %10108 = vmatprep.subr.bf16.mxu0 0
      %10109 = vmatpush1.bf16.msra.mxu0 %v9668
      %10110 = vmatprep.subr.bf16.mxu0 0
      %10111 = vmatpush1.bf16.msra.mxu0 %v9669
      %10112 = vmatprep.subr.bf16.mxu0 0
      %10113 = vmatpush1.bf16.msra.mxu0 %v9670
      %10114 = vmatprep.subr.bf16.mxu0 0
      %10115 = vmatpush1.bf16.msra.mxu0 %v9671
      %10116 = vmatprep.subr.bf16.mxu0 0
      %10117 = vmatpush1.bf16.msra.mxu0 %v9672
      %10118 = vmatprep.subr.bf16.mxu0 0
      %10119 = vmatpush1.bf16.msra.mxu0 %v9673
      %10120 = vmatprep.subr.bf16.mxu0 0
      %10121 = vmatpush1.bf16.msra.mxu0 %v9674
      %10122 = vmatprep.subr.bf16.mxu0 0
      %10123 = vmatpush1.bf16.msra.mxu0 %v9675
      %10124 = vmatprep.subr.bf16.mxu0 0
      %10125 = vmatpush1.bf16.msra.mxu0 %v9676
      %10126 = vmatprep.subr.bf16.mxu0 0
      %10127 = vmatpush1.bf16.msra.mxu0 %v9677
      %10128 = vmatprep.mubr.bf16.mxu0 %v9052
      %10129 = vmatmul.mubr.bf16.gmra.mrb[0].mxu0 %v9051
      %v10130 = vpop.f32.mrb[0].mxu0
      %v10131 = vadd.f32 %v9970, %v10130
      %v10132 = vpop.f32.mrb[0].mxu0
      %v10133 = vpop.f32.mrb[0].mxu0
      %v10134 = vadd.f32 %v9973, %v10133
      %v10135 = vpop.f32.mrb[0].mxu0
      %10136 = vmatprep.mubr.bf16.mxu0 %v9061
      %10137 = vmatmul.mubr.bf16.gmra.mrb[0].mxu0 %v9060
      %v10138 = vpop.f32.mrb[0].mxu0
      %v10139 = vadd.f32 %v9978, %v10138
      %v10140 = vpop.f32.mrb[0].mxu0
      %v10141 = vpop.f32.mrb[0].mxu0
      %v10142 = vadd.f32 %v9981, %v10141
      %v10143 = vpop.f32.mrb[0].mxu0
      %10144 = vmatprep.mubr.bf16.mxu0 %v9070
      %10145 = vmatmul.mubr.bf16.gmra.mrb[0].mxu0 %v9069
      %v10146 = vpop.f32.mrb[0].mxu0
      %v10147 = vadd.f32 %v9986, %v10146
      %v10148 = vpop.f32.mrb[0].mxu0
      %v10149 = vpop.f32.mrb[0].mxu0
      %v10150 = vadd.f32 %v9989, %v10149
      %v10151 = vpop.f32.mrb[0].mxu0
      %10152 = vmatprep.mubr.bf16.mxu0 %v9079
      %10153 = vmatmul.mubr.bf16.gmra.mrb[0].mxu0 %v9078
      %v10154 = vpop.f32.mrb[0].mxu0
      %v10155 = vadd.f32 %v9994, %v10154
      %v10156 = vpop.f32.mrb[0].mxu0
      %v10157 = vpop.f32.mrb[0].mxu0
      %v10158 = vadd.f32 %v9997, %v10157
      %v10159 = vpop.f32.mrb[0].mxu0
      %10160 = vmatprep.mubr.bf16.mxu0 %v9088
      %10161 = vmatmul.mubr.bf16.gmra.mrb[0].mxu0 %v9087
      %v10162 = vpop.f32.mrb[0].mxu0
      %v10163 = vadd.f32 %v10002, %v10162
      %v10164 = vpop.f32.mrb[0].mxu0
      %v10165 = vpop.f32.mrb[0].mxu0
      %v10166 = vadd.f32 %v10005, %v10165
      %v10167 = vpop.f32.mrb[0].mxu0
      %10168 = vmatprep.mubr.bf16.mxu0 %v9097
      %10169 = vmatmul.mubr.bf16.gmra.mrb[0].mxu0 %v9096
      %v10170 = vpop.f32.mrb[0].mxu0
      %v10171 = vadd.f32 %v10010, %v10170
      %v10172 = vpop.f32.mrb[0].mxu0
      %v10173 = vpop.f32.mrb[0].mxu0
      %v10174 = vadd.f32 %v10013, %v10173
      %v10175 = vpop.f32.mrb[0].mxu0
      %10176 = vmatprep.mubr.bf16.mxu0 %v9106
      %10177 = vmatmul.mubr.bf16.gmra.mrb[0].mxu0 %v9105
      %v10178 = vpop.f32.mrb[0].mxu0
      %v10179 = vadd.f32 %v10018, %v10178
      %v10180 = vpop.f32.mrb[0].mxu0
      %v10181 = vpop.f32.mrb[0].mxu0
      %v10182 = vadd.f32 %v10021, %v10181
      %v10183 = vpop.f32.mrb[0].mxu0
      %10184 = vmatprep.mubr.bf16.mxu0 %v9115
      %10185 = vmatmul.mubr.bf16.gmra.mrb[0].mxu0 %v9114
      %v10186 = vpop.f32.mrb[0].mxu0
      %v10187 = vadd.f32 %v10026, %v10186
      %v10188 = vpop.f32.mrb[0].mxu0
      %v10189 = vpop.f32.mrb[0].mxu0
      %v10190 = vadd.f32 %v10029, %v10189
      %v10191 = vpop.f32.mrb[0].mxu0
      %10192 = vmatprep.mubr.bf16.mxu0 %v9124
      %10193 = vmatmul.mubr.bf16.gmra.mrb[0].mxu0 %v9123
      %v10194 = vpop.f32.mrb[0].mxu0
      %v10195 = vadd.f32 %v10034, %v10194
      %v10196 = vpop.f32.mrb[0].mxu0
      %v10197 = vpop.f32.mrb[0].mxu0
      %v10198 = vadd.f32 %v10037, %v10197
      %v10199 = vpop.f32.mrb[0].mxu0
      %10200 = vmatprep.mubr.bf16.mxu0 %v9133
      %10201 = vmatmul.mubr.bf16.gmra.mrb[0].mxu0 %v9132
      %v10202 = vpop.f32.mrb[0].mxu0
      %v10203 = vadd.f32 %v10042, %v10202
      %v10204 = vpop.f32.mrb[0].mxu0
      %v10205 = vpop.f32.mrb[0].mxu0
      %v10206 = vadd.f32 %v10045, %v10205
      %v10207 = vpop.f32.mrb[0].mxu0
      %10208 = vmatprep.mubr.bf16.mxu0 %v9142
      %10209 = vmatmul.mubr.bf16.gmra.mrb[0].mxu0 %v9141
      %v10210 = vpop.f32.mrb[0].mxu0
      %v10211 = vadd.f32 %v10050, %v10210
      %v10212 = vpop.f32.mrb[0].mxu0
      %v10213 = vpop.f32.mrb[0].mxu0
      %v10214 = vadd.f32 %v10053, %v10213
      %v10215 = vpop.f32.mrb[0].mxu0
      %10216 = vmatprep.mubr.bf16.mxu0 %v9151
      %10217 = vmatmul.mubr.bf16.gmra.mrb[0].mxu0 %v9150
      %v10218 = vpop.f32.mrb[0].mxu0
      %v10219 = vadd.f32 %v10058, %v10218
      %v10220 = vpop.f32.mrb[0].mxu0
      %v10221 = vpop.f32.mrb[0].mxu0
      %v10222 = vadd.f32 %v10061, %v10221
      %v10223 = vpop.f32.mrb[0].mxu0
      %10224 = vmatprep.mubr.bf16.mxu0 %v9160
      %10225 = vmatmul.mubr.bf16.gmra.mrb[0].mxu0 %v9159
      %v10226 = vpop.f32.mrb[0].mxu0
      %v10227 = vadd.f32 %v10066, %v10226
      %v10228 = vpop.f32.mrb[0].mxu0
      %v10229 = vpop.f32.mrb[0].mxu0
      %v10230 = vadd.f32 %v10069, %v10229
      %v10231 = vpop.f32.mrb[0].mxu0
      %10232 = vmatprep.mubr.bf16.mxu0 %v9169
      %10233 = vmatmul.mubr.bf16.gmra.mrb[0].mxu0 %v9168
      %v10234 = vpop.f32.mrb[0].mxu0
      %v10235 = vadd.f32 %v10074, %v10234
      %v10236 = vpop.f32.mrb[0].mxu0
      %v10237 = vpop.f32.mrb[0].mxu0
      %v10238 = vadd.f32 %v10077, %v10237
      %v10239 = vpop.f32.mrb[0].mxu0
      %10240 = vmatprep.mubr.bf16.mxu0 %v9178
      %10241 = vmatmul.mubr.bf16.gmra.mrb[0].mxu0 %v9177
      %v10242 = vpop.f32.mrb[0].mxu0
      %v10243 = vadd.f32 %v10082, %v10242
      %v10244 = vpop.f32.mrb[0].mxu0
      %v10245 = vpop.f32.mrb[0].mxu0
      %v10246 = vadd.f32 %v10085, %v10245
      %v10247 = vpop.f32.mrb[0].mxu0
      %10248 = vmatprep.mubr.bf16.mxu0 %v9187
      %10249 = vmatmul.mubr.bf16.gmra.mrb[0].mxu0 %v9186
      %v10250 = vpop.f32.mrb[0].mxu0
      %v10251 = vadd.f32 %v10090, %v10250
      %v10252 = vpop.f32.mrb[0].mxu0
      %v10253 = vpop.f32.mrb[0].mxu0
      %v10254 = vadd.f32 %v10093, %v10253
      %v10255 = vpop.f32.mrb[0].mxu0
      %10256 = vdwg.mxu0
      %10257 = vmatprep.subr.bf16.mxu0 0
      %10258 = vmatpush1.bf16.msra.mxu0 %v9678
      %10259 = vmatprep.subr.bf16.mxu0 0
      %10260 = vmatpush1.bf16.msra.mxu0 %v9679
      %10261 = vmatprep.subr.bf16.mxu0 0
      %10262 = vmatpush1.bf16.msra.mxu0 %v9680
      %10263 = vmatprep.subr.bf16.mxu0 0
      %10264 = vmatpush1.bf16.msra.mxu0 %v9681
      %10265 = vmatprep.subr.bf16.mxu0 0
      %10266 = vmatpush1.bf16.msra.mxu0 %v9682
      %10267 = vmatprep.subr.bf16.mxu0 0
      %10268 = vmatpush1.bf16.msra.mxu0 %v9683
      %10269 = vmatprep.subr.bf16.mxu0 0
      %10270 = vmatpush1.bf16.msra.mxu0 %v9684
      %10271 = vmatprep.subr.bf16.mxu0 0
      %10272 = vmatpush1.bf16.msra.mxu0 %v9685
      %10273 = vmatprep.subr.bf16.mxu0 0
      %10274 = vmatpush1.bf16.msra.mxu0 %v9686
      %10275 = vmatprep.subr.bf16.mxu0 0
      %10276 = vmatpush1.bf16.msra.mxu0 %v9687
      %10277 = vmatprep.subr.bf16.mxu0 0
      %10278 = vmatpush1.bf16.msra.mxu0 %v9688
      %10279 = vmatprep.subr.bf16.mxu0 0
      %10280 = vmatpush1.bf16.msra.mxu0 %v9689
      %10281 = vmatprep.subr.bf16.mxu0 0
      %10282 = vmatpush1.bf16.msra.mxu0 %v9690
      %10283 = vmatprep.subr.bf16.mxu0 0
      %10284 = vmatpush1.bf16.msra.mxu0 %v9691
      %10285 = vmatprep.subr.bf16.mxu0 0
      %10286 = vmatpush1.bf16.msra.mxu0 %v9692
      %10287 = vmatprep.subr.bf16.mxu0 0
      %10288 = vmatpush1.bf16.msra.mxu0 %v9693
      %10289 = vmatprep.mubr.bf16.mxu0 %v9054
      %10290 = vmatmul.mubr.bf16.gmra.mrb[0].mxu0 %v9053
      %v10291 = vpop.f32.mrb[0].mxu0
      %v10292 = vadd.f32 %v10131, %v10291
      %v10293 = vpop.f32.mrb[0].mxu0
      %v10294 = vpop.f32.mrb[0].mxu0
      %v10295 = vadd.f32 %v10134, %v10294
      %v10296 = vpop.f32.mrb[0].mxu0
      %10297 = vmatprep.mubr.bf16.mxu0 %v9063
      %10298 = vmatmul.mubr.bf16.gmra.mrb[0].mxu0 %v9062
      %v10299 = vpop.f32.mrb[0].mxu0
      %v10300 = vadd.f32 %v10139, %v10299
      %v10301 = vpop.f32.mrb[0].mxu0
      %v10302 = vpop.f32.mrb[0].mxu0
      %v10303 = vadd.f32 %v10142, %v10302
      %v10304 = vpop.f32.mrb[0].mxu0
      %10305 = vmatprep.mubr.bf16.mxu0 %v9072
      %10306 = vmatmul.mubr.bf16.gmra.mrb[0].mxu0 %v9071
      %v10307 = vpop.f32.mrb[0].mxu0
      %v10308 = vadd.f32 %v10147, %v10307
      %v10309 = vpop.f32.mrb[0].mxu0
      %v10310 = vpop.f32.mrb[0].mxu0
      %v10311 = vadd.f32 %v10150, %v10310
      %v10312 = vpop.f32.mrb[0].mxu0
      %10313 = vmatprep.mubr.bf16.mxu0 %v9081
      %10314 = vmatmul.mubr.bf16.gmra.mrb[0].mxu0 %v9080
      %v10315 = vpop.f32.mrb[0].mxu0
      %v10316 = vadd.f32 %v10155, %v10315
      %v10317 = vpop.f32.mrb[0].mxu0
      %v10318 = vpop.f32.mrb[0].mxu0
      %v10319 = vadd.f32 %v10158, %v10318
      %v10320 = vpop.f32.mrb[0].mxu0
      %10321 = vmatprep.mubr.bf16.mxu0 %v9090
      %10322 = vmatmul.mubr.bf16.gmra.mrb[0].mxu0 %v9089
      %v10323 = vpop.f32.mrb[0].mxu0
      %v10324 = vadd.f32 %v10163, %v10323
      %v10325 = vpop.f32.mrb[0].mxu0
      %v10326 = vpop.f32.mrb[0].mxu0
      %v10327 = vadd.f32 %v10166, %v10326
      %v10328 = vpop.f32.mrb[0].mxu0
      %10329 = vmatprep.mubr.bf16.mxu0 %v9099
      %10330 = vmatmul.mubr.bf16.gmra.mrb[0].mxu0 %v9098
      %v10331 = vpop.f32.mrb[0].mxu0
      %v10332 = vadd.f32 %v10171, %v10331
      %v10333 = vpop.f32.mrb[0].mxu0
      %v10334 = vpop.f32.mrb[0].mxu0
      %v10335 = vadd.f32 %v10174, %v10334
      %v10336 = vpop.f32.mrb[0].mxu0
      %10337 = vmatprep.mubr.bf16.mxu0 %v9108
      %10338 = vmatmul.mubr.bf16.gmra.mrb[0].mxu0 %v9107
      %v10339 = vpop.f32.mrb[0].mxu0
      %v10340 = vadd.f32 %v10179, %v10339
      %v10341 = vpop.f32.mrb[0].mxu0
      %v10342 = vpop.f32.mrb[0].mxu0
      %v10343 = vadd.f32 %v10182, %v10342
      %v10344 = vpop.f32.mrb[0].mxu0
      %10345 = vmatprep.mubr.bf16.mxu0 %v9117
      %10346 = vmatmul.mubr.bf16.gmra.mrb[0].mxu0 %v9116
      %v10347 = vpop.f32.mrb[0].mxu0
      %v10348 = vadd.f32 %v10187, %v10347
      %v10349 = vpop.f32.mrb[0].mxu0
      %v10350 = vpop.f32.mrb[0].mxu0
      %v10351 = vadd.f32 %v10190, %v10350
      %v10352 = vpop.f32.mrb[0].mxu0
      %10353 = vmatprep.mubr.bf16.mxu0 %v9126
      %10354 = vmatmul.mubr.bf16.gmra.mrb[0].mxu0 %v9125
      %v10355 = vpop.f32.mrb[0].mxu0
      %v10356 = vadd.f32 %v10195, %v10355
      %v10357 = vpop.f32.mrb[0].mxu0
      %v10358 = vpop.f32.mrb[0].mxu0
      %v10359 = vadd.f32 %v10198, %v10358
      %v10360 = vpop.f32.mrb[0].mxu0
      %10361 = vmatprep.mubr.bf16.mxu0 %v9135
      %10362 = vmatmul.mubr.bf16.gmra.mrb[0].mxu0 %v9134
      %v10363 = vpop.f32.mrb[0].mxu0
      %v10364 = vadd.f32 %v10203, %v10363
      %v10365 = vpop.f32.mrb[0].mxu0
      %v10366 = vpop.f32.mrb[0].mxu0
      %v10367 = vadd.f32 %v10206, %v10366
      %v10368 = vpop.f32.mrb[0].mxu0
      %10369 = vmatprep.mubr.bf16.mxu0 %v9144
      %10370 = vmatmul.mubr.bf16.gmra.mrb[0].mxu0 %v9143
      %v10371 = vpop.f32.mrb[0].mxu0
      %v10372 = vadd.f32 %v10211, %v10371
      %v10373 = vpop.f32.mrb[0].mxu0
      %v10374 = vpop.f32.mrb[0].mxu0
      %v10375 = vadd.f32 %v10214, %v10374
      %v10376 = vpop.f32.mrb[0].mxu0
      %10377 = vmatprep.mubr.bf16.mxu0 %v9153
      %10378 = vmatmul.mubr.bf16.gmra.mrb[0].mxu0 %v9152
      %v10379 = vpop.f32.mrb[0].mxu0
      %v10380 = vadd.f32 %v10219, %v10379
      %v10381 = vpop.f32.mrb[0].mxu0
      %v10382 = vpop.f32.mrb[0].mxu0
      %v10383 = vadd.f32 %v10222, %v10382
      %v10384 = vpop.f32.mrb[0].mxu0
      %10385 = vmatprep.mubr.bf16.mxu0 %v9162
      %10386 = vmatmul.mubr.bf16.gmra.mrb[0].mxu0 %v9161
      %v10387 = vpop.f32.mrb[0].mxu0
      %v10388 = vadd.f32 %v10227, %v10387
      %v10389 = vpop.f32.mrb[0].mxu0
      %v10390 = vpop.f32.mrb[0].mxu0
      %v10391 = vadd.f32 %v10230, %v10390
      %v10392 = vpop.f32.mrb[0].mxu0
      %10393 = vmatprep.mubr.bf16.mxu0 %v9171
      %10394 = vmatmul.mubr.bf16.gmra.mrb[0].mxu0 %v9170
      %v10395 = vpop.f32.mrb[0].mxu0
      %v10396 = vadd.f32 %v10235, %v10395
      %v10397 = vpop.f32.mrb[0].mxu0
      %v10398 = vpop.f32.mrb[0].mxu0
      %v10399 = vadd.f32 %v10238, %v10398
      %v10400 = vpop.f32.mrb[0].mxu0
      %10401 = vmatprep.mubr.bf16.mxu0 %v9180
      %10402 = vmatmul.mubr.bf16.gmra.mrb[0].mxu0 %v9179
      %v10403 = vpop.f32.mrb[0].mxu0
      %v10404 = vadd.f32 %v10243, %v10403
      %v10405 = vpop.f32.mrb[0].mxu0
      %v10406 = vpop.f32.mrb[0].mxu0
      %v10407 = vadd.f32 %v10246, %v10406
      %v10408 = vpop.f32.mrb[0].mxu0
      %10409 = vmatprep.mubr.bf16.mxu0 %v9189
      %10410 = vmatmul.mubr.bf16.gmra.mrb[0].mxu0 %v9188
      %v10411 = vpop.f32.mrb[0].mxu0
      %v10412 = vadd.f32 %v10251, %v10411
      %v10413 = vpop.f32.mrb[0].mxu0
      %v10414 = vpop.f32.mrb[0].mxu0
      %v10415 = vadd.f32 %v10254, %v10414
      %v10416 = vpop.f32.mrb[0].mxu0
      %10417 = vdwg.mxu0
      %10418 = vmatprep.subr.bf16.mxu0 0
      %10419 = vmatpush1.bf16.msra.mxu0 %v9694
      %10420 = vmatprep.subr.bf16.mxu0 0
      %10421 = vmatpush1.bf16.msra.mxu0 %v9695
      %10422 = vmatprep.subr.bf16.mxu0 0
      %10423 = vmatpush1.bf16.msra.mxu0 %v9696
      %10424 = vmatprep.subr.bf16.mxu0 0
      %10425 = vmatpush1.bf16.msra.mxu0 %v9697
      %10426 = vmatprep.subr.bf16.mxu0 0
      %10427 = vmatpush1.bf16.msra.mxu0 %v9698
      %10428 = vmatprep.subr.bf16.mxu0 0
      %10429 = vmatpush1.bf16.msra.mxu0 %v9699
      %10430 = vmatprep.subr.bf16.mxu0 0
      %10431 = vmatpush1.bf16.msra.mxu0 %v9700
      %10432 = vmatprep.subr.bf16.mxu0 0
      %10433 = vmatpush1.bf16.msra.mxu0 %v9701
      %10434 = vmatprep.subr.bf16.mxu0 0
      %10435 = vmatpush1.bf16.msra.mxu0 0
      %10436 = vmatprep.subr.bf16.mxu0 0
      %10437 = vmatpush1.bf16.msra.mxu0 0
      %10438 = vmatprep.subr.bf16.mxu0 0
      %10439 = vmatpush1.bf16.msra.mxu0 0
      %10440 = vmatprep.subr.bf16.mxu0 0
      %10441 = vmatpush1.bf16.msra.mxu0 0
      %10442 = vmatprep.subr.bf16.mxu0 0
      %10443 = vmatpush1.bf16.msra.mxu0 0
      %10444 = vmatprep.subr.bf16.mxu0 0
      %10445 = vmatpush1.bf16.msra.mxu0 0
      %10446 = vmatprep.subr.bf16.mxu0 0
      %10447 = vmatpush1.bf16.msra.mxu0 0
      %10448 = vmatprep.subr.bf16.mxu0 0
      %10449 = vmatpush1.bf16.msra.mxu0 0
      %10450 = vmatprep.mubr.bf16.mxu0 0
      %10451 = vmatmul.mubr.bf16.gmra.mrb[0].mxu0 %v9055
      %v10452 = vpop.f32.mrb[0].mxu0
      %v10453 = vadd.f32 %v10292, %v10452
      %v10454 = vpop.f32.mrb[0].mxu0
      %v10455 = vpop.f32.mrb[0].mxu0
      %v10456 = vadd.f32 %v10295, %v10455
      %v10457 = vpop.f32.mrb[0].mxu0
      %10458 = vmatprep.mubr.bf16.mxu0 0
      %10459 = vmatmul.mubr.bf16.gmra.mrb[0].mxu0 %v9064
      %v10460 = vpop.f32.mrb[0].mxu0
      %v10461 = vadd.f32 %v10300, %v10460
      %v10462 = vpop.f32.mrb[0].mxu0
      %v10463 = vpop.f32.mrb[0].mxu0
      %v10464 = vadd.f32 %v10303, %v10463
      %v10465 = vpop.f32.mrb[0].mxu0
      %10466 = vmatprep.mubr.bf16.mxu0 0
      %10467 = vmatmul.mubr.bf16.gmra.mrb[0].mxu0 %v9073
      %v10468 = vpop.f32.mrb[0].mxu0
      %v10469 = vadd.f32 %v10308, %v10468
      %v10470 = vpop.f32.mrb[0].mxu0
      %v10471 = vpop.f32.mrb[0].mxu0
      %v10472 = vadd.f32 %v10311, %v10471
      %v10473 = vpop.f32.mrb[0].mxu0
      %10474 = vmatprep.mubr.bf16.mxu0 0
      %10475 = vmatmul.mubr.bf16.gmra.mrb[0].mxu0 %v9082
      %v10476 = vpop.f32.mrb[0].mxu0
      %v10477 = vadd.f32 %v10316, %v10476
      %v10478 = vpop.f32.mrb[0].mxu0
      %v10479 = vpop.f32.mrb[0].mxu0
      %v10480 = vadd.f32 %v10319, %v10479
      %v10481 = vpop.f32.mrb[0].mxu0
      %10482 = vmatprep.mubr.bf16.mxu0 0
      %10483 = vmatmul.mubr.bf16.gmra.mrb[0].mxu0 %v9091
      %v10484 = vpop.f32.mrb[0].mxu0
      %v10485 = vadd.f32 %v10324, %v10484
      %v10486 = vpop.f32.mrb[0].mxu0
      %v10487 = vpop.f32.mrb[0].mxu0
      %v10488 = vadd.f32 %v10327, %v10487
      %v10489 = vpop.f32.mrb[0].mxu0
      %10490 = vmatprep.mubr.bf16.mxu0 0
      %10491 = vmatmul.mubr.bf16.gmra.mrb[0].mxu0 %v9100
      %v10492 = vpop.f32.mrb[0].mxu0
      %v10493 = vadd.f32 %v10332, %v10492
      %v10494 = vpop.f32.mrb[0].mxu0
      %v10495 = vpop.f32.mrb[0].mxu0
      %v10496 = vadd.f32 %v10335, %v10495
      %v10497 = vpop.f32.mrb[0].mxu0
      %10498 = vmatprep.mubr.bf16.mxu0 0
      %10499 = vmatmul.mubr.bf16.gmra.mrb[0].mxu0 %v9109
      %v10500 = vpop.f32.mrb[0].mxu0
      %v10501 = vadd.f32 %v10340, %v10500
      %v10502 = vpop.f32.mrb[0].mxu0
      %v10503 = vpop.f32.mrb[0].mxu0
      %v10504 = vadd.f32 %v10343, %v10503
      %v10505 = vpop.f32.mrb[0].mxu0
      %10506 = vmatprep.mubr.bf16.mxu0 0
      %10507 = vmatmul.mubr.bf16.gmra.mrb[0].mxu0 %v9118
      %v10508 = vpop.f32.mrb[0].mxu0
      %v10509 = vadd.f32 %v10348, %v10508
      %v10510 = vpop.f32.mrb[0].mxu0
      %v10511 = vpop.f32.mrb[0].mxu0
      %v10512 = vadd.f32 %v10351, %v10511
      %v10513 = vpop.f32.mrb[0].mxu0
      %10514 = vmatprep.mubr.bf16.mxu0 0
      %10515 = vmatmul.mubr.bf16.gmra.mrb[0].mxu0 %v9127
      %v10516 = vpop.f32.mrb[0].mxu0
      %v10517 = vadd.f32 %v10356, %v10516
      %v10518 = vpop.f32.mrb[0].mxu0
      %v10519 = vpop.f32.mrb[0].mxu0
      %v10520 = vadd.f32 %v10359, %v10519
      %v10521 = vpop.f32.mrb[0].mxu0
      %10522 = vmatprep.mubr.bf16.mxu0 0
      %10523 = vmatmul.mubr.bf16.gmra.mrb[0].mxu0 %v9136
      %v10524 = vpop.f32.mrb[0].mxu0
      %v10525 = vadd.f32 %v10364, %v10524
      %v10526 = vpop.f32.mrb[0].mxu0
      %v10527 = vpop.f32.mrb[0].mxu0
      %v10528 = vadd.f32 %v10367, %v10527
      %v10529 = vpop.f32.mrb[0].mxu0
      %10530 = vmatprep.mubr.bf16.mxu0 0
      %10531 = vmatmul.mubr.bf16.gmra.mrb[0].mxu0 %v9145
      %v10532 = vpop.f32.mrb[0].mxu0
      %v10533 = vadd.f32 %v10372, %v10532
      %v10534 = vpop.f32.mrb[0].mxu0
      %v10535 = vpop.f32.mrb[0].mxu0
      %v10536 = vadd.f32 %v10375, %v10535
      %v10537 = vpop.f32.mrb[0].mxu0
      %10538 = vmatprep.mubr.bf16.mxu0 0
      %10539 = vmatmul.mubr.bf16.gmra.mrb[0].mxu0 %v9154
      %v10540 = vpop.f32.mrb[0].mxu0
      %v10541 = vadd.f32 %v10380, %v10540
      %v10542 = vpop.f32.mrb[0].mxu0
      %v10543 = vpop.f32.mrb[0].mxu0
      %v10544 = vadd.f32 %v10383, %v10543
      %v10545 = vpop.f32.mrb[0].mxu0
      %10546 = vmatprep.mubr.bf16.mxu0 0
      %10547 = vmatmul.mubr.bf16.gmra.mrb[0].mxu0 %v9163
      %v10548 = vpop.f32.mrb[0].mxu0
      %v10549 = vadd.f32 %v10388, %v10548
      %v10550 = vpop.f32.mrb[0].mxu0
      %v10551 = vpop.f32.mrb[0].mxu0
      %v10552 = vadd.f32 %v10391, %v10551
      %v10553 = vpop.f32.mrb[0].mxu0
      %10554 = vmatprep.mubr.bf16.mxu0 0
      %10555 = vmatmul.mubr.bf16.gmra.mrb[0].mxu0 %v9172
      %v10556 = vpop.f32.mrb[0].mxu0
      %v10557 = vadd.f32 %v10396, %v10556
      %v10558 = vpop.f32.mrb[0].mxu0
      %v10559 = vpop.f32.mrb[0].mxu0
      %v10560 = vadd.f32 %v10399, %v10559
      %v10561 = vpop.f32.mrb[0].mxu0
      %10562 = vmatprep.mubr.bf16.mxu0 0
      %10563 = vmatmul.mubr.bf16.gmra.mrb[0].mxu0 %v9181
      %v10564 = vpop.f32.mrb[0].mxu0
      %v10565 = vadd.f32 %v10404, %v10564
      %v10566 = vpop.f32.mrb[0].mxu0
      %v10567 = vpop.f32.mrb[0].mxu0
      %v10568 = vadd.f32 %v10407, %v10567
      %v10569 = vpop.f32.mrb[0].mxu0
      %10570 = vmatprep.mubr.bf16.mxu0 0
      %10571 = vmatmul.mubr.bf16.gmra.mrb[0].mxu0 %v9190
      %v10572 = vpop.f32.mrb[0].mxu0
      %v10573 = vadd.f32 %v10412, %v10572
      %v10574 = vpop.f32.mrb[0].mxu0
      %v10575 = vpop.f32.mrb[0].mxu0
      %v10576 = vadd.f32 %v10415, %v10575
      %v10577 = vpop.f32.mrb[0].mxu0
      %10578 = vdwg.mxu0
      %v10579 = vld [vmem:[%s7] sm:$0x1]
      %v10580 = vld [vmem:[%s8] sm:$0x1]
      %v10581 = vadd.f32 %v10453, %v10456
      %v10582 = vadd.f32 %v10581, %v10461
      %v10583 = vadd.f32 %v10582, %v10464
      %v10584 = vadd.f32 %v10583, %v10469
      %v10585 = vadd.f32 %v10584, %v10472
      %v10586 = vadd.f32 %v10585, %v10477
      %v10587 = vadd.f32 %v10586, %v10480
      %v10588 = vadd.f32 %v10587, %v10485
      %v10589 = vadd.f32 %v10588, %v10488
      %v10590 = vadd.f32 %v10589, %v10493
      %v10591 = vadd.f32 %v10590, %v10496
      %v10592 = vadd.f32 %v10591, %v10501
      %v10593 = vadd.f32 %v10592, %v10504
      %v10594 = vadd.f32 %v10593, %v10509
      %v10595 = vadd.f32 %v10594, %v10512
      %v10596 = vadd.f32 %v10595, %v10517
      %v10597 = vadd.f32 %v10596, %v10520
      %v10598 = vadd.f32 %v10597, %v10525
      %v10599 = vadd.f32 %v10598, %v10528
      %v10600 = vadd.f32 %v10599, %v10533
      %v10601 = vadd.f32 %v10600, %v10536
      %v10602 = vadd.f32 %v10601, %v10541
      %v10603 = vadd.f32 %v10602, %v10544
      %v10604 = vadd.f32 %v10603, %v10549
      %v10605 = vadd.f32 %v10604, %v10552
      %v10606 = vadd.f32 %v10605, %v10557
      %v10607 = vadd.f32 %v10606, %v10560
      %v10608 = vadd.f32 %v10607, %v10565
      %v10609 = vadd.f32 %v10608, %v10568
      %v10610 = vadd.f32 %v10609, %v10573
      %v10611 = vadd.f32 %v10610, %v10576
      %v10612 = vrot.slane %v10611, 4
      %v10613 = vadd.f32 %v10611, %v10612
      %v10614 = vrot.slane %v10613, 2
      %v10615 = vadd.f32 %v10613, %v10614
      %v10616 = vrot.slane %v10615, 1
      %v10617 = vadd.f32 %v10615, %v10616
      %v10618 = vmul.f32 %v10453, %v10453
      %v10619 = vmul.f32 %v10456, %v10456
      %v10620 = vmul.f32 %v10461, %v10461
      %v10621 = vmul.f32 %v10464, %v10464
      %v10622 = vmul.f32 %v10469, %v10469
      %v10623 = vmul.f32 %v10472, %v10472
      %v10624 = vmul.f32 %v10477, %v10477
      %v10625 = vmul.f32 %v10480, %v10480
      %v10626 = vmul.f32 %v10485, %v10485
      %v10627 = vmul.f32 %v10488, %v10488
      %v10628 = vmul.f32 %v10493, %v10493
      %v10629 = vmul.f32 %v10496, %v10496
      %v10630 = vmul.f32 %v10501, %v10501
      %v10631 = vmul.f32 %v10504, %v10504
      %v10632 = vmul.f32 %v10509, %v10509
      %v10633 = vmul.f32 %v10512, %v10512
      %v10634 = vmul.f32 %v10517, %v10517
      %v10635 = vmul.f32 %v10520, %v10520
      %v10636 = vmul.f32 %v10525, %v10525
      %v10637 = vmul.f32 %v10528, %v10528
      %v10638 = vmul.f32 %v10533, %v10533
      %v10639 = vmul.f32 %v10536, %v10536
      %v10640 = vmul.f32 %v10541, %v10541
      %v10641 = vmul.f32 %v10544, %v10544
      %v10642 = vmul.f32 %v10549, %v10549
      %v10643 = vmul.f32 %v10552, %v10552
      %v10644 = vmul.f32 %v10557, %v10557
      %v10645 = vmul.f32 %v10560, %v10560
      %v10646 = vmul.f32 %v10565, %v10565
      %v10647 = vmul.f32 %v10568, %v10568
      %v10648 = vmul.f32 %v10573, %v10573
      %v10649 = vmul.f32 %v10576, %v10576
      %v10650 = vadd.f32 %v10618, %v10619
      %v10651 = vadd.f32 %v10650, %v10620
      %v10652 = vadd.f32 %v10651, %v10621
      %v10653 = vadd.f32 %v10652, %v10622
      %v10654 = vadd.f32 %v10653, %v10623
      %v10655 = vadd.f32 %v10654, %v10624
      %v10656 = vadd.f32 %v10655, %v10625
      %v10657 = vadd.f32 %v10656, %v10626
      %v10658 = vadd.f32 %v10657, %v10627
      %v10659 = vadd.f32 %v10658, %v10628
      %v10660 = vadd.f32 %v10659, %v10629
      %v10661 = vadd.f32 %v10660, %v10630
      %v10662 = vadd.f32 %v10661, %v10631
      %v10663 = vadd.f32 %v10662, %v10632
      %v10664 = vadd.f32 %v10663, %v10633
      %v10665 = vadd.f32 %v10664, %v10634
      %v10666 = vadd.f32 %v10665, %v10635
      %v10667 = vadd.f32 %v10666, %v10636
      %v10668 = vadd.f32 %v10667, %v10637
      %v10669 = vadd.f32 %v10668, %v10638
      %v10670 = vadd.f32 %v10669, %v10639
      %v10671 = vadd.f32 %v10670, %v10640
      %v10672 = vadd.f32 %v10671, %v10641
      %v10673 = vadd.f32 %v10672, %v10642
      %v10674 = vadd.f32 %v10673, %v10643
      %v10675 = vadd.f32 %v10674, %v10644
      %v10676 = vadd.f32 %v10675, %v10645
      %v10677 = vadd.f32 %v10676, %v10646
      %v10678 = vadd.f32 %v10677, %v10647
      %v10679 = vadd.f32 %v10678, %v10648
      %v10680 = vadd.f32 %v10679, %v10649
      %v10681 = vrot.slane %v10680, 4
      %v10682 = vadd.f32 %v10680, %v10681
      %v10683 = vrot.slane %v10682, 2
      %v10684 = vadd.f32 %v10682, %v10683
      %v10685 = vrot.slane %v10684, 1
      %v10686 = vadd.f32 %v10684, %v10685
      %v10687 = vld [vmem:[%s9] sm:$0xff]
      %v10688 = vld [vmem:[%s9 + $0x8] sm:$0xff]
      %v10689 = vld [vmem:[%s9 + $0x10] sm:$0xff]
      %v10690 = vld [vmem:[%s9 + $0x18] sm:$0xff]
      %v10691 = vld [vmem:[%s9 + $0x20] sm:$0xff]
      %v10692 = vld [vmem:[%s9 + $0x28] sm:$0xff]
      %v10693 = vld [vmem:[%s9 + $0x30] sm:$0xff]
      %v10694 = vld [vmem:[%s9 + $0x38] sm:$0xff]
      %v10695 = vld [vmem:[%s9 + $0x40] sm:$0xff]
      %v10696 = vld [vmem:[%s9 + $0x48] sm:$0xff]
      %v10697 = vld [vmem:[%s9 + $0x50] sm:$0xff]
      %v10698 = vld [vmem:[%s9 + $0x58] sm:$0xff]
      %v10699 = vld [vmem:[%s9 + $0x60] sm:$0xff]
      %v10700 = vld [vmem:[%s9 + $0x68] sm:$0xff]
      %v10701 = vld [vmem:[%s9 + $0x70] sm:$0xff]
      %v10702 = vld [vmem:[%s9 + $0x78] sm:$0xff]
      %10703 = vmatprep.subr.mxu0 0.0
      %10704 = vmatpush1.msra.mxu0 %v10687
      %10705 = vmatprep.subr.mxu0 0.0
      %10706 = vmatpush1.msra.mxu0 %v10688
      %10707 = vmatprep.subr.mxu0 0.0
      %10708 = vmatpush1.msra.mxu0 %v10689
      %10709 = vmatprep.subr.mxu0 0.0
      %10710 = vmatpush1.msra.mxu0 %v10690
      %10711 = vmatprep.subr.mxu0 0.0
      %10712 = vmatpush1.msra.mxu0 %v10691
      %10713 = vmatprep.subr.mxu0 0.0
      %10714 = vmatpush1.msra.mxu0 %v10692
      %10715 = vmatprep.subr.mxu0 0.0
      %10716 = vmatpush1.msra.mxu0 %v10693
      %10717 = vmatprep.subr.mxu0 0.0
      %10718 = vmatpush1.msra.mxu0 %v10694
      %10719 = vmatprep.subr.mxu0 0.0
      %10720 = vmatpush1.msra.mxu0 %v10695
      %10721 = vmatprep.subr.mxu0 0.0
      %10722 = vmatpush1.msra.mxu0 %v10696
      %10723 = vmatprep.subr.mxu0 0.0
      %10724 = vmatpush1.msra.mxu0 %v10697
      %10725 = vmatprep.subr.mxu0 0.0
      %10726 = vmatpush1.msra.mxu0 %v10698
      %10727 = vmatprep.subr.mxu0 0.0
      %10728 = vmatpush1.msra.mxu0 %v10699
      %10729 = vmatprep.subr.mxu0 0.0
      %10730 = vmatpush1.msra.mxu0 %v10700
      %10731 = vmatprep.subr.mxu0 0.0
      %10732 = vmatpush1.msra.mxu0 %v10701
      %10733 = vmatprep.subr.mxu0 0.0
      %10734 = vmatpush1.msra.mxu0 %v10702
      %10735 = vmatprep.subr.mxu0 0.0
      %10736 = vmatpush1.msra.mxu0 0.0
      %10737 = vmatprep.subr.mxu0 0.0
      %10738 = vmatpush1.msra.mxu0 0.0
      %10739 = vmatprep.subr.mxu0 0.0
      %10740 = vmatpush1.msra.mxu0 0.0
      %10741 = vmatprep.subr.mxu0 0.0
      %10742 = vmatpush1.msra.mxu0 0.0
      %10743 = vmatprep.subr.mxu0 0.0
      %10744 = vmatpush1.msra.mxu0 0.0
      %10745 = vmatprep.subr.mxu0 0.0
      %10746 = vmatpush1.msra.mxu0 0.0
      %10747 = vmatprep.subr.mxu0 0.0
      %10748 = vmatpush1.msra.mxu0 0.0
      %10749 = vmatprep.subr.mxu0 0.0
      %10750 = vmatpush1.msra.mxu0 0.0
      %10751 = vmatprep.subr.mxu0 0.0
      %10752 = vmatpush1.msra.mxu0 0.0
      %10753 = vmatprep.subr.mxu0 0.0
      %10754 = vmatpush1.msra.mxu0 0.0
      %10755 = vmatprep.subr.mxu0 0.0
      %10756 = vmatpush1.msra.mxu0 0.0
      %10757 = vmatprep.subr.mxu0 0.0
      %10758 = vmatpush1.msra.mxu0 0.0
      %10759 = vmatprep.subr.mxu0 0.0
      %10760 = vmatpush1.msra.mxu0 0.0
      %10761 = vmatprep.subr.mxu0 0.0
      %10762 = vmatpush1.msra.mxu0 0.0
      %10763 = vmatprep.subr.mxu0 0.0
      %10764 = vmatpush1.msra.mxu0 0.0
      %10765 = vmatprep.subr.mxu0 0.0
      %10766 = vmatpush1.msra.mxu0 0.0
      %10767 = vmatprep.mubr.f32.mxu0 0.0
      %10768 = vmatmul.mubr.f32.gmra.mrb[0].mxu0 %v10617
      %v10769 = vpop.f32.mrb[0].mxu0
      %v10770 = vadd.f32 0.0, %v10769
      %v10771 = vpop.f32.mrb[0].mxu0
      %10772 = vdwg.mxu0
      %10773 = vmatprep.subr.mxu0 0.0
      %10774 = vmatpush1.msra.mxu0 %v10687
      %10775 = vmatprep.subr.mxu0 0.0
      %10776 = vmatpush1.msra.mxu0 %v10688
      %10777 = vmatprep.subr.mxu0 0.0
      %10778 = vmatpush1.msra.mxu0 %v10689
      %10779 = vmatprep.subr.mxu0 0.0
      %10780 = vmatpush1.msra.mxu0 %v10690
      %10781 = vmatprep.subr.mxu0 0.0
      %10782 = vmatpush1.msra.mxu0 %v10691
      %10783 = vmatprep.subr.mxu0 0.0
      %10784 = vmatpush1.msra.mxu0 %v10692
      %10785 = vmatprep.subr.mxu0 0.0
      %10786 = vmatpush1.msra.mxu0 %v10693
      %10787 = vmatprep.subr.mxu0 0.0
      %10788 = vmatpush1.msra.mxu0 %v10694
      %10789 = vmatprep.subr.mxu0 0.0
      %10790 = vmatpush1.msra.mxu0 %v10695
      %10791 = vmatprep.subr.mxu0 0.0
      %10792 = vmatpush1.msra.mxu0 %v10696
      %10793 = vmatprep.subr.mxu0 0.0
      %10794 = vmatpush1.msra.mxu0 %v10697
      %10795 = vmatprep.subr.mxu0 0.0
      %10796 = vmatpush1.msra.mxu0 %v10698
      %10797 = vmatprep.subr.mxu0 0.0
      %10798 = vmatpush1.msra.mxu0 %v10699
      %10799 = vmatprep.subr.mxu0 0.0
      %10800 = vmatpush1.msra.mxu0 %v10700
      %10801 = vmatprep.subr.mxu0 0.0
      %10802 = vmatpush1.msra.mxu0 %v10701
      %10803 = vmatprep.subr.mxu0 0.0
      %10804 = vmatpush1.msra.mxu0 %v10702
      %10805 = vmatprep.subr.mxu0 0.0
      %10806 = vmatpush1.msra.mxu0 0.0
      %10807 = vmatprep.subr.mxu0 0.0
      %10808 = vmatpush1.msra.mxu0 0.0
      %10809 = vmatprep.subr.mxu0 0.0
      %10810 = vmatpush1.msra.mxu0 0.0
      %10811 = vmatprep.subr.mxu0 0.0
      %10812 = vmatpush1.msra.mxu0 0.0
      %10813 = vmatprep.subr.mxu0 0.0
      %10814 = vmatpush1.msra.mxu0 0.0
      %10815 = vmatprep.subr.mxu0 0.0
      %10816 = vmatpush1.msra.mxu0 0.0
      %10817 = vmatprep.subr.mxu0 0.0
      %10818 = vmatpush1.msra.mxu0 0.0
      %10819 = vmatprep.subr.mxu0 0.0
      %10820 = vmatpush1.msra.mxu0 0.0
      %10821 = vmatprep.subr.mxu0 0.0
      %10822 = vmatpush1.msra.mxu0 0.0
      %10823 = vmatprep.subr.mxu0 0.0
      %10824 = vmatpush1.msra.mxu0 0.0
      %10825 = vmatprep.subr.mxu0 0.0
      %10826 = vmatpush1.msra.mxu0 0.0
      %10827 = vmatprep.subr.mxu0 0.0
      %10828 = vmatpush1.msra.mxu0 0.0
      %10829 = vmatprep.subr.mxu0 0.0
      %10830 = vmatpush1.msra.mxu0 0.0
      %10831 = vmatprep.subr.mxu0 0.0
      %10832 = vmatpush1.msra.mxu0 0.0
      %10833 = vmatprep.subr.mxu0 0.0
      %10834 = vmatpush1.msra.mxu0 0.0
      %10835 = vmatprep.subr.mxu0 0.0
      %10836 = vmatpush1.msra.mxu0 0.0
      %10837 = vmatprep.mubr.f32.mxu0 0.0
      %10838 = vmatmul.mubr.f32.gmra.mrb[0].mxu0 %v10686
      %v10839 = vpop.f32.mrb[0].mxu0
      %v10840 = vadd.f32 0.0, %v10839
      %v10841 = vpop.f32.mrb[0].mxu0
      %10842 = vdwg.mxu0
      %v10843 = vmul.f32 %v10770, %v10770
      %v10844 = vsub.f32 %v10840, %v10843
      %v10845 = vmax.f32 %v10844, 0.0
      %v10846 = vadd.f32 %v10845, 1e-05
      %v10847 = vrsqrt.pop %v10846
      %v10848 = vmul.f32 %v10847, %v10579
      %v10849 = vmul.f32 %v10770, %v10848
      %v10850 = vsub.f32 %v10580, %v10849
      %v10851 = vlaneseq
      %v10852 = vshrl.u32 %v10851, 7
      %v10853 = vsub.s32 0, %v10852
      %v10854 = vrot.slane %v10848, %v10853
      %v10855 = vmul.f32 %v10453, %v10854
      %v10856 = vmul.f32 %v10456, %v10854
      %v10857 = vmul.f32 %v10461, %v10854
      %v10858 = vmul.f32 %v10464, %v10854
      %v10859 = vmul.f32 %v10469, %v10854
      %v10860 = vmul.f32 %v10472, %v10854
      %v10861 = vmul.f32 %v10477, %v10854
      %v10862 = vmul.f32 %v10480, %v10854
      %v10863 = vmul.f32 %v10485, %v10854
      %v10864 = vmul.f32 %v10488, %v10854
      %v10865 = vmul.f32 %v10493, %v10854
      %v10866 = vmul.f32 %v10496, %v10854
      %v10867 = vmul.f32 %v10501, %v10854
      %v10868 = vmul.f32 %v10504, %v10854
      %v10869 = vmul.f32 %v10509, %v10854
      %v10870 = vmul.f32 %v10512, %v10854
      %v10871 = vmul.f32 %v10517, %v10854
      %v10872 = vmul.f32 %v10520, %v10854
      %v10873 = vmul.f32 %v10525, %v10854
      %v10874 = vmul.f32 %v10528, %v10854
      %v10875 = vmul.f32 %v10533, %v10854
      %v10876 = vmul.f32 %v10536, %v10854
      %v10877 = vmul.f32 %v10541, %v10854
      %v10878 = vmul.f32 %v10544, %v10854
      %v10879 = vmul.f32 %v10549, %v10854
      %v10880 = vmul.f32 %v10552, %v10854
      %v10881 = vmul.f32 %v10557, %v10854
      %v10882 = vmul.f32 %v10560, %v10854
      %v10883 = vmul.f32 %v10565, %v10854
      %v10884 = vmul.f32 %v10568, %v10854
      %v10885 = vmul.f32 %v10573, %v10854
      %v10886 = vmul.f32 %v10576, %v10854
      %v10888 = vlaneseq
      %v10889 = vshrl.u32 %v10888, 7
      %v10890 = vsub.s32 0, %v10889
      %v10891 = vrot.slane %v10850, %v10890
      %v10893 = vadd.f32 %v10855, %v10891
      %v10894 = vadd.f32 %v10856, %v10891
      %v10895 = vadd.f32 %v10857, %v10891
      %v10896 = vadd.f32 %v10858, %v10891
      %v10897 = vadd.f32 %v10859, %v10891
      %v10898 = vadd.f32 %v10860, %v10891
      %v10899 = vadd.f32 %v10861, %v10891
      %v10900 = vadd.f32 %v10862, %v10891
      %v10901 = vadd.f32 %v10863, %v10891
      %v10902 = vadd.f32 %v10864, %v10891
      %v10903 = vadd.f32 %v10865, %v10891
      %v10904 = vadd.f32 %v10866, %v10891
      %v10905 = vadd.f32 %v10867, %v10891
      %v10906 = vadd.f32 %v10868, %v10891
      %v10907 = vadd.f32 %v10869, %v10891
      %v10908 = vadd.f32 %v10870, %v10891
      %v10909 = vadd.f32 %v10871, %v10891
      %v10910 = vadd.f32 %v10872, %v10891
      %v10911 = vadd.f32 %v10873, %v10891
      %v10912 = vadd.f32 %v10874, %v10891
      %v10913 = vadd.f32 %v10875, %v10891
      %v10914 = vadd.f32 %v10876, %v10891
      %v10915 = vadd.f32 %v10877, %v10891
      %v10916 = vadd.f32 %v10878, %v10891
      %v10917 = vadd.f32 %v10879, %v10891
      %v10918 = vadd.f32 %v10880, %v10891
      %v10919 = vadd.f32 %v10881, %v10891
      %v10920 = vadd.f32 %v10882, %v10891
      %v10921 = vadd.f32 %v10883, %v10891
      %v10922 = vadd.f32 %v10884, %v10891
      %v10923 = vadd.f32 %v10885, %v10891
      %v10924 = vadd.f32 %v10886, %v10891
      %v10925 = vld [vmem:[%s354] sm:$0xf]
      %v10926 = vld [vmem:[%s354 + $0x4] sm:$0xf]
      %v10927 = vld [vmem:[%s354 + $0x8] sm:$0xf]
      %v10928 = vld [vmem:[%s354 + $0xc] sm:$0xf]
      %v10929 = vld [vmem:[%s354 + $0x10] sm:$0xf]
      %v10930 = vld [vmem:[%s354 + $0x14] sm:$0xf]
      %v10931 = vld [vmem:[%s354 + $0x18] sm:$0xf]
      %v10932 = vld [vmem:[%s354 + $0x1c] sm:$0xf]
      %v10933 = vld [vmem:[%s354 + $0x20] sm:$0xf]
      %v10934 = vld [vmem:[%s354 + $0x24] sm:$0xf]
      %v10935 = vld [vmem:[%s354 + $0x28] sm:$0xf]
      %v10936 = vld [vmem:[%s354 + $0x2c] sm:$0xf]
      %v10937 = vld [vmem:[%s354 + $0x30] sm:$0xf]
      %v10938 = vld [vmem:[%s354 + $0x34] sm:$0xf]
      %v10939 = vld [vmem:[%s354 + $0x38] sm:$0xf]
      %v10940 = vld [vmem:[%s354 + $0x3c] sm:$0xf]
      %v10941 = vld [vmem:[%s354 + $0x40] sm:$0xf]
      %v10942 = vld [vmem:[%s354 + $0x44] sm:$0xf]
      %v10943 = vld [vmem:[%s354 + $0x48] sm:$0xf]
      %v10944 = vld [vmem:[%s354 + $0x4c] sm:$0xf]
      %v10945 = vld [vmem:[%s354 + $0x50] sm:$0xf]
      %v10946 = vld [vmem:[%s354 + $0x54] sm:$0xf]
      %v10947 = vld [vmem:[%s354 + $0x58] sm:$0xf]
      %v10948 = vld [vmem:[%s354 + $0x5c] sm:$0xf]
      %v10949 = vld [vmem:[%s354 + $0x60] sm:$0xf]
      %v10950 = vld [vmem:[%s354 + $0x64] sm:$0xf]
      %v10951 = vld [vmem:[%s354 + $0x68] sm:$0xf]
      %v10952 = vld [vmem:[%s354 + $0x6c] sm:$0xf]
      %v10953 = vld [vmem:[%s354 + $0x70] sm:$0xf]
      %v10954 = vld [vmem:[%s354 + $0x74] sm:$0xf]
      %v10955 = vld [vmem:[%s354 + $0x78] sm:$0xf]
      %v10956 = vld [vmem:[%s354 + $0x7c] sm:$0xf]
      %v10957 = vunpack.c.l.bf16 %v10925
      %v10958 = vunpack.c.l.bf16 %v10926
      %v10959 = vunpack.c.l.bf16 %v10927
      %v10960 = vunpack.c.l.bf16 %v10928
      %v10961 = vunpack.c.l.bf16 %v10929
      %v10962 = vunpack.c.l.bf16 %v10930
      %v10963 = vunpack.c.l.bf16 %v10931
      %v10964 = vunpack.c.l.bf16 %v10932
      %v10965 = vunpack.c.l.bf16 %v10933
      %v10966 = vunpack.c.l.bf16 %v10934
      %v10967 = vunpack.c.l.bf16 %v10935
      %v10968 = vunpack.c.l.bf16 %v10936
      %v10969 = vunpack.c.l.bf16 %v10937
      %v10970 = vunpack.c.l.bf16 %v10938
      %v10971 = vunpack.c.l.bf16 %v10939
      %v10972 = vunpack.c.l.bf16 %v10940
      %v10973 = vunpack.c.l.bf16 %v10941
      %v10974 = vunpack.c.l.bf16 %v10942
      %v10975 = vunpack.c.l.bf16 %v10943
      %v10976 = vunpack.c.l.bf16 %v10944
      %v10977 = vunpack.c.l.bf16 %v10945
      %v10978 = vunpack.c.l.bf16 %v10946
      %v10979 = vunpack.c.l.bf16 %v10947
      %v10980 = vunpack.c.l.bf16 %v10948
      %v10981 = vunpack.c.l.bf16 %v10949
      %v10982 = vunpack.c.l.bf16 %v10950
      %v10983 = vunpack.c.l.bf16 %v10951
      %v10984 = vunpack.c.l.bf16 %v10952
      %v10985 = vunpack.c.l.bf16 %v10953
      %v10986 = vunpack.c.l.bf16 %v10954
      %v10987 = vunpack.c.l.bf16 %v10955
      %v10988 = vunpack.c.l.bf16 %v10956
      %v10989 = vadd.f32 %v10893, %v10957
      %v10990 = vadd.f32 %v10894, %v10958
      %v10991 = vadd.f32 %v10895, %v10959
      %v10992 = vadd.f32 %v10896, %v10960
      %v10993 = vadd.f32 %v10897, %v10961
      %v10994 = vadd.f32 %v10898, %v10962
      %v10995 = vadd.f32 %v10899, %v10963
      %v10996 = vadd.f32 %v10900, %v10964
      %v10997 = vadd.f32 %v10901, %v10965
      %v10998 = vadd.f32 %v10902, %v10966
      %v10999 = vadd.f32 %v10903, %v10967
      %v11000 = vadd.f32 %v10904, %v10968
      %v11001 = vadd.f32 %v10905, %v10969
      %v11002 = vadd.f32 %v10906, %v10970
      %v11003 = vadd.f32 %v10907, %v10971
      %v11004 = vadd.f32 %v10908, %v10972
      %v11005 = vadd.f32 %v10909, %v10973
      %v11006 = vadd.f32 %v10910, %v10974
      %v11007 = vadd.f32 %v10911, %v10975
      %v11008 = vadd.f32 %v10912, %v10976
      %v11009 = vadd.f32 %v10913, %v10977
      %v11010 = vadd.f32 %v10914, %v10978
      %v11011 = vadd.f32 %v10915, %v10979
      %v11012 = vadd.f32 %v10916, %v10980
      %v11013 = vadd.f32 %v10917, %v10981
      %v11014 = vadd.f32 %v10918, %v10982
      %v11015 = vadd.f32 %v10919, %v10983
      %v11016 = vadd.f32 %v10920, %v10984
      %v11017 = vadd.f32 %v10921, %v10985
      %v11018 = vadd.f32 %v10922, %v10986
      %v11019 = vadd.f32 %v10923, %v10987
      %v11020 = vadd.f32 %v10924, %v10988
      %v11021 = vmax.f32 %v10989, 0.0
      %v11022 = vmax.f32 %v10990, 0.0
      %v11023 = vmax.f32 %v10991, 0.0
      %v11024 = vmax.f32 %v10992, 0.0
      %v11025 = vmax.f32 %v10993, 0.0
      %v11026 = vmax.f32 %v10994, 0.0
      %v11027 = vmax.f32 %v10995, 0.0
      %v11028 = vmax.f32 %v10996, 0.0
      %v11029 = vmax.f32 %v10997, 0.0
      %v11030 = vmax.f32 %v10998, 0.0
      %v11031 = vmax.f32 %v10999, 0.0
      %v11032 = vmax.f32 %v11000, 0.0
      %v11033 = vmax.f32 %v11001, 0.0
      %v11034 = vmax.f32 %v11002, 0.0
      %v11035 = vmax.f32 %v11003, 0.0
      %v11036 = vmax.f32 %v11004, 0.0
      %v11037 = vmax.f32 %v11005, 0.0
      %v11038 = vmax.f32 %v11006, 0.0
      %v11039 = vmax.f32 %v11007, 0.0
      %v11040 = vmax.f32 %v11008, 0.0
      %v11041 = vmax.f32 %v11009, 0.0
      %v11042 = vmax.f32 %v11010, 0.0
      %v11043 = vmax.f32 %v11011, 0.0
      %v11044 = vmax.f32 %v11012, 0.0
      %v11045 = vmax.f32 %v11013, 0.0
      %v11046 = vmax.f32 %v11014, 0.0
      %v11047 = vmax.f32 %v11015, 0.0
      %v11048 = vmax.f32 %v11016, 0.0
      %v11049 = vmax.f32 %v11017, 0.0
      %v11050 = vmax.f32 %v11018, 0.0
      %v11051 = vmax.f32 %v11019, 0.0
      %v11052 = vmax.f32 %v11020, 0.0
      %11053 = vst [vmem:[%s359] sm:$0xff] %v11021
      %11054 = vst [vmem:[%s359 + $0x8] sm:$0xff] %v11022
      %11055 = vst [vmem:[%s359 + $0x10] sm:$0xff] %v11023
      %11056 = vst [vmem:[%s359 + $0x18] sm:$0xff] %v11024
      %11057 = vst [vmem:[%s359 + $0x20] sm:$0xff] %v11025
      %11058 = vst [vmem:[%s359 + $0x28] sm:$0xff] %v11026
      %11059 = vst [vmem:[%s359 + $0x30] sm:$0xff] %v11027
      %11060 = vst [vmem:[%s359 + $0x38] sm:$0xff] %v11028
      %11061 = vst [vmem:[%s359 + $0x40] sm:$0xff] %v11029
      %11062 = vst [vmem:[%s359 + $0x48] sm:$0xff] %v11030
      %11063 = vst [vmem:[%s359 + $0x50] sm:$0xff] %v11031
      %11064 = vst [vmem:[%s359 + $0x58] sm:$0xff] %v11032
      %11065 = vst [vmem:[%s359 + $0x60] sm:$0xff] %v11033
      %11066 = vst [vmem:[%s359 + $0x68] sm:$0xff] %v11034
      %11067 = vst [vmem:[%s359 + $0x70] sm:$0xff] %v11035
      %11068 = vst [vmem:[%s359 + $0x78] sm:$0xff] %v11036
      %11069 = vst [vmem:[%s359 + $0x80] sm:$0xff] %v11037
      %11070 = vst [vmem:[%s359 + $0x88] sm:$0xff] %v11038
      %11071 = vst [vmem:[%s359 + $0x90] sm:$0xff] %v11039
      %11072 = vst [vmem:[%s359 + $0x98] sm:$0xff] %v11040
      %11073 = vst [vmem:[%s359 + $0xa0] sm:$0xff] %v11041
      %11074 = vst [vmem:[%s359 + $0xa8] sm:$0xff] %v11042
      %11075 = vst [vmem:[%s359 + $0xb0] sm:$0xff] %v11043
      %11076 = vst [vmem:[%s359 + $0xb8] sm:$0xff] %v11044
      %11077 = vst [vmem:[%s359 + $0xc0] sm:$0xff] %v11045
      %11078 = vst [vmem:[%s359 + $0xc8] sm:$0xff] %v11046
      %11079 = vst [vmem:[%s359 + $0xd0] sm:$0xff] %v11047
      %11080 = vst [vmem:[%s359 + $0xd8] sm:$0xff] %v11048
      %11081 = vst [vmem:[%s359 + $0xe0] sm:$0xff] %v11049
      %11082 = vst [vmem:[%s359 + $0xe8] sm:$0xff] %v11050
      %11083 = vst [vmem:[%s359 + $0xf0] sm:$0xff] %v11051
      %11084 = vst [vmem:[%s359 + $0xf8] sm:$0xff] %v11052
      %p11085 = scmp.lt.s32.totalorder %s21, 1
      %s11086 = scalar_select %p11085, %s21, 1
      %s11087 = smul.addr %s11086, 32
      %s11088 = smul.addr %s11087, 8
      %s11089 = scalar_lea.vmem %s10, %s11088
      // Predicated region
      $region61: #{basic_block_gn.1} parent=59 // pred_check
        %p11090 = pneg %p254
      $region62: #{basic_block_gn.1} parent=59 // pred_check_branch
        %11092 = sbr.rel (%p11090) target = $region64
      $region63: #{basic_block_gn.1} parent=59 // pred_region
        _
      $region64: #{basic_block_gn.1} parent=59 // pred_fallthru
        _
    $region60: #{basic_block_gn.1} parent=5 // pred_fallthru
      _
    %p11093 = scmp.le.s32.totalorder 2, %s16
    // Predicated region
    $region65: #{basic_block_gn.1} parent=5 // pred_check
      %p11094 = pneg %p11093
    $region66: #{basic_block_gn.1} parent=5 // pred_check_branch
      %11096 = sbr.rel (%p11094) target = $region68
    $region67: #{basic_block_gn.1} parent=5 // pred_region
      %s11097 = ssub.s32 %s16, 2
      // Predicated region
      $region69: #{basic_block_gn.1} parent=67 // pred_check
        %p11098 = pneg %p260
      $region70: #{basic_block_gn.1} parent=67 // pred_check_branch
        %11100 = sbr.rel (%p11098) target = $region72
      $region71: #{basic_block_gn.1} parent=67 // pred_region
        %p11101 = scmp.lt.s32.totalorder %s22, 1
        %s11102 = scalar_select %p11101, %s22, 1
        %s11103 = smul.addr %s11102, 32
        %s11104 = smul.addr %s11103, 8
        %s11105 = scalar_lea.vmem %s10, %s11104
      $region72: #{basic_block_gn.1} parent=67 // pred_fallthru
        _
    $region68: #{basic_block_gn.1} parent=5 // pred_fallthru
      _
  $region6: #{basic_block_gn.1} parent=0 // loop_footer
    %s20 = sadd.s32 1, %s16
  $region7: #{basic_block_gn.1} parent=0 // loop_footer_branch
    %15 = sbr.rel target = $region3
  $region8: #{basic_block_gn.1} parent=0 // loop_exit
    _

</llo_original>
